<compile_context>
chip_gen: v6e
topology: v6e:2x2x1
jax: 0.10.0
libtpu: 0.0.40
codegen_flags: <defaults>
</compile_context>

<pallas_src>
import functools
import math

import jax
import jax.numpy as jnp
from jax.experimental import pallas as pl
from jax.experimental.pallas import tpu as pltpu


# ------------------------------ in-kernel helpers ------------------------------

def _layernorm(x, g, b, eps=1e-5):
    mean = jnp.mean(x, axis=-1, keepdims=True)
    var = jnp.mean(jnp.square(x - mean), axis=-1, keepdims=True)
    return (x - mean) * jax.lax.rsqrt(var + eps) * g + b


def _activation(h, kind):
    if kind == "relu":
        return jnp.maximum(h, 0.0)
    # PyTorch nn.Transformer "gelu" is the exact (erf) form.
    return jax.nn.gelu(h, approximate=False)


def _concat_rows(parts):
    return parts[0] if len(parts) == 1 else jnp.concatenate(parts, axis=0)


def _self_attention(x2d, w_qkv, b_qkv, wo, bo, nhead, bs, L, E):
    """nn.MultiheadAttention self-attention over bs independent length-L segments.

    x2d: (bs*L, E); w_qkv: (E, 3E) (= in_proj_weight.T, 1/sqrt(dh) baked into Q);
    wo: (E, E) (= out_proj.weight.T).  No masks, dropout == identity.
    """
    dh = E // nhead
    qkv = jnp.dot(x2d, w_qkv, preferred_element_type=jnp.float32) + b_qkv   # (bs*L, 3E)
    outs = []
    for b in range(bs):
        blk = qkv[b * L:(b + 1) * L, :]                                     # (L, 3E)
        acc = None
        for h in range(nhead):
            q = blk[:, h * dh:(h + 1) * dh]                                 # (L, dh)
            k = blk[:, E + h * dh:E + (h + 1) * dh]                         # (L, dh)
            v = blk[:, 2 * E + h * dh:2 * E + (h + 1) * dh]                 # (L, dh)
            s = jax.lax.dot_general(q, k, (((1,), (1,)), ((), ())),
                                    preferred_element_type=jnp.float32)     # (L, L)
            s = s - jnp.max(s, axis=-1, keepdims=True)
            p = jnp.exp(s)
            p = p / jnp.sum(p, axis=-1, keepdims=True)
            o_h = jnp.dot(p, v, preferred_element_type=jnp.float32)         # (L, dh)
            # head-concat + out_proj folded into a per-head accumulation
            proj = jnp.dot(o_h, wo[h * dh:(h + 1) * dh, :],
                           preferred_element_type=jnp.float32)              # (L, E)
            acc = proj if acc is None else acc + proj
        outs.append(acc)
    return _concat_rows(outs) + bo


def _encoder_layer(x, i, get, nhead, activation, bs, L, E):
    # nn.TransformerEncoderLayer, norm_first=False (post-norm), dropout=identity
    p = f"enc{i}_"
    sa = _self_attention(x, get(p + "w_qkv"), get(p + "b_qkv"),
                         get(p + "wo"), get(p + "bo"), nhead, bs, L, E)
    x = _layernorm(x + sa, get(p + "ln1_g"), get(p + "ln1_b"))
    h = _activation(
        jnp.dot(x, get(p + "w1"), preferred_element_type=jnp.float32) + get(p + "b1"),
        activation)
    ff = jnp.dot(h, get(p + "w2"), preferred_element_type=jnp.float32) + get(p + "b2")
    return _layernorm(x + ff, get(p + "ln2_g"), get(p + "ln2_b"))


def _decoder_layer(x, mem, i, get, nhead, activation, bs, L, E):
    # nn.TransformerDecoderLayer, norm_first=False (post-norm), dropout=identity
    p = f"dec{i}_"
    dh = E // nhead

    # Self-attention with tgt length == 1: softmax over a single key is 1, so
    # the per-head attention output is exactly V -> out_proj(V).  (Always true
    # for this module: tgt = src[-1:], no masks, eval-mode dropout.)
    v = jnp.dot(x, get(p + "sa_wv"), preferred_element_type=jnp.float32) + get(p + "sa_bv")
    sa = jnp.dot(v, get(p + "sa_wo"), preferred_element_type=jnp.float32) + get(p + "sa_bo")
    x = _layernorm(x + sa, get(p + "ln1_g"), get(p + "ln1_b"))

    # Cross-attention: one query row per batch element over its own memory.
    q_all = (jnp.dot(x, get(p + "ca_wq"), preferred_element_type=jnp.float32)
             + get(p + "ca_bq"))                                            # (bs, E)
    kv_all = (jnp.dot(mem, get(p + "ca_wkv"), preferred_element_type=jnp.float32)
              + get(p + "ca_bkv"))                                          # (bs*L, 2E)
    wo = get(p + "ca_wo")
    rows = []
    for b in range(bs):
        kv_b = kv_all[b * L:(b + 1) * L, :]                                 # (L, 2E)
        acc = None
        for h in range(nhead):
            q_h = q_all[b:b + 1, h * dh:(h + 1) * dh]                       # (1, dh)
            k_h = kv_b[:, h * dh:(h + 1) * dh]                              # (L, dh)
            v_h = kv_b[:, E + h * dh:E + (h + 1) * dh]                      # (L, dh)
            s = jax.lax.dot_general(q_h, k_h, (((1,), (1,)), ((), ())),
                                    preferred_element_type=jnp.float32)     # (1, L)
            s = s - jnp.max(s, axis=-1, keepdims=True)
            pr = jnp.exp(s)
            pr = pr / jnp.sum(pr, axis=-1, keepdims=True)
            o_h = jnp.dot(pr, v_h, preferred_element_type=jnp.float32)      # (1, dh)
            proj = jnp.dot(o_h, wo[h * dh:(h + 1) * dh, :],
                           preferred_element_type=jnp.float32)              # (1, E)
            acc = proj if acc is None else acc + proj
        rows.append(acc)
    ca = _concat_rows(rows) + get(p + "ca_bo")
    x = _layernorm(x + ca, get(p + "ln2_g"), get(p + "ln2_b"))

    h = _activation(
        jnp.dot(x, get(p + "w1"), preferred_element_type=jnp.float32) + get(p + "b1"),
        activation)
    ff = jnp.dot(h, get(p + "w2"), preferred_element_type=jnp.float32) + get(p + "b2")
    return _layernorm(x + ff, get(p + "ln3_g"), get(p + "ln3_b"))


# --------------------------------- fused kernel ---------------------------------

def _fused_forward_kernel(src_ref, s_qkv, s_kv, s_f, s_e, s_o, o_ref, *,
                          layout, bs, L, E, nhead, activation, num_enc, num_dec):
    slab_refs = {"qkv": s_qkv, "kv": s_kv, "f": s_f, "e": s_e, "o": s_o}

    def get(name):                       # static, sublane-aligned slab slice
        slab, off, nrows = layout[name]
        return slab_refs[slab][pl.ds(off, nrows), :]

    emb_w = get("emb_w")                 # (Cin, E) -- * sqrt(input_size) baked in
    emb_b = get("emb_b")                 # (1, E)
    pe = get("pe")                       # (L, E)

    # Input embedding for all bs*L rows at once (batch folded into sublanes).
    x2d = _concat_rows([src_ref[b] for b in range(bs)])                     # (bs*L, Cin)
    emb = jnp.dot(x2d, emb_w, preferred_element_type=jnp.float32) + emb_b   # (bs*L, E)

    # src = emb + positional encoding ; tgt = last-time-step embedding + pe[0]
    src = emb + _concat_rows([pe] * bs)
    tgt = (_concat_rows([emb[b * L + L - 1:b * L + L, :] for b in range(bs)])
           + pe[0:1, :])                                                    # (bs, E)

    # encoder stack + final LayerNorm (nn.Transformer default encoder norm)
    mem = src
    for i in range(num_enc):
        mem = _encoder_layer(mem, i, get, nhead, activation, bs, L, E)
    mem = _layernorm(mem, get("enc_norm_g"), get("enc_norm_b"))

    # decoder stack + final LayerNorm
    y = tgt
    for i in range(num_dec):
        y = _decoder_layer(y, mem, i, get, nhead, activation, bs, L, E)
    y = _layernorm(y, get("dec_norm_g"), get("dec_norm_b"))

    # output projection: one lane-contiguous (bs, n_out) store per grid step
    o_ref[0] = (jnp.dot(y, get("out_w"), preferred_element_type=jnp.float32)
                + get("out_b"))


# ------------------------------ parameter building ------------------------------

def make_positional_encoding(max_len, d_model):
    position = jnp.arange(max_len, dtype=jnp.float32)[:, None]
    div_term = jnp.exp(jnp.arange(0, d_model, 2, dtype=jnp.float32)
                       * (-math.log(10000.0) / d_model))
    pe = jnp.zeros((max_len, d_model), jnp.float32)
    pe = pe.at[:, 0::2].set(jnp.sin(position * div_term))
    pe = pe.at[:, 1::2].set(jnp.cos(position * div_term))
    return pe


def _pack_slab(entries, ncols):
    """Concatenate (name, (rows, ncols)) entries into one slab.  Each entry is
    padded to a multiple of 8 rows so every in-kernel slice is sublane-aligned.
    Returns (slab, {name: (row_offset, rows)})."""
    if not entries:
        entries = [("_pad", jnp.zeros((8, ncols), jnp.float32))]
    chunks, offsets, row = [], {}, 0
    for name, arr in entries:
        arr = jnp.asarray(arr, jnp.float32)
        offsets[name] = (row, arr.shape[0])
        pad = (-arr.shape[0]) % 8
        if pad:
            arr = jnp.concatenate([arr, jnp.zeros((pad, ncols), jnp.float32)], 0)
        chunks.append(arr)
        row += arr.shape[0]
    return jnp.concatenate(chunks, axis=0), offsets


def init_params(key, cfg):
    """Weights pre-transposed to matmul (K, N) layout, packed into 5 slabs.

    Scale factors are baked in at init: the input embedding carries
    sqrt(input_size), every Q projection carries 1/sqrt(head_dim).  Decoder
    self-attention keeps only V / out-proj (tgt length is always 1) and the
    cross-attention in-proj is pre-split into Wq / Wkv (no in-kernel lane
    slicing of the fused 3E weight)."""
    E = cfg["d_model"]
    F = cfg["dim_feedforward"]
    Cin = cfg["input_size"]
    L = cfg["input_chunk_length"]
    NE = cfg["num_encoder_layers"]
    ND = cfg["num_decoder_layers"]
    dh = E // cfg["nhead"]
    n_out = cfg["output_chunk_length"] * cfg["output_size"]

    keys = iter(jax.random.split(key, 8 + 8 * NE + 14 * ND))

    def nrm(shape, s=0.05):
        return jax.random.normal(next(keys), shape, jnp.float32) * s

    ones = lambda shape: jnp.ones(shape, jnp.float32)
    zeros = lambda shape: jnp.zeros(shape, jnp.float32)

    scale_in = math.sqrt(Cin)
    q_scale = 1.0 / math.sqrt(dh)

    qkv_e, kv_e, f_e, e_e, o_e = [], [], [], [], []

    # input embedding (nn.Linear(input_size, d_model)) with * sqrt(input_size) baked in
    e_e += [("emb_w", nrm((Cin, E)) * scale_in),
            ("emb_b", nrm((1, E)) * scale_in),
            ("pe", make_positional_encoding(L, E))]

    for i in range(NE):
        p = f"enc{i}_"
        w_qkv = nrm((E, 3 * E))                      # = in_proj_weight.T
        b_qkv = nrm((1, 3 * E))
        w_qkv = w_qkv.at[:, :E].multiply(q_scale)    # bake 1/sqrt(dh) into Q
        b_qkv = b_qkv.at[:, :E].multiply(q_scale)
        qkv_e += [(p + "w_qkv", w_qkv), (p + "b_qkv", b_qkv)]
        e_e += [(p + "wo", nrm((E, E))), (p + "bo", nrm((1, E))),
                (p + "w2", nrm((F, E))), (p + "b2", nrm((1, E))),
                (p + "ln1_g", ones((1, E))), (p + "ln1_b", zeros((1, E))),
                (p + "ln2_g", ones((1, E))), (p + "ln2_b", zeros((1, E)))]
        f_e += [(p + "w1", nrm((E, F))), (p + "b1", nrm((1, F)))]

    for i in range(ND):
        p = f"dec{i}_"
        e_e += [(p + "sa_wv", nrm((E, E))), (p + "sa_bv", nrm((1, E))),
                (p + "sa_wo", nrm((E, E))), (p + "sa_bo", nrm((1, E))),
                (p + "ca_wq", nrm((E, E)) * q_scale), (p + "ca_bq", nrm((1, E)) * q_scale),
                (p + "ca_wo", nrm((E, E))), (p + "ca_bo", nrm((1, E))),
                (p + "w2", nrm((F, E))), (p + "b2", nrm((1, E))),
                (p + "ln1_g", ones((1, E))), (p + "ln1_b", zeros((1, E))),
                (p + "ln2_g", ones((1, E))), (p + "ln2_b", zeros((1, E))),
                (p + "ln3_g", ones((1, E))), (p + "ln3_b", zeros((1, E)))]
        kv_e += [(p + "ca_wkv", nrm((E, 2 * E))), (p + "ca_bkv", nrm((1, 2 * E)))]
        f_e += [(p + "w1", nrm((E, F))), (p + "b1", nrm((1, F)))]

    e_e += [("enc_norm_g", ones((1, E))), ("enc_norm_b", zeros((1, E))),
            ("dec_norm_g", ones((1, E))), ("dec_norm_b", zeros((1, E)))]
    o_e += [("out_w", nrm((E, n_out))), ("out_b", nrm((1, n_out)))]

    slabs, layout = {}, {}
    for slab_key, entries, ncols in [("qkv", qkv_e, 3 * E), ("kv", kv_e, 2 * E),
                                     ("f", f_e, F), ("e", e_e, E), ("o", o_e, n_out)]:
        slab, offs = _pack_slab(entries, ncols)
        slabs[slab_key] = slab
        for name, (off, nrows) in offs.items():
            layout[name] = (slab_key, off, nrows)
    return slabs, layout


# ---------------------------------- forward ----------------------------------

def _default_batch_block(batch):
    """bs = B (single fused step) on 1-TensorCore chips (v5e / v6e);
    bs = B // 2 on chips with two TensorCores per device (v7x, v4/v5p megacore)
    so the 'parallel' batch axis can shard across cores."""
    try:
        kind = jax.devices()[0].device_kind.lower()
    except Exception:
        kind = ""
    multi_tc = any(t in kind for t in ("v7", "7x", "v4", "v5p"))
    if multi_tc and batch >= 2 and batch % 2 == 0:
        return batch // 2
    return batch


def transformer_forward(data, slabs, *, cfg, layout, batch_block=None):
    # data: (batch, input_chunk_length, input_size)
    B, L, Cin = data.shape
    E = cfg["d_model"]
    n_out = cfg["output_chunk_length"] * cfg["output_size"]

    bs = batch_block if batch_block is not None else _default_batch_block(B)
    if bs <= 0 or B % bs != 0:
        bs = B                                      # fall back to one fused step
    n_steps = B // bs

    kernel = functools.partial(
        _fused_forward_kernel,
        layout=layout, bs=bs, L=L, E=E,
        nhead=cfg["nhead"], activation=cfg["activation"],
        num_enc=cfg["num_encoder_layers"], num_dec=cfg["num_decoder_layers"])

    slab_args = [slabs[k] for k in ("qkv", "kv", "f", "e", "o")]
    in_specs = [pl.BlockSpec((bs, L, Cin), lambda g: (g, 0, 0))]
    # Weight slabs: constant index_map -> fetched once, VMEM-resident across all
    # grid steps.  (<1 MiB total, so no single-buffering / retiling is needed.)
    in_specs += [pl.BlockSpec(s.shape, lambda g: (0, 0)) for s in slab_args]

    y = pl.pallas_call(
        kernel,
        grid=(n_steps,),
        in_specs=in_specs,
        out_specs=pl.BlockSpec((1, bs, n_out), lambda g: (g, 0, 0)),
        out_shape=jax.ShapeDtypeStruct((n_steps, bs, n_out), jnp.float32),
        compiler_params=pltpu.CompilerParams(
            dimension_semantics=("parallel",)),
    )(data, *slab_args)

    return y.reshape(B, cfg["output_chunk_length"], cfg["output_size"])


# ------------------------------------ main ------------------------------------

if __name__ == "__main__":
    cfg = dict(
        input_chunk_length=8,
        output_chunk_length=4,
        input_size=4,
        output_size=3,
        d_model=32,
        nhead=4,
        num_encoder_layers=2,
        num_decoder_layers=2,
        dim_feedforward=64,
        dropout=0.0,
        activation="relu",
    )
    key = jax.random.PRNGKey(0)
    pkey, dkey = jax.random.split(key)
    slabs, layout = init_params(pkey, cfg)
    data = jax.random.normal(
        dkey, (2, cfg["input_chunk_length"], cfg["input_size"]), jnp.float32)

    fwd = jax.jit(functools.partial(transformer_forward, cfg=cfg, layout=layout))
    out = jax.block_until_ready(fwd(data, slabs))

    assert out.shape == (2, cfg["output_chunk_length"], cfg["output_size"]), out.shape
    assert bool(jnp.all(jnp.isfinite(out)))
    print("KERNEL_OK")
</pallas_src>

<mosaic_0001>
module attributes {stable_mosaic.version = 11 : i64} {
  func.func @_fused_forward_kernel(%arg0: i32, %arg1: memref<2x8x4xf32, #tpu.memory_space<vmem>>, %arg2: memref<80x96xf32, #tpu.memory_space<vmem>>, %arg3: memref<80x64xf32, #tpu.memory_space<vmem>>, %arg4: memref<160x64xf32, #tpu.memory_space<vmem>>, %arg5: memref<904x32xf32, #tpu.memory_space<vmem>>, %arg6: memref<40x12xf32, #tpu.memory_space<vmem>>, %arg7: memref<1x2x12xf32, #tpu.memory_space<vmem>>) attributes {dimension_semantics = [#tpu.dimension_semantics<parallel>], iteration_bounds = array<i64: 1>, scalar_prefetch = 0 : i64, scratch_operands = 0 : i64, tpu.core_type = #tpu.core_type<tc>, window_params = [{transform_indices = @transform_0, window_bounds = array<i64: 2, 8, 4>}, {pipeline_mode = #tpu.pipeline_mode<synchronous>, transform_indices = @transform_1, window_bounds = array<i64: 80, 96>}, {pipeline_mode = #tpu.pipeline_mode<synchronous>, transform_indices = @transform_2, window_bounds = array<i64: 80, 64>}, {pipeline_mode = #tpu.pipeline_mode<synchronous>, transform_indices = @transform_3, window_bounds = array<i64: 160, 64>}, {pipeline_mode = #tpu.pipeline_mode<synchronous>, transform_indices = @transform_4, window_bounds = array<i64: 904, 32>}, {pipeline_mode = #tpu.pipeline_mode<synchronous>, transform_indices = @transform_5, window_bounds = array<i64: 40, 12>}, {transform_indices = @transform_6, window_bounds = array<i64: 1, 2, 12>}]} {
    %c0 = arith.constant 0 : index
    %c0_0 = arith.constant 0 : index
    %0 = vector.load %arg5[%c0, %c0_0] : memref<904x32xf32, #tpu.memory_space<vmem>>, vector<4x32xf32>
    %c8 = arith.constant 8 : index
    %c0_1 = arith.constant 0 : index
    %1 = vector.load %arg5[%c8, %c0_1] : memref<904x32xf32, #tpu.memory_space<vmem>>, vector<1x32xf32>
    %c16 = arith.constant 16 : index
    %c0_2 = arith.constant 0 : index
    %2 = vector.load %arg5[%c16, %c0_2] : memref<904x32xf32, #tpu.memory_space<vmem>>, vector<8x32xf32>
    %c0_3 = arith.constant 0 : index
    %c0_4 = arith.constant 0 : index
    %c0_5 = arith.constant 0 : index
    %3 = vector.load %arg1[%c0_3, %c0_4, %c0_5] : memref<2x8x4xf32, #tpu.memory_space<vmem>>, vector<1x8x4xf32>
    %4 = vector.shape_cast %3 : vector<1x8x4xf32> to vector<8x4xf32>
    %c1 = arith.constant 1 : index
    %c0_6 = arith.constant 0 : index
    %c0_7 = arith.constant 0 : index
    %5 = vector.load %arg1[%c1, %c0_6, %c0_7] : memref<2x8x4xf32, #tpu.memory_space<vmem>>, vector<1x8x4xf32>
    %6 = vector.shape_cast %5 : vector<1x8x4xf32> to vector<8x4xf32>
    %7 = tpu.concatenate %4, %6 in 0 : vector<8x4xf32>, vector<8x4xf32> -> vector<16x4xf32>
    %cst = arith.constant dense<0.000000e+00> : vector<16x32xf32>
    %8 = tpu.matmul %7, %0, %cst {dimension_numbers = #tpu.dot_dimension_numbers<[1], [0], [0], [1], [0, 0, 1, 1], [], []>} : vector<16x4xf32>, vector<4x32xf32>, vector<16x32xf32> -> vector<16x32xf32>
    %9 = vector.broadcast %1 : vector<1x32xf32> to vector<16x32xf32>
    %10 = arith.addf %8, %9 : vector<16x32xf32>
    %11 = tpu.concatenate %2, %2 in 0 : vector<8x32xf32>, vector<8x32xf32> -> vector<16x32xf32>
    %12 = arith.addf %10, %11 : vector<16x32xf32>
    %13 = vector.extract_strided_slice %10 {offsets = [7, 0], sizes = [1, 32], strides = [1, 1]} : vector<16x32xf32> to vector<1x32xf32>
    %14 = vector.extract_strided_slice %10 {offsets = [15, 0], sizes = [1, 32], strides = [1, 1]} : vector<16x32xf32> to vector<1x32xf32>
    %15 = tpu.concatenate %13, %14 in 0 : vector<1x32xf32>, vector<1x32xf32> -> vector<2x32xf32>
    %16 = vector.extract_strided_slice %2 {offsets = [0, 0], sizes = [1, 32], strides = [1, 1]} : vector<8x32xf32> to vector<1x32xf32>
    %17 = vector.broadcast %16 : vector<1x32xf32> to vector<2x32xf32>
    %18 = arith.addf %15, %17 : vector<2x32xf32>
    %c0_8 = arith.constant 0 : index
    %c0_9 = arith.constant 0 : index
    %19 = vector.load %arg2[%c0_8, %c0_9] : memref<80x96xf32, #tpu.memory_space<vmem>>, vector<32x96xf32>
    %c32 = arith.constant 32 : index
    %c0_10 = arith.constant 0 : index
    %20 = vector.load %arg2[%c32, %c0_10] : memref<80x96xf32, #tpu.memory_space<vmem>>, vector<1x96xf32>
    %c24 = arith.constant 24 : index
    %c0_11 = arith.constant 0 : index
    %21 = vector.load %arg5[%c24, %c0_11] : memref<904x32xf32, #tpu.memory_space<vmem>>, vector<32x32xf32>
    %c56 = arith.constant 56 : index
    %c0_12 = arith.constant 0 : index
    %22 = vector.load %arg5[%c56, %c0_12] : memref<904x32xf32, #tpu.memory_space<vmem>>, vector<1x32xf32>
    %cst_13 = arith.constant dense<0.000000e+00> : vector<16x96xf32>
    %23 = tpu.matmul %12, %19, %cst_13 {dimension_numbers = #tpu.dot_dimension_numbers<[1], [0], [0], [1], [0, 0, 1, 1], [], []>} : vector<16x32xf32>, vector<32x96xf32>, vector<16x96xf32> -> vector<16x96xf32>
    %24 = vector.broadcast %20 : vector<1x96xf32> to vector<16x96xf32>
    %25 = arith.addf %23, %24 : vector<16x96xf32>
    %26 = vector.extract_strided_slice %25 {offsets = [0, 0], sizes = [8, 96], strides = [1, 1]} : vector<16x96xf32> to vector<8x96xf32>
    %27 = vector.extract_strided_slice %26 {offsets = [0, 0], sizes = [8, 8], strides = [1, 1]} : vector<8x96xf32> to vector<8x8xf32>
    %28 = vector.extract_strided_slice %26 {offsets = [0, 32], sizes = [8, 8], strides = [1, 1]} : vector<8x96xf32> to vector<8x8xf32>
    %29 = vector.extract_strided_slice %26 {offsets = [0, 64], sizes = [8, 8], strides = [1, 1]} : vector<8x96xf32> to vector<8x8xf32>
    %cst_14 = arith.constant dense<0.000000e+00> : vector<8x8xf32>
    %30 = tpu.matmul %27, %28, %cst_14 {dimension_numbers = #tpu.dot_dimension_numbers<[1], [1], [0], [0], [0, 0, 1, 0], [], []>} : vector<8x8xf32>, vector<8x8xf32>, vector<8x8xf32> -> vector<8x8xf32>
    %cst_15 = arith.constant dense<0xFF800000> : vector<8xf32>
    %31 = vector.multi_reduction <maximumf>, %30, %cst_15 [1] : vector<8x8xf32> to vector<8xf32>
    %32 = vector.shape_cast %31 : vector<8xf32> to vector<8x1xf32>
    %33 = vector.broadcast %32 : vector<8x1xf32> to vector<8x8xf32>
    %34 = arith.subf %30, %33 : vector<8x8xf32>
    %35 = math.exp %34 : vector<8x8xf32>
    %cst_16 = arith.constant dense<0.000000e+00> : vector<8xf32>
    %36 = vector.multi_reduction <add>, %35, %cst_16 [1] : vector<8x8xf32> to vector<8xf32>
    %37 = vector.shape_cast %36 : vector<8xf32> to vector<8x1xf32>
    %38 = vector.broadcast %37 : vector<8x1xf32> to vector<8x8xf32>
    %39 = arith.divf %35, %38 : vector<8x8xf32>
    %cst_17 = arith.constant dense<0.000000e+00> : vector<8x8xf32>
    %40 = tpu.matmul %39, %29, %cst_17 {dimension_numbers = #tpu.dot_dimension_numbers<[1], [0], [0], [1], [0, 0, 1, 1], [], []>} : vector<8x8xf32>, vector<8x8xf32>, vector<8x8xf32> -> vector<8x8xf32>
    %41 = vector.extract_strided_slice %21 {offsets = [0, 0], sizes = [8, 32], strides = [1, 1]} : vector<32x32xf32> to vector<8x32xf32>
    %cst_18 = arith.constant dense<0.000000e+00> : vector<8x32xf32>
    %42 = tpu.matmul %40, %41, %cst_18 {dimension_numbers = #tpu.dot_dimension_numbers<[1], [0], [0], [1], [0, 0, 1, 1], [], []>} : vector<8x8xf32>, vector<8x32xf32>, vector<8x32xf32> -> vector<8x32xf32>
    %43 = vector.extract_strided_slice %26 {offsets = [0, 8], sizes = [8, 8], strides = [1, 1]} : vector<8x96xf32> to vector<8x8xf32>
    %44 = vector.extract_strided_slice %26 {offsets = [0, 40], sizes = [8, 8], strides = [1, 1]} : vector<8x96xf32> to vector<8x8xf32>
    %45 = vector.extract_strided_slice %26 {offsets = [0, 72], sizes = [8, 8], strides = [1, 1]} : vector<8x96xf32> to vector<8x8xf32>
    %cst_19 = arith.constant dense<0.000000e+00> : vector<8x8xf32>
    %46 = tpu.matmul %43, %44, %cst_19 {dimension_numbers = #tpu.dot_dimension_numbers<[1], [1], [0], [0], [0, 0, 1, 0], [], []>} : vector<8x8xf32>, vector<8x8xf32>, vector<8x8xf32> -> vector<8x8xf32>
    %cst_20 = arith.constant dense<0xFF800000> : vector<8xf32>
    %47 = vector.multi_reduction <maximumf>, %46, %cst_20 [1] : vector<8x8xf32> to vector<8xf32>
    %48 = vector.shape_cast %47 : vector<8xf32> to vector<8x1xf32>
    %49 = vector.broadcast %48 : vector<8x1xf32> to vector<8x8xf32>
    %50 = arith.subf %46, %49 : vector<8x8xf32>
    %51 = math.exp %50 : vector<8x8xf32>
    %cst_21 = arith.constant dense<0.000000e+00> : vector<8xf32>
    %52 = vector.multi_reduction <add>, %51, %cst_21 [1] : vector<8x8xf32> to vector<8xf32>
    %53 = vector.shape_cast %52 : vector<8xf32> to vector<8x1xf32>
    %54 = vector.broadcast %53 : vector<8x1xf32> to vector<8x8xf32>
    %55 = arith.divf %51, %54 : vector<8x8xf32>
    %cst_22 = arith.constant dense<0.000000e+00> : vector<8x8xf32>
    %56 = tpu.matmul %55, %45, %cst_22 {dimension_numbers = #tpu.dot_dimension_numbers<[1], [0], [0], [1], [0, 0, 1, 1], [], []>} : vector<8x8xf32>, vector<8x8xf32>, vector<8x8xf32> -> vector<8x8xf32>
    %57 = vector.extract_strided_slice %21 {offsets = [8, 0], sizes = [8, 32], strides = [1, 1]} : vector<32x32xf32> to vector<8x32xf32>
    %cst_23 = arith.constant dense<0.000000e+00> : vector<8x32xf32>
    %58 = tpu.matmul %56, %57, %cst_23 {dimension_numbers = #tpu.dot_dimension_numbers<[1], [0], [0], [1], [0, 0, 1, 1], [], []>} : vector<8x8xf32>, vector<8x32xf32>, vector<8x32xf32> -> vector<8x32xf32>
    %59 = arith.addf %42, %58 : vector<8x32xf32>
    %60 = vector.extract_strided_slice %26 {offsets = [0, 16], sizes = [8, 8], strides = [1, 1]} : vector<8x96xf32> to vector<8x8xf32>
    %61 = vector.extract_strided_slice %26 {offsets = [0, 48], sizes = [8, 8], strides = [1, 1]} : vector<8x96xf32> to vector<8x8xf32>
    %62 = vector.extract_strided_slice %26 {offsets = [0, 80], sizes = [8, 8], strides = [1, 1]} : vector<8x96xf32> to vector<8x8xf32>
    %cst_24 = arith.constant dense<0.000000e+00> : vector<8x8xf32>
    %63 = tpu.matmul %60, %61, %cst_24 {dimension_numbers = #tpu.dot_dimension_numbers<[1], [1], [0], [0], [0, 0, 1, 0], [], []>} : vector<8x8xf32>, vector<8x8xf32>, vector<8x8xf32> -> vector<8x8xf32>
    %cst_25 = arith.constant dense<0xFF800000> : vector<8xf32>
    %64 = vector.multi_reduction <maximumf>, %63, %cst_25 [1] : vector<8x8xf32> to vector<8xf32>
    %65 = vector.shape_cast %64 : vector<8xf32> to vector<8x1xf32>
    %66 = vector.broadcast %65 : vector<8x1xf32> to vector<8x8xf32>
    %67 = arith.subf %63, %66 : vector<8x8xf32>
    %68 = math.exp %67 : vector<8x8xf32>
    %cst_26 = arith.constant dense<0.000000e+00> : vector<8xf32>
    %69 = vector.multi_reduction <add>, %68, %cst_26 [1] : vector<8x8xf32> to vector<8xf32>
    %70 = vector.shape_cast %69 : vector<8xf32> to vector<8x1xf32>
    %71 = vector.broadcast %70 : vector<8x1xf32> to vector<8x8xf32>
    %72 = arith.divf %68, %71 : vector<8x8xf32>
    %cst_27 = arith.constant dense<0.000000e+00> : vector<8x8xf32>
    %73 = tpu.matmul %72, %62, %cst_27 {dimension_numbers = #tpu.dot_dimension_numbers<[1], [0], [0], [1], [0, 0, 1, 1], [], []>} : vector<8x8xf32>, vector<8x8xf32>, vector<8x8xf32> -> vector<8x8xf32>
    %74 = vector.extract_strided_slice %21 {offsets = [16, 0], sizes = [8, 32], strides = [1, 1]} : vector<32x32xf32> to vector<8x32xf32>
    %cst_28 = arith.constant dense<0.000000e+00> : vector<8x32xf32>
    %75 = tpu.matmul %73, %74, %cst_28 {dimension_numbers = #tpu.dot_dimension_numbers<[1], [0], [0], [1], [0, 0, 1, 1], [], []>} : vector<8x8xf32>, vector<8x32xf32>, vector<8x32xf32> -> vector<8x32xf32>
    %76 = arith.addf %59, %75 : vector<8x32xf32>
    %77 = vector.extract_strided_slice %26 {offsets = [0, 24], sizes = [8, 8], strides = [1, 1]} : vector<8x96xf32> to vector<8x8xf32>
    %78 = vector.extract_strided_slice %26 {offsets = [0, 56], sizes = [8, 8], strides = [1, 1]} : vector<8x96xf32> to vector<8x8xf32>
    %79 = vector.extract_strided_slice %26 {offsets = [0, 88], sizes = [8, 8], strides = [1, 1]} : vector<8x96xf32> to vector<8x8xf32>
    %cst_29 = arith.constant dense<0.000000e+00> : vector<8x8xf32>
    %80 = tpu.matmul %77, %78, %cst_29 {dimension_numbers = #tpu.dot_dimension_numbers<[1], [1], [0], [0], [0, 0, 1, 0], [], []>} : vector<8x8xf32>, vector<8x8xf32>, vector<8x8xf32> -> vector<8x8xf32>
    %cst_30 = arith.constant dense<0xFF800000> : vector<8xf32>
    %81 = vector.multi_reduction <maximumf>, %80, %cst_30 [1] : vector<8x8xf32> to vector<8xf32>
    %82 = vector.shape_cast %81 : vector<8xf32> to vector<8x1xf32>
    %83 = vector.broadcast %82 : vector<8x1xf32> to vector<8x8xf32>
    %84 = arith.subf %80, %83 : vector<8x8xf32>
    %85 = math.exp %84 : vector<8x8xf32>
    %cst_31 = arith.constant dense<0.000000e+00> : vector<8xf32>
    %86 = vector.multi_reduction <add>, %85, %cst_31 [1] : vector<8x8xf32> to vector<8xf32>
    %87 = vector.shape_cast %86 : vector<8xf32> to vector<8x1xf32>
    %88 = vector.broadcast %87 : vector<8x1xf32> to vector<8x8xf32>
    %89 = arith.divf %85, %88 : vector<8x8xf32>
    %cst_32 = arith.constant dense<0.000000e+00> : vector<8x8xf32>
    %90 = tpu.matmul %89, %79, %cst_32 {dimension_numbers = #tpu.dot_dimension_numbers<[1], [0], [0], [1], [0, 0, 1, 1], [], []>} : vector<8x8xf32>, vector<8x8xf32>, vector<8x8xf32> -> vector<8x8xf32>
    %91 = vector.extract_strided_slice %21 {offsets = [24, 0], sizes = [8, 32], strides = [1, 1]} : vector<32x32xf32> to vector<8x32xf32>
    %cst_33 = arith.constant dense<0.000000e+00> : vector<8x32xf32>
    %92 = tpu.matmul %90, %91, %cst_33 {dimension_numbers = #tpu.dot_dimension_numbers<[1], [0], [0], [1], [0, 0, 1, 1], [], []>} : vector<8x8xf32>, vector<8x32xf32>, vector<8x32xf32> -> vector<8x32xf32>
    %93 = arith.addf %76, %92 : vector<8x32xf32>
    %94 = vector.extract_strided_slice %25 {offsets = [8, 0], sizes = [8, 96], strides = [1, 1]} : vector<16x96xf32> to vector<8x96xf32>
    %95 = vector.extract_strided_slice %94 {offsets = [0, 0], sizes = [8, 8], strides = [1, 1]} : vector<8x96xf32> to vector<8x8xf32>
    %96 = vector.extract_strided_slice %94 {offsets = [0, 32], sizes = [8, 8], strides = [1, 1]} : vector<8x96xf32> to vector<8x8xf32>
    %97 = vector.extract_strided_slice %94 {offsets = [0, 64], sizes = [8, 8], strides = [1, 1]} : vector<8x96xf32> to vector<8x8xf32>
    %cst_34 = arith.constant dense<0.000000e+00> : vector<8x8xf32>
    %98 = tpu.matmul %95, %96, %cst_34 {dimension_numbers = #tpu.dot_dimension_numbers<[1], [1], [0], [0], [0, 0, 1, 0], [], []>} : vector<8x8xf32>, vector<8x8xf32>, vector<8x8xf32> -> vector<8x8xf32>
    %cst_35 = arith.constant dense<0xFF800000> : vector<8xf32>
    %99 = vector.multi_reduction <maximumf>, %98, %cst_35 [1] : vector<8x8xf32> to vector<8xf32>
    %100 = vector.shape_cast %99 : vector<8xf32> to vector<8x1xf32>
    %101 = vector.broadcast %100 : vector<8x1xf32> to vector<8x8xf32>
    %102 = arith.subf %98, %101 : vector<8x8xf32>
    %103 = math.exp %102 : vector<8x8xf32>
    %cst_36 = arith.constant dense<0.000000e+00> : vector<8xf32>
    %104 = vector.multi_reduction <add>, %103, %cst_36 [1] : vector<8x8xf32> to vector<8xf32>
    %105 = vector.shape_cast %104 : vector<8xf32> to vector<8x1xf32>
    %106 = vector.broadcast %105 : vector<8x1xf32> to vector<8x8xf32>
    %107 = arith.divf %103, %106 : vector<8x8xf32>
    %cst_37 = arith.constant dense<0.000000e+00> : vector<8x8xf32>
    %108 = tpu.matmul %107, %97, %cst_37 {dimension_numbers = #tpu.dot_dimension_numbers<[1], [0], [0], [1], [0, 0, 1, 1], [], []>} : vector<8x8xf32>, vector<8x8xf32>, vector<8x8xf32> -> vector<8x8xf32>
    %109 = vector.extract_strided_slice %21 {offsets = [0, 0], sizes = [8, 32], strides = [1, 1]} : vector<32x32xf32> to vector<8x32xf32>
    %cst_38 = arith.constant dense<0.000000e+00> : vector<8x32xf32>
    %110 = tpu.matmul %108, %109, %cst_38 {dimension_numbers = #tpu.dot_dimension_numbers<[1], [0], [0], [1], [0, 0, 1, 1], [], []>} : vector<8x8xf32>, vector<8x32xf32>, vector<8x32xf32> -> vector<8x32xf32>
    %111 = vector.extract_strided_slice %94 {offsets = [0, 8], sizes = [8, 8], strides = [1, 1]} : vector<8x96xf32> to vector<8x8xf32>
    %112 = vector.extract_strided_slice %94 {offsets = [0, 40], sizes = [8, 8], strides = [1, 1]} : vector<8x96xf32> to vector<8x8xf32>
    %113 = vector.extract_strided_slice %94 {offsets = [0, 72], sizes = [8, 8], strides = [1, 1]} : vector<8x96xf32> to vector<8x8xf32>
    %cst_39 = arith.constant dense<0.000000e+00> : vector<8x8xf32>
    %114 = tpu.matmul %111, %112, %cst_39 {dimension_numbers = #tpu.dot_dimension_numbers<[1], [1], [0], [0], [0, 0, 1, 0], [], []>} : vector<8x8xf32>, vector<8x8xf32>, vector<8x8xf32> -> vector<8x8xf32>
    %cst_40 = arith.constant dense<0xFF800000> : vector<8xf32>
    %115 = vector.multi_reduction <maximumf>, %114, %cst_40 [1] : vector<8x8xf32> to vector<8xf32>
    %116 = vector.shape_cast %115 : vector<8xf32> to vector<8x1xf32>
    %117 = vector.broadcast %116 : vector<8x1xf32> to vector<8x8xf32>
    %118 = arith.subf %114, %117 : vector<8x8xf32>
    %119 = math.exp %118 : vector<8x8xf32>
    %cst_41 = arith.constant dense<0.000000e+00> : vector<8xf32>
    %120 = vector.multi_reduction <add>, %119, %cst_41 [1] : vector<8x8xf32> to vector<8xf32>
    %121 = vector.shape_cast %120 : vector<8xf32> to vector<8x1xf32>
    %122 = vector.broadcast %121 : vector<8x1xf32> to vector<8x8xf32>
    %123 = arith.divf %119, %122 : vector<8x8xf32>
    %cst_42 = arith.constant dense<0.000000e+00> : vector<8x8xf32>
    %124 = tpu.matmul %123, %113, %cst_42 {dimension_numbers = #tpu.dot_dimension_numbers<[1], [0], [0], [1], [0, 0, 1, 1], [], []>} : vector<8x8xf32>, vector<8x8xf32>, vector<8x8xf32> -> vector<8x8xf32>
    %125 = vector.extract_strided_slice %21 {offsets = [8, 0], sizes = [8, 32], strides = [1, 1]} : vector<32x32xf32> to vector<8x32xf32>
    %cst_43 = arith.constant dense<0.000000e+00> : vector<8x32xf32>
    %126 = tpu.matmul %124, %125, %cst_43 {dimension_numbers = #tpu.dot_dimension_numbers<[1], [0], [0], [1], [0, 0, 1, 1], [], []>} : vector<8x8xf32>, vector<8x32xf32>, vector<8x32xf32> -> vector<8x32xf32>
    %127 = arith.addf %110, %126 : vector<8x32xf32>
    %128 = vector.extract_strided_slice %94 {offsets = [0, 16], sizes = [8, 8], strides = [1, 1]} : vector<8x96xf32> to vector<8x8xf32>
    %129 = vector.extract_strided_slice %94 {offsets = [0, 48], sizes = [8, 8], strides = [1, 1]} : vector<8x96xf32> to vector<8x8xf32>
    %130 = vector.extract_strided_slice %94 {offsets = [0, 80], sizes = [8, 8], strides = [1, 1]} : vector<8x96xf32> to vector<8x8xf32>
    %cst_44 = arith.constant dense<0.000000e+00> : vector<8x8xf32>
    %131 = tpu.matmul %128, %129, %cst_44 {dimension_numbers = #tpu.dot_dimension_numbers<[1], [1], [0], [0], [0, 0, 1, 0], [], []>} : vector<8x8xf32>, vector<8x8xf32>, vector<8x8xf32> -> vector<8x8xf32>
    %cst_45 = arith.constant dense<0xFF800000> : vector<8xf32>
    %132 = vector.multi_reduction <maximumf>, %131, %cst_45 [1] : vector<8x8xf32> to vector<8xf32>
    %133 = vector.shape_cast %132 : vector<8xf32> to vector<8x1xf32>
    %134 = vector.broadcast %133 : vector<8x1xf32> to vector<8x8xf32>
    %135 = arith.subf %131, %134 : vector<8x8xf32>
    %136 = math.exp %135 : vector<8x8xf32>
    %cst_46 = arith.constant dense<0.000000e+00> : vector<8xf32>
    %137 = vector.multi_reduction <add>, %136, %cst_46 [1] : vector<8x8xf32> to vector<8xf32>
    %138 = vector.shape_cast %137 : vector<8xf32> to vector<8x1xf32>
    %139 = vector.broadcast %138 : vector<8x1xf32> to vector<8x8xf32>
    %140 = arith.divf %136, %139 : vector<8x8xf32>
    %cst_47 = arith.constant dense<0.000000e+00> : vector<8x8xf32>
    %141 = tpu.matmul %140, %130, %cst_47 {dimension_numbers = #tpu.dot_dimension_numbers<[1], [0], [0], [1], [0, 0, 1, 1], [], []>} : vector<8x8xf32>, vector<8x8xf32>, vector<8x8xf32> -> vector<8x8xf32>
    %142 = vector.extract_strided_slice %21 {offsets = [16, 0], sizes = [8, 32], strides = [1, 1]} : vector<32x32xf32> to vector<8x32xf32>
    %cst_48 = arith.constant dense<0.000000e+00> : vector<8x32xf32>
    %143 = tpu.matmul %141, %142, %cst_48 {dimension_numbers = #tpu.dot_dimension_numbers<[1], [0], [0], [1], [0, 0, 1, 1], [], []>} : vector<8x8xf32>, vector<8x32xf32>, vector<8x32xf32> -> vector<8x32xf32>
    %144 = arith.addf %127, %143 : vector<8x32xf32>
    %145 = vector.extract_strided_slice %94 {offsets = [0, 24], sizes = [8, 8], strides = [1, 1]} : vector<8x96xf32> to vector<8x8xf32>
    %146 = vector.extract_strided_slice %94 {offsets = [0, 56], sizes = [8, 8], strides = [1, 1]} : vector<8x96xf32> to vector<8x8xf32>
    %147 = vector.extract_strided_slice %94 {offsets = [0, 88], sizes = [8, 8], strides = [1, 1]} : vector<8x96xf32> to vector<8x8xf32>
    %cst_49 = arith.constant dense<0.000000e+00> : vector<8x8xf32>
    %148 = tpu.matmul %145, %146, %cst_49 {dimension_numbers = #tpu.dot_dimension_numbers<[1], [1], [0], [0], [0, 0, 1, 0], [], []>} : vector<8x8xf32>, vector<8x8xf32>, vector<8x8xf32> -> vector<8x8xf32>
    %cst_50 = arith.constant dense<0xFF800000> : vector<8xf32>
    %149 = vector.multi_reduction <maximumf>, %148, %cst_50 [1] : vector<8x8xf32> to vector<8xf32>
    %150 = vector.shape_cast %149 : vector<8xf32> to vector<8x1xf32>
    %151 = vector.broadcast %150 : vector<8x1xf32> to vector<8x8xf32>
    %152 = arith.subf %148, %151 : vector<8x8xf32>
    %153 = math.exp %152 : vector<8x8xf32>
    %cst_51 = arith.constant dense<0.000000e+00> : vector<8xf32>
    %154 = vector.multi_reduction <add>, %153, %cst_51 [1] : vector<8x8xf32> to vector<8xf32>
    %155 = vector.shape_cast %154 : vector<8xf32> to vector<8x1xf32>
    %156 = vector.broadcast %155 : vector<8x1xf32> to vector<8x8xf32>
    %157 = arith.divf %153, %156 : vector<8x8xf32>
    %cst_52 = arith.constant dense<0.000000e+00> : vector<8x8xf32>
    %158 = tpu.matmul %157, %147, %cst_52 {dimension_numbers = #tpu.dot_dimension_numbers<[1], [0], [0], [1], [0, 0, 1, 1], [], []>} : vector<8x8xf32>, vector<8x8xf32>, vector<8x8xf32> -> vector<8x8xf32>
    %159 = vector.extract_strided_slice %21 {offsets = [24, 0], sizes = [8, 32], strides = [1, 1]} : vector<32x32xf32> to vector<8x32xf32>
    %cst_53 = arith.constant dense<0.000000e+00> : vector<8x32xf32>
    %160 = tpu.matmul %158, %159, %cst_53 {dimension_numbers = #tpu.dot_dimension_numbers<[1], [0], [0], [1], [0, 0, 1, 1], [], []>} : vector<8x8xf32>, vector<8x32xf32>, vector<8x32xf32> -> vector<8x32xf32>
    %161 = arith.addf %144, %160 : vector<8x32xf32>
    %162 = tpu.concatenate %93, %161 in 0 : vector<8x32xf32>, vector<8x32xf32> -> vector<16x32xf32>
    %163 = vector.broadcast %22 : vector<1x32xf32> to vector<16x32xf32>
    %164 = arith.addf %162, %163 : vector<16x32xf32>
    %165 = arith.addf %12, %164 : vector<16x32xf32>
    %c136 = arith.constant 136 : index
    %c0_54 = arith.constant 0 : index
    %166 = vector.load %arg5[%c136, %c0_54] : memref<904x32xf32, #tpu.memory_space<vmem>>, vector<1x32xf32>
    %c144 = arith.constant 144 : index
    %c0_55 = arith.constant 0 : index
    %167 = vector.load %arg5[%c144, %c0_55] : memref<904x32xf32, #tpu.memory_space<vmem>>, vector<1x32xf32>
    %cst_56 = arith.constant dense<0.000000e+00> : vector<16xf32>
    %168 = vector.multi_reduction <add>, %165, %cst_56 [1] : vector<16x32xf32> to vector<16xf32>
    %169 = vector.shape_cast %168 : vector<16xf32> to vector<16x1xf32>
    %cst_57 = arith.constant 3.200000e+01 : f32
    %170 = vector.broadcast %cst_57 : f32 to vector<16x1xf32>
    %171 = arith.divf %169, %170 : vector<16x1xf32>
    %172 = vector.broadcast %171 : vector<16x1xf32> to vector<16x32xf32>
    %173 = arith.subf %165, %172 : vector<16x32xf32>
    %174 = arith.mulf %173, %173 : vector<16x32xf32>
    %cst_58 = arith.constant dense<0.000000e+00> : vector<16xf32>
    %175 = vector.multi_reduction <add>, %174, %cst_58 [1] : vector<16x32xf32> to vector<16xf32>
    %176 = vector.shape_cast %175 : vector<16xf32> to vector<16x1xf32>
    %cst_59 = arith.constant 3.200000e+01 : f32
    %177 = vector.broadcast %cst_59 : f32 to vector<16x1xf32>
    %178 = arith.divf %176, %177 : vector<16x1xf32>
    %179 = vector.broadcast %171 : vector<16x1xf32> to vector<16x32xf32>
    %180 = arith.subf %165, %179 : vector<16x32xf32>
    %cst_60 = arith.constant 9.99999974E-6 : f32
    %181 = vector.broadcast %cst_60 : f32 to vector<16x1xf32>
    %182 = arith.addf %178, %181 : vector<16x1xf32>
    %183 = math.rsqrt %182 : vector<16x1xf32>
    %184 = vector.broadcast %183 : vector<16x1xf32> to vector<16x32xf32>
    %185 = arith.mulf %180, %184 : vector<16x32xf32>
    %186 = vector.broadcast %166 : vector<1x32xf32> to vector<16x32xf32>
    %187 = arith.mulf %185, %186 : vector<16x32xf32>
    %188 = vector.broadcast %167 : vector<1x32xf32> to vector<16x32xf32>
    %189 = arith.addf %187, %188 : vector<16x32xf32>
    %c0_61 = arith.constant 0 : index
    %c0_62 = arith.constant 0 : index
    %190 = vector.load %arg4[%c0_61, %c0_62] : memref<160x64xf32, #tpu.memory_space<vmem>>, vector<32x64xf32>
    %cst_63 = arith.constant dense<0.000000e+00> : vector<16x64xf32>
    %191 = tpu.matmul %189, %190, %cst_63 {dimension_numbers = #tpu.dot_dimension_numbers<[1], [0], [0], [1], [0, 0, 1, 1], [], []>} : vector<16x32xf32>, vector<32x64xf32>, vector<16x64xf32> -> vector<16x64xf32>
    %c32_64 = arith.constant 32 : index
    %c0_65 = arith.constant 0 : index
    %192 = vector.load %arg4[%c32_64, %c0_65] : memref<160x64xf32, #tpu.memory_space<vmem>>, vector<1x64xf32>
    %193 = vector.broadcast %192 : vector<1x64xf32> to vector<16x64xf32>
    %194 = arith.addf %191, %193 : vector<16x64xf32>
    %cst_66 = arith.constant 0.000000e+00 : f32
    %195 = vector.broadcast %cst_66 : f32 to vector<16x64xf32>
    %196 = arith.maximumf %194, %195 : vector<16x64xf32>
    %c64 = arith.constant 64 : index
    %c0_67 = arith.constant 0 : index
    %197 = vector.load %arg5[%c64, %c0_67] : memref<904x32xf32, #tpu.memory_space<vmem>>, vector<64x32xf32>
    %cst_68 = arith.constant dense<0.000000e+00> : vector<16x32xf32>
    %198 = tpu.matmul %196, %197, %cst_68 {dimension_numbers = #tpu.dot_dimension_numbers<[1], [0], [0], [1], [0, 0, 1, 1], [], []>} : vector<16x64xf32>, vector<64x32xf32>, vector<16x32xf32> -> vector<16x32xf32>
    %c128 = arith.constant 128 : index
    %c0_69 = arith.constant 0 : index
    %199 = vector.load %arg5[%c128, %c0_69] : memref<904x32xf32, #tpu.memory_space<vmem>>, vector<1x32xf32>
    %200 = vector.broadcast %199 : vector<1x32xf32> to vector<16x32xf32>
    %201 = arith.addf %198, %200 : vector<16x32xf32>
    %202 = arith.addf %189, %201 : vector<16x32xf32>
    %c152 = arith.constant 152 : index
    %c0_70 = arith.constant 0 : index
    %203 = vector.load %arg5[%c152, %c0_70] : memref<904x32xf32, #tpu.memory_space<vmem>>, vector<1x32xf32>
    %c160 = arith.constant 160 : index
    %c0_71 = arith.constant 0 : index
    %204 = vector.load %arg5[%c160, %c0_71] : memref<904x32xf32, #tpu.memory_space<vmem>>, vector<1x32xf32>
    %cst_72 = arith.constant dense<0.000000e+00> : vector<16xf32>
    %205 = vector.multi_reduction <add>, %202, %cst_72 [1] : vector<16x32xf32> to vector<16xf32>
    %206 = vector.shape_cast %205 : vector<16xf32> to vector<16x1xf32>
    %cst_73 = arith.constant 3.200000e+01 : f32
    %207 = vector.broadcast %cst_73 : f32 to vector<16x1xf32>
    %208 = arith.divf %206, %207 : vector<16x1xf32>
    %209 = vector.broadcast %208 : vector<16x1xf32> to vector<16x32xf32>
    %210 = arith.subf %202, %209 : vector<16x32xf32>
    %211 = arith.mulf %210, %210 : vector<16x32xf32>
    %cst_74 = arith.constant dense<0.000000e+00> : vector<16xf32>
    %212 = vector.multi_reduction <add>, %211, %cst_74 [1] : vector<16x32xf32> to vector<16xf32>
    %213 = vector.shape_cast %212 : vector<16xf32> to vector<16x1xf32>
    %cst_75 = arith.constant 3.200000e+01 : f32
    %214 = vector.broadcast %cst_75 : f32 to vector<16x1xf32>
    %215 = arith.divf %213, %214 : vector<16x1xf32>
    %216 = vector.broadcast %208 : vector<16x1xf32> to vector<16x32xf32>
    %217 = arith.subf %202, %216 : vector<16x32xf32>
    %cst_76 = arith.constant 9.99999974E-6 : f32
    %218 = vector.broadcast %cst_76 : f32 to vector<16x1xf32>
    %219 = arith.addf %215, %218 : vector<16x1xf32>
    %220 = math.rsqrt %219 : vector<16x1xf32>
    %221 = vector.broadcast %220 : vector<16x1xf32> to vector<16x32xf32>
    %222 = arith.mulf %217, %221 : vector<16x32xf32>
    %223 = vector.broadcast %203 : vector<1x32xf32> to vector<16x32xf32>
    %224 = arith.mulf %222, %223 : vector<16x32xf32>
    %225 = vector.broadcast %204 : vector<1x32xf32> to vector<16x32xf32>
    %226 = arith.addf %224, %225 : vector<16x32xf32>
    %c40 = arith.constant 40 : index
    %c0_77 = arith.constant 0 : index
    %227 = vector.load %arg2[%c40, %c0_77] : memref<80x96xf32, #tpu.memory_space<vmem>>, vector<32x96xf32>
    %c72 = arith.constant 72 : index
    %c0_78 = arith.constant 0 : index
    %228 = vector.load %arg2[%c72, %c0_78] : memref<80x96xf32, #tpu.memory_space<vmem>>, vector<1x96xf32>
    %c168 = arith.constant 168 : index
    %c0_79 = arith.constant 0 : index
    %229 = vector.load %arg5[%c168, %c0_79] : memref<904x32xf32, #tpu.memory_space<vmem>>, vector<32x32xf32>
    %c200 = arith.constant 200 : index
    %c0_80 = arith.constant 0 : index
    %230 = vector.load %arg5[%c200, %c0_80] : memref<904x32xf32, #tpu.memory_space<vmem>>, vector<1x32xf32>
    %cst_81 = arith.constant dense<0.000000e+00> : vector<16x96xf32>
    %231 = tpu.matmul %226, %227, %cst_81 {dimension_numbers = #tpu.dot_dimension_numbers<[1], [0], [0], [1], [0, 0, 1, 1], [], []>} : vector<16x32xf32>, vector<32x96xf32>, vector<16x96xf32> -> vector<16x96xf32>
    %232 = vector.broadcast %228 : vector<1x96xf32> to vector<16x96xf32>
    %233 = arith.addf %231, %232 : vector<16x96xf32>
    %234 = vector.extract_strided_slice %233 {offsets = [0, 0], sizes = [8, 96], strides = [1, 1]} : vector<16x96xf32> to vector<8x96xf32>
    %235 = vector.extract_strided_slice %234 {offsets = [0, 0], sizes = [8, 8], strides = [1, 1]} : vector<8x96xf32> to vector<8x8xf32>
    %236 = vector.extract_strided_slice %234 {offsets = [0, 32], sizes = [8, 8], strides = [1, 1]} : vector<8x96xf32> to vector<8x8xf32>
    %237 = vector.extract_strided_slice %234 {offsets = [0, 64], sizes = [8, 8], strides = [1, 1]} : vector<8x96xf32> to vector<8x8xf32>
    %cst_82 = arith.constant dense<0.000000e+00> : vector<8x8xf32>
    %238 = tpu.matmul %235, %236, %cst_82 {dimension_numbers = #tpu.dot_dimension_numbers<[1], [1], [0], [0], [0, 0, 1, 0], [], []>} : vector<8x8xf32>, vector<8x8xf32>, vector<8x8xf32> -> vector<8x8xf32>
    %cst_83 = arith.constant dense<0xFF800000> : vector<8xf32>
    %239 = vector.multi_reduction <maximumf>, %238, %cst_83 [1] : vector<8x8xf32> to vector<8xf32>
    %240 = vector.shape_cast %239 : vector<8xf32> to vector<8x1xf32>
    %241 = vector.broadcast %240 : vector<8x1xf32> to vector<8x8xf32>
    %242 = arith.subf %238, %241 : vector<8x8xf32>
    %243 = math.exp %242 : vector<8x8xf32>
    %cst_84 = arith.constant dense<0.000000e+00> : vector<8xf32>
    %244 = vector.multi_reduction <add>, %243, %cst_84 [1] : vector<8x8xf32> to vector<8xf32>
    %245 = vector.shape_cast %244 : vector<8xf32> to vector<8x1xf32>
    %246 = vector.broadcast %245 : vector<8x1xf32> to vector<8x8xf32>
    %247 = arith.divf %243, %246 : vector<8x8xf32>
    %cst_85 = arith.constant dense<0.000000e+00> : vector<8x8xf32>
    %248 = tpu.matmul %247, %237, %cst_85 {dimension_numbers = #tpu.dot_dimension_numbers<[1], [0], [0], [1], [0, 0, 1, 1], [], []>} : vector<8x8xf32>, vector<8x8xf32>, vector<8x8xf32> -> vector<8x8xf32>
    %249 = vector.extract_strided_slice %229 {offsets = [0, 0], sizes = [8, 32], strides = [1, 1]} : vector<32x32xf32> to vector<8x32xf32>
    %cst_86 = arith.constant dense<0.000000e+00> : vector<8x32xf32>
    %250 = tpu.matmul %248, %249, %cst_86 {dimension_numbers = #tpu.dot_dimension_numbers<[1], [0], [0], [1], [0, 0, 1, 1], [], []>} : vector<8x8xf32>, vector<8x32xf32>, vector<8x32xf32> -> vector<8x32xf32>
    %251 = vector.extract_strided_slice %234 {offsets = [0, 8], sizes = [8, 8], strides = [1, 1]} : vector<8x96xf32> to vector<8x8xf32>
    %252 = vector.extract_strided_slice %234 {offsets = [0, 40], sizes = [8, 8], strides = [1, 1]} : vector<8x96xf32> to vector<8x8xf32>
    %253 = vector.extract_strided_slice %234 {offsets = [0, 72], sizes = [8, 8], strides = [1, 1]} : vector<8x96xf32> to vector<8x8xf32>
    %cst_87 = arith.constant dense<0.000000e+00> : vector<8x8xf32>
    %254 = tpu.matmul %251, %252, %cst_87 {dimension_numbers = #tpu.dot_dimension_numbers<[1], [1], [0], [0], [0, 0, 1, 0], [], []>} : vector<8x8xf32>, vector<8x8xf32>, vector<8x8xf32> -> vector<8x8xf32>
    %cst_88 = arith.constant dense<0xFF800000> : vector<8xf32>
    %255 = vector.multi_reduction <maximumf>, %254, %cst_88 [1] : vector<8x8xf32> to vector<8xf32>
    %256 = vector.shape_cast %255 : vector<8xf32> to vector<8x1xf32>
    %257 = vector.broadcast %256 : vector<8x1xf32> to vector<8x8xf32>
    %258 = arith.subf %254, %257 : vector<8x8xf32>
    %259 = math.exp %258 : vector<8x8xf32>
    %cst_89 = arith.constant dense<0.000000e+00> : vector<8xf32>
    %260 = vector.multi_reduction <add>, %259, %cst_89 [1] : vector<8x8xf32> to vector<8xf32>
    %261 = vector.shape_cast %260 : vector<8xf32> to vector<8x1xf32>
    %262 = vector.broadcast %261 : vector<8x1xf32> to vector<8x8xf32>
    %263 = arith.divf %259, %262 : vector<8x8xf32>
    %cst_90 = arith.constant dense<0.000000e+00> : vector<8x8xf32>
    %264 = tpu.matmul %263, %253, %cst_90 {dimension_numbers = #tpu.dot_dimension_numbers<[1], [0], [0], [1], [0, 0, 1, 1], [], []>} : vector<8x8xf32>, vector<8x8xf32>, vector<8x8xf32> -> vector<8x8xf32>
    %265 = vector.extract_strided_slice %229 {offsets = [8, 0], sizes = [8, 32], strides = [1, 1]} : vector<32x32xf32> to vector<8x32xf32>
    %cst_91 = arith.constant dense<0.000000e+00> : vector<8x32xf32>
    %266 = tpu.matmul %264, %265, %cst_91 {dimension_numbers = #tpu.dot_dimension_numbers<[1], [0], [0], [1], [0, 0, 1, 1], [], []>} : vector<8x8xf32>, vector<8x32xf32>, vector<8x32xf32> -> vector<8x32xf32>
    %267 = arith.addf %250, %266 : vector<8x32xf32>
    %268 = vector.extract_strided_slice %234 {offsets = [0, 16], sizes = [8, 8], strides = [1, 1]} : vector<8x96xf32> to vector<8x8xf32>
    %269 = vector.extract_strided_slice %234 {offsets = [0, 48], sizes = [8, 8], strides = [1, 1]} : vector<8x96xf32> to vector<8x8xf32>
    %270 = vector.extract_strided_slice %234 {offsets = [0, 80], sizes = [8, 8], strides = [1, 1]} : vector<8x96xf32> to vector<8x8xf32>
    %cst_92 = arith.constant dense<0.000000e+00> : vector<8x8xf32>
    %271 = tpu.matmul %268, %269, %cst_92 {dimension_numbers = #tpu.dot_dimension_numbers<[1], [1], [0], [0], [0, 0, 1, 0], [], []>} : vector<8x8xf32>, vector<8x8xf32>, vector<8x8xf32> -> vector<8x8xf32>
    %cst_93 = arith.constant dense<0xFF800000> : vector<8xf32>
    %272 = vector.multi_reduction <maximumf>, %271, %cst_93 [1] : vector<8x8xf32> to vector<8xf32>
    %273 = vector.shape_cast %272 : vector<8xf32> to vector<8x1xf32>
    %274 = vector.broadcast %273 : vector<8x1xf32> to vector<8x8xf32>
    %275 = arith.subf %271, %274 : vector<8x8xf32>
    %276 = math.exp %275 : vector<8x8xf32>
    %cst_94 = arith.constant dense<0.000000e+00> : vector<8xf32>
    %277 = vector.multi_reduction <add>, %276, %cst_94 [1] : vector<8x8xf32> to vector<8xf32>
    %278 = vector.shape_cast %277 : vector<8xf32> to vector<8x1xf32>
    %279 = vector.broadcast %278 : vector<8x1xf32> to vector<8x8xf32>
    %280 = arith.divf %276, %279 : vector<8x8xf32>
    %cst_95 = arith.constant dense<0.000000e+00> : vector<8x8xf32>
    %281 = tpu.matmul %280, %270, %cst_95 {dimension_numbers = #tpu.dot_dimension_numbers<[1], [0], [0], [1], [0, 0, 1, 1], [], []>} : vector<8x8xf32>, vector<8x8xf32>, vector<8x8xf32> -> vector<8x8xf32>
    %282 = vector.extract_strided_slice %229 {offsets = [16, 0], sizes = [8, 32], strides = [1, 1]} : vector<32x32xf32> to vector<8x32xf32>
    %cst_96 = arith.constant dense<0.000000e+00> : vector<8x32xf32>
    %283 = tpu.matmul %281, %282, %cst_96 {dimension_numbers = #tpu.dot_dimension_numbers<[1], [0], [0], [1], [0, 0, 1, 1], [], []>} : vector<8x8xf32>, vector<8x32xf32>, vector<8x32xf32> -> vector<8x32xf32>
    %284 = arith.addf %267, %283 : vector<8x32xf32>
    %285 = vector.extract_strided_slice %234 {offsets = [0, 24], sizes = [8, 8], strides = [1, 1]} : vector<8x96xf32> to vector<8x8xf32>
    %286 = vector.extract_strided_slice %234 {offsets = [0, 56], sizes = [8, 8], strides = [1, 1]} : vector<8x96xf32> to vector<8x8xf32>
    %287 = vector.extract_strided_slice %234 {offsets = [0, 88], sizes = [8, 8], strides = [1, 1]} : vector<8x96xf32> to vector<8x8xf32>
    %cst_97 = arith.constant dense<0.000000e+00> : vector<8x8xf32>
    %288 = tpu.matmul %285, %286, %cst_97 {dimension_numbers = #tpu.dot_dimension_numbers<[1], [1], [0], [0], [0, 0, 1, 0], [], []>} : vector<8x8xf32>, vector<8x8xf32>, vector<8x8xf32> -> vector<8x8xf32>
    %cst_98 = arith.constant dense<0xFF800000> : vector<8xf32>
    %289 = vector.multi_reduction <maximumf>, %288, %cst_98 [1] : vector<8x8xf32> to vector<8xf32>
    %290 = vector.shape_cast %289 : vector<8xf32> to vector<8x1xf32>
    %291 = vector.broadcast %290 : vector<8x1xf32> to vector<8x8xf32>
    %292 = arith.subf %288, %291 : vector<8x8xf32>
    %293 = math.exp %292 : vector<8x8xf32>
    %cst_99 = arith.constant dense<0.000000e+00> : vector<8xf32>
    %294 = vector.multi_reduction <add>, %293, %cst_99 [1] : vector<8x8xf32> to vector<8xf32>
    %295 = vector.shape_cast %294 : vector<8xf32> to vector<8x1xf32>
    %296 = vector.broadcast %295 : vector<8x1xf32> to vector<8x8xf32>
    %297 = arith.divf %293, %296 : vector<8x8xf32>
    %cst_100 = arith.constant dense<0.000000e+00> : vector<8x8xf32>
    %298 = tpu.matmul %297, %287, %cst_100 {dimension_numbers = #tpu.dot_dimension_numbers<[1], [0], [0], [1], [0, 0, 1, 1], [], []>} : vector<8x8xf32>, vector<8x8xf32>, vector<8x8xf32> -> vector<8x8xf32>
    %299 = vector.extract_strided_slice %229 {offsets = [24, 0], sizes = [8, 32], strides = [1, 1]} : vector<32x32xf32> to vector<8x32xf32>
    %cst_101 = arith.constant dense<0.000000e+00> : vector<8x32xf32>
    %300 = tpu.matmul %298, %299, %cst_101 {dimension_numbers = #tpu.dot_dimension_numbers<[1], [0], [0], [1], [0, 0, 1, 1], [], []>} : vector<8x8xf32>, vector<8x32xf32>, vector<8x32xf32> -> vector<8x32xf32>
    %301 = arith.addf %284, %300 : vector<8x32xf32>
    %302 = vector.extract_strided_slice %233 {offsets = [8, 0], sizes = [8, 96], strides = [1, 1]} : vector<16x96xf32> to vector<8x96xf32>
    %303 = vector.extract_strided_slice %302 {offsets = [0, 0], sizes = [8, 8], strides = [1, 1]} : vector<8x96xf32> to vector<8x8xf32>
    %304 = vector.extract_strided_slice %302 {offsets = [0, 32], sizes = [8, 8], strides = [1, 1]} : vector<8x96xf32> to vector<8x8xf32>
    %305 = vector.extract_strided_slice %302 {offsets = [0, 64], sizes = [8, 8], strides = [1, 1]} : vector<8x96xf32> to vector<8x8xf32>
    %cst_102 = arith.constant dense<0.000000e+00> : vector<8x8xf32>
    %306 = tpu.matmul %303, %304, %cst_102 {dimension_numbers = #tpu.dot_dimension_numbers<[1], [1], [0], [0], [0, 0, 1, 0], [], []>} : vector<8x8xf32>, vector<8x8xf32>, vector<8x8xf32> -> vector<8x8xf32>
    %cst_103 = arith.constant dense<0xFF800000> : vector<8xf32>
    %307 = vector.multi_reduction <maximumf>, %306, %cst_103 [1] : vector<8x8xf32> to vector<8xf32>
    %308 = vector.shape_cast %307 : vector<8xf32> to vector<8x1xf32>
    %309 = vector.broadcast %308 : vector<8x1xf32> to vector<8x8xf32>
    %310 = arith.subf %306, %309 : vector<8x8xf32>
    %311 = math.exp %310 : vector<8x8xf32>
    %cst_104 = arith.constant dense<0.000000e+00> : vector<8xf32>
    %312 = vector.multi_reduction <add>, %311, %cst_104 [1] : vector<8x8xf32> to vector<8xf32>
    %313 = vector.shape_cast %312 : vector<8xf32> to vector<8x1xf32>
    %314 = vector.broadcast %313 : vector<8x1xf32> to vector<8x8xf32>
    %315 = arith.divf %311, %314 : vector<8x8xf32>
    %cst_105 = arith.constant dense<0.000000e+00> : vector<8x8xf32>
    %316 = tpu.matmul %315, %305, %cst_105 {dimension_numbers = #tpu.dot_dimension_numbers<[1], [0], [0], [1], [0, 0, 1, 1], [], []>} : vector<8x8xf32>, vector<8x8xf32>, vector<8x8xf32> -> vector<8x8xf32>
    %317 = vector.extract_strided_slice %229 {offsets = [0, 0], sizes = [8, 32], strides = [1, 1]} : vector<32x32xf32> to vector<8x32xf32>
    %cst_106 = arith.constant dense<0.000000e+00> : vector<8x32xf32>
    %318 = tpu.matmul %316, %317, %cst_106 {dimension_numbers = #tpu.dot_dimension_numbers<[1], [0], [0], [1], [0, 0, 1, 1], [], []>} : vector<8x8xf32>, vector<8x32xf32>, vector<8x32xf32> -> vector<8x32xf32>
    %319 = vector.extract_strided_slice %302 {offsets = [0, 8], sizes = [8, 8], strides = [1, 1]} : vector<8x96xf32> to vector<8x8xf32>
    %320 = vector.extract_strided_slice %302 {offsets = [0, 40], sizes = [8, 8], strides = [1, 1]} : vector<8x96xf32> to vector<8x8xf32>
    %321 = vector.extract_strided_slice %302 {offsets = [0, 72], sizes = [8, 8], strides = [1, 1]} : vector<8x96xf32> to vector<8x8xf32>
    %cst_107 = arith.constant dense<0.000000e+00> : vector<8x8xf32>
    %322 = tpu.matmul %319, %320, %cst_107 {dimension_numbers = #tpu.dot_dimension_numbers<[1], [1], [0], [0], [0, 0, 1, 0], [], []>} : vector<8x8xf32>, vector<8x8xf32>, vector<8x8xf32> -> vector<8x8xf32>
    %cst_108 = arith.constant dense<0xFF800000> : vector<8xf32>
    %323 = vector.multi_reduction <maximumf>, %322, %cst_108 [1] : vector<8x8xf32> to vector<8xf32>
    %324 = vector.shape_cast %323 : vector<8xf32> to vector<8x1xf32>
    %325 = vector.broadcast %324 : vector<8x1xf32> to vector<8x8xf32>
    %326 = arith.subf %322, %325 : vector<8x8xf32>
    %327 = math.exp %326 : vector<8x8xf32>
    %cst_109 = arith.constant dense<0.000000e+00> : vector<8xf32>
    %328 = vector.multi_reduction <add>, %327, %cst_109 [1] : vector<8x8xf32> to vector<8xf32>
    %329 = vector.shape_cast %328 : vector<8xf32> to vector<8x1xf32>
    %330 = vector.broadcast %329 : vector<8x1xf32> to vector<8x8xf32>
    %331 = arith.divf %327, %330 : vector<8x8xf32>
    %cst_110 = arith.constant dense<0.000000e+00> : vector<8x8xf32>
    %332 = tpu.matmul %331, %321, %cst_110 {dimension_numbers = #tpu.dot_dimension_numbers<[1], [0], [0], [1], [0, 0, 1, 1], [], []>} : vector<8x8xf32>, vector<8x8xf32>, vector<8x8xf32> -> vector<8x8xf32>
    %333 = vector.extract_strided_slice %229 {offsets = [8, 0], sizes = [8, 32], strides = [1, 1]} : vector<32x32xf32> to vector<8x32xf32>
    %cst_111 = arith.constant dense<0.000000e+00> : vector<8x32xf32>
    %334 = tpu.matmul %332, %333, %cst_111 {dimension_numbers = #tpu.dot_dimension_numbers<[1], [0], [0], [1], [0, 0, 1, 1], [], []>} : vector<8x8xf32>, vector<8x32xf32>, vector<8x32xf32> -> vector<8x32xf32>
    %335 = arith.addf %318, %334 : vector<8x32xf32>
    %336 = vector.extract_strided_slice %302 {offsets = [0, 16], sizes = [8, 8], strides = [1, 1]} : vector<8x96xf32> to vector<8x8xf32>
    %337 = vector.extract_strided_slice %302 {offsets = [0, 48], sizes = [8, 8], strides = [1, 1]} : vector<8x96xf32> to vector<8x8xf32>
    %338 = vector.extract_strided_slice %302 {offsets = [0, 80], sizes = [8, 8], strides = [1, 1]} : vector<8x96xf32> to vector<8x8xf32>
    %cst_112 = arith.constant dense<0.000000e+00> : vector<8x8xf32>
    %339 = tpu.matmul %336, %337, %cst_112 {dimension_numbers = #tpu.dot_dimension_numbers<[1], [1], [0], [0], [0, 0, 1, 0], [], []>} : vector<8x8xf32>, vector<8x8xf32>, vector<8x8xf32> -> vector<8x8xf32>
    %cst_113 = arith.constant dense<0xFF800000> : vector<8xf32>
    %340 = vector.multi_reduction <maximumf>, %339, %cst_113 [1] : vector<8x8xf32> to vector<8xf32>
    %341 = vector.shape_cast %340 : vector<8xf32> to vector<8x1xf32>
    %342 = vector.broadcast %341 : vector<8x1xf32> to vector<8x8xf32>
    %343 = arith.subf %339, %342 : vector<8x8xf32>
    %344 = math.exp %343 : vector<8x8xf32>
    %cst_114 = arith.constant dense<0.000000e+00> : vector<8xf32>
    %345 = vector.multi_reduction <add>, %344, %cst_114 [1] : vector<8x8xf32> to vector<8xf32>
    %346 = vector.shape_cast %345 : vector<8xf32> to vector<8x1xf32>
    %347 = vector.broadcast %346 : vector<8x1xf32> to vector<8x8xf32>
    %348 = arith.divf %344, %347 : vector<8x8xf32>
    %cst_115 = arith.constant dense<0.000000e+00> : vector<8x8xf32>
    %349 = tpu.matmul %348, %338, %cst_115 {dimension_numbers = #tpu.dot_dimension_numbers<[1], [0], [0], [1], [0, 0, 1, 1], [], []>} : vector<8x8xf32>, vector<8x8xf32>, vector<8x8xf32> -> vector<8x8xf32>
    %350 = vector.extract_strided_slice %229 {offsets = [16, 0], sizes = [8, 32], strides = [1, 1]} : vector<32x32xf32> to vector<8x32xf32>
    %cst_116 = arith.constant dense<0.000000e+00> : vector<8x32xf32>
    %351 = tpu.matmul %349, %350, %cst_116 {dimension_numbers = #tpu.dot_dimension_numbers<[1], [0], [0], [1], [0, 0, 1, 1], [], []>} : vector<8x8xf32>, vector<8x32xf32>, vector<8x32xf32> -> vector<8x32xf32>
    %352 = arith.addf %335, %351 : vector<8x32xf32>
    %353 = vector.extract_strided_slice %302 {offsets = [0, 24], sizes = [8, 8], strides = [1, 1]} : vector<8x96xf32> to vector<8x8xf32>
    %354 = vector.extract_strided_slice %302 {offsets = [0, 56], sizes = [8, 8], strides = [1, 1]} : vector<8x96xf32> to vector<8x8xf32>
    %355 = vector.extract_strided_slice %302 {offsets = [0, 88], sizes = [8, 8], strides = [1, 1]} : vector<8x96xf32> to vector<8x8xf32>
    %cst_117 = arith.constant dense<0.000000e+00> : vector<8x8xf32>
    %356 = tpu.matmul %353, %354, %cst_117 {dimension_numbers = #tpu.dot_dimension_numbers<[1], [1], [0], [0], [0, 0, 1, 0], [], []>} : vector<8x8xf32>, vector<8x8xf32>, vector<8x8xf32> -> vector<8x8xf32>
    %cst_118 = arith.constant dense<0xFF800000> : vector<8xf32>
    %357 = vector.multi_reduction <maximumf>, %356, %cst_118 [1] : vector<8x8xf32> to vector<8xf32>
    %358 = vector.shape_cast %357 : vector<8xf32> to vector<8x1xf32>
    %359 = vector.broadcast %358 : vector<8x1xf32> to vector<8x8xf32>
    %360 = arith.subf %356, %359 : vector<8x8xf32>
    %361 = math.exp %360 : vector<8x8xf32>
    %cst_119 = arith.constant dense<0.000000e+00> : vector<8xf32>
    %362 = vector.multi_reduction <add>, %361, %cst_119 [1] : vector<8x8xf32> to vector<8xf32>
    %363 = vector.shape_cast %362 : vector<8xf32> to vector<8x1xf32>
    %364 = vector.broadcast %363 : vector<8x1xf32> to vector<8x8xf32>
    %365 = arith.divf %361, %364 : vector<8x8xf32>
    %cst_120 = arith.constant dense<0.000000e+00> : vector<8x8xf32>
    %366 = tpu.matmul %365, %355, %cst_120 {dimension_numbers = #tpu.dot_dimension_numbers<[1], [0], [0], [1], [0, 0, 1, 1], [], []>} : vector<8x8xf32>, vector<8x8xf32>, vector<8x8xf32> -> vector<8x8xf32>
    %367 = vector.extract_strided_slice %229 {offsets = [24, 0], sizes = [8, 32], strides = [1, 1]} : vector<32x32xf32> to vector<8x32xf32>
    %cst_121 = arith.constant dense<0.000000e+00> : vector<8x32xf32>
    %368 = tpu.matmul %366, %367, %cst_121 {dimension_numbers = #tpu.dot_dimension_numbers<[1], [0], [0], [1], [0, 0, 1, 1], [], []>} : vector<8x8xf32>, vector<8x32xf32>, vector<8x32xf32> -> vector<8x32xf32>
    %369 = arith.addf %352, %368 : vector<8x32xf32>
    %370 = tpu.concatenate %301, %369 in 0 : vector<8x32xf32>, vector<8x32xf32> -> vector<16x32xf32>
    %371 = vector.broadcast %230 : vector<1x32xf32> to vector<16x32xf32>
    %372 = arith.addf %370, %371 : vector<16x32xf32>
    %373 = arith.addf %226, %372 : vector<16x32xf32>
    %c280 = arith.constant 280 : index
    %c0_122 = arith.constant 0 : index
    %374 = vector.load %arg5[%c280, %c0_122] : memref<904x32xf32, #tpu.memory_space<vmem>>, vector<1x32xf32>
    %c288 = arith.constant 288 : index
    %c0_123 = arith.constant 0 : index
    %375 = vector.load %arg5[%c288, %c0_123] : memref<904x32xf32, #tpu.memory_space<vmem>>, vector<1x32xf32>
    %cst_124 = arith.constant dense<0.000000e+00> : vector<16xf32>
    %376 = vector.multi_reduction <add>, %373, %cst_124 [1] : vector<16x32xf32> to vector<16xf32>
    %377 = vector.shape_cast %376 : vector<16xf32> to vector<16x1xf32>
    %cst_125 = arith.constant 3.200000e+01 : f32
    %378 = vector.broadcast %cst_125 : f32 to vector<16x1xf32>
    %379 = arith.divf %377, %378 : vector<16x1xf32>
    %380 = vector.broadcast %379 : vector<16x1xf32> to vector<16x32xf32>
    %381 = arith.subf %373, %380 : vector<16x32xf32>
    %382 = arith.mulf %381, %381 : vector<16x32xf32>
    %cst_126 = arith.constant dense<0.000000e+00> : vector<16xf32>
    %383 = vector.multi_reduction <add>, %382, %cst_126 [1] : vector<16x32xf32> to vector<16xf32>
    %384 = vector.shape_cast %383 : vector<16xf32> to vector<16x1xf32>
    %cst_127 = arith.constant 3.200000e+01 : f32
    %385 = vector.broadcast %cst_127 : f32 to vector<16x1xf32>
    %386 = arith.divf %384, %385 : vector<16x1xf32>
    %387 = vector.broadcast %379 : vector<16x1xf32> to vector<16x32xf32>
    %388 = arith.subf %373, %387 : vector<16x32xf32>
    %cst_128 = arith.constant 9.99999974E-6 : f32
    %389 = vector.broadcast %cst_128 : f32 to vector<16x1xf32>
    %390 = arith.addf %386, %389 : vector<16x1xf32>
    %391 = math.rsqrt %390 : vector<16x1xf32>
    %392 = vector.broadcast %391 : vector<16x1xf32> to vector<16x32xf32>
    %393 = arith.mulf %388, %392 : vector<16x32xf32>
    %394 = vector.broadcast %374 : vector<1x32xf32> to vector<16x32xf32>
    %395 = arith.mulf %393, %394 : vector<16x32xf32>
    %396 = vector.broadcast %375 : vector<1x32xf32> to vector<16x32xf32>
    %397 = arith.addf %395, %396 : vector<16x32xf32>
    %c40_129 = arith.constant 40 : index
    %c0_130 = arith.constant 0 : index
    %398 = vector.load %arg4[%c40_129, %c0_130] : memref<160x64xf32, #tpu.memory_space<vmem>>, vector<32x64xf32>
    %cst_131 = arith.constant dense<0.000000e+00> : vector<16x64xf32>
    %399 = tpu.matmul %397, %398, %cst_131 {dimension_numbers = #tpu.dot_dimension_numbers<[1], [0], [0], [1], [0, 0, 1, 1], [], []>} : vector<16x32xf32>, vector<32x64xf32>, vector<16x64xf32> -> vector<16x64xf32>
    %c72_132 = arith.constant 72 : index
    %c0_133 = arith.constant 0 : index
    %400 = vector.load %arg4[%c72_132, %c0_133] : memref<160x64xf32, #tpu.memory_space<vmem>>, vector<1x64xf32>
    %401 = vector.broadcast %400 : vector<1x64xf32> to vector<16x64xf32>
    %402 = arith.addf %399, %401 : vector<16x64xf32>
    %cst_134 = arith.constant 0.000000e+00 : f32
    %403 = vector.broadcast %cst_134 : f32 to vector<16x64xf32>
    %404 = arith.maximumf %402, %403 : vector<16x64xf32>
    %c208 = arith.constant 208 : index
    %c0_135 = arith.constant 0 : index
    %405 = vector.load %arg5[%c208, %c0_135] : memref<904x32xf32, #tpu.memory_space<vmem>>, vector<64x32xf32>
    %cst_136 = arith.constant dense<0.000000e+00> : vector<16x32xf32>
    %406 = tpu.matmul %404, %405, %cst_136 {dimension_numbers = #tpu.dot_dimension_numbers<[1], [0], [0], [1], [0, 0, 1, 1], [], []>} : vector<16x64xf32>, vector<64x32xf32>, vector<16x32xf32> -> vector<16x32xf32>
    %c272 = arith.constant 272 : index
    %c0_137 = arith.constant 0 : index
    %407 = vector.load %arg5[%c272, %c0_137] : memref<904x32xf32, #tpu.memory_space<vmem>>, vector<1x32xf32>
    %408 = vector.broadcast %407 : vector<1x32xf32> to vector<16x32xf32>
    %409 = arith.addf %406, %408 : vector<16x32xf32>
    %410 = arith.addf %397, %409 : vector<16x32xf32>
    %c296 = arith.constant 296 : index
    %c0_138 = arith.constant 0 : index
    %411 = vector.load %arg5[%c296, %c0_138] : memref<904x32xf32, #tpu.memory_space<vmem>>, vector<1x32xf32>
    %c304 = arith.constant 304 : index
    %c0_139 = arith.constant 0 : index
    %412 = vector.load %arg5[%c304, %c0_139] : memref<904x32xf32, #tpu.memory_space<vmem>>, vector<1x32xf32>
    %cst_140 = arith.constant dense<0.000000e+00> : vector<16xf32>
    %413 = vector.multi_reduction <add>, %410, %cst_140 [1] : vector<16x32xf32> to vector<16xf32>
    %414 = vector.shape_cast %413 : vector<16xf32> to vector<16x1xf32>
    %cst_141 = arith.constant 3.200000e+01 : f32
    %415 = vector.broadcast %cst_141 : f32 to vector<16x1xf32>
    %416 = arith.divf %414, %415 : vector<16x1xf32>
    %417 = vector.broadcast %416 : vector<16x1xf32> to vector<16x32xf32>
    %418 = arith.subf %410, %417 : vector<16x32xf32>
    %419 = arith.mulf %418, %418 : vector<16x32xf32>
    %cst_142 = arith.constant dense<0.000000e+00> : vector<16xf32>
    %420 = vector.multi_reduction <add>, %419, %cst_142 [1] : vector<16x32xf32> to vector<16xf32>
    %421 = vector.shape_cast %420 : vector<16xf32> to vector<16x1xf32>
    %cst_143 = arith.constant 3.200000e+01 : f32
    %422 = vector.broadcast %cst_143 : f32 to vector<16x1xf32>
    %423 = arith.divf %421, %422 : vector<16x1xf32>
    %424 = vector.broadcast %416 : vector<16x1xf32> to vector<16x32xf32>
    %425 = arith.subf %410, %424 : vector<16x32xf32>
    %cst_144 = arith.constant 9.99999974E-6 : f32
    %426 = vector.broadcast %cst_144 : f32 to vector<16x1xf32>
    %427 = arith.addf %423, %426 : vector<16x1xf32>
    %428 = math.rsqrt %427 : vector<16x1xf32>
    %429 = vector.broadcast %428 : vector<16x1xf32> to vector<16x32xf32>
    %430 = arith.mulf %425, %429 : vector<16x32xf32>
    %431 = vector.broadcast %411 : vector<1x32xf32> to vector<16x32xf32>
    %432 = arith.mulf %430, %431 : vector<16x32xf32>
    %433 = vector.broadcast %412 : vector<1x32xf32> to vector<16x32xf32>
    %434 = arith.addf %432, %433 : vector<16x32xf32>
    %c872 = arith.constant 872 : index
    %c0_145 = arith.constant 0 : index
    %435 = vector.load %arg5[%c872, %c0_145] : memref<904x32xf32, #tpu.memory_space<vmem>>, vector<1x32xf32>
    %c880 = arith.constant 880 : index
    %c0_146 = arith.constant 0 : index
    %436 = vector.load %arg5[%c880, %c0_146] : memref<904x32xf32, #tpu.memory_space<vmem>>, vector<1x32xf32>
    %cst_147 = arith.constant dense<0.000000e+00> : vector<16xf32>
    %437 = vector.multi_reduction <add>, %434, %cst_147 [1] : vector<16x32xf32> to vector<16xf32>
    %438 = vector.shape_cast %437 : vector<16xf32> to vector<16x1xf32>
    %cst_148 = arith.constant 3.200000e+01 : f32
    %439 = vector.broadcast %cst_148 : f32 to vector<16x1xf32>
    %440 = arith.divf %438, %439 : vector<16x1xf32>
    %441 = vector.broadcast %440 : vector<16x1xf32> to vector<16x32xf32>
    %442 = arith.subf %434, %441 : vector<16x32xf32>
    %443 = arith.mulf %442, %442 : vector<16x32xf32>
    %cst_149 = arith.constant dense<0.000000e+00> : vector<16xf32>
    %444 = vector.multi_reduction <add>, %443, %cst_149 [1] : vector<16x32xf32> to vector<16xf32>
    %445 = vector.shape_cast %444 : vector<16xf32> to vector<16x1xf32>
    %cst_150 = arith.constant 3.200000e+01 : f32
    %446 = vector.broadcast %cst_150 : f32 to vector<16x1xf32>
    %447 = arith.divf %445, %446 : vector<16x1xf32>
    %448 = vector.broadcast %440 : vector<16x1xf32> to vector<16x32xf32>
    %449 = arith.subf %434, %448 : vector<16x32xf32>
    %cst_151 = arith.constant 9.99999974E-6 : f32
    %450 = vector.broadcast %cst_151 : f32 to vector<16x1xf32>
    %451 = arith.addf %447, %450 : vector<16x1xf32>
    %452 = math.rsqrt %451 : vector<16x1xf32>
    %453 = vector.broadcast %452 : vector<16x1xf32> to vector<16x32xf32>
    %454 = arith.mulf %449, %453 : vector<16x32xf32>
    %455 = vector.broadcast %435 : vector<1x32xf32> to vector<16x32xf32>
    %456 = arith.mulf %454, %455 : vector<16x32xf32>
    %457 = vector.broadcast %436 : vector<1x32xf32> to vector<16x32xf32>
    %458 = arith.addf %456, %457 : vector<16x32xf32>
    %c312 = arith.constant 312 : index
    %c0_152 = arith.constant 0 : index
    %459 = vector.load %arg5[%c312, %c0_152] : memref<904x32xf32, #tpu.memory_space<vmem>>, vector<32x32xf32>
    %cst_153 = arith.constant dense<0.000000e+00> : vector<2x32xf32>
    %460 = tpu.matmul %18, %459, %cst_153 {dimension_numbers = #tpu.dot_dimension_numbers<[1], [0], [0], [1], [0, 0, 1, 1], [], []>} : vector<2x32xf32>, vector<32x32xf32>, vector<2x32xf32> -> vector<2x32xf32>
    %c344 = arith.constant 344 : index
    %c0_154 = arith.constant 0 : index
    %461 = vector.load %arg5[%c344, %c0_154] : memref<904x32xf32, #tpu.memory_space<vmem>>, vector<1x32xf32>
    %462 = vector.broadcast %461 : vector<1x32xf32> to vector<2x32xf32>
    %463 = arith.addf %460, %462 : vector<2x32xf32>
    %c352 = arith.constant 352 : index
    %c0_155 = arith.constant 0 : index
    %464 = vector.load %arg5[%c352, %c0_155] : memref<904x32xf32, #tpu.memory_space<vmem>>, vector<32x32xf32>
    %cst_156 = arith.constant dense<0.000000e+00> : vector<2x32xf32>
    %465 = tpu.matmul %463, %464, %cst_156 {dimension_numbers = #tpu.dot_dimension_numbers<[1], [0], [0], [1], [0, 0, 1, 1], [], []>} : vector<2x32xf32>, vector<32x32xf32>, vector<2x32xf32> -> vector<2x32xf32>
    %c384 = arith.constant 384 : index
    %c0_157 = arith.constant 0 : index
    %466 = vector.load %arg5[%c384, %c0_157] : memref<904x32xf32, #tpu.memory_space<vmem>>, vector<1x32xf32>
    %467 = vector.broadcast %466 : vector<1x32xf32> to vector<2x32xf32>
    %468 = arith.addf %465, %467 : vector<2x32xf32>
    %469 = arith.addf %18, %468 : vector<2x32xf32>
    %c544 = arith.constant 544 : index
    %c0_158 = arith.constant 0 : index
    %470 = vector.load %arg5[%c544, %c0_158] : memref<904x32xf32, #tpu.memory_space<vmem>>, vector<1x32xf32>
    %c552 = arith.constant 552 : index
    %c0_159 = arith.constant 0 : index
    %471 = vector.load %arg5[%c552, %c0_159] : memref<904x32xf32, #tpu.memory_space<vmem>>, vector<1x32xf32>
    %cst_160 = arith.constant dense<0.000000e+00> : vector<2xf32>
    %472 = vector.multi_reduction <add>, %469, %cst_160 [1] : vector<2x32xf32> to vector<2xf32>
    %473 = vector.shape_cast %472 : vector<2xf32> to vector<2x1xf32>
    %cst_161 = arith.constant 3.200000e+01 : f32
    %474 = vector.broadcast %cst_161 : f32 to vector<2x1xf32>
    %475 = arith.divf %473, %474 : vector<2x1xf32>
    %476 = vector.broadcast %475 : vector<2x1xf32> to vector<2x32xf32>
    %477 = arith.subf %469, %476 : vector<2x32xf32>
    %478 = arith.mulf %477, %477 : vector<2x32xf32>
    %cst_162 = arith.constant dense<0.000000e+00> : vector<2xf32>
    %479 = vector.multi_reduction <add>, %478, %cst_162 [1] : vector<2x32xf32> to vector<2xf32>
    %480 = vector.shape_cast %479 : vector<2xf32> to vector<2x1xf32>
    %cst_163 = arith.constant 3.200000e+01 : f32
    %481 = vector.broadcast %cst_163 : f32 to vector<2x1xf32>
    %482 = arith.divf %480, %481 : vector<2x1xf32>
    %483 = vector.broadcast %475 : vector<2x1xf32> to vector<2x32xf32>
    %484 = arith.subf %469, %483 : vector<2x32xf32>
    %cst_164 = arith.constant 9.99999974E-6 : f32
    %485 = vector.broadcast %cst_164 : f32 to vector<2x1xf32>
    %486 = arith.addf %482, %485 : vector<2x1xf32>
    %487 = math.rsqrt %486 : vector<2x1xf32>
    %488 = vector.broadcast %487 : vector<2x1xf32> to vector<2x32xf32>
    %489 = arith.mulf %484, %488 : vector<2x32xf32>
    %490 = vector.broadcast %470 : vector<1x32xf32> to vector<2x32xf32>
    %491 = arith.mulf %489, %490 : vector<2x32xf32>
    %492 = vector.broadcast %471 : vector<1x32xf32> to vector<2x32xf32>
    %493 = arith.addf %491, %492 : vector<2x32xf32>
    %c392 = arith.constant 392 : index
    %c0_165 = arith.constant 0 : index
    %494 = vector.load %arg5[%c392, %c0_165] : memref<904x32xf32, #tpu.memory_space<vmem>>, vector<32x32xf32>
    %cst_166 = arith.constant dense<0.000000e+00> : vector<2x32xf32>
    %495 = tpu.matmul %493, %494, %cst_166 {dimension_numbers = #tpu.dot_dimension_numbers<[1], [0], [0], [1], [0, 0, 1, 1], [], []>} : vector<2x32xf32>, vector<32x32xf32>, vector<2x32xf32> -> vector<2x32xf32>
    %c424 = arith.constant 424 : index
    %c0_167 = arith.constant 0 : index
    %496 = vector.load %arg5[%c424, %c0_167] : memref<904x32xf32, #tpu.memory_space<vmem>>, vector<1x32xf32>
    %497 = vector.broadcast %496 : vector<1x32xf32> to vector<2x32xf32>
    %498 = arith.addf %495, %497 : vector<2x32xf32>
    %c0_168 = arith.constant 0 : index
    %c0_169 = arith.constant 0 : index
    %499 = vector.load %arg3[%c0_168, %c0_169] : memref<80x64xf32, #tpu.memory_space<vmem>>, vector<32x64xf32>
    %cst_170 = arith.constant dense<0.000000e+00> : vector<16x64xf32>
    %500 = tpu.matmul %458, %499, %cst_170 {dimension_numbers = #tpu.dot_dimension_numbers<[1], [0], [0], [1], [0, 0, 1, 1], [], []>} : vector<16x32xf32>, vector<32x64xf32>, vector<16x64xf32> -> vector<16x64xf32>
    %c32_171 = arith.constant 32 : index
    %c0_172 = arith.constant 0 : index
    %501 = vector.load %arg3[%c32_171, %c0_172] : memref<80x64xf32, #tpu.memory_space<vmem>>, vector<1x64xf32>
    %502 = vector.broadcast %501 : vector<1x64xf32> to vector<16x64xf32>
    %503 = arith.addf %500, %502 : vector<16x64xf32>
    %c432 = arith.constant 432 : index
    %c0_173 = arith.constant 0 : index
    %504 = vector.load %arg5[%c432, %c0_173] : memref<904x32xf32, #tpu.memory_space<vmem>>, vector<32x32xf32>
    %505 = vector.extract_strided_slice %503 {offsets = [0, 0], sizes = [8, 64], strides = [1, 1]} : vector<16x64xf32> to vector<8x64xf32>
    %506 = vector.extract_strided_slice %498 {offsets = [0, 0], sizes = [1, 8], strides = [1, 1]} : vector<2x32xf32> to vector<1x8xf32>
    %507 = vector.extract_strided_slice %505 {offsets = [0, 0], sizes = [8, 8], strides = [1, 1]} : vector<8x64xf32> to vector<8x8xf32>
    %508 = vector.extract_strided_slice %505 {offsets = [0, 32], sizes = [8, 8], strides = [1, 1]} : vector<8x64xf32> to vector<8x8xf32>
    %cst_174 = arith.constant dense<0.000000e+00> : vector<1x8xf32>
    %509 = tpu.matmul %506, %507, %cst_174 {dimension_numbers = #tpu.dot_dimension_numbers<[1], [1], [0], [0], [0, 0, 1, 0], [], []>} : vector<1x8xf32>, vector<8x8xf32>, vector<1x8xf32> -> vector<1x8xf32>
    %cst_175 = arith.constant dense<0xFF800000> : vector<1xf32>
    %510 = vector.multi_reduction <maximumf>, %509, %cst_175 [1] : vector<1x8xf32> to vector<1xf32>
    %511 = vector.shape_cast %510 : vector<1xf32> to vector<1x1xf32>
    %512 = vector.broadcast %511 : vector<1x1xf32> to vector<1x8xf32>
    %513 = arith.subf %509, %512 : vector<1x8xf32>
    %514 = math.exp %513 : vector<1x8xf32>
    %cst_176 = arith.constant dense<0.000000e+00> : vector<1xf32>
    %515 = vector.multi_reduction <add>, %514, %cst_176 [1] : vector<1x8xf32> to vector<1xf32>
    %516 = vector.shape_cast %515 : vector<1xf32> to vector<1x1xf32>
    %517 = vector.broadcast %516 : vector<1x1xf32> to vector<1x8xf32>
    %518 = arith.divf %514, %517 : vector<1x8xf32>
    %cst_177 = arith.constant dense<0.000000e+00> : vector<1x8xf32>
    %519 = tpu.matmul %518, %508, %cst_177 {dimension_numbers = #tpu.dot_dimension_numbers<[1], [0], [0], [1], [0, 0, 1, 1], [], []>} : vector<1x8xf32>, vector<8x8xf32>, vector<1x8xf32> -> vector<1x8xf32>
    %520 = vector.extract_strided_slice %504 {offsets = [0, 0], sizes = [8, 32], strides = [1, 1]} : vector<32x32xf32> to vector<8x32xf32>
    %cst_178 = arith.constant dense<0.000000e+00> : vector<1x32xf32>
    %521 = tpu.matmul %519, %520, %cst_178 {dimension_numbers = #tpu.dot_dimension_numbers<[1], [0], [0], [1], [0, 0, 1, 1], [], []>} : vector<1x8xf32>, vector<8x32xf32>, vector<1x32xf32> -> vector<1x32xf32>
    %522 = vector.extract_strided_slice %498 {offsets = [0, 8], sizes = [1, 8], strides = [1, 1]} : vector<2x32xf32> to vector<1x8xf32>
    %523 = vector.extract_strided_slice %505 {offsets = [0, 8], sizes = [8, 8], strides = [1, 1]} : vector<8x64xf32> to vector<8x8xf32>
    %524 = vector.extract_strided_slice %505 {offsets = [0, 40], sizes = [8, 8], strides = [1, 1]} : vector<8x64xf32> to vector<8x8xf32>
    %cst_179 = arith.constant dense<0.000000e+00> : vector<1x8xf32>
    %525 = tpu.matmul %522, %523, %cst_179 {dimension_numbers = #tpu.dot_dimension_numbers<[1], [1], [0], [0], [0, 0, 1, 0], [], []>} : vector<1x8xf32>, vector<8x8xf32>, vector<1x8xf32> -> vector<1x8xf32>
    %cst_180 = arith.constant dense<0xFF800000> : vector<1xf32>
    %526 = vector.multi_reduction <maximumf>, %525, %cst_180 [1] : vector<1x8xf32> to vector<1xf32>
    %527 = vector.shape_cast %526 : vector<1xf32> to vector<1x1xf32>
    %528 = vector.broadcast %527 : vector<1x1xf32> to vector<1x8xf32>
    %529 = arith.subf %525, %528 : vector<1x8xf32>
    %530 = math.exp %529 : vector<1x8xf32>
    %cst_181 = arith.constant dense<0.000000e+00> : vector<1xf32>
    %531 = vector.multi_reduction <add>, %530, %cst_181 [1] : vector<1x8xf32> to vector<1xf32>
    %532 = vector.shape_cast %531 : vector<1xf32> to vector<1x1xf32>
    %533 = vector.broadcast %532 : vector<1x1xf32> to vector<1x8xf32>
    %534 = arith.divf %530, %533 : vector<1x8xf32>
    %cst_182 = arith.constant dense<0.000000e+00> : vector<1x8xf32>
    %535 = tpu.matmul %534, %524, %cst_182 {dimension_numbers = #tpu.dot_dimension_numbers<[1], [0], [0], [1], [0, 0, 1, 1], [], []>} : vector<1x8xf32>, vector<8x8xf32>, vector<1x8xf32> -> vector<1x8xf32>
    %536 = vector.extract_strided_slice %504 {offsets = [8, 0], sizes = [8, 32], strides = [1, 1]} : vector<32x32xf32> to vector<8x32xf32>
    %cst_183 = arith.constant dense<0.000000e+00> : vector<1x32xf32>
    %537 = tpu.matmul %535, %536, %cst_183 {dimension_numbers = #tpu.dot_dimension_numbers<[1], [0], [0], [1], [0, 0, 1, 1], [], []>} : vector<1x8xf32>, vector<8x32xf32>, vector<1x32xf32> -> vector<1x32xf32>
    %538 = arith.addf %521, %537 : vector<1x32xf32>
    %539 = vector.extract_strided_slice %498 {offsets = [0, 16], sizes = [1, 8], strides = [1, 1]} : vector<2x32xf32> to vector<1x8xf32>
    %540 = vector.extract_strided_slice %505 {offsets = [0, 16], sizes = [8, 8], strides = [1, 1]} : vector<8x64xf32> to vector<8x8xf32>
    %541 = vector.extract_strided_slice %505 {offsets = [0, 48], sizes = [8, 8], strides = [1, 1]} : vector<8x64xf32> to vector<8x8xf32>
    %cst_184 = arith.constant dense<0.000000e+00> : vector<1x8xf32>
    %542 = tpu.matmul %539, %540, %cst_184 {dimension_numbers = #tpu.dot_dimension_numbers<[1], [1], [0], [0], [0, 0, 1, 0], [], []>} : vector<1x8xf32>, vector<8x8xf32>, vector<1x8xf32> -> vector<1x8xf32>
    %cst_185 = arith.constant dense<0xFF800000> : vector<1xf32>
    %543 = vector.multi_reduction <maximumf>, %542, %cst_185 [1] : vector<1x8xf32> to vector<1xf32>
    %544 = vector.shape_cast %543 : vector<1xf32> to vector<1x1xf32>
    %545 = vector.broadcast %544 : vector<1x1xf32> to vector<1x8xf32>
    %546 = arith.subf %542, %545 : vector<1x8xf32>
    %547 = math.exp %546 : vector<1x8xf32>
    %cst_186 = arith.constant dense<0.000000e+00> : vector<1xf32>
    %548 = vector.multi_reduction <add>, %547, %cst_186 [1] : vector<1x8xf32> to vector<1xf32>
    %549 = vector.shape_cast %548 : vector<1xf32> to vector<1x1xf32>
    %550 = vector.broadcast %549 : vector<1x1xf32> to vector<1x8xf32>
    %551 = arith.divf %547, %550 : vector<1x8xf32>
    %cst_187 = arith.constant dense<0.000000e+00> : vector<1x8xf32>
    %552 = tpu.matmul %551, %541, %cst_187 {dimension_numbers = #tpu.dot_dimension_numbers<[1], [0], [0], [1], [0, 0, 1, 1], [], []>} : vector<1x8xf32>, vector<8x8xf32>, vector<1x8xf32> -> vector<1x8xf32>
    %553 = vector.extract_strided_slice %504 {offsets = [16, 0], sizes = [8, 32], strides = [1, 1]} : vector<32x32xf32> to vector<8x32xf32>
    %cst_188 = arith.constant dense<0.000000e+00> : vector<1x32xf32>
    %554 = tpu.matmul %552, %553, %cst_188 {dimension_numbers = #tpu.dot_dimension_numbers<[1], [0], [0], [1], [0, 0, 1, 1], [], []>} : vector<1x8xf32>, vector<8x32xf32>, vector<1x32xf32> -> vector<1x32xf32>
    %555 = arith.addf %538, %554 : vector<1x32xf32>
    %556 = vector.extract_strided_slice %498 {offsets = [0, 24], sizes = [1, 8], strides = [1, 1]} : vector<2x32xf32> to vector<1x8xf32>
    %557 = vector.extract_strided_slice %505 {offsets = [0, 24], sizes = [8, 8], strides = [1, 1]} : vector<8x64xf32> to vector<8x8xf32>
    %558 = vector.extract_strided_slice %505 {offsets = [0, 56], sizes = [8, 8], strides = [1, 1]} : vector<8x64xf32> to vector<8x8xf32>
    %cst_189 = arith.constant dense<0.000000e+00> : vector<1x8xf32>
    %559 = tpu.matmul %556, %557, %cst_189 {dimension_numbers = #tpu.dot_dimension_numbers<[1], [1], [0], [0], [0, 0, 1, 0], [], []>} : vector<1x8xf32>, vector<8x8xf32>, vector<1x8xf32> -> vector<1x8xf32>
    %cst_190 = arith.constant dense<0xFF800000> : vector<1xf32>
    %560 = vector.multi_reduction <maximumf>, %559, %cst_190 [1] : vector<1x8xf32> to vector<1xf32>
    %561 = vector.shape_cast %560 : vector<1xf32> to vector<1x1xf32>
    %562 = vector.broadcast %561 : vector<1x1xf32> to vector<1x8xf32>
    %563 = arith.subf %559, %562 : vector<1x8xf32>
    %564 = math.exp %563 : vector<1x8xf32>
    %cst_191 = arith.constant dense<0.000000e+00> : vector<1xf32>
    %565 = vector.multi_reduction <add>, %564, %cst_191 [1] : vector<1x8xf32> to vector<1xf32>
    %566 = vector.shape_cast %565 : vector<1xf32> to vector<1x1xf32>
    %567 = vector.broadcast %566 : vector<1x1xf32> to vector<1x8xf32>
    %568 = arith.divf %564, %567 : vector<1x8xf32>
    %cst_192 = arith.constant dense<0.000000e+00> : vector<1x8xf32>
    %569 = tpu.matmul %568, %558, %cst_192 {dimension_numbers = #tpu.dot_dimension_numbers<[1], [0], [0], [1], [0, 0, 1, 1], [], []>} : vector<1x8xf32>, vector<8x8xf32>, vector<1x8xf32> -> vector<1x8xf32>
    %570 = vector.extract_strided_slice %504 {offsets = [24, 0], sizes = [8, 32], strides = [1, 1]} : vector<32x32xf32> to vector<8x32xf32>
    %cst_193 = arith.constant dense<0.000000e+00> : vector<1x32xf32>
    %571 = tpu.matmul %569, %570, %cst_193 {dimension_numbers = #tpu.dot_dimension_numbers<[1], [0], [0], [1], [0, 0, 1, 1], [], []>} : vector<1x8xf32>, vector<8x32xf32>, vector<1x32xf32> -> vector<1x32xf32>
    %572 = arith.addf %555, %571 : vector<1x32xf32>
    %573 = vector.extract_strided_slice %503 {offsets = [8, 0], sizes = [8, 64], strides = [1, 1]} : vector<16x64xf32> to vector<8x64xf32>
    %574 = vector.extract_strided_slice %498 {offsets = [1, 0], sizes = [1, 8], strides = [1, 1]} : vector<2x32xf32> to vector<1x8xf32>
    %575 = vector.extract_strided_slice %573 {offsets = [0, 0], sizes = [8, 8], strides = [1, 1]} : vector<8x64xf32> to vector<8x8xf32>
    %576 = vector.extract_strided_slice %573 {offsets = [0, 32], sizes = [8, 8], strides = [1, 1]} : vector<8x64xf32> to vector<8x8xf32>
    %cst_194 = arith.constant dense<0.000000e+00> : vector<1x8xf32>
    %577 = tpu.matmul %574, %575, %cst_194 {dimension_numbers = #tpu.dot_dimension_numbers<[1], [1], [0], [0], [0, 0, 1, 0], [], []>} : vector<1x8xf32>, vector<8x8xf32>, vector<1x8xf32> -> vector<1x8xf32>
    %cst_195 = arith.constant dense<0xFF800000> : vector<1xf32>
    %578 = vector.multi_reduction <maximumf>, %577, %cst_195 [1] : vector<1x8xf32> to vector<1xf32>
    %579 = vector.shape_cast %578 : vector<1xf32> to vector<1x1xf32>
    %580 = vector.broadcast %579 : vector<1x1xf32> to vector<1x8xf32>
    %581 = arith.subf %577, %580 : vector<1x8xf32>
    %582 = math.exp %581 : vector<1x8xf32>
    %cst_196 = arith.constant dense<0.000000e+00> : vector<1xf32>
    %583 = vector.multi_reduction <add>, %582, %cst_196 [1] : vector<1x8xf32> to vector<1xf32>
    %584 = vector.shape_cast %583 : vector<1xf32> to vector<1x1xf32>
    %585 = vector.broadcast %584 : vector<1x1xf32> to vector<1x8xf32>
    %586 = arith.divf %582, %585 : vector<1x8xf32>
    %cst_197 = arith.constant dense<0.000000e+00> : vector<1x8xf32>
    %587 = tpu.matmul %586, %576, %cst_197 {dimension_numbers = #tpu.dot_dimension_numbers<[1], [0], [0], [1], [0, 0, 1, 1], [], []>} : vector<1x8xf32>, vector<8x8xf32>, vector<1x8xf32> -> vector<1x8xf32>
    %588 = vector.extract_strided_slice %504 {offsets = [0, 0], sizes = [8, 32], strides = [1, 1]} : vector<32x32xf32> to vector<8x32xf32>
    %cst_198 = arith.constant dense<0.000000e+00> : vector<1x32xf32>
    %589 = tpu.matmul %587, %588, %cst_198 {dimension_numbers = #tpu.dot_dimension_numbers<[1], [0], [0], [1], [0, 0, 1, 1], [], []>} : vector<1x8xf32>, vector<8x32xf32>, vector<1x32xf32> -> vector<1x32xf32>
    %590 = vector.extract_strided_slice %498 {offsets = [1, 8], sizes = [1, 8], strides = [1, 1]} : vector<2x32xf32> to vector<1x8xf32>
    %591 = vector.extract_strided_slice %573 {offsets = [0, 8], sizes = [8, 8], strides = [1, 1]} : vector<8x64xf32> to vector<8x8xf32>
    %592 = vector.extract_strided_slice %573 {offsets = [0, 40], sizes = [8, 8], strides = [1, 1]} : vector<8x64xf32> to vector<8x8xf32>
    %cst_199 = arith.constant dense<0.000000e+00> : vector<1x8xf32>
    %593 = tpu.matmul %590, %591, %cst_199 {dimension_numbers = #tpu.dot_dimension_numbers<[1], [1], [0], [0], [0, 0, 1, 0], [], []>} : vector<1x8xf32>, vector<8x8xf32>, vector<1x8xf32> -> vector<1x8xf32>
    %cst_200 = arith.constant dense<0xFF800000> : vector<1xf32>
    %594 = vector.multi_reduction <maximumf>, %593, %cst_200 [1] : vector<1x8xf32> to vector<1xf32>
    %595 = vector.shape_cast %594 : vector<1xf32> to vector<1x1xf32>
    %596 = vector.broadcast %595 : vector<1x1xf32> to vector<1x8xf32>
    %597 = arith.subf %593, %596 : vector<1x8xf32>
    %598 = math.exp %597 : vector<1x8xf32>
    %cst_201 = arith.constant dense<0.000000e+00> : vector<1xf32>
    %599 = vector.multi_reduction <add>, %598, %cst_201 [1] : vector<1x8xf32> to vector<1xf32>
    %600 = vector.shape_cast %599 : vector<1xf32> to vector<1x1xf32>
    %601 = vector.broadcast %600 : vector<1x1xf32> to vector<1x8xf32>
    %602 = arith.divf %598, %601 : vector<1x8xf32>
    %cst_202 = arith.constant dense<0.000000e+00> : vector<1x8xf32>
    %603 = tpu.matmul %602, %592, %cst_202 {dimension_numbers = #tpu.dot_dimension_numbers<[1], [0], [0], [1], [0, 0, 1, 1], [], []>} : vector<1x8xf32>, vector<8x8xf32>, vector<1x8xf32> -> vector<1x8xf32>
    %604 = vector.extract_strided_slice %504 {offsets = [8, 0], sizes = [8, 32], strides = [1, 1]} : vector<32x32xf32> to vector<8x32xf32>
    %cst_203 = arith.constant dense<0.000000e+00> : vector<1x32xf32>
    %605 = tpu.matmul %603, %604, %cst_203 {dimension_numbers = #tpu.dot_dimension_numbers<[1], [0], [0], [1], [0, 0, 1, 1], [], []>} : vector<1x8xf32>, vector<8x32xf32>, vector<1x32xf32> -> vector<1x32xf32>
    %606 = arith.addf %589, %605 : vector<1x32xf32>
    %607 = vector.extract_strided_slice %498 {offsets = [1, 16], sizes = [1, 8], strides = [1, 1]} : vector<2x32xf32> to vector<1x8xf32>
    %608 = vector.extract_strided_slice %573 {offsets = [0, 16], sizes = [8, 8], strides = [1, 1]} : vector<8x64xf32> to vector<8x8xf32>
    %609 = vector.extract_strided_slice %573 {offsets = [0, 48], sizes = [8, 8], strides = [1, 1]} : vector<8x64xf32> to vector<8x8xf32>
    %cst_204 = arith.constant dense<0.000000e+00> : vector<1x8xf32>
    %610 = tpu.matmul %607, %608, %cst_204 {dimension_numbers = #tpu.dot_dimension_numbers<[1], [1], [0], [0], [0, 0, 1, 0], [], []>} : vector<1x8xf32>, vector<8x8xf32>, vector<1x8xf32> -> vector<1x8xf32>
    %cst_205 = arith.constant dense<0xFF800000> : vector<1xf32>
    %611 = vector.multi_reduction <maximumf>, %610, %cst_205 [1] : vector<1x8xf32> to vector<1xf32>
    %612 = vector.shape_cast %611 : vector<1xf32> to vector<1x1xf32>
    %613 = vector.broadcast %612 : vector<1x1xf32> to vector<1x8xf32>
    %614 = arith.subf %610, %613 : vector<1x8xf32>
    %615 = math.exp %614 : vector<1x8xf32>
    %cst_206 = arith.constant dense<0.000000e+00> : vector<1xf32>
    %616 = vector.multi_reduction <add>, %615, %cst_206 [1] : vector<1x8xf32> to vector<1xf32>
    %617 = vector.shape_cast %616 : vector<1xf32> to vector<1x1xf32>
    %618 = vector.broadcast %617 : vector<1x1xf32> to vector<1x8xf32>
    %619 = arith.divf %615, %618 : vector<1x8xf32>
    %cst_207 = arith.constant dense<0.000000e+00> : vector<1x8xf32>
    %620 = tpu.matmul %619, %609, %cst_207 {dimension_numbers = #tpu.dot_dimension_numbers<[1], [0], [0], [1], [0, 0, 1, 1], [], []>} : vector<1x8xf32>, vector<8x8xf32>, vector<1x8xf32> -> vector<1x8xf32>
    %621 = vector.extract_strided_slice %504 {offsets = [16, 0], sizes = [8, 32], strides = [1, 1]} : vector<32x32xf32> to vector<8x32xf32>
    %cst_208 = arith.constant dense<0.000000e+00> : vector<1x32xf32>
    %622 = tpu.matmul %620, %621, %cst_208 {dimension_numbers = #tpu.dot_dimension_numbers<[1], [0], [0], [1], [0, 0, 1, 1], [], []>} : vector<1x8xf32>, vector<8x32xf32>, vector<1x32xf32> -> vector<1x32xf32>
    %623 = arith.addf %606, %622 : vector<1x32xf32>
    %624 = vector.extract_strided_slice %498 {offsets = [1, 24], sizes = [1, 8], strides = [1, 1]} : vector<2x32xf32> to vector<1x8xf32>
    %625 = vector.extract_strided_slice %573 {offsets = [0, 24], sizes = [8, 8], strides = [1, 1]} : vector<8x64xf32> to vector<8x8xf32>
    %626 = vector.extract_strided_slice %573 {offsets = [0, 56], sizes = [8, 8], strides = [1, 1]} : vector<8x64xf32> to vector<8x8xf32>
    %cst_209 = arith.constant dense<0.000000e+00> : vector<1x8xf32>
    %627 = tpu.matmul %624, %625, %cst_209 {dimension_numbers = #tpu.dot_dimension_numbers<[1], [1], [0], [0], [0, 0, 1, 0], [], []>} : vector<1x8xf32>, vector<8x8xf32>, vector<1x8xf32> -> vector<1x8xf32>
    %cst_210 = arith.constant dense<0xFF800000> : vector<1xf32>
    %628 = vector.multi_reduction <maximumf>, %627, %cst_210 [1] : vector<1x8xf32> to vector<1xf32>
    %629 = vector.shape_cast %628 : vector<1xf32> to vector<1x1xf32>
    %630 = vector.broadcast %629 : vector<1x1xf32> to vector<1x8xf32>
    %631 = arith.subf %627, %630 : vector<1x8xf32>
    %632 = math.exp %631 : vector<1x8xf32>
    %cst_211 = arith.constant dense<0.000000e+00> : vector<1xf32>
    %633 = vector.multi_reduction <add>, %632, %cst_211 [1] : vector<1x8xf32> to vector<1xf32>
    %634 = vector.shape_cast %633 : vector<1xf32> to vector<1x1xf32>
    %635 = vector.broadcast %634 : vector<1x1xf32> to vector<1x8xf32>
    %636 = arith.divf %632, %635 : vector<1x8xf32>
    %cst_212 = arith.constant dense<0.000000e+00> : vector<1x8xf32>
    %637 = tpu.matmul %636, %626, %cst_212 {dimension_numbers = #tpu.dot_dimension_numbers<[1], [0], [0], [1], [0, 0, 1, 1], [], []>} : vector<1x8xf32>, vector<8x8xf32>, vector<1x8xf32> -> vector<1x8xf32>
    %638 = vector.extract_strided_slice %504 {offsets = [24, 0], sizes = [8, 32], strides = [1, 1]} : vector<32x32xf32> to vector<8x32xf32>
    %cst_213 = arith.constant dense<0.000000e+00> : vector<1x32xf32>
    %639 = tpu.matmul %637, %638, %cst_213 {dimension_numbers = #tpu.dot_dimension_numbers<[1], [0], [0], [1], [0, 0, 1, 1], [], []>} : vector<1x8xf32>, vector<8x32xf32>, vector<1x32xf32> -> vector<1x32xf32>
    %640 = arith.addf %623, %639 : vector<1x32xf32>
    %641 = tpu.concatenate %572, %640 in 0 : vector<1x32xf32>, vector<1x32xf32> -> vector<2x32xf32>
    %c464 = arith.constant 464 : index
    %c0_214 = arith.constant 0 : index
    %642 = vector.load %arg5[%c464, %c0_214] : memref<904x32xf32, #tpu.memory_space<vmem>>, vector<1x32xf32>
    %643 = vector.broadcast %642 : vector<1x32xf32> to vector<2x32xf32>
    %644 = arith.addf %641, %643 : vector<2x32xf32>
    %645 = arith.addf %493, %644 : vector<2x32xf32>
    %c560 = arith.constant 560 : index
    %c0_215 = arith.constant 0 : index
    %646 = vector.load %arg5[%c560, %c0_215] : memref<904x32xf32, #tpu.memory_space<vmem>>, vector<1x32xf32>
    %c568 = arith.constant 568 : index
    %c0_216 = arith.constant 0 : index
    %647 = vector.load %arg5[%c568, %c0_216] : memref<904x32xf32, #tpu.memory_space<vmem>>, vector<1x32xf32>
    %cst_217 = arith.constant dense<0.000000e+00> : vector<2xf32>
    %648 = vector.multi_reduction <add>, %645, %cst_217 [1] : vector<2x32xf32> to vector<2xf32>
    %649 = vector.shape_cast %648 : vector<2xf32> to vector<2x1xf32>
    %cst_218 = arith.constant 3.200000e+01 : f32
    %650 = vector.broadcast %cst_218 : f32 to vector<2x1xf32>
    %651 = arith.divf %649, %650 : vector<2x1xf32>
    %652 = vector.broadcast %651 : vector<2x1xf32> to vector<2x32xf32>
    %653 = arith.subf %645, %652 : vector<2x32xf32>
    %654 = arith.mulf %653, %653 : vector<2x32xf32>
    %cst_219 = arith.constant dense<0.000000e+00> : vector<2xf32>
    %655 = vector.multi_reduction <add>, %654, %cst_219 [1] : vector<2x32xf32> to vector<2xf32>
    %656 = vector.shape_cast %655 : vector<2xf32> to vector<2x1xf32>
    %cst_220 = arith.constant 3.200000e+01 : f32
    %657 = vector.broadcast %cst_220 : f32 to vector<2x1xf32>
    %658 = arith.divf %656, %657 : vector<2x1xf32>
    %659 = vector.broadcast %651 : vector<2x1xf32> to vector<2x32xf32>
    %660 = arith.subf %645, %659 : vector<2x32xf32>
    %cst_221 = arith.constant 9.99999974E-6 : f32
    %661 = vector.broadcast %cst_221 : f32 to vector<2x1xf32>
    %662 = arith.addf %658, %661 : vector<2x1xf32>
    %663 = math.rsqrt %662 : vector<2x1xf32>
    %664 = vector.broadcast %663 : vector<2x1xf32> to vector<2x32xf32>
    %665 = arith.mulf %660, %664 : vector<2x32xf32>
    %666 = vector.broadcast %646 : vector<1x32xf32> to vector<2x32xf32>
    %667 = arith.mulf %665, %666 : vector<2x32xf32>
    %668 = vector.broadcast %647 : vector<1x32xf32> to vector<2x32xf32>
    %669 = arith.addf %667, %668 : vector<2x32xf32>
    %c80 = arith.constant 80 : index
    %c0_222 = arith.constant 0 : index
    %670 = vector.load %arg4[%c80, %c0_222] : memref<160x64xf32, #tpu.memory_space<vmem>>, vector<32x64xf32>
    %cst_223 = arith.constant dense<0.000000e+00> : vector<2x64xf32>
    %671 = tpu.matmul %669, %670, %cst_223 {dimension_numbers = #tpu.dot_dimension_numbers<[1], [0], [0], [1], [0, 0, 1, 1], [], []>} : vector<2x32xf32>, vector<32x64xf32>, vector<2x64xf32> -> vector<2x64xf32>
    %c112 = arith.constant 112 : index
    %c0_224 = arith.constant 0 : index
    %672 = vector.load %arg4[%c112, %c0_224] : memref<160x64xf32, #tpu.memory_space<vmem>>, vector<1x64xf32>
    %673 = vector.broadcast %672 : vector<1x64xf32> to vector<2x64xf32>
    %674 = arith.addf %671, %673 : vector<2x64xf32>
    %cst_225 = arith.constant 0.000000e+00 : f32
    %675 = vector.broadcast %cst_225 : f32 to vector<2x64xf32>
    %676 = arith.maximumf %674, %675 : vector<2x64xf32>
    %c472 = arith.constant 472 : index
    %c0_226 = arith.constant 0 : index
    %677 = vector.load %arg5[%c472, %c0_226] : memref<904x32xf32, #tpu.memory_space<vmem>>, vector<64x32xf32>
    %cst_227 = arith.constant dense<0.000000e+00> : vector<2x32xf32>
    %678 = tpu.matmul %676, %677, %cst_227 {dimension_numbers = #tpu.dot_dimension_numbers<[1], [0], [0], [1], [0, 0, 1, 1], [], []>} : vector<2x64xf32>, vector<64x32xf32>, vector<2x32xf32> -> vector<2x32xf32>
    %c536 = arith.constant 536 : index
    %c0_228 = arith.constant 0 : index
    %679 = vector.load %arg5[%c536, %c0_228] : memref<904x32xf32, #tpu.memory_space<vmem>>, vector<1x32xf32>
    %680 = vector.broadcast %679 : vector<1x32xf32> to vector<2x32xf32>
    %681 = arith.addf %678, %680 : vector<2x32xf32>
    %682 = arith.addf %669, %681 : vector<2x32xf32>
    %c576 = arith.constant 576 : index
    %c0_229 = arith.constant 0 : index
    %683 = vector.load %arg5[%c576, %c0_229] : memref<904x32xf32, #tpu.memory_space<vmem>>, vector<1x32xf32>
    %c584 = arith.constant 584 : index
    %c0_230 = arith.constant 0 : index
    %684 = vector.load %arg5[%c584, %c0_230] : memref<904x32xf32, #tpu.memory_space<vmem>>, vector<1x32xf32>
    %cst_231 = arith.constant dense<0.000000e+00> : vector<2xf32>
    %685 = vector.multi_reduction <add>, %682, %cst_231 [1] : vector<2x32xf32> to vector<2xf32>
    %686 = vector.shape_cast %685 : vector<2xf32> to vector<2x1xf32>
    %cst_232 = arith.constant 3.200000e+01 : f32
    %687 = vector.broadcast %cst_232 : f32 to vector<2x1xf32>
    %688 = arith.divf %686, %687 : vector<2x1xf32>
    %689 = vector.broadcast %688 : vector<2x1xf32> to vector<2x32xf32>
    %690 = arith.subf %682, %689 : vector<2x32xf32>
    %691 = arith.mulf %690, %690 : vector<2x32xf32>
    %cst_233 = arith.constant dense<0.000000e+00> : vector<2xf32>
    %692 = vector.multi_reduction <add>, %691, %cst_233 [1] : vector<2x32xf32> to vector<2xf32>
    %693 = vector.shape_cast %692 : vector<2xf32> to vector<2x1xf32>
    %cst_234 = arith.constant 3.200000e+01 : f32
    %694 = vector.broadcast %cst_234 : f32 to vector<2x1xf32>
    %695 = arith.divf %693, %694 : vector<2x1xf32>
    %696 = vector.broadcast %688 : vector<2x1xf32> to vector<2x32xf32>
    %697 = arith.subf %682, %696 : vector<2x32xf32>
    %cst_235 = arith.constant 9.99999974E-6 : f32
    %698 = vector.broadcast %cst_235 : f32 to vector<2x1xf32>
    %699 = arith.addf %695, %698 : vector<2x1xf32>
    %700 = math.rsqrt %699 : vector<2x1xf32>
    %701 = vector.broadcast %700 : vector<2x1xf32> to vector<2x32xf32>
    %702 = arith.mulf %697, %701 : vector<2x32xf32>
    %703 = vector.broadcast %683 : vector<1x32xf32> to vector<2x32xf32>
    %704 = arith.mulf %702, %703 : vector<2x32xf32>
    %705 = vector.broadcast %684 : vector<1x32xf32> to vector<2x32xf32>
    %706 = arith.addf %704, %705 : vector<2x32xf32>
    %c592 = arith.constant 592 : index
    %c0_236 = arith.constant 0 : index
    %707 = vector.load %arg5[%c592, %c0_236] : memref<904x32xf32, #tpu.memory_space<vmem>>, vector<32x32xf32>
    %cst_237 = arith.constant dense<0.000000e+00> : vector<2x32xf32>
    %708 = tpu.matmul %706, %707, %cst_237 {dimension_numbers = #tpu.dot_dimension_numbers<[1], [0], [0], [1], [0, 0, 1, 1], [], []>} : vector<2x32xf32>, vector<32x32xf32>, vector<2x32xf32> -> vector<2x32xf32>
    %c624 = arith.constant 624 : index
    %c0_238 = arith.constant 0 : index
    %709 = vector.load %arg5[%c624, %c0_238] : memref<904x32xf32, #tpu.memory_space<vmem>>, vector<1x32xf32>
    %710 = vector.broadcast %709 : vector<1x32xf32> to vector<2x32xf32>
    %711 = arith.addf %708, %710 : vector<2x32xf32>
    %c632 = arith.constant 632 : index
    %c0_239 = arith.constant 0 : index
    %712 = vector.load %arg5[%c632, %c0_239] : memref<904x32xf32, #tpu.memory_space<vmem>>, vector<32x32xf32>
    %cst_240 = arith.constant dense<0.000000e+00> : vector<2x32xf32>
    %713 = tpu.matmul %711, %712, %cst_240 {dimension_numbers = #tpu.dot_dimension_numbers<[1], [0], [0], [1], [0, 0, 1, 1], [], []>} : vector<2x32xf32>, vector<32x32xf32>, vector<2x32xf32> -> vector<2x32xf32>
    %c664 = arith.constant 664 : index
    %c0_241 = arith.constant 0 : index
    %714 = vector.load %arg5[%c664, %c0_241] : memref<904x32xf32, #tpu.memory_space<vmem>>, vector<1x32xf32>
    %715 = vector.broadcast %714 : vector<1x32xf32> to vector<2x32xf32>
    %716 = arith.addf %713, %715 : vector<2x32xf32>
    %717 = arith.addf %706, %716 : vector<2x32xf32>
    %c824 = arith.constant 824 : index
    %c0_242 = arith.constant 0 : index
    %718 = vector.load %arg5[%c824, %c0_242] : memref<904x32xf32, #tpu.memory_space<vmem>>, vector<1x32xf32>
    %c832 = arith.constant 832 : index
    %c0_243 = arith.constant 0 : index
    %719 = vector.load %arg5[%c832, %c0_243] : memref<904x32xf32, #tpu.memory_space<vmem>>, vector<1x32xf32>
    %cst_244 = arith.constant dense<0.000000e+00> : vector<2xf32>
    %720 = vector.multi_reduction <add>, %717, %cst_244 [1] : vector<2x32xf32> to vector<2xf32>
    %721 = vector.shape_cast %720 : vector<2xf32> to vector<2x1xf32>
    %cst_245 = arith.constant 3.200000e+01 : f32
    %722 = vector.broadcast %cst_245 : f32 to vector<2x1xf32>
    %723 = arith.divf %721, %722 : vector<2x1xf32>
    %724 = vector.broadcast %723 : vector<2x1xf32> to vector<2x32xf32>
    %725 = arith.subf %717, %724 : vector<2x32xf32>
    %726 = arith.mulf %725, %725 : vector<2x32xf32>
    %cst_246 = arith.constant dense<0.000000e+00> : vector<2xf32>
    %727 = vector.multi_reduction <add>, %726, %cst_246 [1] : vector<2x32xf32> to vector<2xf32>
    %728 = vector.shape_cast %727 : vector<2xf32> to vector<2x1xf32>
    %cst_247 = arith.constant 3.200000e+01 : f32
    %729 = vector.broadcast %cst_247 : f32 to vector<2x1xf32>
    %730 = arith.divf %728, %729 : vector<2x1xf32>
    %731 = vector.broadcast %723 : vector<2x1xf32> to vector<2x32xf32>
    %732 = arith.subf %717, %731 : vector<2x32xf32>
    %cst_248 = arith.constant 9.99999974E-6 : f32
    %733 = vector.broadcast %cst_248 : f32 to vector<2x1xf32>
    %734 = arith.addf %730, %733 : vector<2x1xf32>
    %735 = math.rsqrt %734 : vector<2x1xf32>
    %736 = vector.broadcast %735 : vector<2x1xf32> to vector<2x32xf32>
    %737 = arith.mulf %732, %736 : vector<2x32xf32>
    %738 = vector.broadcast %718 : vector<1x32xf32> to vector<2x32xf32>
    %739 = arith.mulf %737, %738 : vector<2x32xf32>
    %740 = vector.broadcast %719 : vector<1x32xf32> to vector<2x32xf32>
    %741 = arith.addf %739, %740 : vector<2x32xf32>
    %c672 = arith.constant 672 : index
    %c0_249 = arith.constant 0 : index
    %742 = vector.load %arg5[%c672, %c0_249] : memref<904x32xf32, #tpu.memory_space<vmem>>, vector<32x32xf32>
    %cst_250 = arith.constant dense<0.000000e+00> : vector<2x32xf32>
    %743 = tpu.matmul %741, %742, %cst_250 {dimension_numbers = #tpu.dot_dimension_numbers<[1], [0], [0], [1], [0, 0, 1, 1], [], []>} : vector<2x32xf32>, vector<32x32xf32>, vector<2x32xf32> -> vector<2x32xf32>
    %c704 = arith.constant 704 : index
    %c0_251 = arith.constant 0 : index
    %744 = vector.load %arg5[%c704, %c0_251] : memref<904x32xf32, #tpu.memory_space<vmem>>, vector<1x32xf32>
    %745 = vector.broadcast %744 : vector<1x32xf32> to vector<2x32xf32>
    %746 = arith.addf %743, %745 : vector<2x32xf32>
    %c40_252 = arith.constant 40 : index
    %c0_253 = arith.constant 0 : index
    %747 = vector.load %arg3[%c40_252, %c0_253] : memref<80x64xf32, #tpu.memory_space<vmem>>, vector<32x64xf32>
    %cst_254 = arith.constant dense<0.000000e+00> : vector<16x64xf32>
    %748 = tpu.matmul %458, %747, %cst_254 {dimension_numbers = #tpu.dot_dimension_numbers<[1], [0], [0], [1], [0, 0, 1, 1], [], []>} : vector<16x32xf32>, vector<32x64xf32>, vector<16x64xf32> -> vector<16x64xf32>
    %c72_255 = arith.constant 72 : index
    %c0_256 = arith.constant 0 : index
    %749 = vector.load %arg3[%c72_255, %c0_256] : memref<80x64xf32, #tpu.memory_space<vmem>>, vector<1x64xf32>
    %750 = vector.broadcast %749 : vector<1x64xf32> to vector<16x64xf32>
    %751 = arith.addf %748, %750 : vector<16x64xf32>
    %c712 = arith.constant 712 : index
    %c0_257 = arith.constant 0 : index
    %752 = vector.load %arg5[%c712, %c0_257] : memref<904x32xf32, #tpu.memory_space<vmem>>, vector<32x32xf32>
    %753 = vector.extract_strided_slice %751 {offsets = [0, 0], sizes = [8, 64], strides = [1, 1]} : vector<16x64xf32> to vector<8x64xf32>
    %754 = vector.extract_strided_slice %746 {offsets = [0, 0], sizes = [1, 8], strides = [1, 1]} : vector<2x32xf32> to vector<1x8xf32>
    %755 = vector.extract_strided_slice %753 {offsets = [0, 0], sizes = [8, 8], strides = [1, 1]} : vector<8x64xf32> to vector<8x8xf32>
    %756 = vector.extract_strided_slice %753 {offsets = [0, 32], sizes = [8, 8], strides = [1, 1]} : vector<8x64xf32> to vector<8x8xf32>
    %cst_258 = arith.constant dense<0.000000e+00> : vector<1x8xf32>
    %757 = tpu.matmul %754, %755, %cst_258 {dimension_numbers = #tpu.dot_dimension_numbers<[1], [1], [0], [0], [0, 0, 1, 0], [], []>} : vector<1x8xf32>, vector<8x8xf32>, vector<1x8xf32> -> vector<1x8xf32>
    %cst_259 = arith.constant dense<0xFF800000> : vector<1xf32>
    %758 = vector.multi_reduction <maximumf>, %757, %cst_259 [1] : vector<1x8xf32> to vector<1xf32>
    %759 = vector.shape_cast %758 : vector<1xf32> to vector<1x1xf32>
    %760 = vector.broadcast %759 : vector<1x1xf32> to vector<1x8xf32>
    %761 = arith.subf %757, %760 : vector<1x8xf32>
    %762 = math.exp %761 : vector<1x8xf32>
    %cst_260 = arith.constant dense<0.000000e+00> : vector<1xf32>
    %763 = vector.multi_reduction <add>, %762, %cst_260 [1] : vector<1x8xf32> to vector<1xf32>
    %764 = vector.shape_cast %763 : vector<1xf32> to vector<1x1xf32>
    %765 = vector.broadcast %764 : vector<1x1xf32> to vector<1x8xf32>
    %766 = arith.divf %762, %765 : vector<1x8xf32>
    %cst_261 = arith.constant dense<0.000000e+00> : vector<1x8xf32>
    %767 = tpu.matmul %766, %756, %cst_261 {dimension_numbers = #tpu.dot_dimension_numbers<[1], [0], [0], [1], [0, 0, 1, 1], [], []>} : vector<1x8xf32>, vector<8x8xf32>, vector<1x8xf32> -> vector<1x8xf32>
    %768 = vector.extract_strided_slice %752 {offsets = [0, 0], sizes = [8, 32], strides = [1, 1]} : vector<32x32xf32> to vector<8x32xf32>
    %cst_262 = arith.constant dense<0.000000e+00> : vector<1x32xf32>
    %769 = tpu.matmul %767, %768, %cst_262 {dimension_numbers = #tpu.dot_dimension_numbers<[1], [0], [0], [1], [0, 0, 1, 1], [], []>} : vector<1x8xf32>, vector<8x32xf32>, vector<1x32xf32> -> vector<1x32xf32>
    %770 = vector.extract_strided_slice %746 {offsets = [0, 8], sizes = [1, 8], strides = [1, 1]} : vector<2x32xf32> to vector<1x8xf32>
    %771 = vector.extract_strided_slice %753 {offsets = [0, 8], sizes = [8, 8], strides = [1, 1]} : vector<8x64xf32> to vector<8x8xf32>
    %772 = vector.extract_strided_slice %753 {offsets = [0, 40], sizes = [8, 8], strides = [1, 1]} : vector<8x64xf32> to vector<8x8xf32>
    %cst_263 = arith.constant dense<0.000000e+00> : vector<1x8xf32>
    %773 = tpu.matmul %770, %771, %cst_263 {dimension_numbers = #tpu.dot_dimension_numbers<[1], [1], [0], [0], [0, 0, 1, 0], [], []>} : vector<1x8xf32>, vector<8x8xf32>, vector<1x8xf32> -> vector<1x8xf32>
    %cst_264 = arith.constant dense<0xFF800000> : vector<1xf32>
    %774 = vector.multi_reduction <maximumf>, %773, %cst_264 [1] : vector<1x8xf32> to vector<1xf32>
    %775 = vector.shape_cast %774 : vector<1xf32> to vector<1x1xf32>
    %776 = vector.broadcast %775 : vector<1x1xf32> to vector<1x8xf32>
    %777 = arith.subf %773, %776 : vector<1x8xf32>
    %778 = math.exp %777 : vector<1x8xf32>
    %cst_265 = arith.constant dense<0.000000e+00> : vector<1xf32>
    %779 = vector.multi_reduction <add>, %778, %cst_265 [1] : vector<1x8xf32> to vector<1xf32>
    %780 = vector.shape_cast %779 : vector<1xf32> to vector<1x1xf32>
    %781 = vector.broadcast %780 : vector<1x1xf32> to vector<1x8xf32>
    %782 = arith.divf %778, %781 : vector<1x8xf32>
    %cst_266 = arith.constant dense<0.000000e+00> : vector<1x8xf32>
    %783 = tpu.matmul %782, %772, %cst_266 {dimension_numbers = #tpu.dot_dimension_numbers<[1], [0], [0], [1], [0, 0, 1, 1], [], []>} : vector<1x8xf32>, vector<8x8xf32>, vector<1x8xf32> -> vector<1x8xf32>
    %784 = vector.extract_strided_slice %752 {offsets = [8, 0], sizes = [8, 32], strides = [1, 1]} : vector<32x32xf32> to vector<8x32xf32>
    %cst_267 = arith.constant dense<0.000000e+00> : vector<1x32xf32>
    %785 = tpu.matmul %783, %784, %cst_267 {dimension_numbers = #tpu.dot_dimension_numbers<[1], [0], [0], [1], [0, 0, 1, 1], [], []>} : vector<1x8xf32>, vector<8x32xf32>, vector<1x32xf32> -> vector<1x32xf32>
    %786 = arith.addf %769, %785 : vector<1x32xf32>
    %787 = vector.extract_strided_slice %746 {offsets = [0, 16], sizes = [1, 8], strides = [1, 1]} : vector<2x32xf32> to vector<1x8xf32>
    %788 = vector.extract_strided_slice %753 {offsets = [0, 16], sizes = [8, 8], strides = [1, 1]} : vector<8x64xf32> to vector<8x8xf32>
    %789 = vector.extract_strided_slice %753 {offsets = [0, 48], sizes = [8, 8], strides = [1, 1]} : vector<8x64xf32> to vector<8x8xf32>
    %cst_268 = arith.constant dense<0.000000e+00> : vector<1x8xf32>
    %790 = tpu.matmul %787, %788, %cst_268 {dimension_numbers = #tpu.dot_dimension_numbers<[1], [1], [0], [0], [0, 0, 1, 0], [], []>} : vector<1x8xf32>, vector<8x8xf32>, vector<1x8xf32> -> vector<1x8xf32>
    %cst_269 = arith.constant dense<0xFF800000> : vector<1xf32>
    %791 = vector.multi_reduction <maximumf>, %790, %cst_269 [1] : vector<1x8xf32> to vector<1xf32>
    %792 = vector.shape_cast %791 : vector<1xf32> to vector<1x1xf32>
    %793 = vector.broadcast %792 : vector<1x1xf32> to vector<1x8xf32>
    %794 = arith.subf %790, %793 : vector<1x8xf32>
    %795 = math.exp %794 : vector<1x8xf32>
    %cst_270 = arith.constant dense<0.000000e+00> : vector<1xf32>
    %796 = vector.multi_reduction <add>, %795, %cst_270 [1] : vector<1x8xf32> to vector<1xf32>
    %797 = vector.shape_cast %796 : vector<1xf32> to vector<1x1xf32>
    %798 = vector.broadcast %797 : vector<1x1xf32> to vector<1x8xf32>
    %799 = arith.divf %795, %798 : vector<1x8xf32>
    %cst_271 = arith.constant dense<0.000000e+00> : vector<1x8xf32>
    %800 = tpu.matmul %799, %789, %cst_271 {dimension_numbers = #tpu.dot_dimension_numbers<[1], [0], [0], [1], [0, 0, 1, 1], [], []>} : vector<1x8xf32>, vector<8x8xf32>, vector<1x8xf32> -> vector<1x8xf32>
    %801 = vector.extract_strided_slice %752 {offsets = [16, 0], sizes = [8, 32], strides = [1, 1]} : vector<32x32xf32> to vector<8x32xf32>
    %cst_272 = arith.constant dense<0.000000e+00> : vector<1x32xf32>
    %802 = tpu.matmul %800, %801, %cst_272 {dimension_numbers = #tpu.dot_dimension_numbers<[1], [0], [0], [1], [0, 0, 1, 1], [], []>} : vector<1x8xf32>, vector<8x32xf32>, vector<1x32xf32> -> vector<1x32xf32>
    %803 = arith.addf %786, %802 : vector<1x32xf32>
    %804 = vector.extract_strided_slice %746 {offsets = [0, 24], sizes = [1, 8], strides = [1, 1]} : vector<2x32xf32> to vector<1x8xf32>
    %805 = vector.extract_strided_slice %753 {offsets = [0, 24], sizes = [8, 8], strides = [1, 1]} : vector<8x64xf32> to vector<8x8xf32>
    %806 = vector.extract_strided_slice %753 {offsets = [0, 56], sizes = [8, 8], strides = [1, 1]} : vector<8x64xf32> to vector<8x8xf32>
    %cst_273 = arith.constant dense<0.000000e+00> : vector<1x8xf32>
    %807 = tpu.matmul %804, %805, %cst_273 {dimension_numbers = #tpu.dot_dimension_numbers<[1], [1], [0], [0], [0, 0, 1, 0], [], []>} : vector<1x8xf32>, vector<8x8xf32>, vector<1x8xf32> -> vector<1x8xf32>
    %cst_274 = arith.constant dense<0xFF800000> : vector<1xf32>
    %808 = vector.multi_reduction <maximumf>, %807, %cst_274 [1] : vector<1x8xf32> to vector<1xf32>
    %809 = vector.shape_cast %808 : vector<1xf32> to vector<1x1xf32>
    %810 = vector.broadcast %809 : vector<1x1xf32> to vector<1x8xf32>
    %811 = arith.subf %807, %810 : vector<1x8xf32>
    %812 = math.exp %811 : vector<1x8xf32>
    %cst_275 = arith.constant dense<0.000000e+00> : vector<1xf32>
    %813 = vector.multi_reduction <add>, %812, %cst_275 [1] : vector<1x8xf32> to vector<1xf32>
    %814 = vector.shape_cast %813 : vector<1xf32> to vector<1x1xf32>
    %815 = vector.broadcast %814 : vector<1x1xf32> to vector<1x8xf32>
    %816 = arith.divf %812, %815 : vector<1x8xf32>
    %cst_276 = arith.constant dense<0.000000e+00> : vector<1x8xf32>
    %817 = tpu.matmul %816, %806, %cst_276 {dimension_numbers = #tpu.dot_dimension_numbers<[1], [0], [0], [1], [0, 0, 1, 1], [], []>} : vector<1x8xf32>, vector<8x8xf32>, vector<1x8xf32> -> vector<1x8xf32>
    %818 = vector.extract_strided_slice %752 {offsets = [24, 0], sizes = [8, 32], strides = [1, 1]} : vector<32x32xf32> to vector<8x32xf32>
    %cst_277 = arith.constant dense<0.000000e+00> : vector<1x32xf32>
    %819 = tpu.matmul %817, %818, %cst_277 {dimension_numbers = #tpu.dot_dimension_numbers<[1], [0], [0], [1], [0, 0, 1, 1], [], []>} : vector<1x8xf32>, vector<8x32xf32>, vector<1x32xf32> -> vector<1x32xf32>
    %820 = arith.addf %803, %819 : vector<1x32xf32>
    %821 = vector.extract_strided_slice %751 {offsets = [8, 0], sizes = [8, 64], strides = [1, 1]} : vector<16x64xf32> to vector<8x64xf32>
    %822 = vector.extract_strided_slice %746 {offsets = [1, 0], sizes = [1, 8], strides = [1, 1]} : vector<2x32xf32> to vector<1x8xf32>
    %823 = vector.extract_strided_slice %821 {offsets = [0, 0], sizes = [8, 8], strides = [1, 1]} : vector<8x64xf32> to vector<8x8xf32>
    %824 = vector.extract_strided_slice %821 {offsets = [0, 32], sizes = [8, 8], strides = [1, 1]} : vector<8x64xf32> to vector<8x8xf32>
    %cst_278 = arith.constant dense<0.000000e+00> : vector<1x8xf32>
    %825 = tpu.matmul %822, %823, %cst_278 {dimension_numbers = #tpu.dot_dimension_numbers<[1], [1], [0], [0], [0, 0, 1, 0], [], []>} : vector<1x8xf32>, vector<8x8xf32>, vector<1x8xf32> -> vector<1x8xf32>
    %cst_279 = arith.constant dense<0xFF800000> : vector<1xf32>
    %826 = vector.multi_reduction <maximumf>, %825, %cst_279 [1] : vector<1x8xf32> to vector<1xf32>
    %827 = vector.shape_cast %826 : vector<1xf32> to vector<1x1xf32>
    %828 = vector.broadcast %827 : vector<1x1xf32> to vector<1x8xf32>
    %829 = arith.subf %825, %828 : vector<1x8xf32>
    %830 = math.exp %829 : vector<1x8xf32>
    %cst_280 = arith.constant dense<0.000000e+00> : vector<1xf32>
    %831 = vector.multi_reduction <add>, %830, %cst_280 [1] : vector<1x8xf32> to vector<1xf32>
    %832 = vector.shape_cast %831 : vector<1xf32> to vector<1x1xf32>
    %833 = vector.broadcast %832 : vector<1x1xf32> to vector<1x8xf32>
    %834 = arith.divf %830, %833 : vector<1x8xf32>
    %cst_281 = arith.constant dense<0.000000e+00> : vector<1x8xf32>
    %835 = tpu.matmul %834, %824, %cst_281 {dimension_numbers = #tpu.dot_dimension_numbers<[1], [0], [0], [1], [0, 0, 1, 1], [], []>} : vector<1x8xf32>, vector<8x8xf32>, vector<1x8xf32> -> vector<1x8xf32>
    %836 = vector.extract_strided_slice %752 {offsets = [0, 0], sizes = [8, 32], strides = [1, 1]} : vector<32x32xf32> to vector<8x32xf32>
    %cst_282 = arith.constant dense<0.000000e+00> : vector<1x32xf32>
    %837 = tpu.matmul %835, %836, %cst_282 {dimension_numbers = #tpu.dot_dimension_numbers<[1], [0], [0], [1], [0, 0, 1, 1], [], []>} : vector<1x8xf32>, vector<8x32xf32>, vector<1x32xf32> -> vector<1x32xf32>
    %838 = vector.extract_strided_slice %746 {offsets = [1, 8], sizes = [1, 8], strides = [1, 1]} : vector<2x32xf32> to vector<1x8xf32>
    %839 = vector.extract_strided_slice %821 {offsets = [0, 8], sizes = [8, 8], strides = [1, 1]} : vector<8x64xf32> to vector<8x8xf32>
    %840 = vector.extract_strided_slice %821 {offsets = [0, 40], sizes = [8, 8], strides = [1, 1]} : vector<8x64xf32> to vector<8x8xf32>
    %cst_283 = arith.constant dense<0.000000e+00> : vector<1x8xf32>
    %841 = tpu.matmul %838, %839, %cst_283 {dimension_numbers = #tpu.dot_dimension_numbers<[1], [1], [0], [0], [0, 0, 1, 0], [], []>} : vector<1x8xf32>, vector<8x8xf32>, vector<1x8xf32> -> vector<1x8xf32>
    %cst_284 = arith.constant dense<0xFF800000> : vector<1xf32>
    %842 = vector.multi_reduction <maximumf>, %841, %cst_284 [1] : vector<1x8xf32> to vector<1xf32>
    %843 = vector.shape_cast %842 : vector<1xf32> to vector<1x1xf32>
    %844 = vector.broadcast %843 : vector<1x1xf32> to vector<1x8xf32>
    %845 = arith.subf %841, %844 : vector<1x8xf32>
    %846 = math.exp %845 : vector<1x8xf32>
    %cst_285 = arith.constant dense<0.000000e+00> : vector<1xf32>
    %847 = vector.multi_reduction <add>, %846, %cst_285 [1] : vector<1x8xf32> to vector<1xf32>
    %848 = vector.shape_cast %847 : vector<1xf32> to vector<1x1xf32>
    %849 = vector.broadcast %848 : vector<1x1xf32> to vector<1x8xf32>
    %850 = arith.divf %846, %849 : vector<1x8xf32>
    %cst_286 = arith.constant dense<0.000000e+00> : vector<1x8xf32>
    %851 = tpu.matmul %850, %840, %cst_286 {dimension_numbers = #tpu.dot_dimension_numbers<[1], [0], [0], [1], [0, 0, 1, 1], [], []>} : vector<1x8xf32>, vector<8x8xf32>, vector<1x8xf32> -> vector<1x8xf32>
    %852 = vector.extract_strided_slice %752 {offsets = [8, 0], sizes = [8, 32], strides = [1, 1]} : vector<32x32xf32> to vector<8x32xf32>
    %cst_287 = arith.constant dense<0.000000e+00> : vector<1x32xf32>
    %853 = tpu.matmul %851, %852, %cst_287 {dimension_numbers = #tpu.dot_dimension_numbers<[1], [0], [0], [1], [0, 0, 1, 1], [], []>} : vector<1x8xf32>, vector<8x32xf32>, vector<1x32xf32> -> vector<1x32xf32>
    %854 = arith.addf %837, %853 : vector<1x32xf32>
    %855 = vector.extract_strided_slice %746 {offsets = [1, 16], sizes = [1, 8], strides = [1, 1]} : vector<2x32xf32> to vector<1x8xf32>
    %856 = vector.extract_strided_slice %821 {offsets = [0, 16], sizes = [8, 8], strides = [1, 1]} : vector<8x64xf32> to vector<8x8xf32>
    %857 = vector.extract_strided_slice %821 {offsets = [0, 48], sizes = [8, 8], strides = [1, 1]} : vector<8x64xf32> to vector<8x8xf32>
    %cst_288 = arith.constant dense<0.000000e+00> : vector<1x8xf32>
    %858 = tpu.matmul %855, %856, %cst_288 {dimension_numbers = #tpu.dot_dimension_numbers<[1], [1], [0], [0], [0, 0, 1, 0], [], []>} : vector<1x8xf32>, vector<8x8xf32>, vector<1x8xf32> -> vector<1x8xf32>
    %cst_289 = arith.constant dense<0xFF800000> : vector<1xf32>
    %859 = vector.multi_reduction <maximumf>, %858, %cst_289 [1] : vector<1x8xf32> to vector<1xf32>
    %860 = vector.shape_cast %859 : vector<1xf32> to vector<1x1xf32>
    %861 = vector.broadcast %860 : vector<1x1xf32> to vector<1x8xf32>
    %862 = arith.subf %858, %861 : vector<1x8xf32>
    %863 = math.exp %862 : vector<1x8xf32>
    %cst_290 = arith.constant dense<0.000000e+00> : vector<1xf32>
    %864 = vector.multi_reduction <add>, %863, %cst_290 [1] : vector<1x8xf32> to vector<1xf32>
    %865 = vector.shape_cast %864 : vector<1xf32> to vector<1x1xf32>
    %866 = vector.broadcast %865 : vector<1x1xf32> to vector<1x8xf32>
    %867 = arith.divf %863, %866 : vector<1x8xf32>
    %cst_291 = arith.constant dense<0.000000e+00> : vector<1x8xf32>
    %868 = tpu.matmul %867, %857, %cst_291 {dimension_numbers = #tpu.dot_dimension_numbers<[1], [0], [0], [1], [0, 0, 1, 1], [], []>} : vector<1x8xf32>, vector<8x8xf32>, vector<1x8xf32> -> vector<1x8xf32>
    %869 = vector.extract_strided_slice %752 {offsets = [16, 0], sizes = [8, 32], strides = [1, 1]} : vector<32x32xf32> to vector<8x32xf32>
    %cst_292 = arith.constant dense<0.000000e+00> : vector<1x32xf32>
    %870 = tpu.matmul %868, %869, %cst_292 {dimension_numbers = #tpu.dot_dimension_numbers<[1], [0], [0], [1], [0, 0, 1, 1], [], []>} : vector<1x8xf32>, vector<8x32xf32>, vector<1x32xf32> -> vector<1x32xf32>
    %871 = arith.addf %854, %870 : vector<1x32xf32>
    %872 = vector.extract_strided_slice %746 {offsets = [1, 24], sizes = [1, 8], strides = [1, 1]} : vector<2x32xf32> to vector<1x8xf32>
    %873 = vector.extract_strided_slice %821 {offsets = [0, 24], sizes = [8, 8], strides = [1, 1]} : vector<8x64xf32> to vector<8x8xf32>
    %874 = vector.extract_strided_slice %821 {offsets = [0, 56], sizes = [8, 8], strides = [1, 1]} : vector<8x64xf32> to vector<8x8xf32>
    %cst_293 = arith.constant dense<0.000000e+00> : vector<1x8xf32>
    %875 = tpu.matmul %872, %873, %cst_293 {dimension_numbers = #tpu.dot_dimension_numbers<[1], [1], [0], [0], [0, 0, 1, 0], [], []>} : vector<1x8xf32>, vector<8x8xf32>, vector<1x8xf32> -> vector<1x8xf32>
    %cst_294 = arith.constant dense<0xFF800000> : vector<1xf32>
    %876 = vector.multi_reduction <maximumf>, %875, %cst_294 [1] : vector<1x8xf32> to vector<1xf32>
    %877 = vector.shape_cast %876 : vector<1xf32> to vector<1x1xf32>
    %878 = vector.broadcast %877 : vector<1x1xf32> to vector<1x8xf32>
    %879 = arith.subf %875, %878 : vector<1x8xf32>
    %880 = math.exp %879 : vector<1x8xf32>
    %cst_295 = arith.constant dense<0.000000e+00> : vector<1xf32>
    %881 = vector.multi_reduction <add>, %880, %cst_295 [1] : vector<1x8xf32> to vector<1xf32>
    %882 = vector.shape_cast %881 : vector<1xf32> to vector<1x1xf32>
    %883 = vector.broadcast %882 : vector<1x1xf32> to vector<1x8xf32>
    %884 = arith.divf %880, %883 : vector<1x8xf32>
    %cst_296 = arith.constant dense<0.000000e+00> : vector<1x8xf32>
    %885 = tpu.matmul %884, %874, %cst_296 {dimension_numbers = #tpu.dot_dimension_numbers<[1], [0], [0], [1], [0, 0, 1, 1], [], []>} : vector<1x8xf32>, vector<8x8xf32>, vector<1x8xf32> -> vector<1x8xf32>
    %886 = vector.extract_strided_slice %752 {offsets = [24, 0], sizes = [8, 32], strides = [1, 1]} : vector<32x32xf32> to vector<8x32xf32>
    %cst_297 = arith.constant dense<0.000000e+00> : vector<1x32xf32>
    %887 = tpu.matmul %885, %886, %cst_297 {dimension_numbers = #tpu.dot_dimension_numbers<[1], [0], [0], [1], [0, 0, 1, 1], [], []>} : vector<1x8xf32>, vector<8x32xf32>, vector<1x32xf32> -> vector<1x32xf32>
    %888 = arith.addf %871, %887 : vector<1x32xf32>
    %889 = tpu.concatenate %820, %888 in 0 : vector<1x32xf32>, vector<1x32xf32> -> vector<2x32xf32>
    %c744 = arith.constant 744 : index
    %c0_298 = arith.constant 0 : index
    %890 = vector.load %arg5[%c744, %c0_298] : memref<904x32xf32, #tpu.memory_space<vmem>>, vector<1x32xf32>
    %891 = vector.broadcast %890 : vector<1x32xf32> to vector<2x32xf32>
    %892 = arith.addf %889, %891 : vector<2x32xf32>
    %893 = arith.addf %741, %892 : vector<2x32xf32>
    %c840 = arith.constant 840 : index
    %c0_299 = arith.constant 0 : index
    %894 = vector.load %arg5[%c840, %c0_299] : memref<904x32xf32, #tpu.memory_space<vmem>>, vector<1x32xf32>
    %c848 = arith.constant 848 : index
    %c0_300 = arith.constant 0 : index
    %895 = vector.load %arg5[%c848, %c0_300] : memref<904x32xf32, #tpu.memory_space<vmem>>, vector<1x32xf32>
    %cst_301 = arith.constant dense<0.000000e+00> : vector<2xf32>
    %896 = vector.multi_reduction <add>, %893, %cst_301 [1] : vector<2x32xf32> to vector<2xf32>
    %897 = vector.shape_cast %896 : vector<2xf32> to vector<2x1xf32>
    %cst_302 = arith.constant 3.200000e+01 : f32
    %898 = vector.broadcast %cst_302 : f32 to vector<2x1xf32>
    %899 = arith.divf %897, %898 : vector<2x1xf32>
    %900 = vector.broadcast %899 : vector<2x1xf32> to vector<2x32xf32>
    %901 = arith.subf %893, %900 : vector<2x32xf32>
    %902 = arith.mulf %901, %901 : vector<2x32xf32>
    %cst_303 = arith.constant dense<0.000000e+00> : vector<2xf32>
    %903 = vector.multi_reduction <add>, %902, %cst_303 [1] : vector<2x32xf32> to vector<2xf32>
    %904 = vector.shape_cast %903 : vector<2xf32> to vector<2x1xf32>
    %cst_304 = arith.constant 3.200000e+01 : f32
    %905 = vector.broadcast %cst_304 : f32 to vector<2x1xf32>
    %906 = arith.divf %904, %905 : vector<2x1xf32>
    %907 = vector.broadcast %899 : vector<2x1xf32> to vector<2x32xf32>
    %908 = arith.subf %893, %907 : vector<2x32xf32>
    %cst_305 = arith.constant 9.99999974E-6 : f32
    %909 = vector.broadcast %cst_305 : f32 to vector<2x1xf32>
    %910 = arith.addf %906, %909 : vector<2x1xf32>
    %911 = math.rsqrt %910 : vector<2x1xf32>
    %912 = vector.broadcast %911 : vector<2x1xf32> to vector<2x32xf32>
    %913 = arith.mulf %908, %912 : vector<2x32xf32>
    %914 = vector.broadcast %894 : vector<1x32xf32> to vector<2x32xf32>
    %915 = arith.mulf %913, %914 : vector<2x32xf32>
    %916 = vector.broadcast %895 : vector<1x32xf32> to vector<2x32xf32>
    %917 = arith.addf %915, %916 : vector<2x32xf32>
    %c120 = arith.constant 120 : index
    %c0_306 = arith.constant 0 : index
    %918 = vector.load %arg4[%c120, %c0_306] : memref<160x64xf32, #tpu.memory_space<vmem>>, vector<32x64xf32>
    %cst_307 = arith.constant dense<0.000000e+00> : vector<2x64xf32>
    %919 = tpu.matmul %917, %918, %cst_307 {dimension_numbers = #tpu.dot_dimension_numbers<[1], [0], [0], [1], [0, 0, 1, 1], [], []>} : vector<2x32xf32>, vector<32x64xf32>, vector<2x64xf32> -> vector<2x64xf32>
    %c152_308 = arith.constant 152 : index
    %c0_309 = arith.constant 0 : index
    %920 = vector.load %arg4[%c152_308, %c0_309] : memref<160x64xf32, #tpu.memory_space<vmem>>, vector<1x64xf32>
    %921 = vector.broadcast %920 : vector<1x64xf32> to vector<2x64xf32>
    %922 = arith.addf %919, %921 : vector<2x64xf32>
    %cst_310 = arith.constant 0.000000e+00 : f32
    %923 = vector.broadcast %cst_310 : f32 to vector<2x64xf32>
    %924 = arith.maximumf %922, %923 : vector<2x64xf32>
    %c752 = arith.constant 752 : index
    %c0_311 = arith.constant 0 : index
    %925 = vector.load %arg5[%c752, %c0_311] : memref<904x32xf32, #tpu.memory_space<vmem>>, vector<64x32xf32>
    %cst_312 = arith.constant dense<0.000000e+00> : vector<2x32xf32>
    %926 = tpu.matmul %924, %925, %cst_312 {dimension_numbers = #tpu.dot_dimension_numbers<[1], [0], [0], [1], [0, 0, 1, 1], [], []>} : vector<2x64xf32>, vector<64x32xf32>, vector<2x32xf32> -> vector<2x32xf32>
    %c816 = arith.constant 816 : index
    %c0_313 = arith.constant 0 : index
    %927 = vector.load %arg5[%c816, %c0_313] : memref<904x32xf32, #tpu.memory_space<vmem>>, vector<1x32xf32>
    %928 = vector.broadcast %927 : vector<1x32xf32> to vector<2x32xf32>
    %929 = arith.addf %926, %928 : vector<2x32xf32>
    %930 = arith.addf %917, %929 : vector<2x32xf32>
    %c856 = arith.constant 856 : index
    %c0_314 = arith.constant 0 : index
    %931 = vector.load %arg5[%c856, %c0_314] : memref<904x32xf32, #tpu.memory_space<vmem>>, vector<1x32xf32>
    %c864 = arith.constant 864 : index
    %c0_315 = arith.constant 0 : index
    %932 = vector.load %arg5[%c864, %c0_315] : memref<904x32xf32, #tpu.memory_space<vmem>>, vector<1x32xf32>
    %cst_316 = arith.constant dense<0.000000e+00> : vector<2xf32>
    %933 = vector.multi_reduction <add>, %930, %cst_316 [1] : vector<2x32xf32> to vector<2xf32>
    %934 = vector.shape_cast %933 : vector<2xf32> to vector<2x1xf32>
    %cst_317 = arith.constant 3.200000e+01 : f32
    %935 = vector.broadcast %cst_317 : f32 to vector<2x1xf32>
    %936 = arith.divf %934, %935 : vector<2x1xf32>
    %937 = vector.broadcast %936 : vector<2x1xf32> to vector<2x32xf32>
    %938 = arith.subf %930, %937 : vector<2x32xf32>
    %939 = arith.mulf %938, %938 : vector<2x32xf32>
    %cst_318 = arith.constant dense<0.000000e+00> : vector<2xf32>
    %940 = vector.multi_reduction <add>, %939, %cst_318 [1] : vector<2x32xf32> to vector<2xf32>
    %941 = vector.shape_cast %940 : vector<2xf32> to vector<2x1xf32>
    %cst_319 = arith.constant 3.200000e+01 : f32
    %942 = vector.broadcast %cst_319 : f32 to vector<2x1xf32>
    %943 = arith.divf %941, %942 : vector<2x1xf32>
    %944 = vector.broadcast %936 : vector<2x1xf32> to vector<2x32xf32>
    %945 = arith.subf %930, %944 : vector<2x32xf32>
    %cst_320 = arith.constant 9.99999974E-6 : f32
    %946 = vector.broadcast %cst_320 : f32 to vector<2x1xf32>
    %947 = arith.addf %943, %946 : vector<2x1xf32>
    %948 = math.rsqrt %947 : vector<2x1xf32>
    %949 = vector.broadcast %948 : vector<2x1xf32> to vector<2x32xf32>
    %950 = arith.mulf %945, %949 : vector<2x32xf32>
    %951 = vector.broadcast %931 : vector<1x32xf32> to vector<2x32xf32>
    %952 = arith.mulf %950, %951 : vector<2x32xf32>
    %953 = vector.broadcast %932 : vector<1x32xf32> to vector<2x32xf32>
    %954 = arith.addf %952, %953 : vector<2x32xf32>
    %c888 = arith.constant 888 : index
    %c0_321 = arith.constant 0 : index
    %955 = vector.load %arg5[%c888, %c0_321] : memref<904x32xf32, #tpu.memory_space<vmem>>, vector<1x32xf32>
    %c896 = arith.constant 896 : index
    %c0_322 = arith.constant 0 : index
    %956 = vector.load %arg5[%c896, %c0_322] : memref<904x32xf32, #tpu.memory_space<vmem>>, vector<1x32xf32>
    %cst_323 = arith.constant dense<0.000000e+00> : vector<2xf32>
    %957 = vector.multi_reduction <add>, %954, %cst_323 [1] : vector<2x32xf32> to vector<2xf32>
    %958 = vector.shape_cast %957 : vector<2xf32> to vector<2x1xf32>
    %cst_324 = arith.constant 3.200000e+01 : f32
    %959 = vector.broadcast %cst_324 : f32 to vector<2x1xf32>
    %960 = arith.divf %958, %959 : vector<2x1xf32>
    %961 = vector.broadcast %960 : vector<2x1xf32> to vector<2x32xf32>
    %962 = arith.subf %954, %961 : vector<2x32xf32>
    %963 = arith.mulf %962, %962 : vector<2x32xf32>
    %cst_325 = arith.constant dense<0.000000e+00> : vector<2xf32>
    %964 = vector.multi_reduction <add>, %963, %cst_325 [1] : vector<2x32xf32> to vector<2xf32>
    %965 = vector.shape_cast %964 : vector<2xf32> to vector<2x1xf32>
    %cst_326 = arith.constant 3.200000e+01 : f32
    %966 = vector.broadcast %cst_326 : f32 to vector<2x1xf32>
    %967 = arith.divf %965, %966 : vector<2x1xf32>
    %968 = vector.broadcast %960 : vector<2x1xf32> to vector<2x32xf32>
    %969 = arith.subf %954, %968 : vector<2x32xf32>
    %cst_327 = arith.constant 9.99999974E-6 : f32
    %970 = vector.broadcast %cst_327 : f32 to vector<2x1xf32>
    %971 = arith.addf %967, %970 : vector<2x1xf32>
    %972 = math.rsqrt %971 : vector<2x1xf32>
    %973 = vector.broadcast %972 : vector<2x1xf32> to vector<2x32xf32>
    %974 = arith.mulf %969, %973 : vector<2x32xf32>
    %975 = vector.broadcast %955 : vector<1x32xf32> to vector<2x32xf32>
    %976 = arith.mulf %974, %975 : vector<2x32xf32>
    %977 = vector.broadcast %956 : vector<1x32xf32> to vector<2x32xf32>
    %978 = arith.addf %976, %977 : vector<2x32xf32>
    %c0_328 = arith.constant 0 : index
    %c0_329 = arith.constant 0 : index
    %979 = vector.load %arg6[%c0_328, %c0_329] : memref<40x12xf32, #tpu.memory_space<vmem>>, vector<32x12xf32>
    %cst_330 = arith.constant dense<0.000000e+00> : vector<2x12xf32>
    %980 = tpu.matmul %978, %979, %cst_330 {dimension_numbers = #tpu.dot_dimension_numbers<[1], [0], [0], [1], [0, 0, 1, 1], [], []>} : vector<2x32xf32>, vector<32x12xf32>, vector<2x12xf32> -> vector<2x12xf32>
    %c32_331 = arith.constant 32 : index
    %c0_332 = arith.constant 0 : index
    %981 = vector.load %arg6[%c32_331, %c0_332] : memref<40x12xf32, #tpu.memory_space<vmem>>, vector<1x12xf32>
    %982 = vector.broadcast %981 : vector<1x12xf32> to vector<2x12xf32>
    %983 = arith.addf %980, %982 : vector<2x12xf32>
    %c0_333 = arith.constant 0 : index
    %c0_334 = arith.constant 0 : index
    %c0_335 = arith.constant 0 : index
    %984 = vector.load %arg7[%c0_333, %c0_334, %c0_335] : memref<1x2x12xf32, #tpu.memory_space<vmem>>, vector<1x2x12xf32>
    %985 = vector.shape_cast %984 : vector<1x2x12xf32> to vector<2x12xf32>
    %986 = vector.shape_cast %983 : vector<2x12xf32> to vector<1x2x12xf32>
    tpu.vector_store %arg7[%c0_333, %c0_334, %c0_335], %986 {strides = array<i32>} : memref<1x2x12xf32, #tpu.memory_space<vmem>>, vector<1x2x12xf32>,
    return
  }
  func.func @transform_0(%arg0: i32) -> (i32, i32, i32) {
    %c0_i32 = arith.constant 0 : i32
    %c0_i32_0 = arith.constant 0 : i32
    %c0_i32_1 = arith.constant 0 : i32
    return %arg0, %c0_i32, %c0_i32_0 : i32, i32, i32
  }
  func.func @transform_1(%arg0: i32) -> (i32, i32) {
    %c0_i32 = arith.constant 0 : i32
    %c0_i32_0 = arith.constant 0 : i32
    %c0_i32_1 = arith.constant 0 : i32
    return %c0_i32, %c0_i32_0 : i32, i32
  }
  func.func @transform_2(%arg0: i32) -> (i32, i32) {
    %c0_i32 = arith.constant 0 : i32
    %c0_i32_0 = arith.constant 0 : i32
    %c0_i32_1 = arith.constant 0 : i32
    return %c0_i32, %c0_i32_0 : i32, i32
  }
  func.func @transform_3(%arg0: i32) -> (i32, i32) {
    %c0_i32 = arith.constant 0 : i32
    %c0_i32_0 = arith.constant 0 : i32
    %c0_i32_1 = arith.constant 0 : i32
    return %c0_i32, %c0_i32_0 : i32, i32
  }
  func.func @transform_4(%arg0: i32) -> (i32, i32) {
    %c0_i32 = arith.constant 0 : i32
    %c0_i32_0 = arith.constant 0 : i32
    %c0_i32_1 = arith.constant 0 : i32
    return %c0_i32, %c0_i32_0 : i32, i32
  }
  func.func @transform_5(%arg0: i32) -> (i32, i32) {
    %c0_i32 = arith.constant 0 : i32
    %c0_i32_0 = arith.constant 0 : i32
    %c0_i32_1 = arith.constant 0 : i32
    return %c0_i32, %c0_i32_0 : i32, i32
  }
  func.func @transform_6(%arg0: i32) -> (i32, i32, i32) {
    %c0_i32 = arith.constant 0 : i32
    %c0_i32_0 = arith.constant 0 : i32
    %c0_i32_1 = arith.constant 0 : i32
    return %arg0, %c0_i32, %c0_i32_0 : i32, i32, i32
  }
}

</mosaic_0001>

<llo_original>
// kernel: transformer_forward.1
$region0: #{transformer_forward.1}
  #allocation0 [shape = 'u32[]', space=smem, size = 0x4, offset = 0x4, fixed_abs, tag = 'smem constant byte address 0x4 - core index']
  #allocation1 [shape = 'u32[144,128]{1,0:T(1,128)}', space=vmem, size = 0x12000, scoped, tag = 'internal scratch']
  %s0 = inlined_call_operand.vmem [shape: f32[2,8,4], index: 0, kind: input, shape index: {}]
  %s1 = inlined_call_operand.vmem [shape: f32[80,96], index: 1, kind: input, shape index: {}]
  %s2 = inlined_call_operand.vmem [shape: f32[80,64], index: 2, kind: input, shape index: {}]
  %s3 = inlined_call_operand.vmem [shape: f32[160,64], index: 3, kind: input, shape index: {}]
  %s4 = inlined_call_operand.vmem [shape: f32[904,32], index: 4, kind: input, shape index: {}]
  %s5 = inlined_call_operand.vmem [shape: f32[40,12], index: 5, kind: input, shape index: {}]
  %s6 = inlined_call_operand.vmem [shape: f32[1,2,12], index: 6, kind: output, shape index: {}]
  %s7 = sld [smem:[#allocation0]]
  $region34: #{transformer_forward.1} parent=0
    _
  %s9 = ssub.s32 1, %s7
  %s10 = scalar_select 0, %s9, %s7
  // Predicated region
  $region2: #{transformer_forward.1} parent=0 // pred_check
    _
  $region3: #{transformer_forward.1} parent=0 // pred_check_branch
    %12 = sbr.rel (0) target = $region5
  $region4: #{transformer_forward.1} parent=0 // pred_region
    _
  $region5: #{transformer_forward.1} parent=0 // pred_fallthru
    _
  // Predicated region
  $region6: #{transformer_forward.1} parent=0 // pred_check
    _
  $region7: #{transformer_forward.1} parent=0 // pred_check_branch
    %14 = sbr.rel (0) target = $region9
  $region8: #{transformer_forward.1} parent=0 // pred_region
    _
  $region9: #{transformer_forward.1} parent=0 // pred_fallthru
    _
  // Predicated region
  $region10: #{transformer_forward.1} parent=0 // pred_check
    _
  $region11: #{transformer_forward.1} parent=0 // pred_check_branch
    %16 = sbr.rel (0) target = $region13
  $region12: #{transformer_forward.1} parent=0 // pred_region
    _
  $region13: #{transformer_forward.1} parent=0 // pred_fallthru
    _
  // Predicated region
  $region14: #{transformer_forward.1} parent=0 // pred_check
    _
  $region15: #{transformer_forward.1} parent=0 // pred_check_branch
    %18 = sbr.rel (0) target = $region17
  $region16: #{transformer_forward.1} parent=0 // pred_region
    _
  $region17: #{transformer_forward.1} parent=0 // pred_fallthru
    _
  // Predicated region
  $region18: #{transformer_forward.1} parent=0 // pred_check
    _
  $region19: #{transformer_forward.1} parent=0 // pred_check_branch
    %20 = sbr.rel (0) target = $region21
  $region20: #{transformer_forward.1} parent=0 // pred_region
    _
  $region21: #{transformer_forward.1} parent=0 // pred_fallthru
    _
  // Predicated region
  $region22: #{transformer_forward.1} parent=0 // pred_check
    _
  $region23: #{transformer_forward.1} parent=0 // pred_check_branch
    %22 = sbr.rel (0) target = $region25
  $region24: #{transformer_forward.1} parent=0 // pred_region
    _
  $region25: #{transformer_forward.1} parent=0 // pred_fallthru
    _
  %v23 = vld [vmem:[%s4] sm:$0xf]
  %v24 = vld [vmem:[%s4 + $0x8] sm:$0x1]
  %v25 = vld [vmem:[%s4 + $0x10] sm:$0xff]
  %v26 = vld [vmem:[%s0] sm:$0xff]
  %s27 = scalar_lea.vmem %s0, 8
  %v28 = vld [vmem:[%s27] sm:$0xff]
  %v29 = vlaneseq
  %v30 = vshrl.u32 %v29, 7
  %v31 = vsub.s32 0, %v30
  %v32 = vrot.slane %v24, %v31
  %vm33 = vcmask 31744
  %v35 = vsel %vm33, %v26, 0
  %v38 = vsel %vm33, %v28, 0
  %vm40 = vcmask 1043456
  %v42 = vsel %vm40, %v23, 0
  %44 = vmatprep.subr.mxu0 0.0
  %45 = vmatpush1.msra.mxu0 0.0
  %46 = vmatprep.subr.mxu0 0.0
  %47 = vmatpush1.msra.mxu0 0.0
  %48 = vmatprep.subr.mxu0 0.0
  %49 = vmatpush1.msra.mxu0 0.0
  %50 = vmatprep.subr.mxu0 0.0
  %51 = vmatpush1.msra.mxu0 0.0
  %52 = vmatprep.subr.mxu0 0.0
  %53 = vmatpush1.msra.mxu0 0.0
  %54 = vmatprep.subr.mxu0 0.0
  %55 = vmatpush1.msra.mxu0 0.0
  %56 = vmatprep.subr.mxu0 0.0
  %57 = vmatpush1.msra.mxu0 0.0
  %58 = vmatprep.subr.mxu0 0.0
  %59 = vmatpush1.msra.mxu0 0.0
  %60 = vmatprep.subr.mxu0 0.0
  %61 = vmatpush1.msra.mxu0 0.0
  %62 = vmatprep.subr.mxu0 0.0
  %63 = vmatpush1.msra.mxu0 0.0
  %64 = vmatprep.subr.mxu0 0.0
  %65 = vmatpush1.msra.mxu0 0.0
  %66 = vmatprep.subr.mxu0 0.0
  %67 = vmatpush1.msra.mxu0 0.0
  %68 = vmatprep.subr.mxu0 0.0
  %69 = vmatpush1.msra.mxu0 0.0
  %70 = vmatprep.subr.mxu0 0.0
  %71 = vmatpush1.msra.mxu0 0.0
  %72 = vmatprep.subr.mxu0 0.0
  %73 = vmatpush1.msra.mxu0 0.0
  %74 = vmatprep.subr.mxu0 0.0
  %75 = vmatpush1.msra.mxu0 %v42
  %76 = vmatprep.subr.mxu0 0.0
  %77 = vmatpush2.msra.mxu0 0.0
  %78 = vmatprep.subr.mxu0 0.0
  %79 = vmatpush2.msra.mxu0 0.0
  %80 = vmatprep.subr.mxu0 0.0
  %81 = vmatpush2.msra.mxu0 0.0
  %82 = vmatprep.subr.mxu0 0.0
  %83 = vmatpush2.msra.mxu0 0.0
  %84 = vmatprep.subr.mxu0 0.0
  %85 = vmatpush2.msra.mxu0 0.0
  %86 = vmatprep.subr.mxu0 0.0
  %87 = vmatpush2.msra.mxu0 0.0
  %88 = vmatprep.subr.mxu0 0.0
  %89 = vmatpush2.msra.mxu0 0.0
  %90 = vmatprep.subr.mxu0 0.0
  %91 = vmatpush2.msra.mxu0 0.0
  %92 = vmatprep.subr.mxu0 0.0
  %93 = vmatpush2.msra.mxu0 0.0
  %94 = vmatprep.subr.mxu0 0.0
  %95 = vmatpush2.msra.mxu0 0.0
  %96 = vmatprep.subr.mxu0 0.0
  %97 = vmatpush2.msra.mxu0 0.0
  %98 = vmatprep.subr.mxu0 0.0
  %99 = vmatpush2.msra.mxu0 0.0
  %100 = vmatprep.subr.mxu0 0.0
  %101 = vmatpush2.msra.mxu0 0.0
  %102 = vmatprep.subr.mxu0 0.0
  %103 = vmatpush2.msra.mxu0 0.0
  %104 = vmatprep.subr.mxu0 0.0
  %105 = vmatpush2.msra.mxu0 0.0
  %106 = vmatprep.subr.mxu0 0.0
  %107 = vmatpush2.msra.mxu0 0.0
  %108 = vmatprep.mubr.f32.mxu0 0.0
  %109 = vmatmul.mubr.f32.gmra.mxu0 %v35
  %v110 = vpop.f32.mrf.mxu0
  %v111 = vadd.f32 %v32, %v110
  %v112 = vpop.f32.mrf.mxu0
  %113 = vmatprep.mubr.f32.mxu0 0.0
  %114 = vmatmul.mubr.f32.gmra.mxu0 %v38
  %v115 = vpop.f32.mrf.mxu0
  %v116 = vadd.f32 %v32, %v115
  %v117 = vpop.f32.mrf.mxu0
  %118 = vdwg.mxu0
  %v119 = vadd.f32 %v111, %v25
  %v120 = vadd.f32 %v116, %v25
  %v122 = vrot.slane %v111, 7
  %v125 = vrot.slane %v116, 6
  %vm127 = vcmask 1040384
  %v128 = vsel %vm127, %v122, %v125
  %v129 = vlaneseq
  %v130 = vshrl.u32 %v129, 7
  %v131 = vsub.s32 0, %v130
  %v132 = vrot.slane %v25, %v131
  %v133 = vadd.f32 %v128, %v132
  %v134 = vld [vmem:[%s1] sm:$0xff]
  %v135 = vld [vmem:[%s1 + $0x8] sm:$0xff]
  %v136 = vld [vmem:[%s1 + $0x10] sm:$0xff]
  %v137 = vld [vmem:[%s1 + $0x18] sm:$0xff]
  %v138 = vld [vmem:[%s1 + $0x20] sm:$0x1]
  %v139 = vld [vmem:[%s4 + $0x18] sm:$0xff]
  %v140 = vld [vmem:[%s4 + $0x20] sm:$0xff]
  %v141 = vld [vmem:[%s4 + $0x28] sm:$0xff]
  %v142 = vld [vmem:[%s4 + $0x30] sm:$0xff]
  %v143 = vld [vmem:[%s4 + $0x38] sm:$0x1]
  %v144 = vlaneseq
  %v145 = vshrl.u32 %v144, 7
  %v146 = vsub.s32 0, %v145
  %v147 = vrot.slane %v138, %v146
  %vm148 = vcmask 261120
  %v150 = vsel %vm148, %v119, 0
  %v153 = vsel %vm148, %v120, 0
  %155 = vmatprep.subr.mxu0 0.0
  %156 = vmatpush1.msra.mxu0 0.0
  %157 = vmatprep.subr.mxu0 0.0
  %158 = vmatpush1.msra.mxu0 0.0
  %159 = vmatprep.subr.mxu0 0.0
  %160 = vmatpush1.msra.mxu0 0.0
  %161 = vmatprep.subr.mxu0 0.0
  %162 = vmatpush1.msra.mxu0 0.0
  %163 = vmatprep.subr.mxu0 0.0
  %164 = vmatpush1.msra.mxu0 0.0
  %165 = vmatprep.subr.mxu0 0.0
  %166 = vmatpush1.msra.mxu0 0.0
  %167 = vmatprep.subr.mxu0 0.0
  %168 = vmatpush1.msra.mxu0 0.0
  %169 = vmatprep.subr.mxu0 0.0
  %170 = vmatpush1.msra.mxu0 0.0
  %171 = vmatprep.subr.mxu0 0.0
  %172 = vmatpush1.msra.mxu0 0.0
  %173 = vmatprep.subr.mxu0 0.0
  %174 = vmatpush1.msra.mxu0 0.0
  %175 = vmatprep.subr.mxu0 0.0
  %176 = vmatpush1.msra.mxu0 0.0
  %177 = vmatprep.subr.mxu0 0.0
  %178 = vmatpush1.msra.mxu0 0.0
  %179 = vmatprep.subr.mxu0 0.0
  %180 = vmatpush1.msra.mxu0 %v137
  %181 = vmatprep.subr.mxu0 0.0
  %182 = vmatpush1.msra.mxu0 %v136
  %183 = vmatprep.subr.mxu0 0.0
  %184 = vmatpush1.msra.mxu0 %v135
  %185 = vmatprep.subr.mxu0 0.0
  %186 = vmatpush1.msra.mxu0 %v134
  %187 = vmatprep.subr.mxu0 0.0
  %188 = vmatpush2.msra.mxu0 0.0
  %189 = vmatprep.subr.mxu0 0.0
  %190 = vmatpush2.msra.mxu0 0.0
  %191 = vmatprep.subr.mxu0 0.0
  %192 = vmatpush2.msra.mxu0 0.0
  %193 = vmatprep.subr.mxu0 0.0
  %194 = vmatpush2.msra.mxu0 0.0
  %195 = vmatprep.subr.mxu0 0.0
  %196 = vmatpush2.msra.mxu0 0.0
  %197 = vmatprep.subr.mxu0 0.0
  %198 = vmatpush2.msra.mxu0 0.0
  %199 = vmatprep.subr.mxu0 0.0
  %200 = vmatpush2.msra.mxu0 0.0
  %201 = vmatprep.subr.mxu0 0.0
  %202 = vmatpush2.msra.mxu0 0.0
  %203 = vmatprep.subr.mxu0 0.0
  %204 = vmatpush2.msra.mxu0 0.0
  %205 = vmatprep.subr.mxu0 0.0
  %206 = vmatpush2.msra.mxu0 0.0
  %207 = vmatprep.subr.mxu0 0.0
  %208 = vmatpush2.msra.mxu0 0.0
  %209 = vmatprep.subr.mxu0 0.0
  %210 = vmatpush2.msra.mxu0 0.0
  %211 = vmatprep.subr.mxu0 0.0
  %212 = vmatpush2.msra.mxu0 0.0
  %213 = vmatprep.subr.mxu0 0.0
  %214 = vmatpush2.msra.mxu0 0.0
  %215 = vmatprep.subr.mxu0 0.0
  %216 = vmatpush2.msra.mxu0 0.0
  %217 = vmatprep.subr.mxu0 0.0
  %218 = vmatpush2.msra.mxu0 0.0
  %219 = vmatprep.mubr.f32.mxu0 0.0
  %220 = vmatmul.mubr.f32.gmra.mxu0 %v150
  %v221 = vpop.f32.mrf.mxu0
  %v222 = vadd.f32 %v147, %v221
  %v223 = vpop.f32.mrf.mxu0
  %224 = vmatprep.mubr.f32.mxu0 0.0
  %225 = vmatmul.mubr.f32.gmra.mxu0 %v153
  %v226 = vpop.f32.mrf.mxu0
  %v227 = vadd.f32 %v147, %v226
  %v228 = vpop.f32.mrf.mxu0
  %229 = vdwg.mxu0
  %231 = vrot.lane.b32.xlu0 %v222, 96
  %v232 = vpop.permute.xlu0 %231
  %vm233 = vcmask 64512
  %v234 = vsel %vm233, %v222, 0
  %v236 = vsel %vm233, %v232, 0
  %238 = vmatprep.subr.mxu0 0.0
  %239 = vmatpush1.xpose.msra.mxu0 0.0
  %240 = vmatprep.subr.mxu0 0.0
  %241 = vmatpush1.xpose.msra.mxu0 0.0
  %242 = vmatprep.subr.mxu0 0.0
  %243 = vmatpush1.xpose.msra.mxu0 0.0
  %244 = vmatprep.subr.mxu0 0.0
  %245 = vmatpush1.xpose.msra.mxu0 0.0
  %246 = vmatprep.subr.mxu0 0.0
  %247 = vmatpush1.xpose.msra.mxu0 0.0
  %248 = vmatprep.subr.mxu0 0.0
  %249 = vmatpush1.xpose.msra.mxu0 0.0
  %250 = vmatprep.subr.mxu0 0.0
  %251 = vmatpush1.xpose.msra.mxu0 0.0
  %252 = vmatprep.subr.mxu0 0.0
  %253 = vmatpush1.xpose.msra.mxu0 0.0
  %254 = vmatprep.subr.mxu0 0.0
  %255 = vmatpush1.xpose.msra.mxu0 0.0
  %256 = vmatprep.subr.mxu0 0.0
  %257 = vmatpush1.xpose.msra.mxu0 0.0
  %258 = vmatprep.subr.mxu0 0.0
  %259 = vmatpush1.xpose.msra.mxu0 0.0
  %260 = vmatprep.subr.mxu0 0.0
  %261 = vmatpush1.xpose.msra.mxu0 0.0
  %262 = vmatprep.subr.mxu0 0.0
  %263 = vmatpush1.xpose.msra.mxu0 0.0
  %264 = vmatprep.subr.mxu0 0.0
  %265 = vmatpush1.xpose.msra.mxu0 0.0
  %266 = vmatprep.subr.mxu0 0.0
  %267 = vmatpush1.xpose.msra.mxu0 0.0
  %268 = vmatprep.subr.mxu0 0.0
  %269 = vmatpush1.xpose.msra.mxu0 %v236
  %270 = vmatprep.subr.mxu0 0.0
  %271 = vmatpush2.xpose.msra.mxu0 0.0
  %272 = vmatprep.subr.mxu0 0.0
  %273 = vmatpush2.xpose.msra.mxu0 0.0
  %274 = vmatprep.subr.mxu0 0.0
  %275 = vmatpush2.xpose.msra.mxu0 0.0
  %276 = vmatprep.subr.mxu0 0.0
  %277 = vmatpush2.xpose.msra.mxu0 0.0
  %278 = vmatprep.subr.mxu0 0.0
  %279 = vmatpush2.xpose.msra.mxu0 0.0
  %280 = vmatprep.subr.mxu0 0.0
  %281 = vmatpush2.xpose.msra.mxu0 0.0
  %282 = vmatprep.subr.mxu0 0.0
  %283 = vmatpush2.xpose.msra.mxu0 0.0
  %284 = vmatprep.subr.mxu0 0.0
  %285 = vmatpush2.xpose.msra.mxu0 0.0
  %286 = vmatprep.subr.mxu0 0.0
  %287 = vmatpush2.xpose.msra.mxu0 0.0
  %288 = vmatprep.subr.mxu0 0.0
  %289 = vmatpush2.xpose.msra.mxu0 0.0
  %290 = vmatprep.subr.mxu0 0.0
  %291 = vmatpush2.xpose.msra.mxu0 0.0
  %292 = vmatprep.subr.mxu0 0.0
  %293 = vmatpush2.xpose.msra.mxu0 0.0
  %294 = vmatprep.subr.mxu0 0.0
  %295 = vmatpush2.xpose.msra.mxu0 0.0
  %296 = vmatprep.subr.mxu0 0.0
  %297 = vmatpush2.xpose.msra.mxu0 0.0
  %298 = vmatprep.subr.mxu0 0.0
  %299 = vmatpush2.xpose.msra.mxu0 0.0
  %300 = vmatprep.subr.mxu0 0.0
  %301 = vmatpush2.xpose.msra.mxu0 0.0
  %302 = vmatprep.mubr.f32.mxu0 0.0
  %303 = vmatmul.mubr.f32.gmra.mxu0 %v234
  %v304 = vpop.f32.mrf.mxu0
  %v305 = vadd.f32 0.0, %v304
  %v306 = vpop.f32.mrf.mxu0
  %307 = vdwg.mxu0
  %v308 = vsel %vm233, %v305, -inf
  %309 = vmax.xlane.f32.xlu0 %v308
  %v310 = vpop.xlane.xlu0 %309
  %v311 = vsub.f32 %v305, %v310
  %v312 = vmul.f32 %v311, 1.442695
  %v313 = vpow.pop %v312
  %v314 = vsel %vm233, %v313, 0.0
  %315 = vadd.xlane.f32.xlu0 %v314
  %v316 = vpop.xlane.xlu0 %315
  %v317 = vrcp.pop %v316
  %v318 = vmul.f32 %v313, %v317
  %319 = vrot.lane.b32.xlu0 %v222, 64
  %v320 = vpop.permute.xlu0 %319
  %v323 = vsel %vm233, %v318, 0
  %325 = vmatprep.subr.mxu0 0.0
  %326 = vmatpush1.msra.mxu0 0.0
  %327 = vmatprep.subr.mxu0 0.0
  %328 = vmatpush1.msra.mxu0 0.0
  %329 = vmatprep.subr.mxu0 0.0
  %330 = vmatpush1.msra.mxu0 0.0
  %331 = vmatprep.subr.mxu0 0.0
  %332 = vmatpush1.msra.mxu0 0.0
  %333 = vmatprep.subr.mxu0 0.0
  %334 = vmatpush1.msra.mxu0 0.0
  %335 = vmatprep.subr.mxu0 0.0
  %336 = vmatpush1.msra.mxu0 0.0
  %337 = vmatprep.subr.mxu0 0.0
  %338 = vmatpush1.msra.mxu0 0.0
  %339 = vmatprep.subr.mxu0 0.0
  %340 = vmatpush1.msra.mxu0 0.0
  %341 = vmatprep.subr.mxu0 0.0
  %342 = vmatpush1.msra.mxu0 0.0
  %343 = vmatprep.subr.mxu0 0.0
  %344 = vmatpush1.msra.mxu0 0.0
  %345 = vmatprep.subr.mxu0 0.0
  %346 = vmatpush1.msra.mxu0 0.0
  %347 = vmatprep.subr.mxu0 0.0
  %348 = vmatpush1.msra.mxu0 0.0
  %349 = vmatprep.subr.mxu0 0.0
  %350 = vmatpush1.msra.mxu0 0.0
  %351 = vmatprep.subr.mxu0 0.0
  %352 = vmatpush1.msra.mxu0 0.0
  %353 = vmatprep.subr.mxu0 0.0
  %354 = vmatpush1.msra.mxu0 0.0
  %355 = vmatprep.subr.mxu0 0.0
  %356 = vmatpush1.msra.mxu0 %v320
  %357 = vmatprep.subr.mxu0 0.0
  %358 = vmatpush2.msra.mxu0 0.0
  %359 = vmatprep.subr.mxu0 0.0
  %360 = vmatpush2.msra.mxu0 0.0
  %361 = vmatprep.subr.mxu0 0.0
  %362 = vmatpush2.msra.mxu0 0.0
  %363 = vmatprep.subr.mxu0 0.0
  %364 = vmatpush2.msra.mxu0 0.0
  %365 = vmatprep.subr.mxu0 0.0
  %366 = vmatpush2.msra.mxu0 0.0
  %367 = vmatprep.subr.mxu0 0.0
  %368 = vmatpush2.msra.mxu0 0.0
  %369 = vmatprep.subr.mxu0 0.0
  %370 = vmatpush2.msra.mxu0 0.0
  %371 = vmatprep.subr.mxu0 0.0
  %372 = vmatpush2.msra.mxu0 0.0
  %373 = vmatprep.subr.mxu0 0.0
  %374 = vmatpush2.msra.mxu0 0.0
  %375 = vmatprep.subr.mxu0 0.0
  %376 = vmatpush2.msra.mxu0 0.0
  %377 = vmatprep.subr.mxu0 0.0
  %378 = vmatpush2.msra.mxu0 0.0
  %379 = vmatprep.subr.mxu0 0.0
  %380 = vmatpush2.msra.mxu0 0.0
  %381 = vmatprep.subr.mxu0 0.0
  %382 = vmatpush2.msra.mxu0 0.0
  %383 = vmatprep.subr.mxu0 0.0
  %384 = vmatpush2.msra.mxu0 0.0
  %385 = vmatprep.subr.mxu0 0.0
  %386 = vmatpush2.msra.mxu0 0.0
  %387 = vmatprep.subr.mxu0 0.0
  %388 = vmatpush2.msra.mxu0 0.0
  %389 = vmatprep.mubr.f32.mxu0 0.0
  %390 = vmatmul.mubr.f32.gmra.mxu0 %v323
  %v391 = vpop.f32.mrf.mxu0
  %v392 = vadd.f32 0.0, %v391
  %v393 = vpop.f32.mrf.mxu0
  %394 = vdwg.mxu0
  %395 = vrot.lane.b32.xlu0 %v222, 120
  %v396 = vpop.permute.xlu0 %395
  %397 = vrot.lane.b32.xlu0 %v222, 88
  %v398 = vpop.permute.xlu0 %397
  %v399 = vsel %vm233, %v396, 0
  %v401 = vsel %vm233, %v398, 0
  %403 = vmatprep.subr.mxu0 0.0
  %404 = vmatpush1.xpose.msra.mxu0 0.0
  %405 = vmatprep.subr.mxu0 0.0
  %406 = vmatpush1.xpose.msra.mxu0 0.0
  %407 = vmatprep.subr.mxu0 0.0
  %408 = vmatpush1.xpose.msra.mxu0 0.0
  %409 = vmatprep.subr.mxu0 0.0
  %410 = vmatpush1.xpose.msra.mxu0 0.0
  %411 = vmatprep.subr.mxu0 0.0
  %412 = vmatpush1.xpose.msra.mxu0 0.0
  %413 = vmatprep.subr.mxu0 0.0
  %414 = vmatpush1.xpose.msra.mxu0 0.0
  %415 = vmatprep.subr.mxu0 0.0
  %416 = vmatpush1.xpose.msra.mxu0 0.0
  %417 = vmatprep.subr.mxu0 0.0
  %418 = vmatpush1.xpose.msra.mxu0 0.0
  %419 = vmatprep.subr.mxu0 0.0
  %420 = vmatpush1.xpose.msra.mxu0 0.0
  %421 = vmatprep.subr.mxu0 0.0
  %422 = vmatpush1.xpose.msra.mxu0 0.0
  %423 = vmatprep.subr.mxu0 0.0
  %424 = vmatpush1.xpose.msra.mxu0 0.0
  %425 = vmatprep.subr.mxu0 0.0
  %426 = vmatpush1.xpose.msra.mxu0 0.0
  %427 = vmatprep.subr.mxu0 0.0
  %428 = vmatpush1.xpose.msra.mxu0 0.0
  %429 = vmatprep.subr.mxu0 0.0
  %430 = vmatpush1.xpose.msra.mxu0 0.0
  %431 = vmatprep.subr.mxu0 0.0
  %432 = vmatpush1.xpose.msra.mxu0 0.0
  %433 = vmatprep.subr.mxu0 0.0
  %434 = vmatpush1.xpose.msra.mxu0 %v401
  %435 = vmatprep.subr.mxu0 0.0
  %436 = vmatpush2.xpose.msra.mxu0 0.0
  %437 = vmatprep.subr.mxu0 0.0
  %438 = vmatpush2.xpose.msra.mxu0 0.0
  %439 = vmatprep.subr.mxu0 0.0
  %440 = vmatpush2.xpose.msra.mxu0 0.0
  %441 = vmatprep.subr.mxu0 0.0
  %442 = vmatpush2.xpose.msra.mxu0 0.0
  %443 = vmatprep.subr.mxu0 0.0
  %444 = vmatpush2.xpose.msra.mxu0 0.0
  %445 = vmatprep.subr.mxu0 0.0
  %446 = vmatpush2.xpose.msra.mxu0 0.0
  %447 = vmatprep.subr.mxu0 0.0
  %448 = vmatpush2.xpose.msra.mxu0 0.0
  %449 = vmatprep.subr.mxu0 0.0
  %450 = vmatpush2.xpose.msra.mxu0 0.0
  %451 = vmatprep.subr.mxu0 0.0
  %452 = vmatpush2.xpose.msra.mxu0 0.0
  %453 = vmatprep.subr.mxu0 0.0
  %454 = vmatpush2.xpose.msra.mxu0 0.0
  %455 = vmatprep.subr.mxu0 0.0
  %456 = vmatpush2.xpose.msra.mxu0 0.0
  %457 = vmatprep.subr.mxu0 0.0
  %458 = vmatpush2.xpose.msra.mxu0 0.0
  %459 = vmatprep.subr.mxu0 0.0
  %460 = vmatpush2.xpose.msra.mxu0 0.0
  %461 = vmatprep.subr.mxu0 0.0
  %462 = vmatpush2.xpose.msra.mxu0 0.0
  %463 = vmatprep.subr.mxu0 0.0
  %464 = vmatpush2.xpose.msra.mxu0 0.0
  %465 = vmatprep.subr.mxu0 0.0
  %466 = vmatpush2.xpose.msra.mxu0 0.0
  %467 = vmatprep.mubr.f32.mxu0 0.0
  %468 = vmatmul.mubr.f32.gmra.mxu0 %v399
  %v469 = vpop.f32.mrf.mxu0
  %v470 = vadd.f32 0.0, %v469
  %v471 = vpop.f32.mrf.mxu0
  %472 = vdwg.mxu0
  %v473 = vsel %vm233, %v470, -inf
  %474 = vmax.xlane.f32.xlu0 %v473
  %v475 = vpop.xlane.xlu0 %474
  %v476 = vsub.f32 %v470, %v475
  %v477 = vmul.f32 %v476, 1.442695
  %v478 = vpow.pop %v477
  %v479 = vsel %vm233, %v478, 0.0
  %480 = vadd.xlane.f32.xlu0 %v479
  %v481 = vpop.xlane.xlu0 %480
  %v482 = vrcp.pop %v481
  %v483 = vmul.f32 %v478, %v482
  %484 = vrot.lane.b32.xlu0 %v222, 56
  %v485 = vpop.permute.xlu0 %484
  %v488 = vsel %vm233, %v483, 0
  %490 = vmatprep.subr.mxu0 0.0
  %491 = vmatpush1.msra.mxu0 0.0
  %492 = vmatprep.subr.mxu0 0.0
  %493 = vmatpush1.msra.mxu0 0.0
  %494 = vmatprep.subr.mxu0 0.0
  %495 = vmatpush1.msra.mxu0 0.0
  %496 = vmatprep.subr.mxu0 0.0
  %497 = vmatpush1.msra.mxu0 0.0
  %498 = vmatprep.subr.mxu0 0.0
  %499 = vmatpush1.msra.mxu0 0.0
  %500 = vmatprep.subr.mxu0 0.0
  %501 = vmatpush1.msra.mxu0 0.0
  %502 = vmatprep.subr.mxu0 0.0
  %503 = vmatpush1.msra.mxu0 0.0
  %504 = vmatprep.subr.mxu0 0.0
  %505 = vmatpush1.msra.mxu0 0.0
  %506 = vmatprep.subr.mxu0 0.0
  %507 = vmatpush1.msra.mxu0 0.0
  %508 = vmatprep.subr.mxu0 0.0
  %509 = vmatpush1.msra.mxu0 0.0
  %510 = vmatprep.subr.mxu0 0.0
  %511 = vmatpush1.msra.mxu0 0.0
  %512 = vmatprep.subr.mxu0 0.0
  %513 = vmatpush1.msra.mxu0 0.0
  %514 = vmatprep.subr.mxu0 0.0
  %515 = vmatpush1.msra.mxu0 0.0
  %516 = vmatprep.subr.mxu0 0.0
  %517 = vmatpush1.msra.mxu0 0.0
  %518 = vmatprep.subr.mxu0 0.0
  %519 = vmatpush1.msra.mxu0 0.0
  %520 = vmatprep.subr.mxu0 0.0
  %521 = vmatpush1.msra.mxu0 %v485
  %522 = vmatprep.subr.mxu0 0.0
  %523 = vmatpush2.msra.mxu0 0.0
  %524 = vmatprep.subr.mxu0 0.0
  %525 = vmatpush2.msra.mxu0 0.0
  %526 = vmatprep.subr.mxu0 0.0
  %527 = vmatpush2.msra.mxu0 0.0
  %528 = vmatprep.subr.mxu0 0.0
  %529 = vmatpush2.msra.mxu0 0.0
  %530 = vmatprep.subr.mxu0 0.0
  %531 = vmatpush2.msra.mxu0 0.0
  %532 = vmatprep.subr.mxu0 0.0
  %533 = vmatpush2.msra.mxu0 0.0
  %534 = vmatprep.subr.mxu0 0.0
  %535 = vmatpush2.msra.mxu0 0.0
  %536 = vmatprep.subr.mxu0 0.0
  %537 = vmatpush2.msra.mxu0 0.0
  %538 = vmatprep.subr.mxu0 0.0
  %539 = vmatpush2.msra.mxu0 0.0
  %540 = vmatprep.subr.mxu0 0.0
  %541 = vmatpush2.msra.mxu0 0.0
  %542 = vmatprep.subr.mxu0 0.0
  %543 = vmatpush2.msra.mxu0 0.0
  %544 = vmatprep.subr.mxu0 0.0
  %545 = vmatpush2.msra.mxu0 0.0
  %546 = vmatprep.subr.mxu0 0.0
  %547 = vmatpush2.msra.mxu0 0.0
  %548 = vmatprep.subr.mxu0 0.0
  %549 = vmatpush2.msra.mxu0 0.0
  %550 = vmatprep.subr.mxu0 0.0
  %551 = vmatpush2.msra.mxu0 0.0
  %552 = vmatprep.subr.mxu0 0.0
  %553 = vmatpush2.msra.mxu0 0.0
  %554 = vmatprep.mubr.f32.mxu0 0.0
  %555 = vmatmul.mubr.f32.gmra.mxu0 %v488
  %v556 = vpop.f32.mrf.mxu0
  %v557 = vadd.f32 0.0, %v556
  %v558 = vpop.f32.mrf.mxu0
  %559 = vdwg.mxu0
  %v561 = vsel %vm233, %v557, 0
  %563 = vmatprep.subr.mxu0 0.0
  %564 = vmatpush1.msra.mxu0 0.0
  %565 = vmatprep.subr.mxu0 0.0
  %566 = vmatpush1.msra.mxu0 0.0
  %567 = vmatprep.subr.mxu0 0.0
  %568 = vmatpush1.msra.mxu0 0.0
  %569 = vmatprep.subr.mxu0 0.0
  %570 = vmatpush1.msra.mxu0 0.0
  %571 = vmatprep.subr.mxu0 0.0
  %572 = vmatpush1.msra.mxu0 0.0
  %573 = vmatprep.subr.mxu0 0.0
  %574 = vmatpush1.msra.mxu0 0.0
  %575 = vmatprep.subr.mxu0 0.0
  %576 = vmatpush1.msra.mxu0 0.0
  %577 = vmatprep.subr.mxu0 0.0
  %578 = vmatpush1.msra.mxu0 0.0
  %579 = vmatprep.subr.mxu0 0.0
  %580 = vmatpush1.msra.mxu0 0.0
  %581 = vmatprep.subr.mxu0 0.0
  %582 = vmatpush1.msra.mxu0 0.0
  %583 = vmatprep.subr.mxu0 0.0
  %584 = vmatpush1.msra.mxu0 0.0
  %585 = vmatprep.subr.mxu0 0.0
  %586 = vmatpush1.msra.mxu0 0.0
  %587 = vmatprep.subr.mxu0 0.0
  %588 = vmatpush1.msra.mxu0 0.0
  %589 = vmatprep.subr.mxu0 0.0
  %590 = vmatpush1.msra.mxu0 0.0
  %591 = vmatprep.subr.mxu0 0.0
  %592 = vmatpush1.msra.mxu0 0.0
  %593 = vmatprep.subr.mxu0 0.0
  %594 = vmatpush1.msra.mxu0 %v140
  %595 = vmatprep.subr.mxu0 0.0
  %596 = vmatpush2.msra.mxu0 0.0
  %597 = vmatprep.subr.mxu0 0.0
  %598 = vmatpush2.msra.mxu0 0.0
  %599 = vmatprep.subr.mxu0 0.0
  %600 = vmatpush2.msra.mxu0 0.0
  %601 = vmatprep.subr.mxu0 0.0
  %602 = vmatpush2.msra.mxu0 0.0
  %603 = vmatprep.subr.mxu0 0.0
  %604 = vmatpush2.msra.mxu0 0.0
  %605 = vmatprep.subr.mxu0 0.0
  %606 = vmatpush2.msra.mxu0 0.0
  %607 = vmatprep.subr.mxu0 0.0
  %608 = vmatpush2.msra.mxu0 0.0
  %609 = vmatprep.subr.mxu0 0.0
  %610 = vmatpush2.msra.mxu0 0.0
  %611 = vmatprep.subr.mxu0 0.0
  %612 = vmatpush2.msra.mxu0 0.0
  %613 = vmatprep.subr.mxu0 0.0
  %614 = vmatpush2.msra.mxu0 0.0
  %615 = vmatprep.subr.mxu0 0.0
  %616 = vmatpush2.msra.mxu0 0.0
  %617 = vmatprep.subr.mxu0 0.0
  %618 = vmatpush2.msra.mxu0 0.0
  %619 = vmatprep.subr.mxu0 0.0
  %620 = vmatpush2.msra.mxu0 0.0
  %621 = vmatprep.subr.mxu0 0.0
  %622 = vmatpush2.msra.mxu0 0.0
  %623 = vmatprep.subr.mxu0 0.0
  %624 = vmatpush2.msra.mxu0 0.0
  %625 = vmatprep.subr.mxu0 0.0
  %626 = vmatpush2.msra.mxu0 0.0
  %627 = vmatprep.mubr.f32.mxu0 0.0
  %628 = vmatmul.mubr.f32.gmra.mxu0 %v561
  %v629 = vpop.f32.mrf.mxu0
  %v630 = vadd.f32 0.0, %v629
  %v631 = vpop.f32.mrf.mxu0
  %632 = vdwg.mxu0
  %v634 = vsel %vm233, %v392, 0
  %636 = vmatprep.subr.mxu0 0.0
  %637 = vmatpush1.msra.mxu0 0.0
  %638 = vmatprep.subr.mxu0 0.0
  %639 = vmatpush1.msra.mxu0 0.0
  %640 = vmatprep.subr.mxu0 0.0
  %641 = vmatpush1.msra.mxu0 0.0
  %642 = vmatprep.subr.mxu0 0.0
  %643 = vmatpush1.msra.mxu0 0.0
  %644 = vmatprep.subr.mxu0 0.0
  %645 = vmatpush1.msra.mxu0 0.0
  %646 = vmatprep.subr.mxu0 0.0
  %647 = vmatpush1.msra.mxu0 0.0
  %648 = vmatprep.subr.mxu0 0.0
  %649 = vmatpush1.msra.mxu0 0.0
  %650 = vmatprep.subr.mxu0 0.0
  %651 = vmatpush1.msra.mxu0 0.0
  %652 = vmatprep.subr.mxu0 0.0
  %653 = vmatpush1.msra.mxu0 0.0
  %654 = vmatprep.subr.mxu0 0.0
  %655 = vmatpush1.msra.mxu0 0.0
  %656 = vmatprep.subr.mxu0 0.0
  %657 = vmatpush1.msra.mxu0 0.0
  %658 = vmatprep.subr.mxu0 0.0
  %659 = vmatpush1.msra.mxu0 0.0
  %660 = vmatprep.subr.mxu0 0.0
  %661 = vmatpush1.msra.mxu0 0.0
  %662 = vmatprep.subr.mxu0 0.0
  %663 = vmatpush1.msra.mxu0 0.0
  %664 = vmatprep.subr.mxu0 0.0
  %665 = vmatpush1.msra.mxu0 0.0
  %666 = vmatprep.subr.mxu0 0.0
  %667 = vmatpush1.msra.mxu0 %v139
  %668 = vmatprep.subr.mxu0 0.0
  %669 = vmatpush2.msra.mxu0 0.0
  %670 = vmatprep.subr.mxu0 0.0
  %671 = vmatpush2.msra.mxu0 0.0
  %672 = vmatprep.subr.mxu0 0.0
  %673 = vmatpush2.msra.mxu0 0.0
  %674 = vmatprep.subr.mxu0 0.0
  %675 = vmatpush2.msra.mxu0 0.0
  %676 = vmatprep.subr.mxu0 0.0
  %677 = vmatpush2.msra.mxu0 0.0
  %678 = vmatprep.subr.mxu0 0.0
  %679 = vmatpush2.msra.mxu0 0.0
  %680 = vmatprep.subr.mxu0 0.0
  %681 = vmatpush2.msra.mxu0 0.0
  %682 = vmatprep.subr.mxu0 0.0
  %683 = vmatpush2.msra.mxu0 0.0
  %684 = vmatprep.subr.mxu0 0.0
  %685 = vmatpush2.msra.mxu0 0.0
  %686 = vmatprep.subr.mxu0 0.0
  %687 = vmatpush2.msra.mxu0 0.0
  %688 = vmatprep.subr.mxu0 0.0
  %689 = vmatpush2.msra.mxu0 0.0
  %690 = vmatprep.subr.mxu0 0.0
  %691 = vmatpush2.msra.mxu0 0.0
  %692 = vmatprep.subr.mxu0 0.0
  %693 = vmatpush2.msra.mxu0 0.0
  %694 = vmatprep.subr.mxu0 0.0
  %695 = vmatpush2.msra.mxu0 0.0
  %696 = vmatprep.subr.mxu0 0.0
  %697 = vmatpush2.msra.mxu0 0.0
  %698 = vmatprep.subr.mxu0 0.0
  %699 = vmatpush2.msra.mxu0 0.0
  %700 = vmatprep.mubr.f32.mxu0 0.0
  %701 = vmatmul.mubr.f32.gmra.mxu0 %v634
  %v702 = vpop.f32.mrf.mxu0
  %v703 = vadd.f32 %v630, %v702
  %v704 = vpop.f32.mrf.mxu0
  %705 = vdwg.mxu0
  %706 = vrot.lane.b32.xlu0 %v222, 112
  %v707 = vpop.permute.xlu0 %706
  %708 = vrot.lane.b32.xlu0 %v222, 80
  %v709 = vpop.permute.xlu0 %708
  %v710 = vsel %vm233, %v707, 0
  %v712 = vsel %vm233, %v709, 0
  %714 = vmatprep.subr.mxu0 0.0
  %715 = vmatpush1.xpose.msra.mxu0 0.0
  %716 = vmatprep.subr.mxu0 0.0
  %717 = vmatpush1.xpose.msra.mxu0 0.0
  %718 = vmatprep.subr.mxu0 0.0
  %719 = vmatpush1.xpose.msra.mxu0 0.0
  %720 = vmatprep.subr.mxu0 0.0
  %721 = vmatpush1.xpose.msra.mxu0 0.0
  %722 = vmatprep.subr.mxu0 0.0
  %723 = vmatpush1.xpose.msra.mxu0 0.0
  %724 = vmatprep.subr.mxu0 0.0
  %725 = vmatpush1.xpose.msra.mxu0 0.0
  %726 = vmatprep.subr.mxu0 0.0
  %727 = vmatpush1.xpose.msra.mxu0 0.0
  %728 = vmatprep.subr.mxu0 0.0
  %729 = vmatpush1.xpose.msra.mxu0 0.0
  %730 = vmatprep.subr.mxu0 0.0
  %731 = vmatpush1.xpose.msra.mxu0 0.0
  %732 = vmatprep.subr.mxu0 0.0
  %733 = vmatpush1.xpose.msra.mxu0 0.0
  %734 = vmatprep.subr.mxu0 0.0
  %735 = vmatpush1.xpose.msra.mxu0 0.0
  %736 = vmatprep.subr.mxu0 0.0
  %737 = vmatpush1.xpose.msra.mxu0 0.0
  %738 = vmatprep.subr.mxu0 0.0
  %739 = vmatpush1.xpose.msra.mxu0 0.0
  %740 = vmatprep.subr.mxu0 0.0
  %741 = vmatpush1.xpose.msra.mxu0 0.0
  %742 = vmatprep.subr.mxu0 0.0
  %743 = vmatpush1.xpose.msra.mxu0 0.0
  %744 = vmatprep.subr.mxu0 0.0
  %745 = vmatpush1.xpose.msra.mxu0 %v712
  %746 = vmatprep.subr.mxu0 0.0
  %747 = vmatpush2.xpose.msra.mxu0 0.0
  %748 = vmatprep.subr.mxu0 0.0
  %749 = vmatpush2.xpose.msra.mxu0 0.0
  %750 = vmatprep.subr.mxu0 0.0
  %751 = vmatpush2.xpose.msra.mxu0 0.0
  %752 = vmatprep.subr.mxu0 0.0
  %753 = vmatpush2.xpose.msra.mxu0 0.0
  %754 = vmatprep.subr.mxu0 0.0
  %755 = vmatpush2.xpose.msra.mxu0 0.0
  %756 = vmatprep.subr.mxu0 0.0
  %757 = vmatpush2.xpose.msra.mxu0 0.0
  %758 = vmatprep.subr.mxu0 0.0
  %759 = vmatpush2.xpose.msra.mxu0 0.0
  %760 = vmatprep.subr.mxu0 0.0
  %761 = vmatpush2.xpose.msra.mxu0 0.0
  %762 = vmatprep.subr.mxu0 0.0
  %763 = vmatpush2.xpose.msra.mxu0 0.0
  %764 = vmatprep.subr.mxu0 0.0
  %765 = vmatpush2.xpose.msra.mxu0 0.0
  %766 = vmatprep.subr.mxu0 0.0
  %767 = vmatpush2.xpose.msra.mxu0 0.0
  %768 = vmatprep.subr.mxu0 0.0
  %769 = vmatpush2.xpose.msra.mxu0 0.0
  %770 = vmatprep.subr.mxu0 0.0
  %771 = vmatpush2.xpose.msra.mxu0 0.0
  %772 = vmatprep.subr.mxu0 0.0
  %773 = vmatpush2.xpose.msra.mxu0 0.0
  %774 = vmatprep.subr.mxu0 0.0
  %775 = vmatpush2.xpose.msra.mxu0 0.0
  %776 = vmatprep.subr.mxu0 0.0
  %777 = vmatpush2.xpose.msra.mxu0 0.0
  %778 = vmatprep.mubr.f32.mxu0 0.0
  %779 = vmatmul.mubr.f32.gmra.mxu0 %v710
  %v780 = vpop.f32.mrf.mxu0
  %v781 = vadd.f32 0.0, %v780
  %v782 = vpop.f32.mrf.mxu0
  %783 = vdwg.mxu0
  %v784 = vsel %vm233, %v781, -inf
  %785 = vmax.xlane.f32.xlu0 %v784
  %v786 = vpop.xlane.xlu0 %785
  %v787 = vsub.f32 %v781, %v786
  %v788 = vmul.f32 %v787, 1.442695
  %v789 = vpow.pop %v788
  %v790 = vsel %vm233, %v789, 0.0
  %791 = vadd.xlane.f32.xlu0 %v790
  %v792 = vpop.xlane.xlu0 %791
  %v793 = vrcp.pop %v792
  %v794 = vmul.f32 %v789, %v793
  %795 = vrot.lane.b32.xlu0 %v222, 48
  %v796 = vpop.permute.xlu0 %795
  %v799 = vsel %vm233, %v794, 0
  %801 = vmatprep.subr.mxu0 0.0
  %802 = vmatpush1.msra.mxu0 0.0
  %803 = vmatprep.subr.mxu0 0.0
  %804 = vmatpush1.msra.mxu0 0.0
  %805 = vmatprep.subr.mxu0 0.0
  %806 = vmatpush1.msra.mxu0 0.0
  %807 = vmatprep.subr.mxu0 0.0
  %808 = vmatpush1.msra.mxu0 0.0
  %809 = vmatprep.subr.mxu0 0.0
  %810 = vmatpush1.msra.mxu0 0.0
  %811 = vmatprep.subr.mxu0 0.0
  %812 = vmatpush1.msra.mxu0 0.0
  %813 = vmatprep.subr.mxu0 0.0
  %814 = vmatpush1.msra.mxu0 0.0
  %815 = vmatprep.subr.mxu0 0.0
  %816 = vmatpush1.msra.mxu0 0.0
  %817 = vmatprep.subr.mxu0 0.0
  %818 = vmatpush1.msra.mxu0 0.0
  %819 = vmatprep.subr.mxu0 0.0
  %820 = vmatpush1.msra.mxu0 0.0
  %821 = vmatprep.subr.mxu0 0.0
  %822 = vmatpush1.msra.mxu0 0.0
  %823 = vmatprep.subr.mxu0 0.0
  %824 = vmatpush1.msra.mxu0 0.0
  %825 = vmatprep.subr.mxu0 0.0
  %826 = vmatpush1.msra.mxu0 0.0
  %827 = vmatprep.subr.mxu0 0.0
  %828 = vmatpush1.msra.mxu0 0.0
  %829 = vmatprep.subr.mxu0 0.0
  %830 = vmatpush1.msra.mxu0 0.0
  %831 = vmatprep.subr.mxu0 0.0
  %832 = vmatpush1.msra.mxu0 %v796
  %833 = vmatprep.subr.mxu0 0.0
  %834 = vmatpush2.msra.mxu0 0.0
  %835 = vmatprep.subr.mxu0 0.0
  %836 = vmatpush2.msra.mxu0 0.0
  %837 = vmatprep.subr.mxu0 0.0
  %838 = vmatpush2.msra.mxu0 0.0
  %839 = vmatprep.subr.mxu0 0.0
  %840 = vmatpush2.msra.mxu0 0.0
  %841 = vmatprep.subr.mxu0 0.0
  %842 = vmatpush2.msra.mxu0 0.0
  %843 = vmatprep.subr.mxu0 0.0
  %844 = vmatpush2.msra.mxu0 0.0
  %845 = vmatprep.subr.mxu0 0.0
  %846 = vmatpush2.msra.mxu0 0.0
  %847 = vmatprep.subr.mxu0 0.0
  %848 = vmatpush2.msra.mxu0 0.0
  %849 = vmatprep.subr.mxu0 0.0
  %850 = vmatpush2.msra.mxu0 0.0
  %851 = vmatprep.subr.mxu0 0.0
  %852 = vmatpush2.msra.mxu0 0.0
  %853 = vmatprep.subr.mxu0 0.0
  %854 = vmatpush2.msra.mxu0 0.0
  %855 = vmatprep.subr.mxu0 0.0
  %856 = vmatpush2.msra.mxu0 0.0
  %857 = vmatprep.subr.mxu0 0.0
  %858 = vmatpush2.msra.mxu0 0.0
  %859 = vmatprep.subr.mxu0 0.0
  %860 = vmatpush2.msra.mxu0 0.0
  %861 = vmatprep.subr.mxu0 0.0
  %862 = vmatpush2.msra.mxu0 0.0
  %863 = vmatprep.subr.mxu0 0.0
  %864 = vmatpush2.msra.mxu0 0.0
  %865 = vmatprep.mubr.f32.mxu0 0.0
  %866 = vmatmul.mubr.f32.gmra.mxu0 %v799
  %v867 = vpop.f32.mrf.mxu0
  %v868 = vadd.f32 0.0, %v867
  %v869 = vpop.f32.mrf.mxu0
  %870 = vdwg.mxu0
  %v872 = vsel %vm233, %v868, 0
  %874 = vmatprep.subr.mxu0 0.0
  %875 = vmatpush1.msra.mxu0 0.0
  %876 = vmatprep.subr.mxu0 0.0
  %877 = vmatpush1.msra.mxu0 0.0
  %878 = vmatprep.subr.mxu0 0.0
  %879 = vmatpush1.msra.mxu0 0.0
  %880 = vmatprep.subr.mxu0 0.0
  %881 = vmatpush1.msra.mxu0 0.0
  %882 = vmatprep.subr.mxu0 0.0
  %883 = vmatpush1.msra.mxu0 0.0
  %884 = vmatprep.subr.mxu0 0.0
  %885 = vmatpush1.msra.mxu0 0.0
  %886 = vmatprep.subr.mxu0 0.0
  %887 = vmatpush1.msra.mxu0 0.0
  %888 = vmatprep.subr.mxu0 0.0
  %889 = vmatpush1.msra.mxu0 0.0
  %890 = vmatprep.subr.mxu0 0.0
  %891 = vmatpush1.msra.mxu0 0.0
  %892 = vmatprep.subr.mxu0 0.0
  %893 = vmatpush1.msra.mxu0 0.0
  %894 = vmatprep.subr.mxu0 0.0
  %895 = vmatpush1.msra.mxu0 0.0
  %896 = vmatprep.subr.mxu0 0.0
  %897 = vmatpush1.msra.mxu0 0.0
  %898 = vmatprep.subr.mxu0 0.0
  %899 = vmatpush1.msra.mxu0 0.0
  %900 = vmatprep.subr.mxu0 0.0
  %901 = vmatpush1.msra.mxu0 0.0
  %902 = vmatprep.subr.mxu0 0.0
  %903 = vmatpush1.msra.mxu0 0.0
  %904 = vmatprep.subr.mxu0 0.0
  %905 = vmatpush1.msra.mxu0 %v141
  %906 = vmatprep.subr.mxu0 0.0
  %907 = vmatpush2.msra.mxu0 0.0
  %908 = vmatprep.subr.mxu0 0.0
  %909 = vmatpush2.msra.mxu0 0.0
  %910 = vmatprep.subr.mxu0 0.0
  %911 = vmatpush2.msra.mxu0 0.0
  %912 = vmatprep.subr.mxu0 0.0
  %913 = vmatpush2.msra.mxu0 0.0
  %914 = vmatprep.subr.mxu0 0.0
  %915 = vmatpush2.msra.mxu0 0.0
  %916 = vmatprep.subr.mxu0 0.0
  %917 = vmatpush2.msra.mxu0 0.0
  %918 = vmatprep.subr.mxu0 0.0
  %919 = vmatpush2.msra.mxu0 0.0
  %920 = vmatprep.subr.mxu0 0.0
  %921 = vmatpush2.msra.mxu0 0.0
  %922 = vmatprep.subr.mxu0 0.0
  %923 = vmatpush2.msra.mxu0 0.0
  %924 = vmatprep.subr.mxu0 0.0
  %925 = vmatpush2.msra.mxu0 0.0
  %926 = vmatprep.subr.mxu0 0.0
  %927 = vmatpush2.msra.mxu0 0.0
  %928 = vmatprep.subr.mxu0 0.0
  %929 = vmatpush2.msra.mxu0 0.0
  %930 = vmatprep.subr.mxu0 0.0
  %931 = vmatpush2.msra.mxu0 0.0
  %932 = vmatprep.subr.mxu0 0.0
  %933 = vmatpush2.msra.mxu0 0.0
  %934 = vmatprep.subr.mxu0 0.0
  %935 = vmatpush2.msra.mxu0 0.0
  %936 = vmatprep.subr.mxu0 0.0
  %937 = vmatpush2.msra.mxu0 0.0
  %938 = vmatprep.mubr.f32.mxu0 0.0
  %939 = vmatmul.mubr.f32.gmra.mxu0 %v872
  %v940 = vpop.f32.mrf.mxu0
  %v941 = vadd.f32 0.0, %v940
  %v942 = vpop.f32.mrf.mxu0
  %943 = vdwg.mxu0
  %v944 = vadd.f32 %v703, %v941
  %945 = vrot.lane.b32.xlu0 %v222, 104
  %v946 = vpop.permute.xlu0 %945
  %947 = vrot.lane.b32.xlu0 %v222, 72
  %v948 = vpop.permute.xlu0 %947
  %v949 = vsel %vm233, %v946, 0
  %v951 = vsel %vm233, %v948, 0
  %953 = vmatprep.subr.mxu0 0.0
  %954 = vmatpush1.xpose.msra.mxu0 0.0
  %955 = vmatprep.subr.mxu0 0.0
  %956 = vmatpush1.xpose.msra.mxu0 0.0
  %957 = vmatprep.subr.mxu0 0.0
  %958 = vmatpush1.xpose.msra.mxu0 0.0
  %959 = vmatprep.subr.mxu0 0.0
  %960 = vmatpush1.xpose.msra.mxu0 0.0
  %961 = vmatprep.subr.mxu0 0.0
  %962 = vmatpush1.xpose.msra.mxu0 0.0
  %963 = vmatprep.subr.mxu0 0.0
  %964 = vmatpush1.xpose.msra.mxu0 0.0
  %965 = vmatprep.subr.mxu0 0.0
  %966 = vmatpush1.xpose.msra.mxu0 0.0
  %967 = vmatprep.subr.mxu0 0.0
  %968 = vmatpush1.xpose.msra.mxu0 0.0
  %969 = vmatprep.subr.mxu0 0.0
  %970 = vmatpush1.xpose.msra.mxu0 0.0
  %971 = vmatprep.subr.mxu0 0.0
  %972 = vmatpush1.xpose.msra.mxu0 0.0
  %973 = vmatprep.subr.mxu0 0.0
  %974 = vmatpush1.xpose.msra.mxu0 0.0
  %975 = vmatprep.subr.mxu0 0.0
  %976 = vmatpush1.xpose.msra.mxu0 0.0
  %977 = vmatprep.subr.mxu0 0.0
  %978 = vmatpush1.xpose.msra.mxu0 0.0
  %979 = vmatprep.subr.mxu0 0.0
  %980 = vmatpush1.xpose.msra.mxu0 0.0
  %981 = vmatprep.subr.mxu0 0.0
  %982 = vmatpush1.xpose.msra.mxu0 0.0
  %983 = vmatprep.subr.mxu0 0.0
  %984 = vmatpush1.xpose.msra.mxu0 %v951
  %985 = vmatprep.subr.mxu0 0.0
  %986 = vmatpush2.xpose.msra.mxu0 0.0
  %987 = vmatprep.subr.mxu0 0.0
  %988 = vmatpush2.xpose.msra.mxu0 0.0
  %989 = vmatprep.subr.mxu0 0.0
  %990 = vmatpush2.xpose.msra.mxu0 0.0
  %991 = vmatprep.subr.mxu0 0.0
  %992 = vmatpush2.xpose.msra.mxu0 0.0
  %993 = vmatprep.subr.mxu0 0.0
  %994 = vmatpush2.xpose.msra.mxu0 0.0
  %995 = vmatprep.subr.mxu0 0.0
  %996 = vmatpush2.xpose.msra.mxu0 0.0
  %997 = vmatprep.subr.mxu0 0.0
  %998 = vmatpush2.xpose.msra.mxu0 0.0
  %999 = vmatprep.subr.mxu0 0.0
  %1000 = vmatpush2.xpose.msra.mxu0 0.0
  %1001 = vmatprep.subr.mxu0 0.0
  %1002 = vmatpush2.xpose.msra.mxu0 0.0
  %1003 = vmatprep.subr.mxu0 0.0
  %1004 = vmatpush2.xpose.msra.mxu0 0.0
  %1005 = vmatprep.subr.mxu0 0.0
  %1006 = vmatpush2.xpose.msra.mxu0 0.0
  %1007 = vmatprep.subr.mxu0 0.0
  %1008 = vmatpush2.xpose.msra.mxu0 0.0
  %1009 = vmatprep.subr.mxu0 0.0
  %1010 = vmatpush2.xpose.msra.mxu0 0.0
  %1011 = vmatprep.subr.mxu0 0.0
  %1012 = vmatpush2.xpose.msra.mxu0 0.0
  %1013 = vmatprep.subr.mxu0 0.0
  %1014 = vmatpush2.xpose.msra.mxu0 0.0
  %1015 = vmatprep.subr.mxu0 0.0
  %1016 = vmatpush2.xpose.msra.mxu0 0.0
  %1017 = vmatprep.mubr.f32.mxu0 0.0
  %1018 = vmatmul.mubr.f32.gmra.mxu0 %v949
  %v1019 = vpop.f32.mrf.mxu0
  %v1020 = vadd.f32 0.0, %v1019
  %v1021 = vpop.f32.mrf.mxu0
  %1022 = vdwg.mxu0
  %v1023 = vsel %vm233, %v1020, -inf
  %1024 = vmax.xlane.f32.xlu0 %v1023
  %v1025 = vpop.xlane.xlu0 %1024
  %v1026 = vsub.f32 %v1020, %v1025
  %v1027 = vmul.f32 %v1026, 1.442695
  %v1028 = vpow.pop %v1027
  %v1029 = vsel %vm233, %v1028, 0.0
  %1030 = vadd.xlane.f32.xlu0 %v1029
  %v1031 = vpop.xlane.xlu0 %1030
  %v1032 = vrcp.pop %v1031
  %v1033 = vmul.f32 %v1028, %v1032
  %1034 = vrot.lane.b32.xlu0 %v222, 40
  %v1035 = vpop.permute.xlu0 %1034
  %v1038 = vsel %vm233, %v1033, 0
  %1040 = vmatprep.subr.mxu0 0.0
  %1041 = vmatpush1.msra.mxu0 0.0
  %1042 = vmatprep.subr.mxu0 0.0
  %1043 = vmatpush1.msra.mxu0 0.0
  %1044 = vmatprep.subr.mxu0 0.0
  %1045 = vmatpush1.msra.mxu0 0.0
  %1046 = vmatprep.subr.mxu0 0.0
  %1047 = vmatpush1.msra.mxu0 0.0
  %1048 = vmatprep.subr.mxu0 0.0
  %1049 = vmatpush1.msra.mxu0 0.0
  %1050 = vmatprep.subr.mxu0 0.0
  %1051 = vmatpush1.msra.mxu0 0.0
  %1052 = vmatprep.subr.mxu0 0.0
  %1053 = vmatpush1.msra.mxu0 0.0
  %1054 = vmatprep.subr.mxu0 0.0
  %1055 = vmatpush1.msra.mxu0 0.0
  %1056 = vmatprep.subr.mxu0 0.0
  %1057 = vmatpush1.msra.mxu0 0.0
  %1058 = vmatprep.subr.mxu0 0.0
  %1059 = vmatpush1.msra.mxu0 0.0
  %1060 = vmatprep.subr.mxu0 0.0
  %1061 = vmatpush1.msra.mxu0 0.0
  %1062 = vmatprep.subr.mxu0 0.0
  %1063 = vmatpush1.msra.mxu0 0.0
  %1064 = vmatprep.subr.mxu0 0.0
  %1065 = vmatpush1.msra.mxu0 0.0
  %1066 = vmatprep.subr.mxu0 0.0
  %1067 = vmatpush1.msra.mxu0 0.0
  %1068 = vmatprep.subr.mxu0 0.0
  %1069 = vmatpush1.msra.mxu0 0.0
  %1070 = vmatprep.subr.mxu0 0.0
  %1071 = vmatpush1.msra.mxu0 %v1035
  %1072 = vmatprep.subr.mxu0 0.0
  %1073 = vmatpush2.msra.mxu0 0.0
  %1074 = vmatprep.subr.mxu0 0.0
  %1075 = vmatpush2.msra.mxu0 0.0
  %1076 = vmatprep.subr.mxu0 0.0
  %1077 = vmatpush2.msra.mxu0 0.0
  %1078 = vmatprep.subr.mxu0 0.0
  %1079 = vmatpush2.msra.mxu0 0.0
  %1080 = vmatprep.subr.mxu0 0.0
  %1081 = vmatpush2.msra.mxu0 0.0
  %1082 = vmatprep.subr.mxu0 0.0
  %1083 = vmatpush2.msra.mxu0 0.0
  %1084 = vmatprep.subr.mxu0 0.0
  %1085 = vmatpush2.msra.mxu0 0.0
  %1086 = vmatprep.subr.mxu0 0.0
  %1087 = vmatpush2.msra.mxu0 0.0
  %1088 = vmatprep.subr.mxu0 0.0
  %1089 = vmatpush2.msra.mxu0 0.0
  %1090 = vmatprep.subr.mxu0 0.0
  %1091 = vmatpush2.msra.mxu0 0.0
  %1092 = vmatprep.subr.mxu0 0.0
  %1093 = vmatpush2.msra.mxu0 0.0
  %1094 = vmatprep.subr.mxu0 0.0
  %1095 = vmatpush2.msra.mxu0 0.0
  %1096 = vmatprep.subr.mxu0 0.0
  %1097 = vmatpush2.msra.mxu0 0.0
  %1098 = vmatprep.subr.mxu0 0.0
  %1099 = vmatpush2.msra.mxu0 0.0
  %1100 = vmatprep.subr.mxu0 0.0
  %1101 = vmatpush2.msra.mxu0 0.0
  %1102 = vmatprep.subr.mxu0 0.0
  %1103 = vmatpush2.msra.mxu0 0.0
  %1104 = vmatprep.mubr.f32.mxu0 0.0
  %1105 = vmatmul.mubr.f32.gmra.mxu0 %v1038
  %v1106 = vpop.f32.mrf.mxu0
  %v1107 = vadd.f32 0.0, %v1106
  %v1108 = vpop.f32.mrf.mxu0
  %1109 = vdwg.mxu0
  %v1111 = vsel %vm233, %v1107, 0
  %1113 = vmatprep.subr.mxu0 0.0
  %1114 = vmatpush1.msra.mxu0 0.0
  %1115 = vmatprep.subr.mxu0 0.0
  %1116 = vmatpush1.msra.mxu0 0.0
  %1117 = vmatprep.subr.mxu0 0.0
  %1118 = vmatpush1.msra.mxu0 0.0
  %1119 = vmatprep.subr.mxu0 0.0
  %1120 = vmatpush1.msra.mxu0 0.0
  %1121 = vmatprep.subr.mxu0 0.0
  %1122 = vmatpush1.msra.mxu0 0.0
  %1123 = vmatprep.subr.mxu0 0.0
  %1124 = vmatpush1.msra.mxu0 0.0
  %1125 = vmatprep.subr.mxu0 0.0
  %1126 = vmatpush1.msra.mxu0 0.0
  %1127 = vmatprep.subr.mxu0 0.0
  %1128 = vmatpush1.msra.mxu0 0.0
  %1129 = vmatprep.subr.mxu0 0.0
  %1130 = vmatpush1.msra.mxu0 0.0
  %1131 = vmatprep.subr.mxu0 0.0
  %1132 = vmatpush1.msra.mxu0 0.0
  %1133 = vmatprep.subr.mxu0 0.0
  %1134 = vmatpush1.msra.mxu0 0.0
  %1135 = vmatprep.subr.mxu0 0.0
  %1136 = vmatpush1.msra.mxu0 0.0
  %1137 = vmatprep.subr.mxu0 0.0
  %1138 = vmatpush1.msra.mxu0 0.0
  %1139 = vmatprep.subr.mxu0 0.0
  %1140 = vmatpush1.msra.mxu0 0.0
  %1141 = vmatprep.subr.mxu0 0.0
  %1142 = vmatpush1.msra.mxu0 0.0
  %1143 = vmatprep.subr.mxu0 0.0
  %1144 = vmatpush1.msra.mxu0 %v142
  %1145 = vmatprep.subr.mxu0 0.0
  %1146 = vmatpush2.msra.mxu0 0.0
  %1147 = vmatprep.subr.mxu0 0.0
  %1148 = vmatpush2.msra.mxu0 0.0
  %1149 = vmatprep.subr.mxu0 0.0
  %1150 = vmatpush2.msra.mxu0 0.0
  %1151 = vmatprep.subr.mxu0 0.0
  %1152 = vmatpush2.msra.mxu0 0.0
  %1153 = vmatprep.subr.mxu0 0.0
  %1154 = vmatpush2.msra.mxu0 0.0
  %1155 = vmatprep.subr.mxu0 0.0
  %1156 = vmatpush2.msra.mxu0 0.0
  %1157 = vmatprep.subr.mxu0 0.0
  %1158 = vmatpush2.msra.mxu0 0.0
  %1159 = vmatprep.subr.mxu0 0.0
  %1160 = vmatpush2.msra.mxu0 0.0
  %1161 = vmatprep.subr.mxu0 0.0
  %1162 = vmatpush2.msra.mxu0 0.0
  %1163 = vmatprep.subr.mxu0 0.0
  %1164 = vmatpush2.msra.mxu0 0.0
  %1165 = vmatprep.subr.mxu0 0.0
  %1166 = vmatpush2.msra.mxu0 0.0
  %1167 = vmatprep.subr.mxu0 0.0
  %1168 = vmatpush2.msra.mxu0 0.0
  %1169 = vmatprep.subr.mxu0 0.0
  %1170 = vmatpush2.msra.mxu0 0.0
  %1171 = vmatprep.subr.mxu0 0.0
  %1172 = vmatpush2.msra.mxu0 0.0
  %1173 = vmatprep.subr.mxu0 0.0
  %1174 = vmatpush2.msra.mxu0 0.0
  %1175 = vmatprep.subr.mxu0 0.0
  %1176 = vmatpush2.msra.mxu0 0.0
  %1177 = vmatprep.mubr.f32.mxu0 0.0
  %1178 = vmatmul.mubr.f32.gmra.mxu0 %v1111
  %v1179 = vpop.f32.mrf.mxu0
  %v1180 = vadd.f32 0.0, %v1179
  %v1181 = vpop.f32.mrf.mxu0
  %1182 = vdwg.mxu0
  %v1183 = vadd.f32 %v944, %v1180
  %1185 = vrot.lane.b32.xlu0 %v227, 96
  %v1186 = vpop.permute.xlu0 %1185
  %v1187 = vsel %vm233, %v227, 0
  %v1189 = vsel %vm233, %v1186, 0
  %1191 = vmatprep.subr.mxu0 0.0
  %1192 = vmatpush1.xpose.msra.mxu0 0.0
  %1193 = vmatprep.subr.mxu0 0.0
  %1194 = vmatpush1.xpose.msra.mxu0 0.0
  %1195 = vmatprep.subr.mxu0 0.0
  %1196 = vmatpush1.xpose.msra.mxu0 0.0
  %1197 = vmatprep.subr.mxu0 0.0
  %1198 = vmatpush1.xpose.msra.mxu0 0.0
  %1199 = vmatprep.subr.mxu0 0.0
  %1200 = vmatpush1.xpose.msra.mxu0 0.0
  %1201 = vmatprep.subr.mxu0 0.0
  %1202 = vmatpush1.xpose.msra.mxu0 0.0
  %1203 = vmatprep.subr.mxu0 0.0
  %1204 = vmatpush1.xpose.msra.mxu0 0.0
  %1205 = vmatprep.subr.mxu0 0.0
  %1206 = vmatpush1.xpose.msra.mxu0 0.0
  %1207 = vmatprep.subr.mxu0 0.0
  %1208 = vmatpush1.xpose.msra.mxu0 0.0
  %1209 = vmatprep.subr.mxu0 0.0
  %1210 = vmatpush1.xpose.msra.mxu0 0.0
  %1211 = vmatprep.subr.mxu0 0.0
  %1212 = vmatpush1.xpose.msra.mxu0 0.0
  %1213 = vmatprep.subr.mxu0 0.0
  %1214 = vmatpush1.xpose.msra.mxu0 0.0
  %1215 = vmatprep.subr.mxu0 0.0
  %1216 = vmatpush1.xpose.msra.mxu0 0.0
  %1217 = vmatprep.subr.mxu0 0.0
  %1218 = vmatpush1.xpose.msra.mxu0 0.0
  %1219 = vmatprep.subr.mxu0 0.0
  %1220 = vmatpush1.xpose.msra.mxu0 0.0
  %1221 = vmatprep.subr.mxu0 0.0
  %1222 = vmatpush1.xpose.msra.mxu0 %v1189
  %1223 = vmatprep.subr.mxu0 0.0
  %1224 = vmatpush2.xpose.msra.mxu0 0.0
  %1225 = vmatprep.subr.mxu0 0.0
  %1226 = vmatpush2.xpose.msra.mxu0 0.0
  %1227 = vmatprep.subr.mxu0 0.0
  %1228 = vmatpush2.xpose.msra.mxu0 0.0
  %1229 = vmatprep.subr.mxu0 0.0
  %1230 = vmatpush2.xpose.msra.mxu0 0.0
  %1231 = vmatprep.subr.mxu0 0.0
  %1232 = vmatpush2.xpose.msra.mxu0 0.0
  %1233 = vmatprep.subr.mxu0 0.0
  %1234 = vmatpush2.xpose.msra.mxu0 0.0
  %1235 = vmatprep.subr.mxu0 0.0
  %1236 = vmatpush2.xpose.msra.mxu0 0.0
  %1237 = vmatprep.subr.mxu0 0.0
  %1238 = vmatpush2.xpose.msra.mxu0 0.0
  %1239 = vmatprep.subr.mxu0 0.0
  %1240 = vmatpush2.xpose.msra.mxu0 0.0
  %1241 = vmatprep.subr.mxu0 0.0
  %1242 = vmatpush2.xpose.msra.mxu0 0.0
  %1243 = vmatprep.subr.mxu0 0.0
  %1244 = vmatpush2.xpose.msra.mxu0 0.0
  %1245 = vmatprep.subr.mxu0 0.0
  %1246 = vmatpush2.xpose.msra.mxu0 0.0
  %1247 = vmatprep.subr.mxu0 0.0
  %1248 = vmatpush2.xpose.msra.mxu0 0.0
  %1249 = vmatprep.subr.mxu0 0.0
  %1250 = vmatpush2.xpose.msra.mxu0 0.0
  %1251 = vmatprep.subr.mxu0 0.0
  %1252 = vmatpush2.xpose.msra.mxu0 0.0
  %1253 = vmatprep.subr.mxu0 0.0
  %1254 = vmatpush2.xpose.msra.mxu0 0.0
  %1255 = vmatprep.mubr.f32.mxu0 0.0
  %1256 = vmatmul.mubr.f32.gmra.mxu0 %v1187
  %v1257 = vpop.f32.mrf.mxu0
  %v1258 = vadd.f32 0.0, %v1257
  %v1259 = vpop.f32.mrf.mxu0
  %1260 = vdwg.mxu0
  %v1261 = vsel %vm233, %v1258, -inf
  %1262 = vmax.xlane.f32.xlu0 %v1261
  %v1263 = vpop.xlane.xlu0 %1262
  %v1264 = vsub.f32 %v1258, %v1263
  %v1265 = vmul.f32 %v1264, 1.442695
  %v1266 = vpow.pop %v1265
  %v1267 = vsel %vm233, %v1266, 0.0
  %1268 = vadd.xlane.f32.xlu0 %v1267
  %v1269 = vpop.xlane.xlu0 %1268
  %v1270 = vrcp.pop %v1269
  %v1271 = vmul.f32 %v1266, %v1270
  %1272 = vrot.lane.b32.xlu0 %v227, 64
  %v1273 = vpop.permute.xlu0 %1272
  %v1276 = vsel %vm233, %v1271, 0
  %1278 = vmatprep.subr.mxu0 0.0
  %1279 = vmatpush1.msra.mxu0 0.0
  %1280 = vmatprep.subr.mxu0 0.0
  %1281 = vmatpush1.msra.mxu0 0.0
  %1282 = vmatprep.subr.mxu0 0.0
  %1283 = vmatpush1.msra.mxu0 0.0
  %1284 = vmatprep.subr.mxu0 0.0
  %1285 = vmatpush1.msra.mxu0 0.0
  %1286 = vmatprep.subr.mxu0 0.0
  %1287 = vmatpush1.msra.mxu0 0.0
  %1288 = vmatprep.subr.mxu0 0.0
  %1289 = vmatpush1.msra.mxu0 0.0
  %1290 = vmatprep.subr.mxu0 0.0
  %1291 = vmatpush1.msra.mxu0 0.0
  %1292 = vmatprep.subr.mxu0 0.0
  %1293 = vmatpush1.msra.mxu0 0.0
  %1294 = vmatprep.subr.mxu0 0.0
  %1295 = vmatpush1.msra.mxu0 0.0
  %1296 = vmatprep.subr.mxu0 0.0
  %1297 = vmatpush1.msra.mxu0 0.0
  %1298 = vmatprep.subr.mxu0 0.0
  %1299 = vmatpush1.msra.mxu0 0.0
  %1300 = vmatprep.subr.mxu0 0.0
  %1301 = vmatpush1.msra.mxu0 0.0
  %1302 = vmatprep.subr.mxu0 0.0
  %1303 = vmatpush1.msra.mxu0 0.0
  %1304 = vmatprep.subr.mxu0 0.0
  %1305 = vmatpush1.msra.mxu0 0.0
  %1306 = vmatprep.subr.mxu0 0.0
  %1307 = vmatpush1.msra.mxu0 0.0
  %1308 = vmatprep.subr.mxu0 0.0
  %1309 = vmatpush1.msra.mxu0 %v1273
  %1310 = vmatprep.subr.mxu0 0.0
  %1311 = vmatpush2.msra.mxu0 0.0
  %1312 = vmatprep.subr.mxu0 0.0
  %1313 = vmatpush2.msra.mxu0 0.0
  %1314 = vmatprep.subr.mxu0 0.0
  %1315 = vmatpush2.msra.mxu0 0.0
  %1316 = vmatprep.subr.mxu0 0.0
  %1317 = vmatpush2.msra.mxu0 0.0
  %1318 = vmatprep.subr.mxu0 0.0
  %1319 = vmatpush2.msra.mxu0 0.0
  %1320 = vmatprep.subr.mxu0 0.0
  %1321 = vmatpush2.msra.mxu0 0.0
  %1322 = vmatprep.subr.mxu0 0.0
  %1323 = vmatpush2.msra.mxu0 0.0
  %1324 = vmatprep.subr.mxu0 0.0
  %1325 = vmatpush2.msra.mxu0 0.0
  %1326 = vmatprep.subr.mxu0 0.0
  %1327 = vmatpush2.msra.mxu0 0.0
  %1328 = vmatprep.subr.mxu0 0.0
  %1329 = vmatpush2.msra.mxu0 0.0
  %1330 = vmatprep.subr.mxu0 0.0
  %1331 = vmatpush2.msra.mxu0 0.0
  %1332 = vmatprep.subr.mxu0 0.0
  %1333 = vmatpush2.msra.mxu0 0.0
  %1334 = vmatprep.subr.mxu0 0.0
  %1335 = vmatpush2.msra.mxu0 0.0
  %1336 = vmatprep.subr.mxu0 0.0
  %1337 = vmatpush2.msra.mxu0 0.0
  %1338 = vmatprep.subr.mxu0 0.0
  %1339 = vmatpush2.msra.mxu0 0.0
  %1340 = vmatprep.subr.mxu0 0.0
  %1341 = vmatpush2.msra.mxu0 0.0
  %1342 = vmatprep.mubr.f32.mxu0 0.0
  %1343 = vmatmul.mubr.f32.gmra.mxu0 %v1276
  %v1344 = vpop.f32.mrf.mxu0
  %v1345 = vadd.f32 0.0, %v1344
  %v1346 = vpop.f32.mrf.mxu0
  %1347 = vdwg.mxu0
  %1348 = vrot.lane.b32.xlu0 %v227, 120
  %v1349 = vpop.permute.xlu0 %1348
  %1350 = vrot.lane.b32.xlu0 %v227, 88
  %v1351 = vpop.permute.xlu0 %1350
  %v1352 = vsel %vm233, %v1349, 0
  %v1354 = vsel %vm233, %v1351, 0
  %1356 = vmatprep.subr.mxu0 0.0
  %1357 = vmatpush1.xpose.msra.mxu0 0.0
  %1358 = vmatprep.subr.mxu0 0.0
  %1359 = vmatpush1.xpose.msra.mxu0 0.0
  %1360 = vmatprep.subr.mxu0 0.0
  %1361 = vmatpush1.xpose.msra.mxu0 0.0
  %1362 = vmatprep.subr.mxu0 0.0
  %1363 = vmatpush1.xpose.msra.mxu0 0.0
  %1364 = vmatprep.subr.mxu0 0.0
  %1365 = vmatpush1.xpose.msra.mxu0 0.0
  %1366 = vmatprep.subr.mxu0 0.0
  %1367 = vmatpush1.xpose.msra.mxu0 0.0
  %1368 = vmatprep.subr.mxu0 0.0
  %1369 = vmatpush1.xpose.msra.mxu0 0.0
  %1370 = vmatprep.subr.mxu0 0.0
  %1371 = vmatpush1.xpose.msra.mxu0 0.0
  %1372 = vmatprep.subr.mxu0 0.0
  %1373 = vmatpush1.xpose.msra.mxu0 0.0
  %1374 = vmatprep.subr.mxu0 0.0
  %1375 = vmatpush1.xpose.msra.mxu0 0.0
  %1376 = vmatprep.subr.mxu0 0.0
  %1377 = vmatpush1.xpose.msra.mxu0 0.0
  %1378 = vmatprep.subr.mxu0 0.0
  %1379 = vmatpush1.xpose.msra.mxu0 0.0
  %1380 = vmatprep.subr.mxu0 0.0
  %1381 = vmatpush1.xpose.msra.mxu0 0.0
  %1382 = vmatprep.subr.mxu0 0.0
  %1383 = vmatpush1.xpose.msra.mxu0 0.0
  %1384 = vmatprep.subr.mxu0 0.0
  %1385 = vmatpush1.xpose.msra.mxu0 0.0
  %1386 = vmatprep.subr.mxu0 0.0
  %1387 = vmatpush1.xpose.msra.mxu0 %v1354
  %1388 = vmatprep.subr.mxu0 0.0
  %1389 = vmatpush2.xpose.msra.mxu0 0.0
  %1390 = vmatprep.subr.mxu0 0.0
  %1391 = vmatpush2.xpose.msra.mxu0 0.0
  %1392 = vmatprep.subr.mxu0 0.0
  %1393 = vmatpush2.xpose.msra.mxu0 0.0
  %1394 = vmatprep.subr.mxu0 0.0
  %1395 = vmatpush2.xpose.msra.mxu0 0.0
  %1396 = vmatprep.subr.mxu0 0.0
  %1397 = vmatpush2.xpose.msra.mxu0 0.0
  %1398 = vmatprep.subr.mxu0 0.0
  %1399 = vmatpush2.xpose.msra.mxu0 0.0
  %1400 = vmatprep.subr.mxu0 0.0
  %1401 = vmatpush2.xpose.msra.mxu0 0.0
  %1402 = vmatprep.subr.mxu0 0.0
  %1403 = vmatpush2.xpose.msra.mxu0 0.0
  %1404 = vmatprep.subr.mxu0 0.0
  %1405 = vmatpush2.xpose.msra.mxu0 0.0
  %1406 = vmatprep.subr.mxu0 0.0
  %1407 = vmatpush2.xpose.msra.mxu0 0.0
  %1408 = vmatprep.subr.mxu0 0.0
  %1409 = vmatpush2.xpose.msra.mxu0 0.0
  %1410 = vmatprep.subr.mxu0 0.0
  %1411 = vmatpush2.xpose.msra.mxu0 0.0
  %1412 = vmatprep.subr.mxu0 0.0
  %1413 = vmatpush2.xpose.msra.mxu0 0.0
  %1414 = vmatprep.subr.mxu0 0.0
  %1415 = vmatpush2.xpose.msra.mxu0 0.0
  %1416 = vmatprep.subr.mxu0 0.0
  %1417 = vmatpush2.xpose.msra.mxu0 0.0
  %1418 = vmatprep.subr.mxu0 0.0
  %1419 = vmatpush2.xpose.msra.mxu0 0.0
  %1420 = vmatprep.mubr.f32.mxu0 0.0
  %1421 = vmatmul.mubr.f32.gmra.mxu0 %v1352
  %v1422 = vpop.f32.mrf.mxu0
  %v1423 = vadd.f32 0.0, %v1422
  %v1424 = vpop.f32.mrf.mxu0
  %1425 = vdwg.mxu0
  %v1426 = vsel %vm233, %v1423, -inf
  %1427 = vmax.xlane.f32.xlu0 %v1426
  %v1428 = vpop.xlane.xlu0 %1427
  %v1429 = vsub.f32 %v1423, %v1428
  %v1430 = vmul.f32 %v1429, 1.442695
  %v1431 = vpow.pop %v1430
  %v1432 = vsel %vm233, %v1431, 0.0
  %1433 = vadd.xlane.f32.xlu0 %v1432
  %v1434 = vpop.xlane.xlu0 %1433
  %v1435 = vrcp.pop %v1434
  %v1436 = vmul.f32 %v1431, %v1435
  %1437 = vrot.lane.b32.xlu0 %v227, 56
  %v1438 = vpop.permute.xlu0 %1437
  %v1441 = vsel %vm233, %v1436, 0
  %1443 = vmatprep.subr.mxu0 0.0
  %1444 = vmatpush1.msra.mxu0 0.0
  %1445 = vmatprep.subr.mxu0 0.0
  %1446 = vmatpush1.msra.mxu0 0.0
  %1447 = vmatprep.subr.mxu0 0.0
  %1448 = vmatpush1.msra.mxu0 0.0
  %1449 = vmatprep.subr.mxu0 0.0
  %1450 = vmatpush1.msra.mxu0 0.0
  %1451 = vmatprep.subr.mxu0 0.0
  %1452 = vmatpush1.msra.mxu0 0.0
  %1453 = vmatprep.subr.mxu0 0.0
  %1454 = vmatpush1.msra.mxu0 0.0
  %1455 = vmatprep.subr.mxu0 0.0
  %1456 = vmatpush1.msra.mxu0 0.0
  %1457 = vmatprep.subr.mxu0 0.0
  %1458 = vmatpush1.msra.mxu0 0.0
  %1459 = vmatprep.subr.mxu0 0.0
  %1460 = vmatpush1.msra.mxu0 0.0
  %1461 = vmatprep.subr.mxu0 0.0
  %1462 = vmatpush1.msra.mxu0 0.0
  %1463 = vmatprep.subr.mxu0 0.0
  %1464 = vmatpush1.msra.mxu0 0.0
  %1465 = vmatprep.subr.mxu0 0.0
  %1466 = vmatpush1.msra.mxu0 0.0
  %1467 = vmatprep.subr.mxu0 0.0
  %1468 = vmatpush1.msra.mxu0 0.0
  %1469 = vmatprep.subr.mxu0 0.0
  %1470 = vmatpush1.msra.mxu0 0.0
  %1471 = vmatprep.subr.mxu0 0.0
  %1472 = vmatpush1.msra.mxu0 0.0
  %1473 = vmatprep.subr.mxu0 0.0
  %1474 = vmatpush1.msra.mxu0 %v1438
  %1475 = vmatprep.subr.mxu0 0.0
  %1476 = vmatpush2.msra.mxu0 0.0
  %1477 = vmatprep.subr.mxu0 0.0
  %1478 = vmatpush2.msra.mxu0 0.0
  %1479 = vmatprep.subr.mxu0 0.0
  %1480 = vmatpush2.msra.mxu0 0.0
  %1481 = vmatprep.subr.mxu0 0.0
  %1482 = vmatpush2.msra.mxu0 0.0
  %1483 = vmatprep.subr.mxu0 0.0
  %1484 = vmatpush2.msra.mxu0 0.0
  %1485 = vmatprep.subr.mxu0 0.0
  %1486 = vmatpush2.msra.mxu0 0.0
  %1487 = vmatprep.subr.mxu0 0.0
  %1488 = vmatpush2.msra.mxu0 0.0
  %1489 = vmatprep.subr.mxu0 0.0
  %1490 = vmatpush2.msra.mxu0 0.0
  %1491 = vmatprep.subr.mxu0 0.0
  %1492 = vmatpush2.msra.mxu0 0.0
  %1493 = vmatprep.subr.mxu0 0.0
  %1494 = vmatpush2.msra.mxu0 0.0
  %1495 = vmatprep.subr.mxu0 0.0
  %1496 = vmatpush2.msra.mxu0 0.0
  %1497 = vmatprep.subr.mxu0 0.0
  %1498 = vmatpush2.msra.mxu0 0.0
  %1499 = vmatprep.subr.mxu0 0.0
  %1500 = vmatpush2.msra.mxu0 0.0
  %1501 = vmatprep.subr.mxu0 0.0
  %1502 = vmatpush2.msra.mxu0 0.0
  %1503 = vmatprep.subr.mxu0 0.0
  %1504 = vmatpush2.msra.mxu0 0.0
  %1505 = vmatprep.subr.mxu0 0.0
  %1506 = vmatpush2.msra.mxu0 0.0
  %1507 = vmatprep.mubr.f32.mxu0 0.0
  %1508 = vmatmul.mubr.f32.gmra.mxu0 %v1441
  %v1509 = vpop.f32.mrf.mxu0
  %v1510 = vadd.f32 0.0, %v1509
  %v1511 = vpop.f32.mrf.mxu0
  %1512 = vdwg.mxu0
  %v1514 = vsel %vm233, %v1510, 0
  %1516 = vmatprep.subr.mxu0 0.0
  %1517 = vmatpush1.msra.mxu0 0.0
  %1518 = vmatprep.subr.mxu0 0.0
  %1519 = vmatpush1.msra.mxu0 0.0
  %1520 = vmatprep.subr.mxu0 0.0
  %1521 = vmatpush1.msra.mxu0 0.0
  %1522 = vmatprep.subr.mxu0 0.0
  %1523 = vmatpush1.msra.mxu0 0.0
  %1524 = vmatprep.subr.mxu0 0.0
  %1525 = vmatpush1.msra.mxu0 0.0
  %1526 = vmatprep.subr.mxu0 0.0
  %1527 = vmatpush1.msra.mxu0 0.0
  %1528 = vmatprep.subr.mxu0 0.0
  %1529 = vmatpush1.msra.mxu0 0.0
  %1530 = vmatprep.subr.mxu0 0.0
  %1531 = vmatpush1.msra.mxu0 0.0
  %1532 = vmatprep.subr.mxu0 0.0
  %1533 = vmatpush1.msra.mxu0 0.0
  %1534 = vmatprep.subr.mxu0 0.0
  %1535 = vmatpush1.msra.mxu0 0.0
  %1536 = vmatprep.subr.mxu0 0.0
  %1537 = vmatpush1.msra.mxu0 0.0
  %1538 = vmatprep.subr.mxu0 0.0
  %1539 = vmatpush1.msra.mxu0 0.0
  %1540 = vmatprep.subr.mxu0 0.0
  %1541 = vmatpush1.msra.mxu0 0.0
  %1542 = vmatprep.subr.mxu0 0.0
  %1543 = vmatpush1.msra.mxu0 0.0
  %1544 = vmatprep.subr.mxu0 0.0
  %1545 = vmatpush1.msra.mxu0 0.0
  %1546 = vmatprep.subr.mxu0 0.0
  %1547 = vmatpush1.msra.mxu0 %v140
  %1548 = vmatprep.subr.mxu0 0.0
  %1549 = vmatpush2.msra.mxu0 0.0
  %1550 = vmatprep.subr.mxu0 0.0
  %1551 = vmatpush2.msra.mxu0 0.0
  %1552 = vmatprep.subr.mxu0 0.0
  %1553 = vmatpush2.msra.mxu0 0.0
  %1554 = vmatprep.subr.mxu0 0.0
  %1555 = vmatpush2.msra.mxu0 0.0
  %1556 = vmatprep.subr.mxu0 0.0
  %1557 = vmatpush2.msra.mxu0 0.0
  %1558 = vmatprep.subr.mxu0 0.0
  %1559 = vmatpush2.msra.mxu0 0.0
  %1560 = vmatprep.subr.mxu0 0.0
  %1561 = vmatpush2.msra.mxu0 0.0
  %1562 = vmatprep.subr.mxu0 0.0
  %1563 = vmatpush2.msra.mxu0 0.0
  %1564 = vmatprep.subr.mxu0 0.0
  %1565 = vmatpush2.msra.mxu0 0.0
  %1566 = vmatprep.subr.mxu0 0.0
  %1567 = vmatpush2.msra.mxu0 0.0
  %1568 = vmatprep.subr.mxu0 0.0
  %1569 = vmatpush2.msra.mxu0 0.0
  %1570 = vmatprep.subr.mxu0 0.0
  %1571 = vmatpush2.msra.mxu0 0.0
  %1572 = vmatprep.subr.mxu0 0.0
  %1573 = vmatpush2.msra.mxu0 0.0
  %1574 = vmatprep.subr.mxu0 0.0
  %1575 = vmatpush2.msra.mxu0 0.0
  %1576 = vmatprep.subr.mxu0 0.0
  %1577 = vmatpush2.msra.mxu0 0.0
  %1578 = vmatprep.subr.mxu0 0.0
  %1579 = vmatpush2.msra.mxu0 0.0
  %1580 = vmatprep.mubr.f32.mxu0 0.0
  %1581 = vmatmul.mubr.f32.gmra.mxu0 %v1514
  %v1582 = vpop.f32.mrf.mxu0
  %v1583 = vadd.f32 0.0, %v1582
  %v1584 = vpop.f32.mrf.mxu0
  %1585 = vdwg.mxu0
  %v1587 = vsel %vm233, %v1345, 0
  %1589 = vmatprep.subr.mxu0 0.0
  %1590 = vmatpush1.msra.mxu0 0.0
  %1591 = vmatprep.subr.mxu0 0.0
  %1592 = vmatpush1.msra.mxu0 0.0
  %1593 = vmatprep.subr.mxu0 0.0
  %1594 = vmatpush1.msra.mxu0 0.0
  %1595 = vmatprep.subr.mxu0 0.0
  %1596 = vmatpush1.msra.mxu0 0.0
  %1597 = vmatprep.subr.mxu0 0.0
  %1598 = vmatpush1.msra.mxu0 0.0
  %1599 = vmatprep.subr.mxu0 0.0
  %1600 = vmatpush1.msra.mxu0 0.0
  %1601 = vmatprep.subr.mxu0 0.0
  %1602 = vmatpush1.msra.mxu0 0.0
  %1603 = vmatprep.subr.mxu0 0.0
  %1604 = vmatpush1.msra.mxu0 0.0
  %1605 = vmatprep.subr.mxu0 0.0
  %1606 = vmatpush1.msra.mxu0 0.0
  %1607 = vmatprep.subr.mxu0 0.0
  %1608 = vmatpush1.msra.mxu0 0.0
  %1609 = vmatprep.subr.mxu0 0.0
  %1610 = vmatpush1.msra.mxu0 0.0
  %1611 = vmatprep.subr.mxu0 0.0
  %1612 = vmatpush1.msra.mxu0 0.0
  %1613 = vmatprep.subr.mxu0 0.0
  %1614 = vmatpush1.msra.mxu0 0.0
  %1615 = vmatprep.subr.mxu0 0.0
  %1616 = vmatpush1.msra.mxu0 0.0
  %1617 = vmatprep.subr.mxu0 0.0
  %1618 = vmatpush1.msra.mxu0 0.0
  %1619 = vmatprep.subr.mxu0 0.0
  %1620 = vmatpush1.msra.mxu0 %v139
  %1621 = vmatprep.subr.mxu0 0.0
  %1622 = vmatpush2.msra.mxu0 0.0
  %1623 = vmatprep.subr.mxu0 0.0
  %1624 = vmatpush2.msra.mxu0 0.0
  %1625 = vmatprep.subr.mxu0 0.0
  %1626 = vmatpush2.msra.mxu0 0.0
  %1627 = vmatprep.subr.mxu0 0.0
  %1628 = vmatpush2.msra.mxu0 0.0
  %1629 = vmatprep.subr.mxu0 0.0
  %1630 = vmatpush2.msra.mxu0 0.0
  %1631 = vmatprep.subr.mxu0 0.0
  %1632 = vmatpush2.msra.mxu0 0.0
  %1633 = vmatprep.subr.mxu0 0.0
  %1634 = vmatpush2.msra.mxu0 0.0
  %1635 = vmatprep.subr.mxu0 0.0
  %1636 = vmatpush2.msra.mxu0 0.0
  %1637 = vmatprep.subr.mxu0 0.0
  %1638 = vmatpush2.msra.mxu0 0.0
  %1639 = vmatprep.subr.mxu0 0.0
  %1640 = vmatpush2.msra.mxu0 0.0
  %1641 = vmatprep.subr.mxu0 0.0
  %1642 = vmatpush2.msra.mxu0 0.0
  %1643 = vmatprep.subr.mxu0 0.0
  %1644 = vmatpush2.msra.mxu0 0.0
  %1645 = vmatprep.subr.mxu0 0.0
  %1646 = vmatpush2.msra.mxu0 0.0
  %1647 = vmatprep.subr.mxu0 0.0
  %1648 = vmatpush2.msra.mxu0 0.0
  %1649 = vmatprep.subr.mxu0 0.0
  %1650 = vmatpush2.msra.mxu0 0.0
  %1651 = vmatprep.subr.mxu0 0.0
  %1652 = vmatpush2.msra.mxu0 0.0
  %1653 = vmatprep.mubr.f32.mxu0 0.0
  %1654 = vmatmul.mubr.f32.gmra.mxu0 %v1587
  %v1655 = vpop.f32.mrf.mxu0
  %v1656 = vadd.f32 %v1583, %v1655
  %v1657 = vpop.f32.mrf.mxu0
  %1658 = vdwg.mxu0
  %1659 = vrot.lane.b32.xlu0 %v227, 112
  %v1660 = vpop.permute.xlu0 %1659
  %1661 = vrot.lane.b32.xlu0 %v227, 80
  %v1662 = vpop.permute.xlu0 %1661
  %v1663 = vsel %vm233, %v1660, 0
  %v1665 = vsel %vm233, %v1662, 0
  %1667 = vmatprep.subr.mxu0 0.0
  %1668 = vmatpush1.xpose.msra.mxu0 0.0
  %1669 = vmatprep.subr.mxu0 0.0
  %1670 = vmatpush1.xpose.msra.mxu0 0.0
  %1671 = vmatprep.subr.mxu0 0.0
  %1672 = vmatpush1.xpose.msra.mxu0 0.0
  %1673 = vmatprep.subr.mxu0 0.0
  %1674 = vmatpush1.xpose.msra.mxu0 0.0
  %1675 = vmatprep.subr.mxu0 0.0
  %1676 = vmatpush1.xpose.msra.mxu0 0.0
  %1677 = vmatprep.subr.mxu0 0.0
  %1678 = vmatpush1.xpose.msra.mxu0 0.0
  %1679 = vmatprep.subr.mxu0 0.0
  %1680 = vmatpush1.xpose.msra.mxu0 0.0
  %1681 = vmatprep.subr.mxu0 0.0
  %1682 = vmatpush1.xpose.msra.mxu0 0.0
  %1683 = vmatprep.subr.mxu0 0.0
  %1684 = vmatpush1.xpose.msra.mxu0 0.0
  %1685 = vmatprep.subr.mxu0 0.0
  %1686 = vmatpush1.xpose.msra.mxu0 0.0
  %1687 = vmatprep.subr.mxu0 0.0
  %1688 = vmatpush1.xpose.msra.mxu0 0.0
  %1689 = vmatprep.subr.mxu0 0.0
  %1690 = vmatpush1.xpose.msra.mxu0 0.0
  %1691 = vmatprep.subr.mxu0 0.0
  %1692 = vmatpush1.xpose.msra.mxu0 0.0
  %1693 = vmatprep.subr.mxu0 0.0
  %1694 = vmatpush1.xpose.msra.mxu0 0.0
  %1695 = vmatprep.subr.mxu0 0.0
  %1696 = vmatpush1.xpose.msra.mxu0 0.0
  %1697 = vmatprep.subr.mxu0 0.0
  %1698 = vmatpush1.xpose.msra.mxu0 %v1665
  %1699 = vmatprep.subr.mxu0 0.0
  %1700 = vmatpush2.xpose.msra.mxu0 0.0
  %1701 = vmatprep.subr.mxu0 0.0
  %1702 = vmatpush2.xpose.msra.mxu0 0.0
  %1703 = vmatprep.subr.mxu0 0.0
  %1704 = vmatpush2.xpose.msra.mxu0 0.0
  %1705 = vmatprep.subr.mxu0 0.0
  %1706 = vmatpush2.xpose.msra.mxu0 0.0
  %1707 = vmatprep.subr.mxu0 0.0
  %1708 = vmatpush2.xpose.msra.mxu0 0.0
  %1709 = vmatprep.subr.mxu0 0.0
  %1710 = vmatpush2.xpose.msra.mxu0 0.0
  %1711 = vmatprep.subr.mxu0 0.0
  %1712 = vmatpush2.xpose.msra.mxu0 0.0
  %1713 = vmatprep.subr.mxu0 0.0
  %1714 = vmatpush2.xpose.msra.mxu0 0.0
  %1715 = vmatprep.subr.mxu0 0.0
  %1716 = vmatpush2.xpose.msra.mxu0 0.0
  %1717 = vmatprep.subr.mxu0 0.0
  %1718 = vmatpush2.xpose.msra.mxu0 0.0
  %1719 = vmatprep.subr.mxu0 0.0
  %1720 = vmatpush2.xpose.msra.mxu0 0.0
  %1721 = vmatprep.subr.mxu0 0.0
  %1722 = vmatpush2.xpose.msra.mxu0 0.0
  %1723 = vmatprep.subr.mxu0 0.0
  %1724 = vmatpush2.xpose.msra.mxu0 0.0
  %1725 = vmatprep.subr.mxu0 0.0
  %1726 = vmatpush2.xpose.msra.mxu0 0.0
  %1727 = vmatprep.subr.mxu0 0.0
  %1728 = vmatpush2.xpose.msra.mxu0 0.0
  %1729 = vmatprep.subr.mxu0 0.0
  %1730 = vmatpush2.xpose.msra.mxu0 0.0
  %1731 = vmatprep.mubr.f32.mxu0 0.0
  %1732 = vmatmul.mubr.f32.gmra.mxu0 %v1663
  %v1733 = vpop.f32.mrf.mxu0
  %v1734 = vadd.f32 0.0, %v1733
  %v1735 = vpop.f32.mrf.mxu0
  %1736 = vdwg.mxu0
  %v1737 = vsel %vm233, %v1734, -inf
  %1738 = vmax.xlane.f32.xlu0 %v1737
  %v1739 = vpop.xlane.xlu0 %1738
  %v1740 = vsub.f32 %v1734, %v1739
  %v1741 = vmul.f32 %v1740, 1.442695
  %v1742 = vpow.pop %v1741
  %v1743 = vsel %vm233, %v1742, 0.0
  %1744 = vadd.xlane.f32.xlu0 %v1743
  %v1745 = vpop.xlane.xlu0 %1744
  %v1746 = vrcp.pop %v1745
  %v1747 = vmul.f32 %v1742, %v1746
  %1748 = vrot.lane.b32.xlu0 %v227, 48
  %v1749 = vpop.permute.xlu0 %1748
  %v1752 = vsel %vm233, %v1747, 0
  %1754 = vmatprep.subr.mxu0 0.0
  %1755 = vmatpush1.msra.mxu0 0.0
  %1756 = vmatprep.subr.mxu0 0.0
  %1757 = vmatpush1.msra.mxu0 0.0
  %1758 = vmatprep.subr.mxu0 0.0
  %1759 = vmatpush1.msra.mxu0 0.0
  %1760 = vmatprep.subr.mxu0 0.0
  %1761 = vmatpush1.msra.mxu0 0.0
  %1762 = vmatprep.subr.mxu0 0.0
  %1763 = vmatpush1.msra.mxu0 0.0
  %1764 = vmatprep.subr.mxu0 0.0
  %1765 = vmatpush1.msra.mxu0 0.0
  %1766 = vmatprep.subr.mxu0 0.0
  %1767 = vmatpush1.msra.mxu0 0.0
  %1768 = vmatprep.subr.mxu0 0.0
  %1769 = vmatpush1.msra.mxu0 0.0
  %1770 = vmatprep.subr.mxu0 0.0
  %1771 = vmatpush1.msra.mxu0 0.0
  %1772 = vmatprep.subr.mxu0 0.0
  %1773 = vmatpush1.msra.mxu0 0.0
  %1774 = vmatprep.subr.mxu0 0.0
  %1775 = vmatpush1.msra.mxu0 0.0
  %1776 = vmatprep.subr.mxu0 0.0
  %1777 = vmatpush1.msra.mxu0 0.0
  %1778 = vmatprep.subr.mxu0 0.0
  %1779 = vmatpush1.msra.mxu0 0.0
  %1780 = vmatprep.subr.mxu0 0.0
  %1781 = vmatpush1.msra.mxu0 0.0
  %1782 = vmatprep.subr.mxu0 0.0
  %1783 = vmatpush1.msra.mxu0 0.0
  %1784 = vmatprep.subr.mxu0 0.0
  %1785 = vmatpush1.msra.mxu0 %v1749
  %1786 = vmatprep.subr.mxu0 0.0
  %1787 = vmatpush2.msra.mxu0 0.0
  %1788 = vmatprep.subr.mxu0 0.0
  %1789 = vmatpush2.msra.mxu0 0.0
  %1790 = vmatprep.subr.mxu0 0.0
  %1791 = vmatpush2.msra.mxu0 0.0
  %1792 = vmatprep.subr.mxu0 0.0
  %1793 = vmatpush2.msra.mxu0 0.0
  %1794 = vmatprep.subr.mxu0 0.0
  %1795 = vmatpush2.msra.mxu0 0.0
  %1796 = vmatprep.subr.mxu0 0.0
  %1797 = vmatpush2.msra.mxu0 0.0
  %1798 = vmatprep.subr.mxu0 0.0
  %1799 = vmatpush2.msra.mxu0 0.0
  %1800 = vmatprep.subr.mxu0 0.0
  %1801 = vmatpush2.msra.mxu0 0.0
  %1802 = vmatprep.subr.mxu0 0.0
  %1803 = vmatpush2.msra.mxu0 0.0
  %1804 = vmatprep.subr.mxu0 0.0
  %1805 = vmatpush2.msra.mxu0 0.0
  %1806 = vmatprep.subr.mxu0 0.0
  %1807 = vmatpush2.msra.mxu0 0.0
  %1808 = vmatprep.subr.mxu0 0.0
  %1809 = vmatpush2.msra.mxu0 0.0
  %1810 = vmatprep.subr.mxu0 0.0
  %1811 = vmatpush2.msra.mxu0 0.0
  %1812 = vmatprep.subr.mxu0 0.0
  %1813 = vmatpush2.msra.mxu0 0.0
  %1814 = vmatprep.subr.mxu0 0.0
  %1815 = vmatpush2.msra.mxu0 0.0
  %1816 = vmatprep.subr.mxu0 0.0
  %1817 = vmatpush2.msra.mxu0 0.0
  %1818 = vmatprep.mubr.f32.mxu0 0.0
  %1819 = vmatmul.mubr.f32.gmra.mxu0 %v1752
  %v1820 = vpop.f32.mrf.mxu0
  %v1821 = vadd.f32 0.0, %v1820
  %v1822 = vpop.f32.mrf.mxu0
  %1823 = vdwg.mxu0
  %v1825 = vsel %vm233, %v1821, 0
  %1827 = vmatprep.subr.mxu0 0.0
  %1828 = vmatpush1.msra.mxu0 0.0
  %1829 = vmatprep.subr.mxu0 0.0
  %1830 = vmatpush1.msra.mxu0 0.0
  %1831 = vmatprep.subr.mxu0 0.0
  %1832 = vmatpush1.msra.mxu0 0.0
  %1833 = vmatprep.subr.mxu0 0.0
  %1834 = vmatpush1.msra.mxu0 0.0
  %1835 = vmatprep.subr.mxu0 0.0
  %1836 = vmatpush1.msra.mxu0 0.0
  %1837 = vmatprep.subr.mxu0 0.0
  %1838 = vmatpush1.msra.mxu0 0.0
  %1839 = vmatprep.subr.mxu0 0.0
  %1840 = vmatpush1.msra.mxu0 0.0
  %1841 = vmatprep.subr.mxu0 0.0
  %1842 = vmatpush1.msra.mxu0 0.0
  %1843 = vmatprep.subr.mxu0 0.0
  %1844 = vmatpush1.msra.mxu0 0.0
  %1845 = vmatprep.subr.mxu0 0.0
  %1846 = vmatpush1.msra.mxu0 0.0
  %1847 = vmatprep.subr.mxu0 0.0
  %1848 = vmatpush1.msra.mxu0 0.0
  %1849 = vmatprep.subr.mxu0 0.0
  %1850 = vmatpush1.msra.mxu0 0.0
  %1851 = vmatprep.subr.mxu0 0.0
  %1852 = vmatpush1.msra.mxu0 0.0
  %1853 = vmatprep.subr.mxu0 0.0
  %1854 = vmatpush1.msra.mxu0 0.0
  %1855 = vmatprep.subr.mxu0 0.0
  %1856 = vmatpush1.msra.mxu0 0.0
  %1857 = vmatprep.subr.mxu0 0.0
  %1858 = vmatpush1.msra.mxu0 %v141
  %1859 = vmatprep.subr.mxu0 0.0
  %1860 = vmatpush2.msra.mxu0 0.0
  %1861 = vmatprep.subr.mxu0 0.0
  %1862 = vmatpush2.msra.mxu0 0.0
  %1863 = vmatprep.subr.mxu0 0.0
  %1864 = vmatpush2.msra.mxu0 0.0
  %1865 = vmatprep.subr.mxu0 0.0
  %1866 = vmatpush2.msra.mxu0 0.0
  %1867 = vmatprep.subr.mxu0 0.0
  %1868 = vmatpush2.msra.mxu0 0.0
  %1869 = vmatprep.subr.mxu0 0.0
  %1870 = vmatpush2.msra.mxu0 0.0
  %1871 = vmatprep.subr.mxu0 0.0
  %1872 = vmatpush2.msra.mxu0 0.0
  %1873 = vmatprep.subr.mxu0 0.0
  %1874 = vmatpush2.msra.mxu0 0.0
  %1875 = vmatprep.subr.mxu0 0.0
  %1876 = vmatpush2.msra.mxu0 0.0
  %1877 = vmatprep.subr.mxu0 0.0
  %1878 = vmatpush2.msra.mxu0 0.0
  %1879 = vmatprep.subr.mxu0 0.0
  %1880 = vmatpush2.msra.mxu0 0.0
  %1881 = vmatprep.subr.mxu0 0.0
  %1882 = vmatpush2.msra.mxu0 0.0
  %1883 = vmatprep.subr.mxu0 0.0
  %1884 = vmatpush2.msra.mxu0 0.0
  %1885 = vmatprep.subr.mxu0 0.0
  %1886 = vmatpush2.msra.mxu0 0.0
  %1887 = vmatprep.subr.mxu0 0.0
  %1888 = vmatpush2.msra.mxu0 0.0
  %1889 = vmatprep.subr.mxu0 0.0
  %1890 = vmatpush2.msra.mxu0 0.0
  %1891 = vmatprep.mubr.f32.mxu0 0.0
  %1892 = vmatmul.mubr.f32.gmra.mxu0 %v1825
  %v1893 = vpop.f32.mrf.mxu0
  %v1894 = vadd.f32 0.0, %v1893
  %v1895 = vpop.f32.mrf.mxu0
  %1896 = vdwg.mxu0
  %v1897 = vadd.f32 %v1656, %v1894
  %1898 = vrot.lane.b32.xlu0 %v227, 104
  %v1899 = vpop.permute.xlu0 %1898
  %1900 = vrot.lane.b32.xlu0 %v227, 72
  %v1901 = vpop.permute.xlu0 %1900
  %v1902 = vsel %vm233, %v1899, 0
  %v1904 = vsel %vm233, %v1901, 0
  %1906 = vmatprep.subr.mxu0 0.0
  %1907 = vmatpush1.xpose.msra.mxu0 0.0
  %1908 = vmatprep.subr.mxu0 0.0
  %1909 = vmatpush1.xpose.msra.mxu0 0.0
  %1910 = vmatprep.subr.mxu0 0.0
  %1911 = vmatpush1.xpose.msra.mxu0 0.0
  %1912 = vmatprep.subr.mxu0 0.0
  %1913 = vmatpush1.xpose.msra.mxu0 0.0
  %1914 = vmatprep.subr.mxu0 0.0
  %1915 = vmatpush1.xpose.msra.mxu0 0.0
  %1916 = vmatprep.subr.mxu0 0.0
  %1917 = vmatpush1.xpose.msra.mxu0 0.0
  %1918 = vmatprep.subr.mxu0 0.0
  %1919 = vmatpush1.xpose.msra.mxu0 0.0
  %1920 = vmatprep.subr.mxu0 0.0
  %1921 = vmatpush1.xpose.msra.mxu0 0.0
  %1922 = vmatprep.subr.mxu0 0.0
  %1923 = vmatpush1.xpose.msra.mxu0 0.0
  %1924 = vmatprep.subr.mxu0 0.0
  %1925 = vmatpush1.xpose.msra.mxu0 0.0
  %1926 = vmatprep.subr.mxu0 0.0
  %1927 = vmatpush1.xpose.msra.mxu0 0.0
  %1928 = vmatprep.subr.mxu0 0.0
  %1929 = vmatpush1.xpose.msra.mxu0 0.0
  %1930 = vmatprep.subr.mxu0 0.0
  %1931 = vmatpush1.xpose.msra.mxu0 0.0
  %1932 = vmatprep.subr.mxu0 0.0
  %1933 = vmatpush1.xpose.msra.mxu0 0.0
  %1934 = vmatprep.subr.mxu0 0.0
  %1935 = vmatpush1.xpose.msra.mxu0 0.0
  %1936 = vmatprep.subr.mxu0 0.0
  %1937 = vmatpush1.xpose.msra.mxu0 %v1904
  %1938 = vmatprep.subr.mxu0 0.0
  %1939 = vmatpush2.xpose.msra.mxu0 0.0
  %1940 = vmatprep.subr.mxu0 0.0
  %1941 = vmatpush2.xpose.msra.mxu0 0.0
  %1942 = vmatprep.subr.mxu0 0.0
  %1943 = vmatpush2.xpose.msra.mxu0 0.0
  %1944 = vmatprep.subr.mxu0 0.0
  %1945 = vmatpush2.xpose.msra.mxu0 0.0
  %1946 = vmatprep.subr.mxu0 0.0
  %1947 = vmatpush2.xpose.msra.mxu0 0.0
  %1948 = vmatprep.subr.mxu0 0.0
  %1949 = vmatpush2.xpose.msra.mxu0 0.0
  %1950 = vmatprep.subr.mxu0 0.0
  %1951 = vmatpush2.xpose.msra.mxu0 0.0
  %1952 = vmatprep.subr.mxu0 0.0
  %1953 = vmatpush2.xpose.msra.mxu0 0.0
  %1954 = vmatprep.subr.mxu0 0.0
  %1955 = vmatpush2.xpose.msra.mxu0 0.0
  %1956 = vmatprep.subr.mxu0 0.0
  %1957 = vmatpush2.xpose.msra.mxu0 0.0
  %1958 = vmatprep.subr.mxu0 0.0
  %1959 = vmatpush2.xpose.msra.mxu0 0.0
  %1960 = vmatprep.subr.mxu0 0.0
  %1961 = vmatpush2.xpose.msra.mxu0 0.0
  %1962 = vmatprep.subr.mxu0 0.0
  %1963 = vmatpush2.xpose.msra.mxu0 0.0
  %1964 = vmatprep.subr.mxu0 0.0
  %1965 = vmatpush2.xpose.msra.mxu0 0.0
  %1966 = vmatprep.subr.mxu0 0.0
  %1967 = vmatpush2.xpose.msra.mxu0 0.0
  %1968 = vmatprep.subr.mxu0 0.0
  %1969 = vmatpush2.xpose.msra.mxu0 0.0
  %1970 = vmatprep.mubr.f32.mxu0 0.0
  %1971 = vmatmul.mubr.f32.gmra.mxu0 %v1902
  %v1972 = vpop.f32.mrf.mxu0
  %v1973 = vadd.f32 0.0, %v1972
  %v1974 = vpop.f32.mrf.mxu0
  %1975 = vdwg.mxu0
  %v1976 = vsel %vm233, %v1973, -inf
  %1977 = vmax.xlane.f32.xlu0 %v1976
  %v1978 = vpop.xlane.xlu0 %1977
  %v1979 = vsub.f32 %v1973, %v1978
  %v1980 = vmul.f32 %v1979, 1.442695
  %v1981 = vpow.pop %v1980
  %v1982 = vsel %vm233, %v1981, 0.0
  %1983 = vadd.xlane.f32.xlu0 %v1982
  %v1984 = vpop.xlane.xlu0 %1983
  %v1985 = vrcp.pop %v1984
  %v1986 = vmul.f32 %v1981, %v1985
  %1987 = vrot.lane.b32.xlu0 %v227, 40
  %v1988 = vpop.permute.xlu0 %1987
  %v1991 = vsel %vm233, %v1986, 0
  %1993 = vmatprep.subr.mxu0 0.0
  %1994 = vmatpush1.msra.mxu0 0.0
  %1995 = vmatprep.subr.mxu0 0.0
  %1996 = vmatpush1.msra.mxu0 0.0
  %1997 = vmatprep.subr.mxu0 0.0
  %1998 = vmatpush1.msra.mxu0 0.0
  %1999 = vmatprep.subr.mxu0 0.0
  %2000 = vmatpush1.msra.mxu0 0.0
  %2001 = vmatprep.subr.mxu0 0.0
  %2002 = vmatpush1.msra.mxu0 0.0
  %2003 = vmatprep.subr.mxu0 0.0
  %2004 = vmatpush1.msra.mxu0 0.0
  %2005 = vmatprep.subr.mxu0 0.0
  %2006 = vmatpush1.msra.mxu0 0.0
  %2007 = vmatprep.subr.mxu0 0.0
  %2008 = vmatpush1.msra.mxu0 0.0
  %2009 = vmatprep.subr.mxu0 0.0
  %2010 = vmatpush1.msra.mxu0 0.0
  %2011 = vmatprep.subr.mxu0 0.0
  %2012 = vmatpush1.msra.mxu0 0.0
  %2013 = vmatprep.subr.mxu0 0.0
  %2014 = vmatpush1.msra.mxu0 0.0
  %2015 = vmatprep.subr.mxu0 0.0
  %2016 = vmatpush1.msra.mxu0 0.0
  %2017 = vmatprep.subr.mxu0 0.0
  %2018 = vmatpush1.msra.mxu0 0.0
  %2019 = vmatprep.subr.mxu0 0.0
  %2020 = vmatpush1.msra.mxu0 0.0
  %2021 = vmatprep.subr.mxu0 0.0
  %2022 = vmatpush1.msra.mxu0 0.0
  %2023 = vmatprep.subr.mxu0 0.0
  %2024 = vmatpush1.msra.mxu0 %v1988
  %2025 = vmatprep.subr.mxu0 0.0
  %2026 = vmatpush2.msra.mxu0 0.0
  %2027 = vmatprep.subr.mxu0 0.0
  %2028 = vmatpush2.msra.mxu0 0.0
  %2029 = vmatprep.subr.mxu0 0.0
  %2030 = vmatpush2.msra.mxu0 0.0
  %2031 = vmatprep.subr.mxu0 0.0
  %2032 = vmatpush2.msra.mxu0 0.0
  %2033 = vmatprep.subr.mxu0 0.0
  %2034 = vmatpush2.msra.mxu0 0.0
  %2035 = vmatprep.subr.mxu0 0.0
  %2036 = vmatpush2.msra.mxu0 0.0
  %2037 = vmatprep.subr.mxu0 0.0
  %2038 = vmatpush2.msra.mxu0 0.0
  %2039 = vmatprep.subr.mxu0 0.0
  %2040 = vmatpush2.msra.mxu0 0.0
  %2041 = vmatprep.subr.mxu0 0.0
  %2042 = vmatpush2.msra.mxu0 0.0
  %2043 = vmatprep.subr.mxu0 0.0
  %2044 = vmatpush2.msra.mxu0 0.0
  %2045 = vmatprep.subr.mxu0 0.0
  %2046 = vmatpush2.msra.mxu0 0.0
  %2047 = vmatprep.subr.mxu0 0.0
  %2048 = vmatpush2.msra.mxu0 0.0
  %2049 = vmatprep.subr.mxu0 0.0
  %2050 = vmatpush2.msra.mxu0 0.0
  %2051 = vmatprep.subr.mxu0 0.0
  %2052 = vmatpush2.msra.mxu0 0.0
  %2053 = vmatprep.subr.mxu0 0.0
  %2054 = vmatpush2.msra.mxu0 0.0
  %2055 = vmatprep.subr.mxu0 0.0
  %2056 = vmatpush2.msra.mxu0 0.0
  %2057 = vmatprep.mubr.f32.mxu0 0.0
  %2058 = vmatmul.mubr.f32.gmra.mxu0 %v1991
  %v2059 = vpop.f32.mrf.mxu0
  %v2060 = vadd.f32 0.0, %v2059
  %v2061 = vpop.f32.mrf.mxu0
  %2062 = vdwg.mxu0
  %v2064 = vsel %vm233, %v2060, 0
  %2066 = vmatprep.subr.mxu0 0.0
  %2067 = vmatpush1.msra.mxu0 0.0
  %2068 = vmatprep.subr.mxu0 0.0
  %2069 = vmatpush1.msra.mxu0 0.0
  %2070 = vmatprep.subr.mxu0 0.0
  %2071 = vmatpush1.msra.mxu0 0.0
  %2072 = vmatprep.subr.mxu0 0.0
  %2073 = vmatpush1.msra.mxu0 0.0
  %2074 = vmatprep.subr.mxu0 0.0
  %2075 = vmatpush1.msra.mxu0 0.0
  %2076 = vmatprep.subr.mxu0 0.0
  %2077 = vmatpush1.msra.mxu0 0.0
  %2078 = vmatprep.subr.mxu0 0.0
  %2079 = vmatpush1.msra.mxu0 0.0
  %2080 = vmatprep.subr.mxu0 0.0
  %2081 = vmatpush1.msra.mxu0 0.0
  %2082 = vmatprep.subr.mxu0 0.0
  %2083 = vmatpush1.msra.mxu0 0.0
  %2084 = vmatprep.subr.mxu0 0.0
  %2085 = vmatpush1.msra.mxu0 0.0
  %2086 = vmatprep.subr.mxu0 0.0
  %2087 = vmatpush1.msra.mxu0 0.0
  %2088 = vmatprep.subr.mxu0 0.0
  %2089 = vmatpush1.msra.mxu0 0.0
  %2090 = vmatprep.subr.mxu0 0.0
  %2091 = vmatpush1.msra.mxu0 0.0
  %2092 = vmatprep.subr.mxu0 0.0
  %2093 = vmatpush1.msra.mxu0 0.0
  %2094 = vmatprep.subr.mxu0 0.0
  %2095 = vmatpush1.msra.mxu0 0.0
  %2096 = vmatprep.subr.mxu0 0.0
  %2097 = vmatpush1.msra.mxu0 %v142
  %2098 = vmatprep.subr.mxu0 0.0
  %2099 = vmatpush2.msra.mxu0 0.0
  %2100 = vmatprep.subr.mxu0 0.0
  %2101 = vmatpush2.msra.mxu0 0.0
  %2102 = vmatprep.subr.mxu0 0.0
  %2103 = vmatpush2.msra.mxu0 0.0
  %2104 = vmatprep.subr.mxu0 0.0
  %2105 = vmatpush2.msra.mxu0 0.0
  %2106 = vmatprep.subr.mxu0 0.0
  %2107 = vmatpush2.msra.mxu0 0.0
  %2108 = vmatprep.subr.mxu0 0.0
  %2109 = vmatpush2.msra.mxu0 0.0
  %2110 = vmatprep.subr.mxu0 0.0
  %2111 = vmatpush2.msra.mxu0 0.0
  %2112 = vmatprep.subr.mxu0 0.0
  %2113 = vmatpush2.msra.mxu0 0.0
  %2114 = vmatprep.subr.mxu0 0.0
  %2115 = vmatpush2.msra.mxu0 0.0
  %2116 = vmatprep.subr.mxu0 0.0
  %2117 = vmatpush2.msra.mxu0 0.0
  %2118 = vmatprep.subr.mxu0 0.0
  %2119 = vmatpush2.msra.mxu0 0.0
  %2120 = vmatprep.subr.mxu0 0.0
  %2121 = vmatpush2.msra.mxu0 0.0
  %2122 = vmatprep.subr.mxu0 0.0
  %2123 = vmatpush2.msra.mxu0 0.0
  %2124 = vmatprep.subr.mxu0 0.0
  %2125 = vmatpush2.msra.mxu0 0.0
  %2126 = vmatprep.subr.mxu0 0.0
  %2127 = vmatpush2.msra.mxu0 0.0
  %2128 = vmatprep.subr.mxu0 0.0
  %2129 = vmatpush2.msra.mxu0 0.0
  %2130 = vmatprep.mubr.f32.mxu0 0.0
  %2131 = vmatmul.mubr.f32.gmra.mxu0 %v2064
  %v2132 = vpop.f32.mrf.mxu0
  %v2133 = vadd.f32 0.0, %v2132
  %v2134 = vpop.f32.mrf.mxu0
  %2135 = vdwg.mxu0
  %v2136 = vadd.f32 %v1897, %v2133
  %v2137 = vlaneseq
  %v2138 = vshrl.u32 %v2137, 7
  %v2139 = vsub.s32 0, %v2138
  %v2140 = vrot.slane %v143, %v2139
  %v2141 = vadd.f32 %v1183, %v2140
  %v2142 = vadd.f32 %v2136, %v2140
  %v2143 = vadd.f32 %v119, %v2141
  %v2144 = vadd.f32 %v120, %v2142
  %v2145 = vld [vmem:[%s4 + $0x88] sm:$0x1]
  %v2146 = vld [vmem:[%s4 + $0x90] sm:$0x1]
  %v2147 = vsel %vm148, %v2143, 0.0
  %2148 = vadd.xlane.f32.xlu0 %v2147
  %v2149 = vpop.xlane.xlu0 %2148
  %v2150 = vsel %vm148, %v2144, 0.0
  %2151 = vadd.xlane.f32.xlu0 %v2150
  %v2152 = vpop.xlane.xlu0 %2151
  %v2153 = vrcp.pop 32.0
  %v2154 = vmul.f32 %v2149, %v2153
  %v2155 = vmul.f32 %v2152, %v2153
  %v2156 = vsub.f32 %v2143, %v2154
  %v2157 = vsub.f32 %v2144, %v2155
  %v2158 = vmul.f32 %v2156, %v2156
  %v2159 = vmul.f32 %v2157, %v2157
  %v2160 = vsel %vm148, %v2158, 0.0
  %2161 = vadd.xlane.f32.xlu0 %v2160
  %v2162 = vpop.xlane.xlu0 %2161
  %v2163 = vsel %vm148, %v2159, 0.0
  %2164 = vadd.xlane.f32.xlu0 %v2163
  %v2165 = vpop.xlane.xlu0 %2164
  %v2166 = vmul.f32 %v2162, %v2153
  %v2167 = vmul.f32 %v2165, %v2153
  %v2168 = vadd.f32 %v2166, 1e-05
  %v2169 = vadd.f32 %v2167, 1e-05
  %v2170 = vrsqrt.pop %v2168
  %v2171 = vrsqrt.pop %v2169
  %v2172 = vmul.f32 %v2156, %v2170
  %v2173 = vmul.f32 %v2157, %v2171
  %v2174 = vlaneseq
  %v2175 = vshrl.u32 %v2174, 7
  %v2176 = vsub.s32 0, %v2175
  %v2177 = vrot.slane %v2145, %v2176
  %v2178 = vmul.f32 %v2172, %v2177
  %v2179 = vmul.f32 %v2173, %v2177
  %v2180 = vlaneseq
  %v2181 = vshrl.u32 %v2180, 7
  %v2182 = vsub.s32 0, %v2181
  %v2183 = vrot.slane %v2146, %v2182
  %v2184 = vadd.f32 %v2178, %v2183
  %v2185 = vadd.f32 %v2179, %v2183
  %v2186 = vld [vmem:[%s3] sm:$0xff]
  %v2187 = vld [vmem:[%s3 + $0x8] sm:$0xff]
  %v2188 = vld [vmem:[%s3 + $0x10] sm:$0xff]
  %v2189 = vld [vmem:[%s3 + $0x18] sm:$0xff]
  %v2190 = vld [vmem:[%s3 + $0x20] sm:$0x1]
  %v2191 = vlaneseq
  %v2192 = vshrl.u32 %v2191, 7
  %v2193 = vsub.s32 0, %v2192
  %v2194 = vrot.slane %v2190, %v2193
  %v2196 = vsel %vm148, %v2184, 0
  %v2199 = vsel %vm148, %v2185, 0
  %2201 = vmatprep.subr.mxu0 0.0
  %2202 = vmatpush1.msra.mxu0 0.0
  %2203 = vmatprep.subr.mxu0 0.0
  %2204 = vmatpush1.msra.mxu0 0.0
  %2205 = vmatprep.subr.mxu0 0.0
  %2206 = vmatpush1.msra.mxu0 0.0
  %2207 = vmatprep.subr.mxu0 0.0
  %2208 = vmatpush1.msra.mxu0 0.0
  %2209 = vmatprep.subr.mxu0 0.0
  %2210 = vmatpush1.msra.mxu0 0.0
  %2211 = vmatprep.subr.mxu0 0.0
  %2212 = vmatpush1.msra.mxu0 0.0
  %2213 = vmatprep.subr.mxu0 0.0
  %2214 = vmatpush1.msra.mxu0 0.0
  %2215 = vmatprep.subr.mxu0 0.0
  %2216 = vmatpush1.msra.mxu0 0.0
  %2217 = vmatprep.subr.mxu0 0.0
  %2218 = vmatpush1.msra.mxu0 0.0
  %2219 = vmatprep.subr.mxu0 0.0
  %2220 = vmatpush1.msra.mxu0 0.0
  %2221 = vmatprep.subr.mxu0 0.0
  %2222 = vmatpush1.msra.mxu0 0.0
  %2223 = vmatprep.subr.mxu0 0.0
  %2224 = vmatpush1.msra.mxu0 0.0
  %2225 = vmatprep.subr.mxu0 0.0
  %2226 = vmatpush1.msra.mxu0 %v2189
  %2227 = vmatprep.subr.mxu0 0.0
  %2228 = vmatpush1.msra.mxu0 %v2188
  %2229 = vmatprep.subr.mxu0 0.0
  %2230 = vmatpush1.msra.mxu0 %v2187
  %2231 = vmatprep.subr.mxu0 0.0
  %2232 = vmatpush1.msra.mxu0 %v2186
  %2233 = vmatprep.subr.mxu0 0.0
  %2234 = vmatpush2.msra.mxu0 0.0
  %2235 = vmatprep.subr.mxu0 0.0
  %2236 = vmatpush2.msra.mxu0 0.0
  %2237 = vmatprep.subr.mxu0 0.0
  %2238 = vmatpush2.msra.mxu0 0.0
  %2239 = vmatprep.subr.mxu0 0.0
  %2240 = vmatpush2.msra.mxu0 0.0
  %2241 = vmatprep.subr.mxu0 0.0
  %2242 = vmatpush2.msra.mxu0 0.0
  %2243 = vmatprep.subr.mxu0 0.0
  %2244 = vmatpush2.msra.mxu0 0.0
  %2245 = vmatprep.subr.mxu0 0.0
  %2246 = vmatpush2.msra.mxu0 0.0
  %2247 = vmatprep.subr.mxu0 0.0
  %2248 = vmatpush2.msra.mxu0 0.0
  %2249 = vmatprep.subr.mxu0 0.0
  %2250 = vmatpush2.msra.mxu0 0.0
  %2251 = vmatprep.subr.mxu0 0.0
  %2252 = vmatpush2.msra.mxu0 0.0
  %2253 = vmatprep.subr.mxu0 0.0
  %2254 = vmatpush2.msra.mxu0 0.0
  %2255 = vmatprep.subr.mxu0 0.0
  %2256 = vmatpush2.msra.mxu0 0.0
  %2257 = vmatprep.subr.mxu0 0.0
  %2258 = vmatpush2.msra.mxu0 0.0
  %2259 = vmatprep.subr.mxu0 0.0
  %2260 = vmatpush2.msra.mxu0 0.0
  %2261 = vmatprep.subr.mxu0 0.0
  %2262 = vmatpush2.msra.mxu0 0.0
  %2263 = vmatprep.subr.mxu0 0.0
  %2264 = vmatpush2.msra.mxu0 0.0
  %2265 = vmatprep.mubr.f32.mxu0 0.0
  %2266 = vmatmul.mubr.f32.gmra.mxu0 %v2196
  %v2267 = vpop.f32.mrf.mxu0
  %v2268 = vadd.f32 %v2194, %v2267
  %v2269 = vpop.f32.mrf.mxu0
  %2270 = vmatprep.mubr.f32.mxu0 0.0
  %2271 = vmatmul.mubr.f32.gmra.mxu0 %v2199
  %v2272 = vpop.f32.mrf.mxu0
  %v2273 = vadd.f32 %v2194, %v2272
  %v2274 = vpop.f32.mrf.mxu0
  %2275 = vdwg.mxu0
  %v2276 = vmax.f32 %v2268, 0.0
  %v2277 = vmax.f32 %v2273, 0.0
  %v2278 = vld [vmem:[%s4 + $0x40] sm:$0xff]
  %v2279 = vld [vmem:[%s4 + $0x48] sm:$0xff]
  %v2280 = vld [vmem:[%s4 + $0x50] sm:$0xff]
  %v2281 = vld [vmem:[%s4 + $0x58] sm:$0xff]
  %v2282 = vld [vmem:[%s4 + $0x60] sm:$0xff]
  %v2283 = vld [vmem:[%s4 + $0x68] sm:$0xff]
  %v2284 = vld [vmem:[%s4 + $0x70] sm:$0xff]
  %v2285 = vld [vmem:[%s4 + $0x78] sm:$0xff]
  %v2286 = vld [vmem:[%s4 + $0x80] sm:$0x1]
  %v2287 = vlaneseq
  %v2288 = vshrl.u32 %v2287, 7
  %v2289 = vsub.s32 0, %v2288
  %v2290 = vrot.slane %v2286, %v2289
  %vm2291 = vcmask 523264
  %v2293 = vsel %vm2291, %v2276, 0
  %v2296 = vsel %vm2291, %v2277, 0
  %2298 = vmatprep.subr.mxu0 0.0
  %2299 = vmatpush1.msra.mxu0 0.0
  %2300 = vmatprep.subr.mxu0 0.0
  %2301 = vmatpush1.msra.mxu0 0.0
  %2302 = vmatprep.subr.mxu0 0.0
  %2303 = vmatpush1.msra.mxu0 0.0
  %2304 = vmatprep.subr.mxu0 0.0
  %2305 = vmatpush1.msra.mxu0 0.0
  %2306 = vmatprep.subr.mxu0 0.0
  %2307 = vmatpush1.msra.mxu0 0.0
  %2308 = vmatprep.subr.mxu0 0.0
  %2309 = vmatpush1.msra.mxu0 0.0
  %2310 = vmatprep.subr.mxu0 0.0
  %2311 = vmatpush1.msra.mxu0 0.0
  %2312 = vmatprep.subr.mxu0 0.0
  %2313 = vmatpush1.msra.mxu0 0.0
  %2314 = vmatprep.subr.mxu0 0.0
  %2315 = vmatpush1.msra.mxu0 %v2285
  %2316 = vmatprep.subr.mxu0 0.0
  %2317 = vmatpush1.msra.mxu0 %v2284
  %2318 = vmatprep.subr.mxu0 0.0
  %2319 = vmatpush1.msra.mxu0 %v2283
  %2320 = vmatprep.subr.mxu0 0.0
  %2321 = vmatpush1.msra.mxu0 %v2282
  %2322 = vmatprep.subr.mxu0 0.0
  %2323 = vmatpush1.msra.mxu0 %v2281
  %2324 = vmatprep.subr.mxu0 0.0
  %2325 = vmatpush1.msra.mxu0 %v2280
  %2326 = vmatprep.subr.mxu0 0.0
  %2327 = vmatpush1.msra.mxu0 %v2279
  %2328 = vmatprep.subr.mxu0 0.0
  %2329 = vmatpush1.msra.mxu0 %v2278
  %2330 = vmatprep.subr.mxu0 0.0
  %2331 = vmatpush2.msra.mxu0 0.0
  %2332 = vmatprep.subr.mxu0 0.0
  %2333 = vmatpush2.msra.mxu0 0.0
  %2334 = vmatprep.subr.mxu0 0.0
  %2335 = vmatpush2.msra.mxu0 0.0
  %2336 = vmatprep.subr.mxu0 0.0
  %2337 = vmatpush2.msra.mxu0 0.0
  %2338 = vmatprep.subr.mxu0 0.0
  %2339 = vmatpush2.msra.mxu0 0.0
  %2340 = vmatprep.subr.mxu0 0.0
  %2341 = vmatpush2.msra.mxu0 0.0
  %2342 = vmatprep.subr.mxu0 0.0
  %2343 = vmatpush2.msra.mxu0 0.0
  %2344 = vmatprep.subr.mxu0 0.0
  %2345 = vmatpush2.msra.mxu0 0.0
  %2346 = vmatprep.subr.mxu0 0.0
  %2347 = vmatpush2.msra.mxu0 0.0
  %2348 = vmatprep.subr.mxu0 0.0
  %2349 = vmatpush2.msra.mxu0 0.0
  %2350 = vmatprep.subr.mxu0 0.0
  %2351 = vmatpush2.msra.mxu0 0.0
  %2352 = vmatprep.subr.mxu0 0.0
  %2353 = vmatpush2.msra.mxu0 0.0
  %2354 = vmatprep.subr.mxu0 0.0
  %2355 = vmatpush2.msra.mxu0 0.0
  %2356 = vmatprep.subr.mxu0 0.0
  %2357 = vmatpush2.msra.mxu0 0.0
  %2358 = vmatprep.subr.mxu0 0.0
  %2359 = vmatpush2.msra.mxu0 0.0
  %2360 = vmatprep.subr.mxu0 0.0
  %2361 = vmatpush2.msra.mxu0 0.0
  %2362 = vmatprep.mubr.f32.mxu0 0.0
  %2363 = vmatmul.mubr.f32.gmra.mxu0 %v2293
  %v2364 = vpop.f32.mrf.mxu0
  %v2365 = vadd.f32 %v2290, %v2364
  %v2366 = vpop.f32.mrf.mxu0
  %2367 = vmatprep.mubr.f32.mxu0 0.0
  %2368 = vmatmul.mubr.f32.gmra.mxu0 %v2296
  %v2369 = vpop.f32.mrf.mxu0
  %v2370 = vadd.f32 %v2290, %v2369
  %v2371 = vpop.f32.mrf.mxu0
  %2372 = vdwg.mxu0
  %v2373 = vadd.f32 %v2184, %v2365
  %v2374 = vadd.f32 %v2185, %v2370
  %v2375 = vld [vmem:[%s4 + $0x98] sm:$0x1]
  %v2376 = vld [vmem:[%s4 + $0xa0] sm:$0x1]
  %v2377 = vsel %vm148, %v2373, 0.0
  %2378 = vadd.xlane.f32.xlu0 %v2377
  %v2379 = vpop.xlane.xlu0 %2378
  %v2380 = vsel %vm148, %v2374, 0.0
  %2381 = vadd.xlane.f32.xlu0 %v2380
  %v2382 = vpop.xlane.xlu0 %2381
  %v2383 = vmul.f32 %v2379, %v2153
  %v2384 = vmul.f32 %v2382, %v2153
  %v2385 = vsub.f32 %v2373, %v2383
  %v2386 = vsub.f32 %v2374, %v2384
  %v2387 = vmul.f32 %v2385, %v2385
  %v2388 = vmul.f32 %v2386, %v2386
  %v2389 = vsel %vm148, %v2387, 0.0
  %2390 = vadd.xlane.f32.xlu0 %v2389
  %v2391 = vpop.xlane.xlu0 %2390
  %v2392 = vsel %vm148, %v2388, 0.0
  %2393 = vadd.xlane.f32.xlu0 %v2392
  %v2394 = vpop.xlane.xlu0 %2393
  %v2395 = vmul.f32 %v2391, %v2153
  %v2396 = vmul.f32 %v2394, %v2153
  %v2397 = vadd.f32 %v2395, 1e-05
  %v2398 = vadd.f32 %v2396, 1e-05
  %v2399 = vrsqrt.pop %v2397
  %v2400 = vrsqrt.pop %v2398
  %v2401 = vmul.f32 %v2385, %v2399
  %v2402 = vmul.f32 %v2386, %v2400
  %v2403 = vlaneseq
  %v2404 = vshrl.u32 %v2403, 7
  %v2405 = vsub.s32 0, %v2404
  %v2406 = vrot.slane %v2375, %v2405
  %v2407 = vmul.f32 %v2401, %v2406
  %v2408 = vmul.f32 %v2402, %v2406
  %v2409 = vlaneseq
  %v2410 = vshrl.u32 %v2409, 7
  %v2411 = vsub.s32 0, %v2410
  %v2412 = vrot.slane %v2376, %v2411
  %v2413 = vadd.f32 %v2407, %v2412
  %v2414 = vadd.f32 %v2408, %v2412
  %v2415 = vld [vmem:[%s1 + $0x28] sm:$0xff]
  %v2416 = vld [vmem:[%s1 + $0x30] sm:$0xff]
  %v2417 = vld [vmem:[%s1 + $0x38] sm:$0xff]
  %v2418 = vld [vmem:[%s1 + $0x40] sm:$0xff]
  %v2419 = vld [vmem:[%s1 + $0x48] sm:$0x1]
  %v2420 = vld [vmem:[%s4 + $0xa8] sm:$0xff]
  %v2421 = vld [vmem:[%s4 + $0xb0] sm:$0xff]
  %v2422 = vld [vmem:[%s4 + $0xb8] sm:$0xff]
  %v2423 = vld [vmem:[%s4 + $0xc0] sm:$0xff]
  %v2424 = vld [vmem:[%s4 + $0xc8] sm:$0x1]
  %v2425 = vlaneseq
  %v2426 = vshrl.u32 %v2425, 7
  %v2427 = vsub.s32 0, %v2426
  %v2428 = vrot.slane %v2419, %v2427
  %v2430 = vsel %vm148, %v2413, 0
  %v2433 = vsel %vm148, %v2414, 0
  %2435 = vmatprep.subr.mxu0 0.0
  %2436 = vmatpush1.msra.mxu0 0.0
  %2437 = vmatprep.subr.mxu0 0.0
  %2438 = vmatpush1.msra.mxu0 0.0
  %2439 = vmatprep.subr.mxu0 0.0
  %2440 = vmatpush1.msra.mxu0 0.0
  %2441 = vmatprep.subr.mxu0 0.0
  %2442 = vmatpush1.msra.mxu0 0.0
  %2443 = vmatprep.subr.mxu0 0.0
  %2444 = vmatpush1.msra.mxu0 0.0
  %2445 = vmatprep.subr.mxu0 0.0
  %2446 = vmatpush1.msra.mxu0 0.0
  %2447 = vmatprep.subr.mxu0 0.0
  %2448 = vmatpush1.msra.mxu0 0.0
  %2449 = vmatprep.subr.mxu0 0.0
  %2450 = vmatpush1.msra.mxu0 0.0
  %2451 = vmatprep.subr.mxu0 0.0
  %2452 = vmatpush1.msra.mxu0 0.0
  %2453 = vmatprep.subr.mxu0 0.0
  %2454 = vmatpush1.msra.mxu0 0.0
  %2455 = vmatprep.subr.mxu0 0.0
  %2456 = vmatpush1.msra.mxu0 0.0
  %2457 = vmatprep.subr.mxu0 0.0
  %2458 = vmatpush1.msra.mxu0 0.0
  %2459 = vmatprep.subr.mxu0 0.0
  %2460 = vmatpush1.msra.mxu0 %v2418
  %2461 = vmatprep.subr.mxu0 0.0
  %2462 = vmatpush1.msra.mxu0 %v2417
  %2463 = vmatprep.subr.mxu0 0.0
  %2464 = vmatpush1.msra.mxu0 %v2416
  %2465 = vmatprep.subr.mxu0 0.0
  %2466 = vmatpush1.msra.mxu0 %v2415
  %2467 = vmatprep.subr.mxu0 0.0
  %2468 = vmatpush2.msra.mxu0 0.0
  %2469 = vmatprep.subr.mxu0 0.0
  %2470 = vmatpush2.msra.mxu0 0.0
  %2471 = vmatprep.subr.mxu0 0.0
  %2472 = vmatpush2.msra.mxu0 0.0
  %2473 = vmatprep.subr.mxu0 0.0
  %2474 = vmatpush2.msra.mxu0 0.0
  %2475 = vmatprep.subr.mxu0 0.0
  %2476 = vmatpush2.msra.mxu0 0.0
  %2477 = vmatprep.subr.mxu0 0.0
  %2478 = vmatpush2.msra.mxu0 0.0
  %2479 = vmatprep.subr.mxu0 0.0
  %2480 = vmatpush2.msra.mxu0 0.0
  %2481 = vmatprep.subr.mxu0 0.0
  %2482 = vmatpush2.msra.mxu0 0.0
  %2483 = vmatprep.subr.mxu0 0.0
  %2484 = vmatpush2.msra.mxu0 0.0
  %2485 = vmatprep.subr.mxu0 0.0
  %2486 = vmatpush2.msra.mxu0 0.0
  %2487 = vmatprep.subr.mxu0 0.0
  %2488 = vmatpush2.msra.mxu0 0.0
  %2489 = vmatprep.subr.mxu0 0.0
  %2490 = vmatpush2.msra.mxu0 0.0
  %2491 = vmatprep.subr.mxu0 0.0
  %2492 = vmatpush2.msra.mxu0 0.0
  %2493 = vmatprep.subr.mxu0 0.0
  %2494 = vmatpush2.msra.mxu0 0.0
  %2495 = vmatprep.subr.mxu0 0.0
  %2496 = vmatpush2.msra.mxu0 0.0
  %2497 = vmatprep.subr.mxu0 0.0
  %2498 = vmatpush2.msra.mxu0 0.0
  %2499 = vmatprep.mubr.f32.mxu0 0.0
  %2500 = vmatmul.mubr.f32.gmra.mxu0 %v2430
  %v2501 = vpop.f32.mrf.mxu0
  %v2502 = vadd.f32 %v2428, %v2501
  %v2503 = vpop.f32.mrf.mxu0
  %2504 = vmatprep.mubr.f32.mxu0 0.0
  %2505 = vmatmul.mubr.f32.gmra.mxu0 %v2433
  %v2506 = vpop.f32.mrf.mxu0
  %v2507 = vadd.f32 %v2428, %v2506
  %v2508 = vpop.f32.mrf.mxu0
  %2509 = vdwg.mxu0
  %2511 = vrot.lane.b32.xlu0 %v2502, 96
  %v2512 = vpop.permute.xlu0 %2511
  %v2513 = vsel %vm233, %v2502, 0
  %v2515 = vsel %vm233, %v2512, 0
  %2517 = vmatprep.subr.mxu0 0.0
  %2518 = vmatpush1.xpose.msra.mxu0 0.0
  %2519 = vmatprep.subr.mxu0 0.0
  %2520 = vmatpush1.xpose.msra.mxu0 0.0
  %2521 = vmatprep.subr.mxu0 0.0
  %2522 = vmatpush1.xpose.msra.mxu0 0.0
  %2523 = vmatprep.subr.mxu0 0.0
  %2524 = vmatpush1.xpose.msra.mxu0 0.0
  %2525 = vmatprep.subr.mxu0 0.0
  %2526 = vmatpush1.xpose.msra.mxu0 0.0
  %2527 = vmatprep.subr.mxu0 0.0
  %2528 = vmatpush1.xpose.msra.mxu0 0.0
  %2529 = vmatprep.subr.mxu0 0.0
  %2530 = vmatpush1.xpose.msra.mxu0 0.0
  %2531 = vmatprep.subr.mxu0 0.0
  %2532 = vmatpush1.xpose.msra.mxu0 0.0
  %2533 = vmatprep.subr.mxu0 0.0
  %2534 = vmatpush1.xpose.msra.mxu0 0.0
  %2535 = vmatprep.subr.mxu0 0.0
  %2536 = vmatpush1.xpose.msra.mxu0 0.0
  %2537 = vmatprep.subr.mxu0 0.0
  %2538 = vmatpush1.xpose.msra.mxu0 0.0
  %2539 = vmatprep.subr.mxu0 0.0
  %2540 = vmatpush1.xpose.msra.mxu0 0.0
  %2541 = vmatprep.subr.mxu0 0.0
  %2542 = vmatpush1.xpose.msra.mxu0 0.0
  %2543 = vmatprep.subr.mxu0 0.0
  %2544 = vmatpush1.xpose.msra.mxu0 0.0
  %2545 = vmatprep.subr.mxu0 0.0
  %2546 = vmatpush1.xpose.msra.mxu0 0.0
  %2547 = vmatprep.subr.mxu0 0.0
  %2548 = vmatpush1.xpose.msra.mxu0 %v2515
  %2549 = vmatprep.subr.mxu0 0.0
  %2550 = vmatpush2.xpose.msra.mxu0 0.0
  %2551 = vmatprep.subr.mxu0 0.0
  %2552 = vmatpush2.xpose.msra.mxu0 0.0
  %2553 = vmatprep.subr.mxu0 0.0
  %2554 = vmatpush2.xpose.msra.mxu0 0.0
  %2555 = vmatprep.subr.mxu0 0.0
  %2556 = vmatpush2.xpose.msra.mxu0 0.0
  %2557 = vmatprep.subr.mxu0 0.0
  %2558 = vmatpush2.xpose.msra.mxu0 0.0
  %2559 = vmatprep.subr.mxu0 0.0
  %2560 = vmatpush2.xpose.msra.mxu0 0.0
  %2561 = vmatprep.subr.mxu0 0.0
  %2562 = vmatpush2.xpose.msra.mxu0 0.0
  %2563 = vmatprep.subr.mxu0 0.0
  %2564 = vmatpush2.xpose.msra.mxu0 0.0
  %2565 = vmatprep.subr.mxu0 0.0
  %2566 = vmatpush2.xpose.msra.mxu0 0.0
  %2567 = vmatprep.subr.mxu0 0.0
  %2568 = vmatpush2.xpose.msra.mxu0 0.0
  %2569 = vmatprep.subr.mxu0 0.0
  %2570 = vmatpush2.xpose.msra.mxu0 0.0
  %2571 = vmatprep.subr.mxu0 0.0
  %2572 = vmatpush2.xpose.msra.mxu0 0.0
  %2573 = vmatprep.subr.mxu0 0.0
  %2574 = vmatpush2.xpose.msra.mxu0 0.0
  %2575 = vmatprep.subr.mxu0 0.0
  %2576 = vmatpush2.xpose.msra.mxu0 0.0
  %2577 = vmatprep.subr.mxu0 0.0
  %2578 = vmatpush2.xpose.msra.mxu0 0.0
  %2579 = vmatprep.subr.mxu0 0.0
  %2580 = vmatpush2.xpose.msra.mxu0 0.0
  %2581 = vmatprep.mubr.f32.mxu0 0.0
  %2582 = vmatmul.mubr.f32.gmra.mxu0 %v2513
  %v2583 = vpop.f32.mrf.mxu0
  %v2584 = vadd.f32 0.0, %v2583
  %v2585 = vpop.f32.mrf.mxu0
  %2586 = vdwg.mxu0
  %v2587 = vsel %vm233, %v2584, -inf
  %2588 = vmax.xlane.f32.xlu0 %v2587
  %v2589 = vpop.xlane.xlu0 %2588
  %v2590 = vsub.f32 %v2584, %v2589
  %v2591 = vmul.f32 %v2590, 1.442695
  %v2592 = vpow.pop %v2591
  %v2593 = vsel %vm233, %v2592, 0.0
  %2594 = vadd.xlane.f32.xlu0 %v2593
  %v2595 = vpop.xlane.xlu0 %2594
  %v2596 = vrcp.pop %v2595
  %v2597 = vmul.f32 %v2592, %v2596
  %2598 = vrot.lane.b32.xlu0 %v2502, 64
  %v2599 = vpop.permute.xlu0 %2598
  %v2602 = vsel %vm233, %v2597, 0
  %2604 = vmatprep.subr.mxu0 0.0
  %2605 = vmatpush1.msra.mxu0 0.0
  %2606 = vmatprep.subr.mxu0 0.0
  %2607 = vmatpush1.msra.mxu0 0.0
  %2608 = vmatprep.subr.mxu0 0.0
  %2609 = vmatpush1.msra.mxu0 0.0
  %2610 = vmatprep.subr.mxu0 0.0
  %2611 = vmatpush1.msra.mxu0 0.0
  %2612 = vmatprep.subr.mxu0 0.0
  %2613 = vmatpush1.msra.mxu0 0.0
  %2614 = vmatprep.subr.mxu0 0.0
  %2615 = vmatpush1.msra.mxu0 0.0
  %2616 = vmatprep.subr.mxu0 0.0
  %2617 = vmatpush1.msra.mxu0 0.0
  %2618 = vmatprep.subr.mxu0 0.0
  %2619 = vmatpush1.msra.mxu0 0.0
  %2620 = vmatprep.subr.mxu0 0.0
  %2621 = vmatpush1.msra.mxu0 0.0
  %2622 = vmatprep.subr.mxu0 0.0
  %2623 = vmatpush1.msra.mxu0 0.0
  %2624 = vmatprep.subr.mxu0 0.0
  %2625 = vmatpush1.msra.mxu0 0.0
  %2626 = vmatprep.subr.mxu0 0.0
  %2627 = vmatpush1.msra.mxu0 0.0
  %2628 = vmatprep.subr.mxu0 0.0
  %2629 = vmatpush1.msra.mxu0 0.0
  %2630 = vmatprep.subr.mxu0 0.0
  %2631 = vmatpush1.msra.mxu0 0.0
  %2632 = vmatprep.subr.mxu0 0.0
  %2633 = vmatpush1.msra.mxu0 0.0
  %2634 = vmatprep.subr.mxu0 0.0
  %2635 = vmatpush1.msra.mxu0 %v2599
  %2636 = vmatprep.subr.mxu0 0.0
  %2637 = vmatpush2.msra.mxu0 0.0
  %2638 = vmatprep.subr.mxu0 0.0
  %2639 = vmatpush2.msra.mxu0 0.0
  %2640 = vmatprep.subr.mxu0 0.0
  %2641 = vmatpush2.msra.mxu0 0.0
  %2642 = vmatprep.subr.mxu0 0.0
  %2643 = vmatpush2.msra.mxu0 0.0
  %2644 = vmatprep.subr.mxu0 0.0
  %2645 = vmatpush2.msra.mxu0 0.0
  %2646 = vmatprep.subr.mxu0 0.0
  %2647 = vmatpush2.msra.mxu0 0.0
  %2648 = vmatprep.subr.mxu0 0.0
  %2649 = vmatpush2.msra.mxu0 0.0
  %2650 = vmatprep.subr.mxu0 0.0
  %2651 = vmatpush2.msra.mxu0 0.0
  %2652 = vmatprep.subr.mxu0 0.0
  %2653 = vmatpush2.msra.mxu0 0.0
  %2654 = vmatprep.subr.mxu0 0.0
  %2655 = vmatpush2.msra.mxu0 0.0
  %2656 = vmatprep.subr.mxu0 0.0
  %2657 = vmatpush2.msra.mxu0 0.0
  %2658 = vmatprep.subr.mxu0 0.0
  %2659 = vmatpush2.msra.mxu0 0.0
  %2660 = vmatprep.subr.mxu0 0.0
  %2661 = vmatpush2.msra.mxu0 0.0
  %2662 = vmatprep.subr.mxu0 0.0
  %2663 = vmatpush2.msra.mxu0 0.0
  %2664 = vmatprep.subr.mxu0 0.0
  %2665 = vmatpush2.msra.mxu0 0.0
  %2666 = vmatprep.subr.mxu0 0.0
  %2667 = vmatpush2.msra.mxu0 0.0
  %2668 = vmatprep.mubr.f32.mxu0 0.0
  %2669 = vmatmul.mubr.f32.gmra.mxu0 %v2602
  %v2670 = vpop.f32.mrf.mxu0
  %v2671 = vadd.f32 0.0, %v2670
  %v2672 = vpop.f32.mrf.mxu0
  %2673 = vdwg.mxu0
  %2674 = vrot.lane.b32.xlu0 %v2502, 120
  %v2675 = vpop.permute.xlu0 %2674
  %2676 = vrot.lane.b32.xlu0 %v2502, 88
  %v2677 = vpop.permute.xlu0 %2676
  %v2678 = vsel %vm233, %v2675, 0
  %v2680 = vsel %vm233, %v2677, 0
  %2682 = vmatprep.subr.mxu0 0.0
  %2683 = vmatpush1.xpose.msra.mxu0 0.0
  %2684 = vmatprep.subr.mxu0 0.0
  %2685 = vmatpush1.xpose.msra.mxu0 0.0
  %2686 = vmatprep.subr.mxu0 0.0
  %2687 = vmatpush1.xpose.msra.mxu0 0.0
  %2688 = vmatprep.subr.mxu0 0.0
  %2689 = vmatpush1.xpose.msra.mxu0 0.0
  %2690 = vmatprep.subr.mxu0 0.0
  %2691 = vmatpush1.xpose.msra.mxu0 0.0
  %2692 = vmatprep.subr.mxu0 0.0
  %2693 = vmatpush1.xpose.msra.mxu0 0.0
  %2694 = vmatprep.subr.mxu0 0.0
  %2695 = vmatpush1.xpose.msra.mxu0 0.0
  %2696 = vmatprep.subr.mxu0 0.0
  %2697 = vmatpush1.xpose.msra.mxu0 0.0
  %2698 = vmatprep.subr.mxu0 0.0
  %2699 = vmatpush1.xpose.msra.mxu0 0.0
  %2700 = vmatprep.subr.mxu0 0.0
  %2701 = vmatpush1.xpose.msra.mxu0 0.0
  %2702 = vmatprep.subr.mxu0 0.0
  %2703 = vmatpush1.xpose.msra.mxu0 0.0
  %2704 = vmatprep.subr.mxu0 0.0
  %2705 = vmatpush1.xpose.msra.mxu0 0.0
  %2706 = vmatprep.subr.mxu0 0.0
  %2707 = vmatpush1.xpose.msra.mxu0 0.0
  %2708 = vmatprep.subr.mxu0 0.0
  %2709 = vmatpush1.xpose.msra.mxu0 0.0
  %2710 = vmatprep.subr.mxu0 0.0
  %2711 = vmatpush1.xpose.msra.mxu0 0.0
  %2712 = vmatprep.subr.mxu0 0.0
  %2713 = vmatpush1.xpose.msra.mxu0 %v2680
  %2714 = vmatprep.subr.mxu0 0.0
  %2715 = vmatpush2.xpose.msra.mxu0 0.0
  %2716 = vmatprep.subr.mxu0 0.0
  %2717 = vmatpush2.xpose.msra.mxu0 0.0
  %2718 = vmatprep.subr.mxu0 0.0
  %2719 = vmatpush2.xpose.msra.mxu0 0.0
  %2720 = vmatprep.subr.mxu0 0.0
  %2721 = vmatpush2.xpose.msra.mxu0 0.0
  %2722 = vmatprep.subr.mxu0 0.0
  %2723 = vmatpush2.xpose.msra.mxu0 0.0
  %2724 = vmatprep.subr.mxu0 0.0
  %2725 = vmatpush2.xpose.msra.mxu0 0.0
  %2726 = vmatprep.subr.mxu0 0.0
  %2727 = vmatpush2.xpose.msra.mxu0 0.0
  %2728 = vmatprep.subr.mxu0 0.0
  %2729 = vmatpush2.xpose.msra.mxu0 0.0
  %2730 = vmatprep.subr.mxu0 0.0
  %2731 = vmatpush2.xpose.msra.mxu0 0.0
  %2732 = vmatprep.subr.mxu0 0.0
  %2733 = vmatpush2.xpose.msra.mxu0 0.0
  %2734 = vmatprep.subr.mxu0 0.0
  %2735 = vmatpush2.xpose.msra.mxu0 0.0
  %2736 = vmatprep.subr.mxu0 0.0
  %2737 = vmatpush2.xpose.msra.mxu0 0.0
  %2738 = vmatprep.subr.mxu0 0.0
  %2739 = vmatpush2.xpose.msra.mxu0 0.0
  %2740 = vmatprep.subr.mxu0 0.0
  %2741 = vmatpush2.xpose.msra.mxu0 0.0
  %2742 = vmatprep.subr.mxu0 0.0
  %2743 = vmatpush2.xpose.msra.mxu0 0.0
  %2744 = vmatprep.subr.mxu0 0.0
  %2745 = vmatpush2.xpose.msra.mxu0 0.0
  %2746 = vmatprep.mubr.f32.mxu0 0.0
  %2747 = vmatmul.mubr.f32.gmra.mxu0 %v2678
  %v2748 = vpop.f32.mrf.mxu0
  %v2749 = vadd.f32 0.0, %v2748
  %v2750 = vpop.f32.mrf.mxu0
  %2751 = vdwg.mxu0
  %v2752 = vsel %vm233, %v2749, -inf
  %2753 = vmax.xlane.f32.xlu0 %v2752
  %v2754 = vpop.xlane.xlu0 %2753
  %v2755 = vsub.f32 %v2749, %v2754
  %v2756 = vmul.f32 %v2755, 1.442695
  %v2757 = vpow.pop %v2756
  %v2758 = vsel %vm233, %v2757, 0.0
  %2759 = vadd.xlane.f32.xlu0 %v2758
  %v2760 = vpop.xlane.xlu0 %2759
  %v2761 = vrcp.pop %v2760
  %v2762 = vmul.f32 %v2757, %v2761
  %2763 = vrot.lane.b32.xlu0 %v2502, 56
  %v2764 = vpop.permute.xlu0 %2763
  %v2767 = vsel %vm233, %v2762, 0
  %2769 = vmatprep.subr.mxu0 0.0
  %2770 = vmatpush1.msra.mxu0 0.0
  %2771 = vmatprep.subr.mxu0 0.0
  %2772 = vmatpush1.msra.mxu0 0.0
  %2773 = vmatprep.subr.mxu0 0.0
  %2774 = vmatpush1.msra.mxu0 0.0
  %2775 = vmatprep.subr.mxu0 0.0
  %2776 = vmatpush1.msra.mxu0 0.0
  %2777 = vmatprep.subr.mxu0 0.0
  %2778 = vmatpush1.msra.mxu0 0.0
  %2779 = vmatprep.subr.mxu0 0.0
  %2780 = vmatpush1.msra.mxu0 0.0
  %2781 = vmatprep.subr.mxu0 0.0
  %2782 = vmatpush1.msra.mxu0 0.0
  %2783 = vmatprep.subr.mxu0 0.0
  %2784 = vmatpush1.msra.mxu0 0.0
  %2785 = vmatprep.subr.mxu0 0.0
  %2786 = vmatpush1.msra.mxu0 0.0
  %2787 = vmatprep.subr.mxu0 0.0
  %2788 = vmatpush1.msra.mxu0 0.0
  %2789 = vmatprep.subr.mxu0 0.0
  %2790 = vmatpush1.msra.mxu0 0.0
  %2791 = vmatprep.subr.mxu0 0.0
  %2792 = vmatpush1.msra.mxu0 0.0
  %2793 = vmatprep.subr.mxu0 0.0
  %2794 = vmatpush1.msra.mxu0 0.0
  %2795 = vmatprep.subr.mxu0 0.0
  %2796 = vmatpush1.msra.mxu0 0.0
  %2797 = vmatprep.subr.mxu0 0.0
  %2798 = vmatpush1.msra.mxu0 0.0
  %2799 = vmatprep.subr.mxu0 0.0
  %2800 = vmatpush1.msra.mxu0 %v2764
  %2801 = vmatprep.subr.mxu0 0.0
  %2802 = vmatpush2.msra.mxu0 0.0
  %2803 = vmatprep.subr.mxu0 0.0
  %2804 = vmatpush2.msra.mxu0 0.0
  %2805 = vmatprep.subr.mxu0 0.0
  %2806 = vmatpush2.msra.mxu0 0.0
  %2807 = vmatprep.subr.mxu0 0.0
  %2808 = vmatpush2.msra.mxu0 0.0
  %2809 = vmatprep.subr.mxu0 0.0
  %2810 = vmatpush2.msra.mxu0 0.0
  %2811 = vmatprep.subr.mxu0 0.0
  %2812 = vmatpush2.msra.mxu0 0.0
  %2813 = vmatprep.subr.mxu0 0.0
  %2814 = vmatpush2.msra.mxu0 0.0
  %2815 = vmatprep.subr.mxu0 0.0
  %2816 = vmatpush2.msra.mxu0 0.0
  %2817 = vmatprep.subr.mxu0 0.0
  %2818 = vmatpush2.msra.mxu0 0.0
  %2819 = vmatprep.subr.mxu0 0.0
  %2820 = vmatpush2.msra.mxu0 0.0
  %2821 = vmatprep.subr.mxu0 0.0
  %2822 = vmatpush2.msra.mxu0 0.0
  %2823 = vmatprep.subr.mxu0 0.0
  %2824 = vmatpush2.msra.mxu0 0.0
  %2825 = vmatprep.subr.mxu0 0.0
  %2826 = vmatpush2.msra.mxu0 0.0
  %2827 = vmatprep.subr.mxu0 0.0
  %2828 = vmatpush2.msra.mxu0 0.0
  %2829 = vmatprep.subr.mxu0 0.0
  %2830 = vmatpush2.msra.mxu0 0.0
  %2831 = vmatprep.subr.mxu0 0.0
  %2832 = vmatpush2.msra.mxu0 0.0
  %2833 = vmatprep.mubr.f32.mxu0 0.0
  %2834 = vmatmul.mubr.f32.gmra.mxu0 %v2767
  %v2835 = vpop.f32.mrf.mxu0
  %v2836 = vadd.f32 0.0, %v2835
  %v2837 = vpop.f32.mrf.mxu0
  %2838 = vdwg.mxu0
  %v2840 = vsel %vm233, %v2836, 0
  %2842 = vmatprep.subr.mxu0 0.0
  %2843 = vmatpush1.msra.mxu0 0.0
  %2844 = vmatprep.subr.mxu0 0.0
  %2845 = vmatpush1.msra.mxu0 0.0
  %2846 = vmatprep.subr.mxu0 0.0
  %2847 = vmatpush1.msra.mxu0 0.0
  %2848 = vmatprep.subr.mxu0 0.0
  %2849 = vmatpush1.msra.mxu0 0.0
  %2850 = vmatprep.subr.mxu0 0.0
  %2851 = vmatpush1.msra.mxu0 0.0
  %2852 = vmatprep.subr.mxu0 0.0
  %2853 = vmatpush1.msra.mxu0 0.0
  %2854 = vmatprep.subr.mxu0 0.0
  %2855 = vmatpush1.msra.mxu0 0.0
  %2856 = vmatprep.subr.mxu0 0.0
  %2857 = vmatpush1.msra.mxu0 0.0
  %2858 = vmatprep.subr.mxu0 0.0
  %2859 = vmatpush1.msra.mxu0 0.0
  %2860 = vmatprep.subr.mxu0 0.0
  %2861 = vmatpush1.msra.mxu0 0.0
  %2862 = vmatprep.subr.mxu0 0.0
  %2863 = vmatpush1.msra.mxu0 0.0
  %2864 = vmatprep.subr.mxu0 0.0
  %2865 = vmatpush1.msra.mxu0 0.0
  %2866 = vmatprep.subr.mxu0 0.0
  %2867 = vmatpush1.msra.mxu0 0.0
  %2868 = vmatprep.subr.mxu0 0.0
  %2869 = vmatpush1.msra.mxu0 0.0
  %2870 = vmatprep.subr.mxu0 0.0
  %2871 = vmatpush1.msra.mxu0 0.0
  %2872 = vmatprep.subr.mxu0 0.0
  %2873 = vmatpush1.msra.mxu0 %v2421
  %2874 = vmatprep.subr.mxu0 0.0
  %2875 = vmatpush2.msra.mxu0 0.0
  %2876 = vmatprep.subr.mxu0 0.0
  %2877 = vmatpush2.msra.mxu0 0.0
  %2878 = vmatprep.subr.mxu0 0.0
  %2879 = vmatpush2.msra.mxu0 0.0
  %2880 = vmatprep.subr.mxu0 0.0
  %2881 = vmatpush2.msra.mxu0 0.0
  %2882 = vmatprep.subr.mxu0 0.0
  %2883 = vmatpush2.msra.mxu0 0.0
  %2884 = vmatprep.subr.mxu0 0.0
  %2885 = vmatpush2.msra.mxu0 0.0
  %2886 = vmatprep.subr.mxu0 0.0
  %2887 = vmatpush2.msra.mxu0 0.0
  %2888 = vmatprep.subr.mxu0 0.0
  %2889 = vmatpush2.msra.mxu0 0.0
  %2890 = vmatprep.subr.mxu0 0.0
  %2891 = vmatpush2.msra.mxu0 0.0
  %2892 = vmatprep.subr.mxu0 0.0
  %2893 = vmatpush2.msra.mxu0 0.0
  %2894 = vmatprep.subr.mxu0 0.0
  %2895 = vmatpush2.msra.mxu0 0.0
  %2896 = vmatprep.subr.mxu0 0.0
  %2897 = vmatpush2.msra.mxu0 0.0
  %2898 = vmatprep.subr.mxu0 0.0
  %2899 = vmatpush2.msra.mxu0 0.0
  %2900 = vmatprep.subr.mxu0 0.0
  %2901 = vmatpush2.msra.mxu0 0.0
  %2902 = vmatprep.subr.mxu0 0.0
  %2903 = vmatpush2.msra.mxu0 0.0
  %2904 = vmatprep.subr.mxu0 0.0
  %2905 = vmatpush2.msra.mxu0 0.0
  %2906 = vmatprep.mubr.f32.mxu0 0.0
  %2907 = vmatmul.mubr.f32.gmra.mxu0 %v2840
  %v2908 = vpop.f32.mrf.mxu0
  %v2909 = vadd.f32 0.0, %v2908
  %v2910 = vpop.f32.mrf.mxu0
  %2911 = vdwg.mxu0
  %v2913 = vsel %vm233, %v2671, 0
  %2915 = vmatprep.subr.mxu0 0.0
  %2916 = vmatpush1.msra.mxu0 0.0
  %2917 = vmatprep.subr.mxu0 0.0
  %2918 = vmatpush1.msra.mxu0 0.0
  %2919 = vmatprep.subr.mxu0 0.0
  %2920 = vmatpush1.msra.mxu0 0.0
  %2921 = vmatprep.subr.mxu0 0.0
  %2922 = vmatpush1.msra.mxu0 0.0
  %2923 = vmatprep.subr.mxu0 0.0
  %2924 = vmatpush1.msra.mxu0 0.0
  %2925 = vmatprep.subr.mxu0 0.0
  %2926 = vmatpush1.msra.mxu0 0.0
  %2927 = vmatprep.subr.mxu0 0.0
  %2928 = vmatpush1.msra.mxu0 0.0
  %2929 = vmatprep.subr.mxu0 0.0
  %2930 = vmatpush1.msra.mxu0 0.0
  %2931 = vmatprep.subr.mxu0 0.0
  %2932 = vmatpush1.msra.mxu0 0.0
  %2933 = vmatprep.subr.mxu0 0.0
  %2934 = vmatpush1.msra.mxu0 0.0
  %2935 = vmatprep.subr.mxu0 0.0
  %2936 = vmatpush1.msra.mxu0 0.0
  %2937 = vmatprep.subr.mxu0 0.0
  %2938 = vmatpush1.msra.mxu0 0.0
  %2939 = vmatprep.subr.mxu0 0.0
  %2940 = vmatpush1.msra.mxu0 0.0
  %2941 = vmatprep.subr.mxu0 0.0
  %2942 = vmatpush1.msra.mxu0 0.0
  %2943 = vmatprep.subr.mxu0 0.0
  %2944 = vmatpush1.msra.mxu0 0.0
  %2945 = vmatprep.subr.mxu0 0.0
  %2946 = vmatpush1.msra.mxu0 %v2420
  %2947 = vmatprep.subr.mxu0 0.0
  %2948 = vmatpush2.msra.mxu0 0.0
  %2949 = vmatprep.subr.mxu0 0.0
  %2950 = vmatpush2.msra.mxu0 0.0
  %2951 = vmatprep.subr.mxu0 0.0
  %2952 = vmatpush2.msra.mxu0 0.0
  %2953 = vmatprep.subr.mxu0 0.0
  %2954 = vmatpush2.msra.mxu0 0.0
  %2955 = vmatprep.subr.mxu0 0.0
  %2956 = vmatpush2.msra.mxu0 0.0
  %2957 = vmatprep.subr.mxu0 0.0
  %2958 = vmatpush2.msra.mxu0 0.0
  %2959 = vmatprep.subr.mxu0 0.0
  %2960 = vmatpush2.msra.mxu0 0.0
  %2961 = vmatprep.subr.mxu0 0.0
  %2962 = vmatpush2.msra.mxu0 0.0
  %2963 = vmatprep.subr.mxu0 0.0
  %2964 = vmatpush2.msra.mxu0 0.0
  %2965 = vmatprep.subr.mxu0 0.0
  %2966 = vmatpush2.msra.mxu0 0.0
  %2967 = vmatprep.subr.mxu0 0.0
  %2968 = vmatpush2.msra.mxu0 0.0
  %2969 = vmatprep.subr.mxu0 0.0
  %2970 = vmatpush2.msra.mxu0 0.0
  %2971 = vmatprep.subr.mxu0 0.0
  %2972 = vmatpush2.msra.mxu0 0.0
  %2973 = vmatprep.subr.mxu0 0.0
  %2974 = vmatpush2.msra.mxu0 0.0
  %2975 = vmatprep.subr.mxu0 0.0
  %2976 = vmatpush2.msra.mxu0 0.0
  %2977 = vmatprep.subr.mxu0 0.0
  %2978 = vmatpush2.msra.mxu0 0.0
  %2979 = vmatprep.mubr.f32.mxu0 0.0
  %2980 = vmatmul.mubr.f32.gmra.mxu0 %v2913
  %v2981 = vpop.f32.mrf.mxu0
  %v2982 = vadd.f32 %v2909, %v2981
  %v2983 = vpop.f32.mrf.mxu0
  %2984 = vdwg.mxu0
  %2985 = vrot.lane.b32.xlu0 %v2502, 112
  %v2986 = vpop.permute.xlu0 %2985
  %2987 = vrot.lane.b32.xlu0 %v2502, 80
  %v2988 = vpop.permute.xlu0 %2987
  %v2989 = vsel %vm233, %v2986, 0
  %v2991 = vsel %vm233, %v2988, 0
  %2993 = vmatprep.subr.mxu0 0.0
  %2994 = vmatpush1.xpose.msra.mxu0 0.0
  %2995 = vmatprep.subr.mxu0 0.0
  %2996 = vmatpush1.xpose.msra.mxu0 0.0
  %2997 = vmatprep.subr.mxu0 0.0
  %2998 = vmatpush1.xpose.msra.mxu0 0.0
  %2999 = vmatprep.subr.mxu0 0.0
  %3000 = vmatpush1.xpose.msra.mxu0 0.0
  %3001 = vmatprep.subr.mxu0 0.0
  %3002 = vmatpush1.xpose.msra.mxu0 0.0
  %3003 = vmatprep.subr.mxu0 0.0
  %3004 = vmatpush1.xpose.msra.mxu0 0.0
  %3005 = vmatprep.subr.mxu0 0.0
  %3006 = vmatpush1.xpose.msra.mxu0 0.0
  %3007 = vmatprep.subr.mxu0 0.0
  %3008 = vmatpush1.xpose.msra.mxu0 0.0
  %3009 = vmatprep.subr.mxu0 0.0
  %3010 = vmatpush1.xpose.msra.mxu0 0.0
  %3011 = vmatprep.subr.mxu0 0.0
  %3012 = vmatpush1.xpose.msra.mxu0 0.0
  %3013 = vmatprep.subr.mxu0 0.0
  %3014 = vmatpush1.xpose.msra.mxu0 0.0
  %3015 = vmatprep.subr.mxu0 0.0
  %3016 = vmatpush1.xpose.msra.mxu0 0.0
  %3017 = vmatprep.subr.mxu0 0.0
  %3018 = vmatpush1.xpose.msra.mxu0 0.0
  %3019 = vmatprep.subr.mxu0 0.0
  %3020 = vmatpush1.xpose.msra.mxu0 0.0
  %3021 = vmatprep.subr.mxu0 0.0
  %3022 = vmatpush1.xpose.msra.mxu0 0.0
  %3023 = vmatprep.subr.mxu0 0.0
  %3024 = vmatpush1.xpose.msra.mxu0 %v2991
  %3025 = vmatprep.subr.mxu0 0.0
  %3026 = vmatpush2.xpose.msra.mxu0 0.0
  %3027 = vmatprep.subr.mxu0 0.0
  %3028 = vmatpush2.xpose.msra.mxu0 0.0
  %3029 = vmatprep.subr.mxu0 0.0
  %3030 = vmatpush2.xpose.msra.mxu0 0.0
  %3031 = vmatprep.subr.mxu0 0.0
  %3032 = vmatpush2.xpose.msra.mxu0 0.0
  %3033 = vmatprep.subr.mxu0 0.0
  %3034 = vmatpush2.xpose.msra.mxu0 0.0
  %3035 = vmatprep.subr.mxu0 0.0
  %3036 = vmatpush2.xpose.msra.mxu0 0.0
  %3037 = vmatprep.subr.mxu0 0.0
  %3038 = vmatpush2.xpose.msra.mxu0 0.0
  %3039 = vmatprep.subr.mxu0 0.0
  %3040 = vmatpush2.xpose.msra.mxu0 0.0
  %3041 = vmatprep.subr.mxu0 0.0
  %3042 = vmatpush2.xpose.msra.mxu0 0.0
  %3043 = vmatprep.subr.mxu0 0.0
  %3044 = vmatpush2.xpose.msra.mxu0 0.0
  %3045 = vmatprep.subr.mxu0 0.0
  %3046 = vmatpush2.xpose.msra.mxu0 0.0
  %3047 = vmatprep.subr.mxu0 0.0
  %3048 = vmatpush2.xpose.msra.mxu0 0.0
  %3049 = vmatprep.subr.mxu0 0.0
  %3050 = vmatpush2.xpose.msra.mxu0 0.0
  %3051 = vmatprep.subr.mxu0 0.0
  %3052 = vmatpush2.xpose.msra.mxu0 0.0
  %3053 = vmatprep.subr.mxu0 0.0
  %3054 = vmatpush2.xpose.msra.mxu0 0.0
  %3055 = vmatprep.subr.mxu0 0.0
  %3056 = vmatpush2.xpose.msra.mxu0 0.0
  %3057 = vmatprep.mubr.f32.mxu0 0.0
  %3058 = vmatmul.mubr.f32.gmra.mxu0 %v2989
  %v3059 = vpop.f32.mrf.mxu0
  %v3060 = vadd.f32 0.0, %v3059
  %v3061 = vpop.f32.mrf.mxu0
  %3062 = vdwg.mxu0
  %v3063 = vsel %vm233, %v3060, -inf
  %3064 = vmax.xlane.f32.xlu0 %v3063
  %v3065 = vpop.xlane.xlu0 %3064
  %v3066 = vsub.f32 %v3060, %v3065
  %v3067 = vmul.f32 %v3066, 1.442695
  %v3068 = vpow.pop %v3067
  %v3069 = vsel %vm233, %v3068, 0.0
  %3070 = vadd.xlane.f32.xlu0 %v3069
  %v3071 = vpop.xlane.xlu0 %3070
  %v3072 = vrcp.pop %v3071
  %v3073 = vmul.f32 %v3068, %v3072
  %3074 = vrot.lane.b32.xlu0 %v2502, 48
  %v3075 = vpop.permute.xlu0 %3074
  %v3078 = vsel %vm233, %v3073, 0
  %3080 = vmatprep.subr.mxu0 0.0
  %3081 = vmatpush1.msra.mxu0 0.0
  %3082 = vmatprep.subr.mxu0 0.0
  %3083 = vmatpush1.msra.mxu0 0.0
  %3084 = vmatprep.subr.mxu0 0.0
  %3085 = vmatpush1.msra.mxu0 0.0
  %3086 = vmatprep.subr.mxu0 0.0
  %3087 = vmatpush1.msra.mxu0 0.0
  %3088 = vmatprep.subr.mxu0 0.0
  %3089 = vmatpush1.msra.mxu0 0.0
  %3090 = vmatprep.subr.mxu0 0.0
  %3091 = vmatpush1.msra.mxu0 0.0
  %3092 = vmatprep.subr.mxu0 0.0
  %3093 = vmatpush1.msra.mxu0 0.0
  %3094 = vmatprep.subr.mxu0 0.0
  %3095 = vmatpush1.msra.mxu0 0.0
  %3096 = vmatprep.subr.mxu0 0.0
  %3097 = vmatpush1.msra.mxu0 0.0
  %3098 = vmatprep.subr.mxu0 0.0
  %3099 = vmatpush1.msra.mxu0 0.0
  %3100 = vmatprep.subr.mxu0 0.0
  %3101 = vmatpush1.msra.mxu0 0.0
  %3102 = vmatprep.subr.mxu0 0.0
  %3103 = vmatpush1.msra.mxu0 0.0
  %3104 = vmatprep.subr.mxu0 0.0
  %3105 = vmatpush1.msra.mxu0 0.0
  %3106 = vmatprep.subr.mxu0 0.0
  %3107 = vmatpush1.msra.mxu0 0.0
  %3108 = vmatprep.subr.mxu0 0.0
  %3109 = vmatpush1.msra.mxu0 0.0
  %3110 = vmatprep.subr.mxu0 0.0
  %3111 = vmatpush1.msra.mxu0 %v3075
  %3112 = vmatprep.subr.mxu0 0.0
  %3113 = vmatpush2.msra.mxu0 0.0
  %3114 = vmatprep.subr.mxu0 0.0
  %3115 = vmatpush2.msra.mxu0 0.0
  %3116 = vmatprep.subr.mxu0 0.0
  %3117 = vmatpush2.msra.mxu0 0.0
  %3118 = vmatprep.subr.mxu0 0.0
  %3119 = vmatpush2.msra.mxu0 0.0
  %3120 = vmatprep.subr.mxu0 0.0
  %3121 = vmatpush2.msra.mxu0 0.0
  %3122 = vmatprep.subr.mxu0 0.0
  %3123 = vmatpush2.msra.mxu0 0.0
  %3124 = vmatprep.subr.mxu0 0.0
  %3125 = vmatpush2.msra.mxu0 0.0
  %3126 = vmatprep.subr.mxu0 0.0
  %3127 = vmatpush2.msra.mxu0 0.0
  %3128 = vmatprep.subr.mxu0 0.0
  %3129 = vmatpush2.msra.mxu0 0.0
  %3130 = vmatprep.subr.mxu0 0.0
  %3131 = vmatpush2.msra.mxu0 0.0
  %3132 = vmatprep.subr.mxu0 0.0
  %3133 = vmatpush2.msra.mxu0 0.0
  %3134 = vmatprep.subr.mxu0 0.0
  %3135 = vmatpush2.msra.mxu0 0.0
  %3136 = vmatprep.subr.mxu0 0.0
  %3137 = vmatpush2.msra.mxu0 0.0
  %3138 = vmatprep.subr.mxu0 0.0
  %3139 = vmatpush2.msra.mxu0 0.0
  %3140 = vmatprep.subr.mxu0 0.0
  %3141 = vmatpush2.msra.mxu0 0.0
  %3142 = vmatprep.subr.mxu0 0.0
  %3143 = vmatpush2.msra.mxu0 0.0
  %3144 = vmatprep.mubr.f32.mxu0 0.0
  %3145 = vmatmul.mubr.f32.gmra.mxu0 %v3078
  %v3146 = vpop.f32.mrf.mxu0
  %v3147 = vadd.f32 0.0, %v3146
  %v3148 = vpop.f32.mrf.mxu0
  %3149 = vdwg.mxu0
  %v3151 = vsel %vm233, %v3147, 0
  %3153 = vmatprep.subr.mxu0 0.0
  %3154 = vmatpush1.msra.mxu0 0.0
  %3155 = vmatprep.subr.mxu0 0.0
  %3156 = vmatpush1.msra.mxu0 0.0
  %3157 = vmatprep.subr.mxu0 0.0
  %3158 = vmatpush1.msra.mxu0 0.0
  %3159 = vmatprep.subr.mxu0 0.0
  %3160 = vmatpush1.msra.mxu0 0.0
  %3161 = vmatprep.subr.mxu0 0.0
  %3162 = vmatpush1.msra.mxu0 0.0
  %3163 = vmatprep.subr.mxu0 0.0
  %3164 = vmatpush1.msra.mxu0 0.0
  %3165 = vmatprep.subr.mxu0 0.0
  %3166 = vmatpush1.msra.mxu0 0.0
  %3167 = vmatprep.subr.mxu0 0.0
  %3168 = vmatpush1.msra.mxu0 0.0
  %3169 = vmatprep.subr.mxu0 0.0
  %3170 = vmatpush1.msra.mxu0 0.0
  %3171 = vmatprep.subr.mxu0 0.0
  %3172 = vmatpush1.msra.mxu0 0.0
  %3173 = vmatprep.subr.mxu0 0.0
  %3174 = vmatpush1.msra.mxu0 0.0
  %3175 = vmatprep.subr.mxu0 0.0
  %3176 = vmatpush1.msra.mxu0 0.0
  %3177 = vmatprep.subr.mxu0 0.0
  %3178 = vmatpush1.msra.mxu0 0.0
  %3179 = vmatprep.subr.mxu0 0.0
  %3180 = vmatpush1.msra.mxu0 0.0
  %3181 = vmatprep.subr.mxu0 0.0
  %3182 = vmatpush1.msra.mxu0 0.0
  %3183 = vmatprep.subr.mxu0 0.0
  %3184 = vmatpush1.msra.mxu0 %v2422
  %3185 = vmatprep.subr.mxu0 0.0
  %3186 = vmatpush2.msra.mxu0 0.0
  %3187 = vmatprep.subr.mxu0 0.0
  %3188 = vmatpush2.msra.mxu0 0.0
  %3189 = vmatprep.subr.mxu0 0.0
  %3190 = vmatpush2.msra.mxu0 0.0
  %3191 = vmatprep.subr.mxu0 0.0
  %3192 = vmatpush2.msra.mxu0 0.0
  %3193 = vmatprep.subr.mxu0 0.0
  %3194 = vmatpush2.msra.mxu0 0.0
  %3195 = vmatprep.subr.mxu0 0.0
  %3196 = vmatpush2.msra.mxu0 0.0
  %3197 = vmatprep.subr.mxu0 0.0
  %3198 = vmatpush2.msra.mxu0 0.0
  %3199 = vmatprep.subr.mxu0 0.0
  %3200 = vmatpush2.msra.mxu0 0.0
  %3201 = vmatprep.subr.mxu0 0.0
  %3202 = vmatpush2.msra.mxu0 0.0
  %3203 = vmatprep.subr.mxu0 0.0
  %3204 = vmatpush2.msra.mxu0 0.0
  %3205 = vmatprep.subr.mxu0 0.0
  %3206 = vmatpush2.msra.mxu0 0.0
  %3207 = vmatprep.subr.mxu0 0.0
  %3208 = vmatpush2.msra.mxu0 0.0
  %3209 = vmatprep.subr.mxu0 0.0
  %3210 = vmatpush2.msra.mxu0 0.0
  %3211 = vmatprep.subr.mxu0 0.0
  %3212 = vmatpush2.msra.mxu0 0.0
  %3213 = vmatprep.subr.mxu0 0.0
  %3214 = vmatpush2.msra.mxu0 0.0
  %3215 = vmatprep.subr.mxu0 0.0
  %3216 = vmatpush2.msra.mxu0 0.0
  %3217 = vmatprep.mubr.f32.mxu0 0.0
  %3218 = vmatmul.mubr.f32.gmra.mxu0 %v3151
  %v3219 = vpop.f32.mrf.mxu0
  %v3220 = vadd.f32 0.0, %v3219
  %v3221 = vpop.f32.mrf.mxu0
  %3222 = vdwg.mxu0
  %v3223 = vadd.f32 %v2982, %v3220
  %3224 = vrot.lane.b32.xlu0 %v2502, 104
  %v3225 = vpop.permute.xlu0 %3224
  %3226 = vrot.lane.b32.xlu0 %v2502, 72
  %v3227 = vpop.permute.xlu0 %3226
  %v3228 = vsel %vm233, %v3225, 0
  %v3230 = vsel %vm233, %v3227, 0
  %3232 = vmatprep.subr.mxu0 0.0
  %3233 = vmatpush1.xpose.msra.mxu0 0.0
  %3234 = vmatprep.subr.mxu0 0.0
  %3235 = vmatpush1.xpose.msra.mxu0 0.0
  %3236 = vmatprep.subr.mxu0 0.0
  %3237 = vmatpush1.xpose.msra.mxu0 0.0
  %3238 = vmatprep.subr.mxu0 0.0
  %3239 = vmatpush1.xpose.msra.mxu0 0.0
  %3240 = vmatprep.subr.mxu0 0.0
  %3241 = vmatpush1.xpose.msra.mxu0 0.0
  %3242 = vmatprep.subr.mxu0 0.0
  %3243 = vmatpush1.xpose.msra.mxu0 0.0
  %3244 = vmatprep.subr.mxu0 0.0
  %3245 = vmatpush1.xpose.msra.mxu0 0.0
  %3246 = vmatprep.subr.mxu0 0.0
  %3247 = vmatpush1.xpose.msra.mxu0 0.0
  %3248 = vmatprep.subr.mxu0 0.0
  %3249 = vmatpush1.xpose.msra.mxu0 0.0
  %3250 = vmatprep.subr.mxu0 0.0
  %3251 = vmatpush1.xpose.msra.mxu0 0.0
  %3252 = vmatprep.subr.mxu0 0.0
  %3253 = vmatpush1.xpose.msra.mxu0 0.0
  %3254 = vmatprep.subr.mxu0 0.0
  %3255 = vmatpush1.xpose.msra.mxu0 0.0
  %3256 = vmatprep.subr.mxu0 0.0
  %3257 = vmatpush1.xpose.msra.mxu0 0.0
  %3258 = vmatprep.subr.mxu0 0.0
  %3259 = vmatpush1.xpose.msra.mxu0 0.0
  %3260 = vmatprep.subr.mxu0 0.0
  %3261 = vmatpush1.xpose.msra.mxu0 0.0
  %3262 = vmatprep.subr.mxu0 0.0
  %3263 = vmatpush1.xpose.msra.mxu0 %v3230
  %3264 = vmatprep.subr.mxu0 0.0
  %3265 = vmatpush2.xpose.msra.mxu0 0.0
  %3266 = vmatprep.subr.mxu0 0.0
  %3267 = vmatpush2.xpose.msra.mxu0 0.0
  %3268 = vmatprep.subr.mxu0 0.0
  %3269 = vmatpush2.xpose.msra.mxu0 0.0
  %3270 = vmatprep.subr.mxu0 0.0
  %3271 = vmatpush2.xpose.msra.mxu0 0.0
  %3272 = vmatprep.subr.mxu0 0.0
  %3273 = vmatpush2.xpose.msra.mxu0 0.0
  %3274 = vmatprep.subr.mxu0 0.0
  %3275 = vmatpush2.xpose.msra.mxu0 0.0
  %3276 = vmatprep.subr.mxu0 0.0
  %3277 = vmatpush2.xpose.msra.mxu0 0.0
  %3278 = vmatprep.subr.mxu0 0.0
  %3279 = vmatpush2.xpose.msra.mxu0 0.0
  %3280 = vmatprep.subr.mxu0 0.0
  %3281 = vmatpush2.xpose.msra.mxu0 0.0
  %3282 = vmatprep.subr.mxu0 0.0
  %3283 = vmatpush2.xpose.msra.mxu0 0.0
  %3284 = vmatprep.subr.mxu0 0.0
  %3285 = vmatpush2.xpose.msra.mxu0 0.0
  %3286 = vmatprep.subr.mxu0 0.0
  %3287 = vmatpush2.xpose.msra.mxu0 0.0
  %3288 = vmatprep.subr.mxu0 0.0
  %3289 = vmatpush2.xpose.msra.mxu0 0.0
  %3290 = vmatprep.subr.mxu0 0.0
  %3291 = vmatpush2.xpose.msra.mxu0 0.0
  %3292 = vmatprep.subr.mxu0 0.0
  %3293 = vmatpush2.xpose.msra.mxu0 0.0
  %3294 = vmatprep.subr.mxu0 0.0
  %3295 = vmatpush2.xpose.msra.mxu0 0.0
  %3296 = vmatprep.mubr.f32.mxu0 0.0
  %3297 = vmatmul.mubr.f32.gmra.mxu0 %v3228
  %v3298 = vpop.f32.mrf.mxu0
  %v3299 = vadd.f32 0.0, %v3298
  %v3300 = vpop.f32.mrf.mxu0
  %3301 = vdwg.mxu0
  %v3302 = vsel %vm233, %v3299, -inf
  %3303 = vmax.xlane.f32.xlu0 %v3302
  %v3304 = vpop.xlane.xlu0 %3303
  %v3305 = vsub.f32 %v3299, %v3304
  %v3306 = vmul.f32 %v3305, 1.442695
  %v3307 = vpow.pop %v3306
  %v3308 = vsel %vm233, %v3307, 0.0
  %3309 = vadd.xlane.f32.xlu0 %v3308
  %v3310 = vpop.xlane.xlu0 %3309
  %v3311 = vrcp.pop %v3310
  %v3312 = vmul.f32 %v3307, %v3311
  %3313 = vrot.lane.b32.xlu0 %v2502, 40
  %v3314 = vpop.permute.xlu0 %3313
  %v3317 = vsel %vm233, %v3312, 0
  %3319 = vmatprep.subr.mxu0 0.0
  %3320 = vmatpush1.msra.mxu0 0.0
  %3321 = vmatprep.subr.mxu0 0.0
  %3322 = vmatpush1.msra.mxu0 0.0
  %3323 = vmatprep.subr.mxu0 0.0
  %3324 = vmatpush1.msra.mxu0 0.0
  %3325 = vmatprep.subr.mxu0 0.0
  %3326 = vmatpush1.msra.mxu0 0.0
  %3327 = vmatprep.subr.mxu0 0.0
  %3328 = vmatpush1.msra.mxu0 0.0
  %3329 = vmatprep.subr.mxu0 0.0
  %3330 = vmatpush1.msra.mxu0 0.0
  %3331 = vmatprep.subr.mxu0 0.0
  %3332 = vmatpush1.msra.mxu0 0.0
  %3333 = vmatprep.subr.mxu0 0.0
  %3334 = vmatpush1.msra.mxu0 0.0
  %3335 = vmatprep.subr.mxu0 0.0
  %3336 = vmatpush1.msra.mxu0 0.0
  %3337 = vmatprep.subr.mxu0 0.0
  %3338 = vmatpush1.msra.mxu0 0.0
  %3339 = vmatprep.subr.mxu0 0.0
  %3340 = vmatpush1.msra.mxu0 0.0
  %3341 = vmatprep.subr.mxu0 0.0
  %3342 = vmatpush1.msra.mxu0 0.0
  %3343 = vmatprep.subr.mxu0 0.0
  %3344 = vmatpush1.msra.mxu0 0.0
  %3345 = vmatprep.subr.mxu0 0.0
  %3346 = vmatpush1.msra.mxu0 0.0
  %3347 = vmatprep.subr.mxu0 0.0
  %3348 = vmatpush1.msra.mxu0 0.0
  %3349 = vmatprep.subr.mxu0 0.0
  %3350 = vmatpush1.msra.mxu0 %v3314
  %3351 = vmatprep.subr.mxu0 0.0
  %3352 = vmatpush2.msra.mxu0 0.0
  %3353 = vmatprep.subr.mxu0 0.0
  %3354 = vmatpush2.msra.mxu0 0.0
  %3355 = vmatprep.subr.mxu0 0.0
  %3356 = vmatpush2.msra.mxu0 0.0
  %3357 = vmatprep.subr.mxu0 0.0
  %3358 = vmatpush2.msra.mxu0 0.0
  %3359 = vmatprep.subr.mxu0 0.0
  %3360 = vmatpush2.msra.mxu0 0.0
  %3361 = vmatprep.subr.mxu0 0.0
  %3362 = vmatpush2.msra.mxu0 0.0
  %3363 = vmatprep.subr.mxu0 0.0
  %3364 = vmatpush2.msra.mxu0 0.0
  %3365 = vmatprep.subr.mxu0 0.0
  %3366 = vmatpush2.msra.mxu0 0.0
  %3367 = vmatprep.subr.mxu0 0.0
  %3368 = vmatpush2.msra.mxu0 0.0
  %3369 = vmatprep.subr.mxu0 0.0
  %3370 = vmatpush2.msra.mxu0 0.0
  %3371 = vmatprep.subr.mxu0 0.0
  %3372 = vmatpush2.msra.mxu0 0.0
  %3373 = vmatprep.subr.mxu0 0.0
  %3374 = vmatpush2.msra.mxu0 0.0
  %3375 = vmatprep.subr.mxu0 0.0
  %3376 = vmatpush2.msra.mxu0 0.0
  %3377 = vmatprep.subr.mxu0 0.0
  %3378 = vmatpush2.msra.mxu0 0.0
  %3379 = vmatprep.subr.mxu0 0.0
  %3380 = vmatpush2.msra.mxu0 0.0
  %3381 = vmatprep.subr.mxu0 0.0
  %3382 = vmatpush2.msra.mxu0 0.0
  %3383 = vmatprep.mubr.f32.mxu0 0.0
  %3384 = vmatmul.mubr.f32.gmra.mxu0 %v3317
  %v3385 = vpop.f32.mrf.mxu0
  %v3386 = vadd.f32 0.0, %v3385
  %v3387 = vpop.f32.mrf.mxu0
  %3388 = vdwg.mxu0
  %v3390 = vsel %vm233, %v3386, 0
  %3392 = vmatprep.subr.mxu0 0.0
  %3393 = vmatpush1.msra.mxu0 0.0
  %3394 = vmatprep.subr.mxu0 0.0
  %3395 = vmatpush1.msra.mxu0 0.0
  %3396 = vmatprep.subr.mxu0 0.0
  %3397 = vmatpush1.msra.mxu0 0.0
  %3398 = vmatprep.subr.mxu0 0.0
  %3399 = vmatpush1.msra.mxu0 0.0
  %3400 = vmatprep.subr.mxu0 0.0
  %3401 = vmatpush1.msra.mxu0 0.0
  %3402 = vmatprep.subr.mxu0 0.0
  %3403 = vmatpush1.msra.mxu0 0.0
  %3404 = vmatprep.subr.mxu0 0.0
  %3405 = vmatpush1.msra.mxu0 0.0
  %3406 = vmatprep.subr.mxu0 0.0
  %3407 = vmatpush1.msra.mxu0 0.0
  %3408 = vmatprep.subr.mxu0 0.0
  %3409 = vmatpush1.msra.mxu0 0.0
  %3410 = vmatprep.subr.mxu0 0.0
  %3411 = vmatpush1.msra.mxu0 0.0
  %3412 = vmatprep.subr.mxu0 0.0
  %3413 = vmatpush1.msra.mxu0 0.0
  %3414 = vmatprep.subr.mxu0 0.0
  %3415 = vmatpush1.msra.mxu0 0.0
  %3416 = vmatprep.subr.mxu0 0.0
  %3417 = vmatpush1.msra.mxu0 0.0
  %3418 = vmatprep.subr.mxu0 0.0
  %3419 = vmatpush1.msra.mxu0 0.0
  %3420 = vmatprep.subr.mxu0 0.0
  %3421 = vmatpush1.msra.mxu0 0.0
  %3422 = vmatprep.subr.mxu0 0.0
  %3423 = vmatpush1.msra.mxu0 %v2423
  %3424 = vmatprep.subr.mxu0 0.0
  %3425 = vmatpush2.msra.mxu0 0.0
  %3426 = vmatprep.subr.mxu0 0.0
  %3427 = vmatpush2.msra.mxu0 0.0
  %3428 = vmatprep.subr.mxu0 0.0
  %3429 = vmatpush2.msra.mxu0 0.0
  %3430 = vmatprep.subr.mxu0 0.0
  %3431 = vmatpush2.msra.mxu0 0.0
  %3432 = vmatprep.subr.mxu0 0.0
  %3433 = vmatpush2.msra.mxu0 0.0
  %3434 = vmatprep.subr.mxu0 0.0
  %3435 = vmatpush2.msra.mxu0 0.0
  %3436 = vmatprep.subr.mxu0 0.0
  %3437 = vmatpush2.msra.mxu0 0.0
  %3438 = vmatprep.subr.mxu0 0.0
  %3439 = vmatpush2.msra.mxu0 0.0
  %3440 = vmatprep.subr.mxu0 0.0
  %3441 = vmatpush2.msra.mxu0 0.0
  %3442 = vmatprep.subr.mxu0 0.0
  %3443 = vmatpush2.msra.mxu0 0.0
  %3444 = vmatprep.subr.mxu0 0.0
  %3445 = vmatpush2.msra.mxu0 0.0
  %3446 = vmatprep.subr.mxu0 0.0
  %3447 = vmatpush2.msra.mxu0 0.0
  %3448 = vmatprep.subr.mxu0 0.0
  %3449 = vmatpush2.msra.mxu0 0.0
  %3450 = vmatprep.subr.mxu0 0.0
  %3451 = vmatpush2.msra.mxu0 0.0
  %3452 = vmatprep.subr.mxu0 0.0
  %3453 = vmatpush2.msra.mxu0 0.0
  %3454 = vmatprep.subr.mxu0 0.0
  %3455 = vmatpush2.msra.mxu0 0.0
  %3456 = vmatprep.mubr.f32.mxu0 0.0
  %3457 = vmatmul.mubr.f32.gmra.mxu0 %v3390
  %v3458 = vpop.f32.mrf.mxu0
  %v3459 = vadd.f32 0.0, %v3458
  %v3460 = vpop.f32.mrf.mxu0
  %3461 = vdwg.mxu0
  %v3462 = vadd.f32 %v3223, %v3459
  %3464 = vrot.lane.b32.xlu0 %v2507, 96
  %v3465 = vpop.permute.xlu0 %3464
  %v3466 = vsel %vm233, %v2507, 0
  %v3468 = vsel %vm233, %v3465, 0
  %3470 = vmatprep.subr.mxu0 0.0
  %3471 = vmatpush1.xpose.msra.mxu0 0.0
  %3472 = vmatprep.subr.mxu0 0.0
  %3473 = vmatpush1.xpose.msra.mxu0 0.0
  %3474 = vmatprep.subr.mxu0 0.0
  %3475 = vmatpush1.xpose.msra.mxu0 0.0
  %3476 = vmatprep.subr.mxu0 0.0
  %3477 = vmatpush1.xpose.msra.mxu0 0.0
  %3478 = vmatprep.subr.mxu0 0.0
  %3479 = vmatpush1.xpose.msra.mxu0 0.0
  %3480 = vmatprep.subr.mxu0 0.0
  %3481 = vmatpush1.xpose.msra.mxu0 0.0
  %3482 = vmatprep.subr.mxu0 0.0
  %3483 = vmatpush1.xpose.msra.mxu0 0.0
  %3484 = vmatprep.subr.mxu0 0.0
  %3485 = vmatpush1.xpose.msra.mxu0 0.0
  %3486 = vmatprep.subr.mxu0 0.0
  %3487 = vmatpush1.xpose.msra.mxu0 0.0
  %3488 = vmatprep.subr.mxu0 0.0
  %3489 = vmatpush1.xpose.msra.mxu0 0.0
  %3490 = vmatprep.subr.mxu0 0.0
  %3491 = vmatpush1.xpose.msra.mxu0 0.0
  %3492 = vmatprep.subr.mxu0 0.0
  %3493 = vmatpush1.xpose.msra.mxu0 0.0
  %3494 = vmatprep.subr.mxu0 0.0
  %3495 = vmatpush1.xpose.msra.mxu0 0.0
  %3496 = vmatprep.subr.mxu0 0.0
  %3497 = vmatpush1.xpose.msra.mxu0 0.0
  %3498 = vmatprep.subr.mxu0 0.0
  %3499 = vmatpush1.xpose.msra.mxu0 0.0
  %3500 = vmatprep.subr.mxu0 0.0
  %3501 = vmatpush1.xpose.msra.mxu0 %v3468
  %3502 = vmatprep.subr.mxu0 0.0
  %3503 = vmatpush2.xpose.msra.mxu0 0.0
  %3504 = vmatprep.subr.mxu0 0.0
  %3505 = vmatpush2.xpose.msra.mxu0 0.0
  %3506 = vmatprep.subr.mxu0 0.0
  %3507 = vmatpush2.xpose.msra.mxu0 0.0
  %3508 = vmatprep.subr.mxu0 0.0
  %3509 = vmatpush2.xpose.msra.mxu0 0.0
  %3510 = vmatprep.subr.mxu0 0.0
  %3511 = vmatpush2.xpose.msra.mxu0 0.0
  %3512 = vmatprep.subr.mxu0 0.0
  %3513 = vmatpush2.xpose.msra.mxu0 0.0
  %3514 = vmatprep.subr.mxu0 0.0
  %3515 = vmatpush2.xpose.msra.mxu0 0.0
  %3516 = vmatprep.subr.mxu0 0.0
  %3517 = vmatpush2.xpose.msra.mxu0 0.0
  %3518 = vmatprep.subr.mxu0 0.0
  %3519 = vmatpush2.xpose.msra.mxu0 0.0
  %3520 = vmatprep.subr.mxu0 0.0
  %3521 = vmatpush2.xpose.msra.mxu0 0.0
  %3522 = vmatprep.subr.mxu0 0.0
  %3523 = vmatpush2.xpose.msra.mxu0 0.0
  %3524 = vmatprep.subr.mxu0 0.0
  %3525 = vmatpush2.xpose.msra.mxu0 0.0
  %3526 = vmatprep.subr.mxu0 0.0
  %3527 = vmatpush2.xpose.msra.mxu0 0.0
  %3528 = vmatprep.subr.mxu0 0.0
  %3529 = vmatpush2.xpose.msra.mxu0 0.0
  %3530 = vmatprep.subr.mxu0 0.0
  %3531 = vmatpush2.xpose.msra.mxu0 0.0
  %3532 = vmatprep.subr.mxu0 0.0
  %3533 = vmatpush2.xpose.msra.mxu0 0.0
  %3534 = vmatprep.mubr.f32.mxu0 0.0
  %3535 = vmatmul.mubr.f32.gmra.mxu0 %v3466
  %v3536 = vpop.f32.mrf.mxu0
  %v3537 = vadd.f32 0.0, %v3536
  %v3538 = vpop.f32.mrf.mxu0
  %3539 = vdwg.mxu0
  %v3540 = vsel %vm233, %v3537, -inf
  %3541 = vmax.xlane.f32.xlu0 %v3540
  %v3542 = vpop.xlane.xlu0 %3541
  %v3543 = vsub.f32 %v3537, %v3542
  %v3544 = vmul.f32 %v3543, 1.442695
  %v3545 = vpow.pop %v3544
  %v3546 = vsel %vm233, %v3545, 0.0
  %3547 = vadd.xlane.f32.xlu0 %v3546
  %v3548 = vpop.xlane.xlu0 %3547
  %v3549 = vrcp.pop %v3548
  %v3550 = vmul.f32 %v3545, %v3549
  %3551 = vrot.lane.b32.xlu0 %v2507, 64
  %v3552 = vpop.permute.xlu0 %3551
  %v3555 = vsel %vm233, %v3550, 0
  %3557 = vmatprep.subr.mxu0 0.0
  %3558 = vmatpush1.msra.mxu0 0.0
  %3559 = vmatprep.subr.mxu0 0.0
  %3560 = vmatpush1.msra.mxu0 0.0
  %3561 = vmatprep.subr.mxu0 0.0
  %3562 = vmatpush1.msra.mxu0 0.0
  %3563 = vmatprep.subr.mxu0 0.0
  %3564 = vmatpush1.msra.mxu0 0.0
  %3565 = vmatprep.subr.mxu0 0.0
  %3566 = vmatpush1.msra.mxu0 0.0
  %3567 = vmatprep.subr.mxu0 0.0
  %3568 = vmatpush1.msra.mxu0 0.0
  %3569 = vmatprep.subr.mxu0 0.0
  %3570 = vmatpush1.msra.mxu0 0.0
  %3571 = vmatprep.subr.mxu0 0.0
  %3572 = vmatpush1.msra.mxu0 0.0
  %3573 = vmatprep.subr.mxu0 0.0
  %3574 = vmatpush1.msra.mxu0 0.0
  %3575 = vmatprep.subr.mxu0 0.0
  %3576 = vmatpush1.msra.mxu0 0.0
  %3577 = vmatprep.subr.mxu0 0.0
  %3578 = vmatpush1.msra.mxu0 0.0
  %3579 = vmatprep.subr.mxu0 0.0
  %3580 = vmatpush1.msra.mxu0 0.0
  %3581 = vmatprep.subr.mxu0 0.0
  %3582 = vmatpush1.msra.mxu0 0.0
  %3583 = vmatprep.subr.mxu0 0.0
  %3584 = vmatpush1.msra.mxu0 0.0
  %3585 = vmatprep.subr.mxu0 0.0
  %3586 = vmatpush1.msra.mxu0 0.0
  %3587 = vmatprep.subr.mxu0 0.0
  %3588 = vmatpush1.msra.mxu0 %v3552
  %3589 = vmatprep.subr.mxu0 0.0
  %3590 = vmatpush2.msra.mxu0 0.0
  %3591 = vmatprep.subr.mxu0 0.0
  %3592 = vmatpush2.msra.mxu0 0.0
  %3593 = vmatprep.subr.mxu0 0.0
  %3594 = vmatpush2.msra.mxu0 0.0
  %3595 = vmatprep.subr.mxu0 0.0
  %3596 = vmatpush2.msra.mxu0 0.0
  %3597 = vmatprep.subr.mxu0 0.0
  %3598 = vmatpush2.msra.mxu0 0.0
  %3599 = vmatprep.subr.mxu0 0.0
  %3600 = vmatpush2.msra.mxu0 0.0
  %3601 = vmatprep.subr.mxu0 0.0
  %3602 = vmatpush2.msra.mxu0 0.0
  %3603 = vmatprep.subr.mxu0 0.0
  %3604 = vmatpush2.msra.mxu0 0.0
  %3605 = vmatprep.subr.mxu0 0.0
  %3606 = vmatpush2.msra.mxu0 0.0
  %3607 = vmatprep.subr.mxu0 0.0
  %3608 = vmatpush2.msra.mxu0 0.0
  %3609 = vmatprep.subr.mxu0 0.0
  %3610 = vmatpush2.msra.mxu0 0.0
  %3611 = vmatprep.subr.mxu0 0.0
  %3612 = vmatpush2.msra.mxu0 0.0
  %3613 = vmatprep.subr.mxu0 0.0
  %3614 = vmatpush2.msra.mxu0 0.0
  %3615 = vmatprep.subr.mxu0 0.0
  %3616 = vmatpush2.msra.mxu0 0.0
  %3617 = vmatprep.subr.mxu0 0.0
  %3618 = vmatpush2.msra.mxu0 0.0
  %3619 = vmatprep.subr.mxu0 0.0
  %3620 = vmatpush2.msra.mxu0 0.0
  %3621 = vmatprep.mubr.f32.mxu0 0.0
  %3622 = vmatmul.mubr.f32.gmra.mxu0 %v3555
  %v3623 = vpop.f32.mrf.mxu0
  %v3624 = vadd.f32 0.0, %v3623
  %v3625 = vpop.f32.mrf.mxu0
  %3626 = vdwg.mxu0
  %3627 = vrot.lane.b32.xlu0 %v2507, 120
  %v3628 = vpop.permute.xlu0 %3627
  %3629 = vrot.lane.b32.xlu0 %v2507, 88
  %v3630 = vpop.permute.xlu0 %3629
  %v3631 = vsel %vm233, %v3628, 0
  %v3633 = vsel %vm233, %v3630, 0
  %3635 = vmatprep.subr.mxu0 0.0
  %3636 = vmatpush1.xpose.msra.mxu0 0.0
  %3637 = vmatprep.subr.mxu0 0.0
  %3638 = vmatpush1.xpose.msra.mxu0 0.0
  %3639 = vmatprep.subr.mxu0 0.0
  %3640 = vmatpush1.xpose.msra.mxu0 0.0
  %3641 = vmatprep.subr.mxu0 0.0
  %3642 = vmatpush1.xpose.msra.mxu0 0.0
  %3643 = vmatprep.subr.mxu0 0.0
  %3644 = vmatpush1.xpose.msra.mxu0 0.0
  %3645 = vmatprep.subr.mxu0 0.0
  %3646 = vmatpush1.xpose.msra.mxu0 0.0
  %3647 = vmatprep.subr.mxu0 0.0
  %3648 = vmatpush1.xpose.msra.mxu0 0.0
  %3649 = vmatprep.subr.mxu0 0.0
  %3650 = vmatpush1.xpose.msra.mxu0 0.0
  %3651 = vmatprep.subr.mxu0 0.0
  %3652 = vmatpush1.xpose.msra.mxu0 0.0
  %3653 = vmatprep.subr.mxu0 0.0
  %3654 = vmatpush1.xpose.msra.mxu0 0.0
  %3655 = vmatprep.subr.mxu0 0.0
  %3656 = vmatpush1.xpose.msra.mxu0 0.0
  %3657 = vmatprep.subr.mxu0 0.0
  %3658 = vmatpush1.xpose.msra.mxu0 0.0
  %3659 = vmatprep.subr.mxu0 0.0
  %3660 = vmatpush1.xpose.msra.mxu0 0.0
  %3661 = vmatprep.subr.mxu0 0.0
  %3662 = vmatpush1.xpose.msra.mxu0 0.0
  %3663 = vmatprep.subr.mxu0 0.0
  %3664 = vmatpush1.xpose.msra.mxu0 0.0
  %3665 = vmatprep.subr.mxu0 0.0
  %3666 = vmatpush1.xpose.msra.mxu0 %v3633
  %3667 = vmatprep.subr.mxu0 0.0
  %3668 = vmatpush2.xpose.msra.mxu0 0.0
  %3669 = vmatprep.subr.mxu0 0.0
  %3670 = vmatpush2.xpose.msra.mxu0 0.0
  %3671 = vmatprep.subr.mxu0 0.0
  %3672 = vmatpush2.xpose.msra.mxu0 0.0
  %3673 = vmatprep.subr.mxu0 0.0
  %3674 = vmatpush2.xpose.msra.mxu0 0.0
  %3675 = vmatprep.subr.mxu0 0.0
  %3676 = vmatpush2.xpose.msra.mxu0 0.0
  %3677 = vmatprep.subr.mxu0 0.0
  %3678 = vmatpush2.xpose.msra.mxu0 0.0
  %3679 = vmatprep.subr.mxu0 0.0
  %3680 = vmatpush2.xpose.msra.mxu0 0.0
  %3681 = vmatprep.subr.mxu0 0.0
  %3682 = vmatpush2.xpose.msra.mxu0 0.0
  %3683 = vmatprep.subr.mxu0 0.0
  %3684 = vmatpush2.xpose.msra.mxu0 0.0
  %3685 = vmatprep.subr.mxu0 0.0
  %3686 = vmatpush2.xpose.msra.mxu0 0.0
  %3687 = vmatprep.subr.mxu0 0.0
  %3688 = vmatpush2.xpose.msra.mxu0 0.0
  %3689 = vmatprep.subr.mxu0 0.0
  %3690 = vmatpush2.xpose.msra.mxu0 0.0
  %3691 = vmatprep.subr.mxu0 0.0
  %3692 = vmatpush2.xpose.msra.mxu0 0.0
  %3693 = vmatprep.subr.mxu0 0.0
  %3694 = vmatpush2.xpose.msra.mxu0 0.0
  %3695 = vmatprep.subr.mxu0 0.0
  %3696 = vmatpush2.xpose.msra.mxu0 0.0
  %3697 = vmatprep.subr.mxu0 0.0
  %3698 = vmatpush2.xpose.msra.mxu0 0.0
  %3699 = vmatprep.mubr.f32.mxu0 0.0
  %3700 = vmatmul.mubr.f32.gmra.mxu0 %v3631
  %v3701 = vpop.f32.mrf.mxu0
  %v3702 = vadd.f32 0.0, %v3701
  %v3703 = vpop.f32.mrf.mxu0
  %3704 = vdwg.mxu0
  %v3705 = vsel %vm233, %v3702, -inf
  %3706 = vmax.xlane.f32.xlu0 %v3705
  %v3707 = vpop.xlane.xlu0 %3706
  %v3708 = vsub.f32 %v3702, %v3707
  %v3709 = vmul.f32 %v3708, 1.442695
  %v3710 = vpow.pop %v3709
  %v3711 = vsel %vm233, %v3710, 0.0
  %3712 = vadd.xlane.f32.xlu0 %v3711
  %v3713 = vpop.xlane.xlu0 %3712
  %v3714 = vrcp.pop %v3713
  %v3715 = vmul.f32 %v3710, %v3714
  %3716 = vrot.lane.b32.xlu0 %v2507, 56
  %v3717 = vpop.permute.xlu0 %3716
  %v3720 = vsel %vm233, %v3715, 0
  %3722 = vmatprep.subr.mxu0 0.0
  %3723 = vmatpush1.msra.mxu0 0.0
  %3724 = vmatprep.subr.mxu0 0.0
  %3725 = vmatpush1.msra.mxu0 0.0
  %3726 = vmatprep.subr.mxu0 0.0
  %3727 = vmatpush1.msra.mxu0 0.0
  %3728 = vmatprep.subr.mxu0 0.0
  %3729 = vmatpush1.msra.mxu0 0.0
  %3730 = vmatprep.subr.mxu0 0.0
  %3731 = vmatpush1.msra.mxu0 0.0
  %3732 = vmatprep.subr.mxu0 0.0
  %3733 = vmatpush1.msra.mxu0 0.0
  %3734 = vmatprep.subr.mxu0 0.0
  %3735 = vmatpush1.msra.mxu0 0.0
  %3736 = vmatprep.subr.mxu0 0.0
  %3737 = vmatpush1.msra.mxu0 0.0
  %3738 = vmatprep.subr.mxu0 0.0
  %3739 = vmatpush1.msra.mxu0 0.0
  %3740 = vmatprep.subr.mxu0 0.0
  %3741 = vmatpush1.msra.mxu0 0.0
  %3742 = vmatprep.subr.mxu0 0.0
  %3743 = vmatpush1.msra.mxu0 0.0
  %3744 = vmatprep.subr.mxu0 0.0
  %3745 = vmatpush1.msra.mxu0 0.0
  %3746 = vmatprep.subr.mxu0 0.0
  %3747 = vmatpush1.msra.mxu0 0.0
  %3748 = vmatprep.subr.mxu0 0.0
  %3749 = vmatpush1.msra.mxu0 0.0
  %3750 = vmatprep.subr.mxu0 0.0
  %3751 = vmatpush1.msra.mxu0 0.0
  %3752 = vmatprep.subr.mxu0 0.0
  %3753 = vmatpush1.msra.mxu0 %v3717
  %3754 = vmatprep.subr.mxu0 0.0
  %3755 = vmatpush2.msra.mxu0 0.0
  %3756 = vmatprep.subr.mxu0 0.0
  %3757 = vmatpush2.msra.mxu0 0.0
  %3758 = vmatprep.subr.mxu0 0.0
  %3759 = vmatpush2.msra.mxu0 0.0
  %3760 = vmatprep.subr.mxu0 0.0
  %3761 = vmatpush2.msra.mxu0 0.0
  %3762 = vmatprep.subr.mxu0 0.0
  %3763 = vmatpush2.msra.mxu0 0.0
  %3764 = vmatprep.subr.mxu0 0.0
  %3765 = vmatpush2.msra.mxu0 0.0
  %3766 = vmatprep.subr.mxu0 0.0
  %3767 = vmatpush2.msra.mxu0 0.0
  %3768 = vmatprep.subr.mxu0 0.0
  %3769 = vmatpush2.msra.mxu0 0.0
  %3770 = vmatprep.subr.mxu0 0.0
  %3771 = vmatpush2.msra.mxu0 0.0
  %3772 = vmatprep.subr.mxu0 0.0
  %3773 = vmatpush2.msra.mxu0 0.0
  %3774 = vmatprep.subr.mxu0 0.0
  %3775 = vmatpush2.msra.mxu0 0.0
  %3776 = vmatprep.subr.mxu0 0.0
  %3777 = vmatpush2.msra.mxu0 0.0
  %3778 = vmatprep.subr.mxu0 0.0
  %3779 = vmatpush2.msra.mxu0 0.0
  %3780 = vmatprep.subr.mxu0 0.0
  %3781 = vmatpush2.msra.mxu0 0.0
  %3782 = vmatprep.subr.mxu0 0.0
  %3783 = vmatpush2.msra.mxu0 0.0
  %3784 = vmatprep.subr.mxu0 0.0
  %3785 = vmatpush2.msra.mxu0 0.0
  %3786 = vmatprep.mubr.f32.mxu0 0.0
  %3787 = vmatmul.mubr.f32.gmra.mxu0 %v3720
  %v3788 = vpop.f32.mrf.mxu0
  %v3789 = vadd.f32 0.0, %v3788
  %v3790 = vpop.f32.mrf.mxu0
  %3791 = vdwg.mxu0
  %v3793 = vsel %vm233, %v3789, 0
  %3795 = vmatprep.subr.mxu0 0.0
  %3796 = vmatpush1.msra.mxu0 0.0
  %3797 = vmatprep.subr.mxu0 0.0
  %3798 = vmatpush1.msra.mxu0 0.0
  %3799 = vmatprep.subr.mxu0 0.0
  %3800 = vmatpush1.msra.mxu0 0.0
  %3801 = vmatprep.subr.mxu0 0.0
  %3802 = vmatpush1.msra.mxu0 0.0
  %3803 = vmatprep.subr.mxu0 0.0
  %3804 = vmatpush1.msra.mxu0 0.0
  %3805 = vmatprep.subr.mxu0 0.0
  %3806 = vmatpush1.msra.mxu0 0.0
  %3807 = vmatprep.subr.mxu0 0.0
  %3808 = vmatpush1.msra.mxu0 0.0
  %3809 = vmatprep.subr.mxu0 0.0
  %3810 = vmatpush1.msra.mxu0 0.0
  %3811 = vmatprep.subr.mxu0 0.0
  %3812 = vmatpush1.msra.mxu0 0.0
  %3813 = vmatprep.subr.mxu0 0.0
  %3814 = vmatpush1.msra.mxu0 0.0
  %3815 = vmatprep.subr.mxu0 0.0
  %3816 = vmatpush1.msra.mxu0 0.0
  %3817 = vmatprep.subr.mxu0 0.0
  %3818 = vmatpush1.msra.mxu0 0.0
  %3819 = vmatprep.subr.mxu0 0.0
  %3820 = vmatpush1.msra.mxu0 0.0
  %3821 = vmatprep.subr.mxu0 0.0
  %3822 = vmatpush1.msra.mxu0 0.0
  %3823 = vmatprep.subr.mxu0 0.0
  %3824 = vmatpush1.msra.mxu0 0.0
  %3825 = vmatprep.subr.mxu0 0.0
  %3826 = vmatpush1.msra.mxu0 %v2421
  %3827 = vmatprep.subr.mxu0 0.0
  %3828 = vmatpush2.msra.mxu0 0.0
  %3829 = vmatprep.subr.mxu0 0.0
  %3830 = vmatpush2.msra.mxu0 0.0
  %3831 = vmatprep.subr.mxu0 0.0
  %3832 = vmatpush2.msra.mxu0 0.0
  %3833 = vmatprep.subr.mxu0 0.0
  %3834 = vmatpush2.msra.mxu0 0.0
  %3835 = vmatprep.subr.mxu0 0.0
  %3836 = vmatpush2.msra.mxu0 0.0
  %3837 = vmatprep.subr.mxu0 0.0
  %3838 = vmatpush2.msra.mxu0 0.0
  %3839 = vmatprep.subr.mxu0 0.0
  %3840 = vmatpush2.msra.mxu0 0.0
  %3841 = vmatprep.subr.mxu0 0.0
  %3842 = vmatpush2.msra.mxu0 0.0
  %3843 = vmatprep.subr.mxu0 0.0
  %3844 = vmatpush2.msra.mxu0 0.0
  %3845 = vmatprep.subr.mxu0 0.0
  %3846 = vmatpush2.msra.mxu0 0.0
  %3847 = vmatprep.subr.mxu0 0.0
  %3848 = vmatpush2.msra.mxu0 0.0
  %3849 = vmatprep.subr.mxu0 0.0
  %3850 = vmatpush2.msra.mxu0 0.0
  %3851 = vmatprep.subr.mxu0 0.0
  %3852 = vmatpush2.msra.mxu0 0.0
  %3853 = vmatprep.subr.mxu0 0.0
  %3854 = vmatpush2.msra.mxu0 0.0
  %3855 = vmatprep.subr.mxu0 0.0
  %3856 = vmatpush2.msra.mxu0 0.0
  %3857 = vmatprep.subr.mxu0 0.0
  %3858 = vmatpush2.msra.mxu0 0.0
  %3859 = vmatprep.mubr.f32.mxu0 0.0
  %3860 = vmatmul.mubr.f32.gmra.mxu0 %v3793
  %v3861 = vpop.f32.mrf.mxu0
  %v3862 = vadd.f32 0.0, %v3861
  %v3863 = vpop.f32.mrf.mxu0
  %3864 = vdwg.mxu0
  %v3866 = vsel %vm233, %v3624, 0
  %3868 = vmatprep.subr.mxu0 0.0
  %3869 = vmatpush1.msra.mxu0 0.0
  %3870 = vmatprep.subr.mxu0 0.0
  %3871 = vmatpush1.msra.mxu0 0.0
  %3872 = vmatprep.subr.mxu0 0.0
  %3873 = vmatpush1.msra.mxu0 0.0
  %3874 = vmatprep.subr.mxu0 0.0
  %3875 = vmatpush1.msra.mxu0 0.0
  %3876 = vmatprep.subr.mxu0 0.0
  %3877 = vmatpush1.msra.mxu0 0.0
  %3878 = vmatprep.subr.mxu0 0.0
  %3879 = vmatpush1.msra.mxu0 0.0
  %3880 = vmatprep.subr.mxu0 0.0
  %3881 = vmatpush1.msra.mxu0 0.0
  %3882 = vmatprep.subr.mxu0 0.0
  %3883 = vmatpush1.msra.mxu0 0.0
  %3884 = vmatprep.subr.mxu0 0.0
  %3885 = vmatpush1.msra.mxu0 0.0
  %3886 = vmatprep.subr.mxu0 0.0
  %3887 = vmatpush1.msra.mxu0 0.0
  %3888 = vmatprep.subr.mxu0 0.0
  %3889 = vmatpush1.msra.mxu0 0.0
  %3890 = vmatprep.subr.mxu0 0.0
  %3891 = vmatpush1.msra.mxu0 0.0
  %3892 = vmatprep.subr.mxu0 0.0
  %3893 = vmatpush1.msra.mxu0 0.0
  %3894 = vmatprep.subr.mxu0 0.0
  %3895 = vmatpush1.msra.mxu0 0.0
  %3896 = vmatprep.subr.mxu0 0.0
  %3897 = vmatpush1.msra.mxu0 0.0
  %3898 = vmatprep.subr.mxu0 0.0
  %3899 = vmatpush1.msra.mxu0 %v2420
  %3900 = vmatprep.subr.mxu0 0.0
  %3901 = vmatpush2.msra.mxu0 0.0
  %3902 = vmatprep.subr.mxu0 0.0
  %3903 = vmatpush2.msra.mxu0 0.0
  %3904 = vmatprep.subr.mxu0 0.0
  %3905 = vmatpush2.msra.mxu0 0.0
  %3906 = vmatprep.subr.mxu0 0.0
  %3907 = vmatpush2.msra.mxu0 0.0
  %3908 = vmatprep.subr.mxu0 0.0
  %3909 = vmatpush2.msra.mxu0 0.0
  %3910 = vmatprep.subr.mxu0 0.0
  %3911 = vmatpush2.msra.mxu0 0.0
  %3912 = vmatprep.subr.mxu0 0.0
  %3913 = vmatpush2.msra.mxu0 0.0
  %3914 = vmatprep.subr.mxu0 0.0
  %3915 = vmatpush2.msra.mxu0 0.0
  %3916 = vmatprep.subr.mxu0 0.0
  %3917 = vmatpush2.msra.mxu0 0.0
  %3918 = vmatprep.subr.mxu0 0.0
  %3919 = vmatpush2.msra.mxu0 0.0
  %3920 = vmatprep.subr.mxu0 0.0
  %3921 = vmatpush2.msra.mxu0 0.0
  %3922 = vmatprep.subr.mxu0 0.0
  %3923 = vmatpush2.msra.mxu0 0.0
  %3924 = vmatprep.subr.mxu0 0.0
  %3925 = vmatpush2.msra.mxu0 0.0
  %3926 = vmatprep.subr.mxu0 0.0
  %3927 = vmatpush2.msra.mxu0 0.0
  %3928 = vmatprep.subr.mxu0 0.0
  %3929 = vmatpush2.msra.mxu0 0.0
  %3930 = vmatprep.subr.mxu0 0.0
  %3931 = vmatpush2.msra.mxu0 0.0
  %3932 = vmatprep.mubr.f32.mxu0 0.0
  %3933 = vmatmul.mubr.f32.gmra.mxu0 %v3866
  %v3934 = vpop.f32.mrf.mxu0
  %v3935 = vadd.f32 %v3862, %v3934
  %v3936 = vpop.f32.mrf.mxu0
  %3937 = vdwg.mxu0
  %3938 = vrot.lane.b32.xlu0 %v2507, 112
  %v3939 = vpop.permute.xlu0 %3938
  %3940 = vrot.lane.b32.xlu0 %v2507, 80
  %v3941 = vpop.permute.xlu0 %3940
  %v3942 = vsel %vm233, %v3939, 0
  %v3944 = vsel %vm233, %v3941, 0
  %3946 = vmatprep.subr.mxu0 0.0
  %3947 = vmatpush1.xpose.msra.mxu0 0.0
  %3948 = vmatprep.subr.mxu0 0.0
  %3949 = vmatpush1.xpose.msra.mxu0 0.0
  %3950 = vmatprep.subr.mxu0 0.0
  %3951 = vmatpush1.xpose.msra.mxu0 0.0
  %3952 = vmatprep.subr.mxu0 0.0
  %3953 = vmatpush1.xpose.msra.mxu0 0.0
  %3954 = vmatprep.subr.mxu0 0.0
  %3955 = vmatpush1.xpose.msra.mxu0 0.0
  %3956 = vmatprep.subr.mxu0 0.0
  %3957 = vmatpush1.xpose.msra.mxu0 0.0
  %3958 = vmatprep.subr.mxu0 0.0
  %3959 = vmatpush1.xpose.msra.mxu0 0.0
  %3960 = vmatprep.subr.mxu0 0.0
  %3961 = vmatpush1.xpose.msra.mxu0 0.0
  %3962 = vmatprep.subr.mxu0 0.0
  %3963 = vmatpush1.xpose.msra.mxu0 0.0
  %3964 = vmatprep.subr.mxu0 0.0
  %3965 = vmatpush1.xpose.msra.mxu0 0.0
  %3966 = vmatprep.subr.mxu0 0.0
  %3967 = vmatpush1.xpose.msra.mxu0 0.0
  %3968 = vmatprep.subr.mxu0 0.0
  %3969 = vmatpush1.xpose.msra.mxu0 0.0
  %3970 = vmatprep.subr.mxu0 0.0
  %3971 = vmatpush1.xpose.msra.mxu0 0.0
  %3972 = vmatprep.subr.mxu0 0.0
  %3973 = vmatpush1.xpose.msra.mxu0 0.0
  %3974 = vmatprep.subr.mxu0 0.0
  %3975 = vmatpush1.xpose.msra.mxu0 0.0
  %3976 = vmatprep.subr.mxu0 0.0
  %3977 = vmatpush1.xpose.msra.mxu0 %v3944
  %3978 = vmatprep.subr.mxu0 0.0
  %3979 = vmatpush2.xpose.msra.mxu0 0.0
  %3980 = vmatprep.subr.mxu0 0.0
  %3981 = vmatpush2.xpose.msra.mxu0 0.0
  %3982 = vmatprep.subr.mxu0 0.0
  %3983 = vmatpush2.xpose.msra.mxu0 0.0
  %3984 = vmatprep.subr.mxu0 0.0
  %3985 = vmatpush2.xpose.msra.mxu0 0.0
  %3986 = vmatprep.subr.mxu0 0.0
  %3987 = vmatpush2.xpose.msra.mxu0 0.0
  %3988 = vmatprep.subr.mxu0 0.0
  %3989 = vmatpush2.xpose.msra.mxu0 0.0
  %3990 = vmatprep.subr.mxu0 0.0
  %3991 = vmatpush2.xpose.msra.mxu0 0.0
  %3992 = vmatprep.subr.mxu0 0.0
  %3993 = vmatpush2.xpose.msra.mxu0 0.0
  %3994 = vmatprep.subr.mxu0 0.0
  %3995 = vmatpush2.xpose.msra.mxu0 0.0
  %3996 = vmatprep.subr.mxu0 0.0
  %3997 = vmatpush2.xpose.msra.mxu0 0.0
  %3998 = vmatprep.subr.mxu0 0.0
  %3999 = vmatpush2.xpose.msra.mxu0 0.0
  %4000 = vmatprep.subr.mxu0 0.0
  %4001 = vmatpush2.xpose.msra.mxu0 0.0
  %4002 = vmatprep.subr.mxu0 0.0
  %4003 = vmatpush2.xpose.msra.mxu0 0.0
  %4004 = vmatprep.subr.mxu0 0.0
  %4005 = vmatpush2.xpose.msra.mxu0 0.0
  %4006 = vmatprep.subr.mxu0 0.0
  %4007 = vmatpush2.xpose.msra.mxu0 0.0
  %4008 = vmatprep.subr.mxu0 0.0
  %4009 = vmatpush2.xpose.msra.mxu0 0.0
  %4010 = vmatprep.mubr.f32.mxu0 0.0
  %4011 = vmatmul.mubr.f32.gmra.mxu0 %v3942
  %v4012 = vpop.f32.mrf.mxu0
  %v4013 = vadd.f32 0.0, %v4012
  %v4014 = vpop.f32.mrf.mxu0
  %4015 = vdwg.mxu0
  %v4016 = vsel %vm233, %v4013, -inf
  %4017 = vmax.xlane.f32.xlu0 %v4016
  %v4018 = vpop.xlane.xlu0 %4017
  %v4019 = vsub.f32 %v4013, %v4018
  %v4020 = vmul.f32 %v4019, 1.442695
  %v4021 = vpow.pop %v4020
  %v4022 = vsel %vm233, %v4021, 0.0
  %4023 = vadd.xlane.f32.xlu0 %v4022
  %v4024 = vpop.xlane.xlu0 %4023
  %v4025 = vrcp.pop %v4024
  %v4026 = vmul.f32 %v4021, %v4025
  %4027 = vrot.lane.b32.xlu0 %v2507, 48
  %v4028 = vpop.permute.xlu0 %4027
  %v4031 = vsel %vm233, %v4026, 0
  %4033 = vmatprep.subr.mxu0 0.0
  %4034 = vmatpush1.msra.mxu0 0.0
  %4035 = vmatprep.subr.mxu0 0.0
  %4036 = vmatpush1.msra.mxu0 0.0
  %4037 = vmatprep.subr.mxu0 0.0
  %4038 = vmatpush1.msra.mxu0 0.0
  %4039 = vmatprep.subr.mxu0 0.0
  %4040 = vmatpush1.msra.mxu0 0.0
  %4041 = vmatprep.subr.mxu0 0.0
  %4042 = vmatpush1.msra.mxu0 0.0
  %4043 = vmatprep.subr.mxu0 0.0
  %4044 = vmatpush1.msra.mxu0 0.0
  %4045 = vmatprep.subr.mxu0 0.0
  %4046 = vmatpush1.msra.mxu0 0.0
  %4047 = vmatprep.subr.mxu0 0.0
  %4048 = vmatpush1.msra.mxu0 0.0
  %4049 = vmatprep.subr.mxu0 0.0
  %4050 = vmatpush1.msra.mxu0 0.0
  %4051 = vmatprep.subr.mxu0 0.0
  %4052 = vmatpush1.msra.mxu0 0.0
  %4053 = vmatprep.subr.mxu0 0.0
  %4054 = vmatpush1.msra.mxu0 0.0
  %4055 = vmatprep.subr.mxu0 0.0
  %4056 = vmatpush1.msra.mxu0 0.0
  %4057 = vmatprep.subr.mxu0 0.0
  %4058 = vmatpush1.msra.mxu0 0.0
  %4059 = vmatprep.subr.mxu0 0.0
  %4060 = vmatpush1.msra.mxu0 0.0
  %4061 = vmatprep.subr.mxu0 0.0
  %4062 = vmatpush1.msra.mxu0 0.0
  %4063 = vmatprep.subr.mxu0 0.0
  %4064 = vmatpush1.msra.mxu0 %v4028
  %4065 = vmatprep.subr.mxu0 0.0
  %4066 = vmatpush2.msra.mxu0 0.0
  %4067 = vmatprep.subr.mxu0 0.0
  %4068 = vmatpush2.msra.mxu0 0.0
  %4069 = vmatprep.subr.mxu0 0.0
  %4070 = vmatpush2.msra.mxu0 0.0
  %4071 = vmatprep.subr.mxu0 0.0
  %4072 = vmatpush2.msra.mxu0 0.0
  %4073 = vmatprep.subr.mxu0 0.0
  %4074 = vmatpush2.msra.mxu0 0.0
  %4075 = vmatprep.subr.mxu0 0.0
  %4076 = vmatpush2.msra.mxu0 0.0
  %4077 = vmatprep.subr.mxu0 0.0
  %4078 = vmatpush2.msra.mxu0 0.0
  %4079 = vmatprep.subr.mxu0 0.0
  %4080 = vmatpush2.msra.mxu0 0.0
  %4081 = vmatprep.subr.mxu0 0.0
  %4082 = vmatpush2.msra.mxu0 0.0
  %4083 = vmatprep.subr.mxu0 0.0
  %4084 = vmatpush2.msra.mxu0 0.0
  %4085 = vmatprep.subr.mxu0 0.0
  %4086 = vmatpush2.msra.mxu0 0.0
  %4087 = vmatprep.subr.mxu0 0.0
  %4088 = vmatpush2.msra.mxu0 0.0
  %4089 = vmatprep.subr.mxu0 0.0
  %4090 = vmatpush2.msra.mxu0 0.0
  %4091 = vmatprep.subr.mxu0 0.0
  %4092 = vmatpush2.msra.mxu0 0.0
  %4093 = vmatprep.subr.mxu0 0.0
  %4094 = vmatpush2.msra.mxu0 0.0
  %4095 = vmatprep.subr.mxu0 0.0
  %4096 = vmatpush2.msra.mxu0 0.0
  %4097 = vmatprep.mubr.f32.mxu0 0.0
  %4098 = vmatmul.mubr.f32.gmra.mxu0 %v4031
  %v4099 = vpop.f32.mrf.mxu0
  %v4100 = vadd.f32 0.0, %v4099
  %v4101 = vpop.f32.mrf.mxu0
  %4102 = vdwg.mxu0
  %v4104 = vsel %vm233, %v4100, 0
  %4106 = vmatprep.subr.mxu0 0.0
  %4107 = vmatpush1.msra.mxu0 0.0
  %4108 = vmatprep.subr.mxu0 0.0
  %4109 = vmatpush1.msra.mxu0 0.0
  %4110 = vmatprep.subr.mxu0 0.0
  %4111 = vmatpush1.msra.mxu0 0.0
  %4112 = vmatprep.subr.mxu0 0.0
  %4113 = vmatpush1.msra.mxu0 0.0
  %4114 = vmatprep.subr.mxu0 0.0
  %4115 = vmatpush1.msra.mxu0 0.0
  %4116 = vmatprep.subr.mxu0 0.0
  %4117 = vmatpush1.msra.mxu0 0.0
  %4118 = vmatprep.subr.mxu0 0.0
  %4119 = vmatpush1.msra.mxu0 0.0
  %4120 = vmatprep.subr.mxu0 0.0
  %4121 = vmatpush1.msra.mxu0 0.0
  %4122 = vmatprep.subr.mxu0 0.0
  %4123 = vmatpush1.msra.mxu0 0.0
  %4124 = vmatprep.subr.mxu0 0.0
  %4125 = vmatpush1.msra.mxu0 0.0
  %4126 = vmatprep.subr.mxu0 0.0
  %4127 = vmatpush1.msra.mxu0 0.0
  %4128 = vmatprep.subr.mxu0 0.0
  %4129 = vmatpush1.msra.mxu0 0.0
  %4130 = vmatprep.subr.mxu0 0.0
  %4131 = vmatpush1.msra.mxu0 0.0
  %4132 = vmatprep.subr.mxu0 0.0
  %4133 = vmatpush1.msra.mxu0 0.0
  %4134 = vmatprep.subr.mxu0 0.0
  %4135 = vmatpush1.msra.mxu0 0.0
  %4136 = vmatprep.subr.mxu0 0.0
  %4137 = vmatpush1.msra.mxu0 %v2422
  %4138 = vmatprep.subr.mxu0 0.0
  %4139 = vmatpush2.msra.mxu0 0.0
  %4140 = vmatprep.subr.mxu0 0.0
  %4141 = vmatpush2.msra.mxu0 0.0
  %4142 = vmatprep.subr.mxu0 0.0
  %4143 = vmatpush2.msra.mxu0 0.0
  %4144 = vmatprep.subr.mxu0 0.0
  %4145 = vmatpush2.msra.mxu0 0.0
  %4146 = vmatprep.subr.mxu0 0.0
  %4147 = vmatpush2.msra.mxu0 0.0
  %4148 = vmatprep.subr.mxu0 0.0
  %4149 = vmatpush2.msra.mxu0 0.0
  %4150 = vmatprep.subr.mxu0 0.0
  %4151 = vmatpush2.msra.mxu0 0.0
  %4152 = vmatprep.subr.mxu0 0.0
  %4153 = vmatpush2.msra.mxu0 0.0
  %4154 = vmatprep.subr.mxu0 0.0
  %4155 = vmatpush2.msra.mxu0 0.0
  %4156 = vmatprep.subr.mxu0 0.0
  %4157 = vmatpush2.msra.mxu0 0.0
  %4158 = vmatprep.subr.mxu0 0.0
  %4159 = vmatpush2.msra.mxu0 0.0
  %4160 = vmatprep.subr.mxu0 0.0
  %4161 = vmatpush2.msra.mxu0 0.0
  %4162 = vmatprep.subr.mxu0 0.0
  %4163 = vmatpush2.msra.mxu0 0.0
  %4164 = vmatprep.subr.mxu0 0.0
  %4165 = vmatpush2.msra.mxu0 0.0
  %4166 = vmatprep.subr.mxu0 0.0
  %4167 = vmatpush2.msra.mxu0 0.0
  %4168 = vmatprep.subr.mxu0 0.0
  %4169 = vmatpush2.msra.mxu0 0.0
  %4170 = vmatprep.mubr.f32.mxu0 0.0
  %4171 = vmatmul.mubr.f32.gmra.mxu0 %v4104
  %v4172 = vpop.f32.mrf.mxu0
  %v4173 = vadd.f32 0.0, %v4172
  %v4174 = vpop.f32.mrf.mxu0
  %4175 = vdwg.mxu0
  %v4176 = vadd.f32 %v3935, %v4173
  %4177 = vrot.lane.b32.xlu0 %v2507, 104
  %v4178 = vpop.permute.xlu0 %4177
  %4179 = vrot.lane.b32.xlu0 %v2507, 72
  %v4180 = vpop.permute.xlu0 %4179
  %v4181 = vsel %vm233, %v4178, 0
  %v4183 = vsel %vm233, %v4180, 0
  %4185 = vmatprep.subr.mxu0 0.0
  %4186 = vmatpush1.xpose.msra.mxu0 0.0
  %4187 = vmatprep.subr.mxu0 0.0
  %4188 = vmatpush1.xpose.msra.mxu0 0.0
  %4189 = vmatprep.subr.mxu0 0.0
  %4190 = vmatpush1.xpose.msra.mxu0 0.0
  %4191 = vmatprep.subr.mxu0 0.0
  %4192 = vmatpush1.xpose.msra.mxu0 0.0
  %4193 = vmatprep.subr.mxu0 0.0
  %4194 = vmatpush1.xpose.msra.mxu0 0.0
  %4195 = vmatprep.subr.mxu0 0.0
  %4196 = vmatpush1.xpose.msra.mxu0 0.0
  %4197 = vmatprep.subr.mxu0 0.0
  %4198 = vmatpush1.xpose.msra.mxu0 0.0
  %4199 = vmatprep.subr.mxu0 0.0
  %4200 = vmatpush1.xpose.msra.mxu0 0.0
  %4201 = vmatprep.subr.mxu0 0.0
  %4202 = vmatpush1.xpose.msra.mxu0 0.0
  %4203 = vmatprep.subr.mxu0 0.0
  %4204 = vmatpush1.xpose.msra.mxu0 0.0
  %4205 = vmatprep.subr.mxu0 0.0
  %4206 = vmatpush1.xpose.msra.mxu0 0.0
  %4207 = vmatprep.subr.mxu0 0.0
  %4208 = vmatpush1.xpose.msra.mxu0 0.0
  %4209 = vmatprep.subr.mxu0 0.0
  %4210 = vmatpush1.xpose.msra.mxu0 0.0
  %4211 = vmatprep.subr.mxu0 0.0
  %4212 = vmatpush1.xpose.msra.mxu0 0.0
  %4213 = vmatprep.subr.mxu0 0.0
  %4214 = vmatpush1.xpose.msra.mxu0 0.0
  %4215 = vmatprep.subr.mxu0 0.0
  %4216 = vmatpush1.xpose.msra.mxu0 %v4183
  %4217 = vmatprep.subr.mxu0 0.0
  %4218 = vmatpush2.xpose.msra.mxu0 0.0
  %4219 = vmatprep.subr.mxu0 0.0
  %4220 = vmatpush2.xpose.msra.mxu0 0.0
  %4221 = vmatprep.subr.mxu0 0.0
  %4222 = vmatpush2.xpose.msra.mxu0 0.0
  %4223 = vmatprep.subr.mxu0 0.0
  %4224 = vmatpush2.xpose.msra.mxu0 0.0
  %4225 = vmatprep.subr.mxu0 0.0
  %4226 = vmatpush2.xpose.msra.mxu0 0.0
  %4227 = vmatprep.subr.mxu0 0.0
  %4228 = vmatpush2.xpose.msra.mxu0 0.0
  %4229 = vmatprep.subr.mxu0 0.0
  %4230 = vmatpush2.xpose.msra.mxu0 0.0
  %4231 = vmatprep.subr.mxu0 0.0
  %4232 = vmatpush2.xpose.msra.mxu0 0.0
  %4233 = vmatprep.subr.mxu0 0.0
  %4234 = vmatpush2.xpose.msra.mxu0 0.0
  %4235 = vmatprep.subr.mxu0 0.0
  %4236 = vmatpush2.xpose.msra.mxu0 0.0
  %4237 = vmatprep.subr.mxu0 0.0
  %4238 = vmatpush2.xpose.msra.mxu0 0.0
  %4239 = vmatprep.subr.mxu0 0.0
  %4240 = vmatpush2.xpose.msra.mxu0 0.0
  %4241 = vmatprep.subr.mxu0 0.0
  %4242 = vmatpush2.xpose.msra.mxu0 0.0
  %4243 = vmatprep.subr.mxu0 0.0
  %4244 = vmatpush2.xpose.msra.mxu0 0.0
  %4245 = vmatprep.subr.mxu0 0.0
  %4246 = vmatpush2.xpose.msra.mxu0 0.0
  %4247 = vmatprep.subr.mxu0 0.0
  %4248 = vmatpush2.xpose.msra.mxu0 0.0
  %4249 = vmatprep.mubr.f32.mxu0 0.0
  %4250 = vmatmul.mubr.f32.gmra.mxu0 %v4181
  %v4251 = vpop.f32.mrf.mxu0
  %v4252 = vadd.f32 0.0, %v4251
  %v4253 = vpop.f32.mrf.mxu0
  %4254 = vdwg.mxu0
  %v4255 = vsel %vm233, %v4252, -inf
  %4256 = vmax.xlane.f32.xlu0 %v4255
  %v4257 = vpop.xlane.xlu0 %4256
  %v4258 = vsub.f32 %v4252, %v4257
  %v4259 = vmul.f32 %v4258, 1.442695
  %v4260 = vpow.pop %v4259
  %v4261 = vsel %vm233, %v4260, 0.0
  %4262 = vadd.xlane.f32.xlu0 %v4261
  %v4263 = vpop.xlane.xlu0 %4262
  %v4264 = vrcp.pop %v4263
  %v4265 = vmul.f32 %v4260, %v4264
  %4266 = vrot.lane.b32.xlu0 %v2507, 40
  %v4267 = vpop.permute.xlu0 %4266
  %v4270 = vsel %vm233, %v4265, 0
  %4272 = vmatprep.subr.mxu0 0.0
  %4273 = vmatpush1.msra.mxu0 0.0
  %4274 = vmatprep.subr.mxu0 0.0
  %4275 = vmatpush1.msra.mxu0 0.0
  %4276 = vmatprep.subr.mxu0 0.0
  %4277 = vmatpush1.msra.mxu0 0.0
  %4278 = vmatprep.subr.mxu0 0.0
  %4279 = vmatpush1.msra.mxu0 0.0
  %4280 = vmatprep.subr.mxu0 0.0
  %4281 = vmatpush1.msra.mxu0 0.0
  %4282 = vmatprep.subr.mxu0 0.0
  %4283 = vmatpush1.msra.mxu0 0.0
  %4284 = vmatprep.subr.mxu0 0.0
  %4285 = vmatpush1.msra.mxu0 0.0
  %4286 = vmatprep.subr.mxu0 0.0
  %4287 = vmatpush1.msra.mxu0 0.0
  %4288 = vmatprep.subr.mxu0 0.0
  %4289 = vmatpush1.msra.mxu0 0.0
  %4290 = vmatprep.subr.mxu0 0.0
  %4291 = vmatpush1.msra.mxu0 0.0
  %4292 = vmatprep.subr.mxu0 0.0
  %4293 = vmatpush1.msra.mxu0 0.0
  %4294 = vmatprep.subr.mxu0 0.0
  %4295 = vmatpush1.msra.mxu0 0.0
  %4296 = vmatprep.subr.mxu0 0.0
  %4297 = vmatpush1.msra.mxu0 0.0
  %4298 = vmatprep.subr.mxu0 0.0
  %4299 = vmatpush1.msra.mxu0 0.0
  %4300 = vmatprep.subr.mxu0 0.0
  %4301 = vmatpush1.msra.mxu0 0.0
  %4302 = vmatprep.subr.mxu0 0.0
  %4303 = vmatpush1.msra.mxu0 %v4267
  %4304 = vmatprep.subr.mxu0 0.0
  %4305 = vmatpush2.msra.mxu0 0.0
  %4306 = vmatprep.subr.mxu0 0.0
  %4307 = vmatpush2.msra.mxu0 0.0
  %4308 = vmatprep.subr.mxu0 0.0
  %4309 = vmatpush2.msra.mxu0 0.0
  %4310 = vmatprep.subr.mxu0 0.0
  %4311 = vmatpush2.msra.mxu0 0.0
  %4312 = vmatprep.subr.mxu0 0.0
  %4313 = vmatpush2.msra.mxu0 0.0
  %4314 = vmatprep.subr.mxu0 0.0
  %4315 = vmatpush2.msra.mxu0 0.0
  %4316 = vmatprep.subr.mxu0 0.0
  %4317 = vmatpush2.msra.mxu0 0.0
  %4318 = vmatprep.subr.mxu0 0.0
  %4319 = vmatpush2.msra.mxu0 0.0
  %4320 = vmatprep.subr.mxu0 0.0
  %4321 = vmatpush2.msra.mxu0 0.0
  %4322 = vmatprep.subr.mxu0 0.0
  %4323 = vmatpush2.msra.mxu0 0.0
  %4324 = vmatprep.subr.mxu0 0.0
  %4325 = vmatpush2.msra.mxu0 0.0
  %4326 = vmatprep.subr.mxu0 0.0
  %4327 = vmatpush2.msra.mxu0 0.0
  %4328 = vmatprep.subr.mxu0 0.0
  %4329 = vmatpush2.msra.mxu0 0.0
  %4330 = vmatprep.subr.mxu0 0.0
  %4331 = vmatpush2.msra.mxu0 0.0
  %4332 = vmatprep.subr.mxu0 0.0
  %4333 = vmatpush2.msra.mxu0 0.0
  %4334 = vmatprep.subr.mxu0 0.0
  %4335 = vmatpush2.msra.mxu0 0.0
  %4336 = vmatprep.mubr.f32.mxu0 0.0
  %4337 = vmatmul.mubr.f32.gmra.mxu0 %v4270
  %v4338 = vpop.f32.mrf.mxu0
  %v4339 = vadd.f32 0.0, %v4338
  %v4340 = vpop.f32.mrf.mxu0
  %4341 = vdwg.mxu0
  %v4343 = vsel %vm233, %v4339, 0
  %4345 = vmatprep.subr.mxu0 0.0
  %4346 = vmatpush1.msra.mxu0 0.0
  %4347 = vmatprep.subr.mxu0 0.0
  %4348 = vmatpush1.msra.mxu0 0.0
  %4349 = vmatprep.subr.mxu0 0.0
  %4350 = vmatpush1.msra.mxu0 0.0
  %4351 = vmatprep.subr.mxu0 0.0
  %4352 = vmatpush1.msra.mxu0 0.0
  %4353 = vmatprep.subr.mxu0 0.0
  %4354 = vmatpush1.msra.mxu0 0.0
  %4355 = vmatprep.subr.mxu0 0.0
  %4356 = vmatpush1.msra.mxu0 0.0
  %4357 = vmatprep.subr.mxu0 0.0
  %4358 = vmatpush1.msra.mxu0 0.0
  %4359 = vmatprep.subr.mxu0 0.0
  %4360 = vmatpush1.msra.mxu0 0.0
  %4361 = vmatprep.subr.mxu0 0.0
  %4362 = vmatpush1.msra.mxu0 0.0
  %4363 = vmatprep.subr.mxu0 0.0
  %4364 = vmatpush1.msra.mxu0 0.0
  %4365 = vmatprep.subr.mxu0 0.0
  %4366 = vmatpush1.msra.mxu0 0.0
  %4367 = vmatprep.subr.mxu0 0.0
  %4368 = vmatpush1.msra.mxu0 0.0
  %4369 = vmatprep.subr.mxu0 0.0
  %4370 = vmatpush1.msra.mxu0 0.0
  %4371 = vmatprep.subr.mxu0 0.0
  %4372 = vmatpush1.msra.mxu0 0.0
  %4373 = vmatprep.subr.mxu0 0.0
  %4374 = vmatpush1.msra.mxu0 0.0
  %4375 = vmatprep.subr.mxu0 0.0
  %4376 = vmatpush1.msra.mxu0 %v2423
  %4377 = vmatprep.subr.mxu0 0.0
  %4378 = vmatpush2.msra.mxu0 0.0
  %4379 = vmatprep.subr.mxu0 0.0
  %4380 = vmatpush2.msra.mxu0 0.0
  %4381 = vmatprep.subr.mxu0 0.0
  %4382 = vmatpush2.msra.mxu0 0.0
  %4383 = vmatprep.subr.mxu0 0.0
  %4384 = vmatpush2.msra.mxu0 0.0
  %4385 = vmatprep.subr.mxu0 0.0
  %4386 = vmatpush2.msra.mxu0 0.0
  %4387 = vmatprep.subr.mxu0 0.0
  %4388 = vmatpush2.msra.mxu0 0.0
  %4389 = vmatprep.subr.mxu0 0.0
  %4390 = vmatpush2.msra.mxu0 0.0
  %4391 = vmatprep.subr.mxu0 0.0
  %4392 = vmatpush2.msra.mxu0 0.0
  %4393 = vmatprep.subr.mxu0 0.0
  %4394 = vmatpush2.msra.mxu0 0.0
  %4395 = vmatprep.subr.mxu0 0.0
  %4396 = vmatpush2.msra.mxu0 0.0
  %4397 = vmatprep.subr.mxu0 0.0
  %4398 = vmatpush2.msra.mxu0 0.0
  %4399 = vmatprep.subr.mxu0 0.0
  %4400 = vmatpush2.msra.mxu0 0.0
  %4401 = vmatprep.subr.mxu0 0.0
  %4402 = vmatpush2.msra.mxu0 0.0
  %4403 = vmatprep.subr.mxu0 0.0
  %4404 = vmatpush2.msra.mxu0 0.0
  %4405 = vmatprep.subr.mxu0 0.0
  %4406 = vmatpush2.msra.mxu0 0.0
  %4407 = vmatprep.subr.mxu0 0.0
  %4408 = vmatpush2.msra.mxu0 0.0
  %4409 = vmatprep.mubr.f32.mxu0 0.0
  %4410 = vmatmul.mubr.f32.gmra.mxu0 %v4343
  %v4411 = vpop.f32.mrf.mxu0
  %v4412 = vadd.f32 0.0, %v4411
  %v4413 = vpop.f32.mrf.mxu0
  %4414 = vdwg.mxu0
  %v4415 = vadd.f32 %v4176, %v4412
  %v4416 = vlaneseq
  %v4417 = vshrl.u32 %v4416, 7
  %v4418 = vsub.s32 0, %v4417
  %v4419 = vrot.slane %v2424, %v4418
  %v4420 = vadd.f32 %v3462, %v4419
  %v4421 = vadd.f32 %v4415, %v4419
  %v4422 = vadd.f32 %v2413, %v4420
  %v4423 = vadd.f32 %v2414, %v4421
  %v4424 = vld [vmem:[%s4 + $0x118] sm:$0x1]
  %v4425 = vld [vmem:[%s4 + $0x120] sm:$0x1]
  %v4426 = vsel %vm148, %v4422, 0.0
  %4427 = vadd.xlane.f32.xlu0 %v4426
  %v4428 = vpop.xlane.xlu0 %4427
  %v4429 = vsel %vm148, %v4423, 0.0
  %4430 = vadd.xlane.f32.xlu0 %v4429
  %v4431 = vpop.xlane.xlu0 %4430
  %v4432 = vmul.f32 %v4428, %v2153
  %v4433 = vmul.f32 %v4431, %v2153
  %v4434 = vsub.f32 %v4422, %v4432
  %v4435 = vsub.f32 %v4423, %v4433
  %v4436 = vmul.f32 %v4434, %v4434
  %v4437 = vmul.f32 %v4435, %v4435
  %v4438 = vsel %vm148, %v4436, 0.0
  %4439 = vadd.xlane.f32.xlu0 %v4438
  %v4440 = vpop.xlane.xlu0 %4439
  %v4441 = vsel %vm148, %v4437, 0.0
  %4442 = vadd.xlane.f32.xlu0 %v4441
  %v4443 = vpop.xlane.xlu0 %4442
  %v4444 = vmul.f32 %v4440, %v2153
  %v4445 = vmul.f32 %v4443, %v2153
  %v4446 = vadd.f32 %v4444, 1e-05
  %v4447 = vadd.f32 %v4445, 1e-05
  %v4448 = vrsqrt.pop %v4446
  %v4449 = vrsqrt.pop %v4447
  %v4450 = vmul.f32 %v4434, %v4448
  %v4451 = vmul.f32 %v4435, %v4449
  %v4452 = vlaneseq
  %v4453 = vshrl.u32 %v4452, 7
  %v4454 = vsub.s32 0, %v4453
  %v4455 = vrot.slane %v4424, %v4454
  %v4456 = vmul.f32 %v4450, %v4455
  %v4457 = vmul.f32 %v4451, %v4455
  %v4458 = vlaneseq
  %v4459 = vshrl.u32 %v4458, 7
  %v4460 = vsub.s32 0, %v4459
  %v4461 = vrot.slane %v4425, %v4460
  %v4462 = vadd.f32 %v4456, %v4461
  %v4463 = vadd.f32 %v4457, %v4461
  %v4464 = vld [vmem:[%s3 + $0x28] sm:$0xff]
  %v4465 = vld [vmem:[%s3 + $0x30] sm:$0xff]
  %v4466 = vld [vmem:[%s3 + $0x38] sm:$0xff]
  %v4467 = vld [vmem:[%s3 + $0x40] sm:$0xff]
  %v4468 = vld [vmem:[%s3 + $0x48] sm:$0x1]
  %v4469 = vlaneseq
  %v4470 = vshrl.u32 %v4469, 7
  %v4471 = vsub.s32 0, %v4470
  %v4472 = vrot.slane %v4468, %v4471
  %v4474 = vsel %vm148, %v4462, 0
  %v4477 = vsel %vm148, %v4463, 0
  %4479 = vmatprep.subr.mxu0 0.0
  %4480 = vmatpush1.msra.mxu0 0.0
  %4481 = vmatprep.subr.mxu0 0.0
  %4482 = vmatpush1.msra.mxu0 0.0
  %4483 = vmatprep.subr.mxu0 0.0
  %4484 = vmatpush1.msra.mxu0 0.0
  %4485 = vmatprep.subr.mxu0 0.0
  %4486 = vmatpush1.msra.mxu0 0.0
  %4487 = vmatprep.subr.mxu0 0.0
  %4488 = vmatpush1.msra.mxu0 0.0
  %4489 = vmatprep.subr.mxu0 0.0
  %4490 = vmatpush1.msra.mxu0 0.0
  %4491 = vmatprep.subr.mxu0 0.0
  %4492 = vmatpush1.msra.mxu0 0.0
  %4493 = vmatprep.subr.mxu0 0.0
  %4494 = vmatpush1.msra.mxu0 0.0
  %4495 = vmatprep.subr.mxu0 0.0
  %4496 = vmatpush1.msra.mxu0 0.0
  %4497 = vmatprep.subr.mxu0 0.0
  %4498 = vmatpush1.msra.mxu0 0.0
  %4499 = vmatprep.subr.mxu0 0.0
  %4500 = vmatpush1.msra.mxu0 0.0
  %4501 = vmatprep.subr.mxu0 0.0
  %4502 = vmatpush1.msra.mxu0 0.0
  %4503 = vmatprep.subr.mxu0 0.0
  %4504 = vmatpush1.msra.mxu0 %v4467
  %4505 = vmatprep.subr.mxu0 0.0
  %4506 = vmatpush1.msra.mxu0 %v4466
  %4507 = vmatprep.subr.mxu0 0.0
  %4508 = vmatpush1.msra.mxu0 %v4465
  %4509 = vmatprep.subr.mxu0 0.0
  %4510 = vmatpush1.msra.mxu0 %v4464
  %4511 = vmatprep.subr.mxu0 0.0
  %4512 = vmatpush2.msra.mxu0 0.0
  %4513 = vmatprep.subr.mxu0 0.0
  %4514 = vmatpush2.msra.mxu0 0.0
  %4515 = vmatprep.subr.mxu0 0.0
  %4516 = vmatpush2.msra.mxu0 0.0
  %4517 = vmatprep.subr.mxu0 0.0
  %4518 = vmatpush2.msra.mxu0 0.0
  %4519 = vmatprep.subr.mxu0 0.0
  %4520 = vmatpush2.msra.mxu0 0.0
  %4521 = vmatprep.subr.mxu0 0.0
  %4522 = vmatpush2.msra.mxu0 0.0
  %4523 = vmatprep.subr.mxu0 0.0
  %4524 = vmatpush2.msra.mxu0 0.0
  %4525 = vmatprep.subr.mxu0 0.0
  %4526 = vmatpush2.msra.mxu0 0.0
  %4527 = vmatprep.subr.mxu0 0.0
  %4528 = vmatpush2.msra.mxu0 0.0
  %4529 = vmatprep.subr.mxu0 0.0
  %4530 = vmatpush2.msra.mxu0 0.0
  %4531 = vmatprep.subr.mxu0 0.0
  %4532 = vmatpush2.msra.mxu0 0.0
  %4533 = vmatprep.subr.mxu0 0.0
  %4534 = vmatpush2.msra.mxu0 0.0
  %4535 = vmatprep.subr.mxu0 0.0
  %4536 = vmatpush2.msra.mxu0 0.0
  %4537 = vmatprep.subr.mxu0 0.0
  %4538 = vmatpush2.msra.mxu0 0.0
  %4539 = vmatprep.subr.mxu0 0.0
  %4540 = vmatpush2.msra.mxu0 0.0
  %4541 = vmatprep.subr.mxu0 0.0
  %4542 = vmatpush2.msra.mxu0 0.0
  %4543 = vmatprep.mubr.f32.mxu0 0.0
  %4544 = vmatmul.mubr.f32.gmra.mxu0 %v4474
  %v4545 = vpop.f32.mrf.mxu0
  %v4546 = vadd.f32 %v4472, %v4545
  %v4547 = vpop.f32.mrf.mxu0
  %4548 = vmatprep.mubr.f32.mxu0 0.0
  %4549 = vmatmul.mubr.f32.gmra.mxu0 %v4477
  %v4550 = vpop.f32.mrf.mxu0
  %v4551 = vadd.f32 %v4472, %v4550
  %v4552 = vpop.f32.mrf.mxu0
  %4553 = vdwg.mxu0
  %v4554 = vmax.f32 %v4546, 0.0
  %v4555 = vmax.f32 %v4551, 0.0
  %v4556 = vld [vmem:[%s4 + $0xd0] sm:$0xff]
  %v4557 = vld [vmem:[%s4 + $0xd8] sm:$0xff]
  %v4558 = vld [vmem:[%s4 + $0xe0] sm:$0xff]
  %v4559 = vld [vmem:[%s4 + $0xe8] sm:$0xff]
  %v4560 = vld [vmem:[%s4 + $0xf0] sm:$0xff]
  %v4561 = vld [vmem:[%s4 + $0xf8] sm:$0xff]
  %v4562 = vld [vmem:[%s4 + $0x100] sm:$0xff]
  %v4563 = vld [vmem:[%s4 + $0x108] sm:$0xff]
  %v4564 = vld [vmem:[%s4 + $0x110] sm:$0x1]
  %v4565 = vlaneseq
  %v4566 = vshrl.u32 %v4565, 7
  %v4567 = vsub.s32 0, %v4566
  %v4568 = vrot.slane %v4564, %v4567
  %v4570 = vsel %vm2291, %v4554, 0
  %v4573 = vsel %vm2291, %v4555, 0
  %4575 = vmatprep.subr.mxu0 0.0
  %4576 = vmatpush1.msra.mxu0 0.0
  %4577 = vmatprep.subr.mxu0 0.0
  %4578 = vmatpush1.msra.mxu0 0.0
  %4579 = vmatprep.subr.mxu0 0.0
  %4580 = vmatpush1.msra.mxu0 0.0
  %4581 = vmatprep.subr.mxu0 0.0
  %4582 = vmatpush1.msra.mxu0 0.0
  %4583 = vmatprep.subr.mxu0 0.0
  %4584 = vmatpush1.msra.mxu0 0.0
  %4585 = vmatprep.subr.mxu0 0.0
  %4586 = vmatpush1.msra.mxu0 0.0
  %4587 = vmatprep.subr.mxu0 0.0
  %4588 = vmatpush1.msra.mxu0 0.0
  %4589 = vmatprep.subr.mxu0 0.0
  %4590 = vmatpush1.msra.mxu0 0.0
  %4591 = vmatprep.subr.mxu0 0.0
  %4592 = vmatpush1.msra.mxu0 %v4563
  %4593 = vmatprep.subr.mxu0 0.0
  %4594 = vmatpush1.msra.mxu0 %v4562
  %4595 = vmatprep.subr.mxu0 0.0
  %4596 = vmatpush1.msra.mxu0 %v4561
  %4597 = vmatprep.subr.mxu0 0.0
  %4598 = vmatpush1.msra.mxu0 %v4560
  %4599 = vmatprep.subr.mxu0 0.0
  %4600 = vmatpush1.msra.mxu0 %v4559
  %4601 = vmatprep.subr.mxu0 0.0
  %4602 = vmatpush1.msra.mxu0 %v4558
  %4603 = vmatprep.subr.mxu0 0.0
  %4604 = vmatpush1.msra.mxu0 %v4557
  %4605 = vmatprep.subr.mxu0 0.0
  %4606 = vmatpush1.msra.mxu0 %v4556
  %4607 = vmatprep.subr.mxu0 0.0
  %4608 = vmatpush2.msra.mxu0 0.0
  %4609 = vmatprep.subr.mxu0 0.0
  %4610 = vmatpush2.msra.mxu0 0.0
  %4611 = vmatprep.subr.mxu0 0.0
  %4612 = vmatpush2.msra.mxu0 0.0
  %4613 = vmatprep.subr.mxu0 0.0
  %4614 = vmatpush2.msra.mxu0 0.0
  %4615 = vmatprep.subr.mxu0 0.0
  %4616 = vmatpush2.msra.mxu0 0.0
  %4617 = vmatprep.subr.mxu0 0.0
  %4618 = vmatpush2.msra.mxu0 0.0
  %4619 = vmatprep.subr.mxu0 0.0
  %4620 = vmatpush2.msra.mxu0 0.0
  %4621 = vmatprep.subr.mxu0 0.0
  %4622 = vmatpush2.msra.mxu0 0.0
  %4623 = vmatprep.subr.mxu0 0.0
  %4624 = vmatpush2.msra.mxu0 0.0
  %4625 = vmatprep.subr.mxu0 0.0
  %4626 = vmatpush2.msra.mxu0 0.0
  %4627 = vmatprep.subr.mxu0 0.0
  %4628 = vmatpush2.msra.mxu0 0.0
  %4629 = vmatprep.subr.mxu0 0.0
  %4630 = vmatpush2.msra.mxu0 0.0
  %4631 = vmatprep.subr.mxu0 0.0
  %4632 = vmatpush2.msra.mxu0 0.0
  %4633 = vmatprep.subr.mxu0 0.0
  %4634 = vmatpush2.msra.mxu0 0.0
  %4635 = vmatprep.subr.mxu0 0.0
  %4636 = vmatpush2.msra.mxu0 0.0
  %4637 = vmatprep.subr.mxu0 0.0
  %4638 = vmatpush2.msra.mxu0 0.0
  %4639 = vmatprep.mubr.f32.mxu0 0.0
  %4640 = vmatmul.mubr.f32.gmra.mxu0 %v4570
  %v4641 = vpop.f32.mrf.mxu0
  %v4642 = vadd.f32 %v4568, %v4641
  %v4643 = vpop.f32.mrf.mxu0
  %4644 = vmatprep.mubr.f32.mxu0 0.0
  %4645 = vmatmul.mubr.f32.gmra.mxu0 %v4573
  %v4646 = vpop.f32.mrf.mxu0
  %v4647 = vadd.f32 %v4568, %v4646
  %v4648 = vpop.f32.mrf.mxu0
  %4649 = vdwg.mxu0
  %v4650 = vadd.f32 %v4462, %v4642
  %v4651 = vadd.f32 %v4463, %v4647
  %v4652 = vld [vmem:[%s4 + $0x128] sm:$0x1]
  %v4653 = vld [vmem:[%s4 + $0x130] sm:$0x1]
  %v4654 = vsel %vm148, %v4650, 0.0
  %4655 = vadd.xlane.f32.xlu0 %v4654
  %v4656 = vpop.xlane.xlu0 %4655
  %v4657 = vsel %vm148, %v4651, 0.0
  %4658 = vadd.xlane.f32.xlu0 %v4657
  %v4659 = vpop.xlane.xlu0 %4658
  %v4660 = vmul.f32 %v4656, %v2153
  %v4661 = vmul.f32 %v4659, %v2153
  %v4662 = vsub.f32 %v4650, %v4660
  %v4663 = vsub.f32 %v4651, %v4661
  %v4664 = vmul.f32 %v4662, %v4662
  %v4665 = vmul.f32 %v4663, %v4663
  %v4666 = vsel %vm148, %v4664, 0.0
  %4667 = vadd.xlane.f32.xlu0 %v4666
  %v4668 = vpop.xlane.xlu0 %4667
  %v4669 = vsel %vm148, %v4665, 0.0
  %4670 = vadd.xlane.f32.xlu0 %v4669
  %v4671 = vpop.xlane.xlu0 %4670
  %v4672 = vmul.f32 %v4668, %v2153
  %v4673 = vmul.f32 %v4671, %v2153
  %v4674 = vadd.f32 %v4672, 1e-05
  %v4675 = vadd.f32 %v4673, 1e-05
  %v4676 = vrsqrt.pop %v4674
  %v4677 = vrsqrt.pop %v4675
  %v4678 = vmul.f32 %v4662, %v4676
  %v4679 = vmul.f32 %v4663, %v4677
  %v4680 = vlaneseq
  %v4681 = vshrl.u32 %v4680, 7
  %v4682 = vsub.s32 0, %v4681
  %v4683 = vrot.slane %v4652, %v4682
  %v4684 = vmul.f32 %v4678, %v4683
  %v4685 = vmul.f32 %v4679, %v4683
  %v4686 = vlaneseq
  %v4687 = vshrl.u32 %v4686, 7
  %v4688 = vsub.s32 0, %v4687
  %v4689 = vrot.slane %v4653, %v4688
  %v4690 = vadd.f32 %v4684, %v4689
  %v4691 = vadd.f32 %v4685, %v4689
  %v4692 = vld [vmem:[%s4 + $0x368] sm:$0x1]
  %v4693 = vld [vmem:[%s4 + $0x370] sm:$0x1]
  %v4694 = vsel %vm148, %v4690, 0.0
  %4695 = vadd.xlane.f32.xlu0 %v4694
  %v4696 = vpop.xlane.xlu0 %4695
  %v4697 = vsel %vm148, %v4691, 0.0
  %4698 = vadd.xlane.f32.xlu0 %v4697
  %v4699 = vpop.xlane.xlu0 %4698
  %v4700 = vmul.f32 %v4696, %v2153
  %v4701 = vmul.f32 %v4699, %v2153
  %v4702 = vsub.f32 %v4690, %v4700
  %v4703 = vsub.f32 %v4691, %v4701
  %v4704 = vmul.f32 %v4702, %v4702
  %v4705 = vmul.f32 %v4703, %v4703
  %v4706 = vsel %vm148, %v4704, 0.0
  %4707 = vadd.xlane.f32.xlu0 %v4706
  %v4708 = vpop.xlane.xlu0 %4707
  %v4709 = vsel %vm148, %v4705, 0.0
  %4710 = vadd.xlane.f32.xlu0 %v4709
  %v4711 = vpop.xlane.xlu0 %4710
  %v4712 = vmul.f32 %v4708, %v2153
  %v4713 = vmul.f32 %v4711, %v2153
  %v4714 = vadd.f32 %v4712, 1e-05
  %v4715 = vadd.f32 %v4713, 1e-05
  %v4716 = vrsqrt.pop %v4714
  %v4717 = vrsqrt.pop %v4715
  %v4718 = vmul.f32 %v4702, %v4716
  %v4719 = vmul.f32 %v4703, %v4717
  %v4720 = vlaneseq
  %v4721 = vshrl.u32 %v4720, 7
  %v4722 = vsub.s32 0, %v4721
  %v4723 = vrot.slane %v4692, %v4722
  %v4724 = vmul.f32 %v4718, %v4723
  %v4725 = vmul.f32 %v4719, %v4723
  %v4726 = vlaneseq
  %v4727 = vshrl.u32 %v4726, 7
  %v4728 = vsub.s32 0, %v4727
  %v4729 = vrot.slane %v4693, %v4728
  %v4730 = vadd.f32 %v4724, %v4729
  %v4731 = vadd.f32 %v4725, %v4729
  %v4732 = vld [vmem:[%s4 + $0x138] sm:$0xff]
  %v4733 = vld [vmem:[%s4 + $0x140] sm:$0xff]
  %v4734 = vld [vmem:[%s4 + $0x148] sm:$0xff]
  %v4735 = vld [vmem:[%s4 + $0x150] sm:$0xff]
  %v4736 = vld [vmem:[%s4 + $0x158] sm:$0x1]
  %v4737 = vlaneseq
  %v4738 = vshrl.u32 %v4737, 7
  %v4739 = vsub.s32 0, %v4738
  %v4740 = vrot.slane %v4736, %v4739
  %v4742 = vsel %vm148, %v133, 0
  %4744 = vmatprep.subr.mxu0 0.0
  %4745 = vmatpush1.msra.mxu0 0.0
  %4746 = vmatprep.subr.mxu0 0.0
  %4747 = vmatpush1.msra.mxu0 0.0
  %4748 = vmatprep.subr.mxu0 0.0
  %4749 = vmatpush1.msra.mxu0 0.0
  %4750 = vmatprep.subr.mxu0 0.0
  %4751 = vmatpush1.msra.mxu0 0.0
  %4752 = vmatprep.subr.mxu0 0.0
  %4753 = vmatpush1.msra.mxu0 0.0
  %4754 = vmatprep.subr.mxu0 0.0
  %4755 = vmatpush1.msra.mxu0 0.0
  %4756 = vmatprep.subr.mxu0 0.0
  %4757 = vmatpush1.msra.mxu0 0.0
  %4758 = vmatprep.subr.mxu0 0.0
  %4759 = vmatpush1.msra.mxu0 0.0
  %4760 = vmatprep.subr.mxu0 0.0
  %4761 = vmatpush1.msra.mxu0 0.0
  %4762 = vmatprep.subr.mxu0 0.0
  %4763 = vmatpush1.msra.mxu0 0.0
  %4764 = vmatprep.subr.mxu0 0.0
  %4765 = vmatpush1.msra.mxu0 0.0
  %4766 = vmatprep.subr.mxu0 0.0
  %4767 = vmatpush1.msra.mxu0 0.0
  %4768 = vmatprep.subr.mxu0 0.0
  %4769 = vmatpush1.msra.mxu0 %v4735
  %4770 = vmatprep.subr.mxu0 0.0
  %4771 = vmatpush1.msra.mxu0 %v4734
  %4772 = vmatprep.subr.mxu0 0.0
  %4773 = vmatpush1.msra.mxu0 %v4733
  %4774 = vmatprep.subr.mxu0 0.0
  %4775 = vmatpush1.msra.mxu0 %v4732
  %4776 = vmatprep.subr.mxu0 0.0
  %4777 = vmatpush2.msra.mxu0 0.0
  %4778 = vmatprep.subr.mxu0 0.0
  %4779 = vmatpush2.msra.mxu0 0.0
  %4780 = vmatprep.subr.mxu0 0.0
  %4781 = vmatpush2.msra.mxu0 0.0
  %4782 = vmatprep.subr.mxu0 0.0
  %4783 = vmatpush2.msra.mxu0 0.0
  %4784 = vmatprep.subr.mxu0 0.0
  %4785 = vmatpush2.msra.mxu0 0.0
  %4786 = vmatprep.subr.mxu0 0.0
  %4787 = vmatpush2.msra.mxu0 0.0
  %4788 = vmatprep.subr.mxu0 0.0
  %4789 = vmatpush2.msra.mxu0 0.0
  %4790 = vmatprep.subr.mxu0 0.0
  %4791 = vmatpush2.msra.mxu0 0.0
  %4792 = vmatprep.subr.mxu0 0.0
  %4793 = vmatpush2.msra.mxu0 0.0
  %4794 = vmatprep.subr.mxu0 0.0
  %4795 = vmatpush2.msra.mxu0 0.0
  %4796 = vmatprep.subr.mxu0 0.0
  %4797 = vmatpush2.msra.mxu0 0.0
  %4798 = vmatprep.subr.mxu0 0.0
  %4799 = vmatpush2.msra.mxu0 0.0
  %4800 = vmatprep.subr.mxu0 0.0
  %4801 = vmatpush2.msra.mxu0 0.0
  %4802 = vmatprep.subr.mxu0 0.0
  %4803 = vmatpush2.msra.mxu0 0.0
  %4804 = vmatprep.subr.mxu0 0.0
  %4805 = vmatpush2.msra.mxu0 0.0
  %4806 = vmatprep.subr.mxu0 0.0
  %4807 = vmatpush2.msra.mxu0 0.0
  %4808 = vmatprep.mubr.f32.mxu0 0.0
  %4809 = vmatmul.mubr.f32.gmra.mxu0 %v4742
  %v4810 = vpop.f32.mrf.mxu0
  %v4811 = vadd.f32 %v4740, %v4810
  %v4812 = vpop.f32.mrf.mxu0
  %4813 = vdwg.mxu0
  %v4814 = vld [vmem:[%s4 + $0x160] sm:$0xff]
  %v4815 = vld [vmem:[%s4 + $0x168] sm:$0xff]
  %v4816 = vld [vmem:[%s4 + $0x170] sm:$0xff]
  %v4817 = vld [vmem:[%s4 + $0x178] sm:$0xff]
  %v4818 = vld [vmem:[%s4 + $0x180] sm:$0x1]
  %v4819 = vlaneseq
  %v4820 = vshrl.u32 %v4819, 7
  %v4821 = vsub.s32 0, %v4820
  %v4822 = vrot.slane %v4818, %v4821
  %v4824 = vsel %vm148, %v4811, 0
  %4826 = vmatprep.subr.mxu0 0.0
  %4827 = vmatpush1.msra.mxu0 0.0
  %4828 = vmatprep.subr.mxu0 0.0
  %4829 = vmatpush1.msra.mxu0 0.0
  %4830 = vmatprep.subr.mxu0 0.0
  %4831 = vmatpush1.msra.mxu0 0.0
  %4832 = vmatprep.subr.mxu0 0.0
  %4833 = vmatpush1.msra.mxu0 0.0
  %4834 = vmatprep.subr.mxu0 0.0
  %4835 = vmatpush1.msra.mxu0 0.0
  %4836 = vmatprep.subr.mxu0 0.0
  %4837 = vmatpush1.msra.mxu0 0.0
  %4838 = vmatprep.subr.mxu0 0.0
  %4839 = vmatpush1.msra.mxu0 0.0
  %4840 = vmatprep.subr.mxu0 0.0
  %4841 = vmatpush1.msra.mxu0 0.0
  %4842 = vmatprep.subr.mxu0 0.0
  %4843 = vmatpush1.msra.mxu0 0.0
  %4844 = vmatprep.subr.mxu0 0.0
  %4845 = vmatpush1.msra.mxu0 0.0
  %4846 = vmatprep.subr.mxu0 0.0
  %4847 = vmatpush1.msra.mxu0 0.0
  %4848 = vmatprep.subr.mxu0 0.0
  %4849 = vmatpush1.msra.mxu0 0.0
  %4850 = vmatprep.subr.mxu0 0.0
  %4851 = vmatpush1.msra.mxu0 %v4817
  %4852 = vmatprep.subr.mxu0 0.0
  %4853 = vmatpush1.msra.mxu0 %v4816
  %4854 = vmatprep.subr.mxu0 0.0
  %4855 = vmatpush1.msra.mxu0 %v4815
  %4856 = vmatprep.subr.mxu0 0.0
  %4857 = vmatpush1.msra.mxu0 %v4814
  %4858 = vmatprep.subr.mxu0 0.0
  %4859 = vmatpush2.msra.mxu0 0.0
  %4860 = vmatprep.subr.mxu0 0.0
  %4861 = vmatpush2.msra.mxu0 0.0
  %4862 = vmatprep.subr.mxu0 0.0
  %4863 = vmatpush2.msra.mxu0 0.0
  %4864 = vmatprep.subr.mxu0 0.0
  %4865 = vmatpush2.msra.mxu0 0.0
  %4866 = vmatprep.subr.mxu0 0.0
  %4867 = vmatpush2.msra.mxu0 0.0
  %4868 = vmatprep.subr.mxu0 0.0
  %4869 = vmatpush2.msra.mxu0 0.0
  %4870 = vmatprep.subr.mxu0 0.0
  %4871 = vmatpush2.msra.mxu0 0.0
  %4872 = vmatprep.subr.mxu0 0.0
  %4873 = vmatpush2.msra.mxu0 0.0
  %4874 = vmatprep.subr.mxu0 0.0
  %4875 = vmatpush2.msra.mxu0 0.0
  %4876 = vmatprep.subr.mxu0 0.0
  %4877 = vmatpush2.msra.mxu0 0.0
  %4878 = vmatprep.subr.mxu0 0.0
  %4879 = vmatpush2.msra.mxu0 0.0
  %4880 = vmatprep.subr.mxu0 0.0
  %4881 = vmatpush2.msra.mxu0 0.0
  %4882 = vmatprep.subr.mxu0 0.0
  %4883 = vmatpush2.msra.mxu0 0.0
  %4884 = vmatprep.subr.mxu0 0.0
  %4885 = vmatpush2.msra.mxu0 0.0
  %4886 = vmatprep.subr.mxu0 0.0
  %4887 = vmatpush2.msra.mxu0 0.0
  %4888 = vmatprep.subr.mxu0 0.0
  %4889 = vmatpush2.msra.mxu0 0.0
  %4890 = vmatprep.mubr.f32.mxu0 0.0
  %4891 = vmatmul.mubr.f32.gmra.mxu0 %v4824
  %v4892 = vpop.f32.mrf.mxu0
  %v4893 = vadd.f32 %v4822, %v4892
  %v4894 = vpop.f32.mrf.mxu0
  %4895 = vdwg.mxu0
  %v4896 = vadd.f32 %v133, %v4893
  %v4897 = vld [vmem:[%s4 + $0x220] sm:$0x1]
  %v4898 = vld [vmem:[%s4 + $0x228] sm:$0x1]
  %vm4899 = vcmask 254976
  %v4900 = vsel %vm4899, %v4896, 0.0
  %4901 = vadd.xlane.f32.xlu0 %v4900
  %v4902 = vpop.xlane.xlu0 %4901
  %v4903 = vmul.f32 %v4902, %v2153
  %v4904 = vsub.f32 %v4896, %v4903
  %v4905 = vmul.f32 %v4904, %v4904
  %v4906 = vsel %vm4899, %v4905, 0.0
  %4907 = vadd.xlane.f32.xlu0 %v4906
  %v4908 = vpop.xlane.xlu0 %4907
  %v4909 = vmul.f32 %v4908, %v2153
  %v4910 = vadd.f32 %v4909, 1e-05
  %v4911 = vrsqrt.pop %v4910
  %v4912 = vmul.f32 %v4904, %v4911
  %v4913 = vlaneseq
  %v4914 = vshrl.u32 %v4913, 7
  %v4915 = vsub.s32 0, %v4914
  %v4916 = vrot.slane %v4897, %v4915
  %v4917 = vmul.f32 %v4912, %v4916
  %v4918 = vlaneseq
  %v4919 = vshrl.u32 %v4918, 7
  %v4920 = vsub.s32 0, %v4919
  %v4921 = vrot.slane %v4898, %v4920
  %v4922 = vadd.f32 %v4917, %v4921
  %v4923 = vld [vmem:[%s4 + $0x188] sm:$0xff]
  %v4924 = vld [vmem:[%s4 + $0x190] sm:$0xff]
  %v4925 = vld [vmem:[%s4 + $0x198] sm:$0xff]
  %v4926 = vld [vmem:[%s4 + $0x1a0] sm:$0xff]
  %v4927 = vld [vmem:[%s4 + $0x1a8] sm:$0x1]
  %v4928 = vlaneseq
  %v4929 = vshrl.u32 %v4928, 7
  %v4930 = vsub.s32 0, %v4929
  %v4931 = vrot.slane %v4927, %v4930
  %v4933 = vsel %vm148, %v4922, 0
  %4935 = vmatprep.subr.mxu0 0.0
  %4936 = vmatpush1.msra.mxu0 0.0
  %4937 = vmatprep.subr.mxu0 0.0
  %4938 = vmatpush1.msra.mxu0 0.0
  %4939 = vmatprep.subr.mxu0 0.0
  %4940 = vmatpush1.msra.mxu0 0.0
  %4941 = vmatprep.subr.mxu0 0.0
  %4942 = vmatpush1.msra.mxu0 0.0
  %4943 = vmatprep.subr.mxu0 0.0
  %4944 = vmatpush1.msra.mxu0 0.0
  %4945 = vmatprep.subr.mxu0 0.0
  %4946 = vmatpush1.msra.mxu0 0.0
  %4947 = vmatprep.subr.mxu0 0.0
  %4948 = vmatpush1.msra.mxu0 0.0
  %4949 = vmatprep.subr.mxu0 0.0
  %4950 = vmatpush1.msra.mxu0 0.0
  %4951 = vmatprep.subr.mxu0 0.0
  %4952 = vmatpush1.msra.mxu0 0.0
  %4953 = vmatprep.subr.mxu0 0.0
  %4954 = vmatpush1.msra.mxu0 0.0
  %4955 = vmatprep.subr.mxu0 0.0
  %4956 = vmatpush1.msra.mxu0 0.0
  %4957 = vmatprep.subr.mxu0 0.0
  %4958 = vmatpush1.msra.mxu0 0.0
  %4959 = vmatprep.subr.mxu0 0.0
  %4960 = vmatpush1.msra.mxu0 %v4926
  %4961 = vmatprep.subr.mxu0 0.0
  %4962 = vmatpush1.msra.mxu0 %v4925
  %4963 = vmatprep.subr.mxu0 0.0
  %4964 = vmatpush1.msra.mxu0 %v4924
  %4965 = vmatprep.subr.mxu0 0.0
  %4966 = vmatpush1.msra.mxu0 %v4923
  %4967 = vmatprep.subr.mxu0 0.0
  %4968 = vmatpush2.msra.mxu0 0.0
  %4969 = vmatprep.subr.mxu0 0.0
  %4970 = vmatpush2.msra.mxu0 0.0
  %4971 = vmatprep.subr.mxu0 0.0
  %4972 = vmatpush2.msra.mxu0 0.0
  %4973 = vmatprep.subr.mxu0 0.0
  %4974 = vmatpush2.msra.mxu0 0.0
  %4975 = vmatprep.subr.mxu0 0.0
  %4976 = vmatpush2.msra.mxu0 0.0
  %4977 = vmatprep.subr.mxu0 0.0
  %4978 = vmatpush2.msra.mxu0 0.0
  %4979 = vmatprep.subr.mxu0 0.0
  %4980 = vmatpush2.msra.mxu0 0.0
  %4981 = vmatprep.subr.mxu0 0.0
  %4982 = vmatpush2.msra.mxu0 0.0
  %4983 = vmatprep.subr.mxu0 0.0
  %4984 = vmatpush2.msra.mxu0 0.0
  %4985 = vmatprep.subr.mxu0 0.0
  %4986 = vmatpush2.msra.mxu0 0.0
  %4987 = vmatprep.subr.mxu0 0.0
  %4988 = vmatpush2.msra.mxu0 0.0
  %4989 = vmatprep.subr.mxu0 0.0
  %4990 = vmatpush2.msra.mxu0 0.0
  %4991 = vmatprep.subr.mxu0 0.0
  %4992 = vmatpush2.msra.mxu0 0.0
  %4993 = vmatprep.subr.mxu0 0.0
  %4994 = vmatpush2.msra.mxu0 0.0
  %4995 = vmatprep.subr.mxu0 0.0
  %4996 = vmatpush2.msra.mxu0 0.0
  %4997 = vmatprep.subr.mxu0 0.0
  %4998 = vmatpush2.msra.mxu0 0.0
  %4999 = vmatprep.mubr.f32.mxu0 0.0
  %5000 = vmatmul.mubr.f32.gmra.mxu0 %v4933
  %v5001 = vpop.f32.mrf.mxu0
  %v5002 = vadd.f32 %v4931, %v5001
  %v5003 = vpop.f32.mrf.mxu0
  %5004 = vdwg.mxu0
  %v5005 = vld [vmem:[%s2] sm:$0xff]
  %v5006 = vld [vmem:[%s2 + $0x8] sm:$0xff]
  %v5007 = vld [vmem:[%s2 + $0x10] sm:$0xff]
  %v5008 = vld [vmem:[%s2 + $0x18] sm:$0xff]
  %v5009 = vld [vmem:[%s2 + $0x20] sm:$0x1]
  %v5010 = vlaneseq
  %v5011 = vshrl.u32 %v5010, 7
  %v5012 = vsub.s32 0, %v5011
  %v5013 = vrot.slane %v5009, %v5012
  %v5015 = vsel %vm148, %v4730, 0
  %v5018 = vsel %vm148, %v4731, 0
  %5020 = vmatprep.subr.mxu0 0.0
  %5021 = vmatpush1.msra.mxu0 0.0
  %5022 = vmatprep.subr.mxu0 0.0
  %5023 = vmatpush1.msra.mxu0 0.0
  %5024 = vmatprep.subr.mxu0 0.0
  %5025 = vmatpush1.msra.mxu0 0.0
  %5026 = vmatprep.subr.mxu0 0.0
  %5027 = vmatpush1.msra.mxu0 0.0
  %5028 = vmatprep.subr.mxu0 0.0
  %5029 = vmatpush1.msra.mxu0 0.0
  %5030 = vmatprep.subr.mxu0 0.0
  %5031 = vmatpush1.msra.mxu0 0.0
  %5032 = vmatprep.subr.mxu0 0.0
  %5033 = vmatpush1.msra.mxu0 0.0
  %5034 = vmatprep.subr.mxu0 0.0
  %5035 = vmatpush1.msra.mxu0 0.0
  %5036 = vmatprep.subr.mxu0 0.0
  %5037 = vmatpush1.msra.mxu0 0.0
  %5038 = vmatprep.subr.mxu0 0.0
  %5039 = vmatpush1.msra.mxu0 0.0
  %5040 = vmatprep.subr.mxu0 0.0
  %5041 = vmatpush1.msra.mxu0 0.0
  %5042 = vmatprep.subr.mxu0 0.0
  %5043 = vmatpush1.msra.mxu0 0.0
  %5044 = vmatprep.subr.mxu0 0.0
  %5045 = vmatpush1.msra.mxu0 %v5008
  %5046 = vmatprep.subr.mxu0 0.0
  %5047 = vmatpush1.msra.mxu0 %v5007
  %5048 = vmatprep.subr.mxu0 0.0
  %5049 = vmatpush1.msra.mxu0 %v5006
  %5050 = vmatprep.subr.mxu0 0.0
  %5051 = vmatpush1.msra.mxu0 %v5005
  %5052 = vmatprep.subr.mxu0 0.0
  %5053 = vmatpush2.msra.mxu0 0.0
  %5054 = vmatprep.subr.mxu0 0.0
  %5055 = vmatpush2.msra.mxu0 0.0
  %5056 = vmatprep.subr.mxu0 0.0
  %5057 = vmatpush2.msra.mxu0 0.0
  %5058 = vmatprep.subr.mxu0 0.0
  %5059 = vmatpush2.msra.mxu0 0.0
  %5060 = vmatprep.subr.mxu0 0.0
  %5061 = vmatpush2.msra.mxu0 0.0
  %5062 = vmatprep.subr.mxu0 0.0
  %5063 = vmatpush2.msra.mxu0 0.0
  %5064 = vmatprep.subr.mxu0 0.0
  %5065 = vmatpush2.msra.mxu0 0.0
  %5066 = vmatprep.subr.mxu0 0.0
  %5067 = vmatpush2.msra.mxu0 0.0
  %5068 = vmatprep.subr.mxu0 0.0
  %5069 = vmatpush2.msra.mxu0 0.0
  %5070 = vmatprep.subr.mxu0 0.0
  %5071 = vmatpush2.msra.mxu0 0.0
  %5072 = vmatprep.subr.mxu0 0.0
  %5073 = vmatpush2.msra.mxu0 0.0
  %5074 = vmatprep.subr.mxu0 0.0
  %5075 = vmatpush2.msra.mxu0 0.0
  %5076 = vmatprep.subr.mxu0 0.0
  %5077 = vmatpush2.msra.mxu0 0.0
  %5078 = vmatprep.subr.mxu0 0.0
  %5079 = vmatpush2.msra.mxu0 0.0
  %5080 = vmatprep.subr.mxu0 0.0
  %5081 = vmatpush2.msra.mxu0 0.0
  %5082 = vmatprep.subr.mxu0 0.0
  %5083 = vmatpush2.msra.mxu0 0.0
  %5084 = vmatprep.mubr.f32.mxu0 0.0
  %5085 = vmatmul.mubr.f32.gmra.mxu0 %v5015
  %v5086 = vpop.f32.mrf.mxu0
  %v5087 = vadd.f32 %v5013, %v5086
  %v5088 = vpop.f32.mrf.mxu0
  %5089 = vmatprep.mubr.f32.mxu0 0.0
  %5090 = vmatmul.mubr.f32.gmra.mxu0 %v5018
  %v5091 = vpop.f32.mrf.mxu0
  %v5092 = vadd.f32 %v5013, %v5091
  %v5093 = vpop.f32.mrf.mxu0
  %5094 = vdwg.mxu0
  %v5095 = vld [vmem:[%s4 + $0x1b0] sm:$0xff]
  %v5096 = vld [vmem:[%s4 + $0x1b8] sm:$0xff]
  %v5097 = vld [vmem:[%s4 + $0x1c0] sm:$0xff]
  %v5098 = vld [vmem:[%s4 + $0x1c8] sm:$0xff]
  %v5100 = vsel %vm233, %v5002, 0
  %v5103 = vsel %vm233, %v5087, 0
  %5105 = vmatprep.subr.mxu0 0.0
  %5106 = vmatpush1.xpose.msra.mxu0 0.0
  %5107 = vmatprep.subr.mxu0 0.0
  %5108 = vmatpush1.xpose.msra.mxu0 0.0
  %5109 = vmatprep.subr.mxu0 0.0
  %5110 = vmatpush1.xpose.msra.mxu0 0.0
  %5111 = vmatprep.subr.mxu0 0.0
  %5112 = vmatpush1.xpose.msra.mxu0 0.0
  %5113 = vmatprep.subr.mxu0 0.0
  %5114 = vmatpush1.xpose.msra.mxu0 0.0
  %5115 = vmatprep.subr.mxu0 0.0
  %5116 = vmatpush1.xpose.msra.mxu0 0.0
  %5117 = vmatprep.subr.mxu0 0.0
  %5118 = vmatpush1.xpose.msra.mxu0 0.0
  %5119 = vmatprep.subr.mxu0 0.0
  %5120 = vmatpush1.xpose.msra.mxu0 0.0
  %5121 = vmatprep.subr.mxu0 0.0
  %5122 = vmatpush1.xpose.msra.mxu0 0.0
  %5123 = vmatprep.subr.mxu0 0.0
  %5124 = vmatpush1.xpose.msra.mxu0 0.0
  %5125 = vmatprep.subr.mxu0 0.0
  %5126 = vmatpush1.xpose.msra.mxu0 0.0
  %5127 = vmatprep.subr.mxu0 0.0
  %5128 = vmatpush1.xpose.msra.mxu0 0.0
  %5129 = vmatprep.subr.mxu0 0.0
  %5130 = vmatpush1.xpose.msra.mxu0 0.0
  %5131 = vmatprep.subr.mxu0 0.0
  %5132 = vmatpush1.xpose.msra.mxu0 0.0
  %5133 = vmatprep.subr.mxu0 0.0
  %5134 = vmatpush1.xpose.msra.mxu0 0.0
  %5135 = vmatprep.subr.mxu0 0.0
  %5136 = vmatpush1.xpose.msra.mxu0 %v5103
  %5137 = vmatprep.subr.mxu0 0.0
  %5138 = vmatpush2.xpose.msra.mxu0 0.0
  %5139 = vmatprep.subr.mxu0 0.0
  %5140 = vmatpush2.xpose.msra.mxu0 0.0
  %5141 = vmatprep.subr.mxu0 0.0
  %5142 = vmatpush2.xpose.msra.mxu0 0.0
  %5143 = vmatprep.subr.mxu0 0.0
  %5144 = vmatpush2.xpose.msra.mxu0 0.0
  %5145 = vmatprep.subr.mxu0 0.0
  %5146 = vmatpush2.xpose.msra.mxu0 0.0
  %5147 = vmatprep.subr.mxu0 0.0
  %5148 = vmatpush2.xpose.msra.mxu0 0.0
  %5149 = vmatprep.subr.mxu0 0.0
  %5150 = vmatpush2.xpose.msra.mxu0 0.0
  %5151 = vmatprep.subr.mxu0 0.0
  %5152 = vmatpush2.xpose.msra.mxu0 0.0
  %5153 = vmatprep.subr.mxu0 0.0
  %5154 = vmatpush2.xpose.msra.mxu0 0.0
  %5155 = vmatprep.subr.mxu0 0.0
  %5156 = vmatpush2.xpose.msra.mxu0 0.0
  %5157 = vmatprep.subr.mxu0 0.0
  %5158 = vmatpush2.xpose.msra.mxu0 0.0
  %5159 = vmatprep.subr.mxu0 0.0
  %5160 = vmatpush2.xpose.msra.mxu0 0.0
  %5161 = vmatprep.subr.mxu0 0.0
  %5162 = vmatpush2.xpose.msra.mxu0 0.0
  %5163 = vmatprep.subr.mxu0 0.0
  %5164 = vmatpush2.xpose.msra.mxu0 0.0
  %5165 = vmatprep.subr.mxu0 0.0
  %5166 = vmatpush2.xpose.msra.mxu0 0.0
  %5167 = vmatprep.subr.mxu0 0.0
  %5168 = vmatpush2.xpose.msra.mxu0 0.0
  %5169 = vmatprep.mubr.f32.mxu0 0.0
  %5170 = vmatmul.mubr.f32.gmra.mxu0 %v5100
  %v5171 = vpop.f32.mrf.mxu0
  %v5172 = vadd.f32 0.0, %v5171
  %v5173 = vpop.f32.mrf.mxu0
  %5174 = vdwg.mxu0
  %vm5175 = vcmask 57344
  %v5176 = vsel %vm5175, %v5172, -inf
  %5177 = vmax.xlane.f32.xlu0 %v5176
  %v5178 = vpop.xlane.xlu0 %5177
  %v5179 = vsub.f32 %v5172, %v5178
  %v5180 = vmul.f32 %v5179, 1.442695
  %v5181 = vpow.pop %v5180
  %v5182 = vsel %vm5175, %v5181, 0.0
  %5183 = vadd.xlane.f32.xlu0 %v5182
  %v5184 = vpop.xlane.xlu0 %5183
  %v5185 = vrcp.pop %v5184
  %v5186 = vmul.f32 %v5181, %v5185
  %5187 = vrot.lane.b32.xlu0 %v5087, 96
  %v5188 = vpop.permute.xlu0 %5187
  %v5191 = vsel %vm233, %v5186, 0
  %5193 = vmatprep.subr.mxu0 0.0
  %5194 = vmatpush1.msra.mxu0 0.0
  %5195 = vmatprep.subr.mxu0 0.0
  %5196 = vmatpush1.msra.mxu0 0.0
  %5197 = vmatprep.subr.mxu0 0.0
  %5198 = vmatpush1.msra.mxu0 0.0
  %5199 = vmatprep.subr.mxu0 0.0
  %5200 = vmatpush1.msra.mxu0 0.0
  %5201 = vmatprep.subr.mxu0 0.0
  %5202 = vmatpush1.msra.mxu0 0.0
  %5203 = vmatprep.subr.mxu0 0.0
  %5204 = vmatpush1.msra.mxu0 0.0
  %5205 = vmatprep.subr.mxu0 0.0
  %5206 = vmatpush1.msra.mxu0 0.0
  %5207 = vmatprep.subr.mxu0 0.0
  %5208 = vmatpush1.msra.mxu0 0.0
  %5209 = vmatprep.subr.mxu0 0.0
  %5210 = vmatpush1.msra.mxu0 0.0
  %5211 = vmatprep.subr.mxu0 0.0
  %5212 = vmatpush1.msra.mxu0 0.0
  %5213 = vmatprep.subr.mxu0 0.0
  %5214 = vmatpush1.msra.mxu0 0.0
  %5215 = vmatprep.subr.mxu0 0.0
  %5216 = vmatpush1.msra.mxu0 0.0
  %5217 = vmatprep.subr.mxu0 0.0
  %5218 = vmatpush1.msra.mxu0 0.0
  %5219 = vmatprep.subr.mxu0 0.0
  %5220 = vmatpush1.msra.mxu0 0.0
  %5221 = vmatprep.subr.mxu0 0.0
  %5222 = vmatpush1.msra.mxu0 0.0
  %5223 = vmatprep.subr.mxu0 0.0
  %5224 = vmatpush1.msra.mxu0 %v5188
  %5225 = vmatprep.subr.mxu0 0.0
  %5226 = vmatpush2.msra.mxu0 0.0
  %5227 = vmatprep.subr.mxu0 0.0
  %5228 = vmatpush2.msra.mxu0 0.0
  %5229 = vmatprep.subr.mxu0 0.0
  %5230 = vmatpush2.msra.mxu0 0.0
  %5231 = vmatprep.subr.mxu0 0.0
  %5232 = vmatpush2.msra.mxu0 0.0
  %5233 = vmatprep.subr.mxu0 0.0
  %5234 = vmatpush2.msra.mxu0 0.0
  %5235 = vmatprep.subr.mxu0 0.0
  %5236 = vmatpush2.msra.mxu0 0.0
  %5237 = vmatprep.subr.mxu0 0.0
  %5238 = vmatpush2.msra.mxu0 0.0
  %5239 = vmatprep.subr.mxu0 0.0
  %5240 = vmatpush2.msra.mxu0 0.0
  %5241 = vmatprep.subr.mxu0 0.0
  %5242 = vmatpush2.msra.mxu0 0.0
  %5243 = vmatprep.subr.mxu0 0.0
  %5244 = vmatpush2.msra.mxu0 0.0
  %5245 = vmatprep.subr.mxu0 0.0
  %5246 = vmatpush2.msra.mxu0 0.0
  %5247 = vmatprep.subr.mxu0 0.0
  %5248 = vmatpush2.msra.mxu0 0.0
  %5249 = vmatprep.subr.mxu0 0.0
  %5250 = vmatpush2.msra.mxu0 0.0
  %5251 = vmatprep.subr.mxu0 0.0
  %5252 = vmatpush2.msra.mxu0 0.0
  %5253 = vmatprep.subr.mxu0 0.0
  %5254 = vmatpush2.msra.mxu0 0.0
  %5255 = vmatprep.subr.mxu0 0.0
  %5256 = vmatpush2.msra.mxu0 0.0
  %5257 = vmatprep.mubr.f32.mxu0 0.0
  %5258 = vmatmul.mubr.f32.gmra.mxu0 %v5191
  %v5259 = vpop.f32.mrf.mxu0
  %v5260 = vadd.f32 0.0, %v5259
  %v5261 = vpop.f32.mrf.mxu0
  %5262 = vdwg.mxu0
  %5263 = vrot.lane.b32.xlu0 %v5002, 120
  %v5264 = vpop.permute.xlu0 %5263
  %5265 = vrot.lane.b32.xlu0 %v5087, 120
  %v5266 = vpop.permute.xlu0 %5265
  %v5267 = vsel %vm233, %v5264, 0
  %v5269 = vsel %vm233, %v5266, 0
  %5271 = vmatprep.subr.mxu0 0.0
  %5272 = vmatpush1.xpose.msra.mxu0 0.0
  %5273 = vmatprep.subr.mxu0 0.0
  %5274 = vmatpush1.xpose.msra.mxu0 0.0
  %5275 = vmatprep.subr.mxu0 0.0
  %5276 = vmatpush1.xpose.msra.mxu0 0.0
  %5277 = vmatprep.subr.mxu0 0.0
  %5278 = vmatpush1.xpose.msra.mxu0 0.0
  %5279 = vmatprep.subr.mxu0 0.0
  %5280 = vmatpush1.xpose.msra.mxu0 0.0
  %5281 = vmatprep.subr.mxu0 0.0
  %5282 = vmatpush1.xpose.msra.mxu0 0.0
  %5283 = vmatprep.subr.mxu0 0.0
  %5284 = vmatpush1.xpose.msra.mxu0 0.0
  %5285 = vmatprep.subr.mxu0 0.0
  %5286 = vmatpush1.xpose.msra.mxu0 0.0
  %5287 = vmatprep.subr.mxu0 0.0
  %5288 = vmatpush1.xpose.msra.mxu0 0.0
  %5289 = vmatprep.subr.mxu0 0.0
  %5290 = vmatpush1.xpose.msra.mxu0 0.0
  %5291 = vmatprep.subr.mxu0 0.0
  %5292 = vmatpush1.xpose.msra.mxu0 0.0
  %5293 = vmatprep.subr.mxu0 0.0
  %5294 = vmatpush1.xpose.msra.mxu0 0.0
  %5295 = vmatprep.subr.mxu0 0.0
  %5296 = vmatpush1.xpose.msra.mxu0 0.0
  %5297 = vmatprep.subr.mxu0 0.0
  %5298 = vmatpush1.xpose.msra.mxu0 0.0
  %5299 = vmatprep.subr.mxu0 0.0
  %5300 = vmatpush1.xpose.msra.mxu0 0.0
  %5301 = vmatprep.subr.mxu0 0.0
  %5302 = vmatpush1.xpose.msra.mxu0 %v5269
  %5303 = vmatprep.subr.mxu0 0.0
  %5304 = vmatpush2.xpose.msra.mxu0 0.0
  %5305 = vmatprep.subr.mxu0 0.0
  %5306 = vmatpush2.xpose.msra.mxu0 0.0
  %5307 = vmatprep.subr.mxu0 0.0
  %5308 = vmatpush2.xpose.msra.mxu0 0.0
  %5309 = vmatprep.subr.mxu0 0.0
  %5310 = vmatpush2.xpose.msra.mxu0 0.0
  %5311 = vmatprep.subr.mxu0 0.0
  %5312 = vmatpush2.xpose.msra.mxu0 0.0
  %5313 = vmatprep.subr.mxu0 0.0
  %5314 = vmatpush2.xpose.msra.mxu0 0.0
  %5315 = vmatprep.subr.mxu0 0.0
  %5316 = vmatpush2.xpose.msra.mxu0 0.0
  %5317 = vmatprep.subr.mxu0 0.0
  %5318 = vmatpush2.xpose.msra.mxu0 0.0
  %5319 = vmatprep.subr.mxu0 0.0
  %5320 = vmatpush2.xpose.msra.mxu0 0.0
  %5321 = vmatprep.subr.mxu0 0.0
  %5322 = vmatpush2.xpose.msra.mxu0 0.0
  %5323 = vmatprep.subr.mxu0 0.0
  %5324 = vmatpush2.xpose.msra.mxu0 0.0
  %5325 = vmatprep.subr.mxu0 0.0
  %5326 = vmatpush2.xpose.msra.mxu0 0.0
  %5327 = vmatprep.subr.mxu0 0.0
  %5328 = vmatpush2.xpose.msra.mxu0 0.0
  %5329 = vmatprep.subr.mxu0 0.0
  %5330 = vmatpush2.xpose.msra.mxu0 0.0
  %5331 = vmatprep.subr.mxu0 0.0
  %5332 = vmatpush2.xpose.msra.mxu0 0.0
  %5333 = vmatprep.subr.mxu0 0.0
  %5334 = vmatpush2.xpose.msra.mxu0 0.0
  %5335 = vmatprep.mubr.f32.mxu0 0.0
  %5336 = vmatmul.mubr.f32.gmra.mxu0 %v5267
  %v5337 = vpop.f32.mrf.mxu0
  %v5338 = vadd.f32 0.0, %v5337
  %v5339 = vpop.f32.mrf.mxu0
  %5340 = vdwg.mxu0
  %v5341 = vsel %vm5175, %v5338, -inf
  %5342 = vmax.xlane.f32.xlu0 %v5341
  %v5343 = vpop.xlane.xlu0 %5342
  %v5344 = vsub.f32 %v5338, %v5343
  %v5345 = vmul.f32 %v5344, 1.442695
  %v5346 = vpow.pop %v5345
  %v5347 = vsel %vm5175, %v5346, 0.0
  %5348 = vadd.xlane.f32.xlu0 %v5347
  %v5349 = vpop.xlane.xlu0 %5348
  %v5350 = vrcp.pop %v5349
  %v5351 = vmul.f32 %v5346, %v5350
  %5352 = vrot.lane.b32.xlu0 %v5087, 88
  %v5353 = vpop.permute.xlu0 %5352
  %v5356 = vsel %vm233, %v5351, 0
  %5358 = vmatprep.subr.mxu0 0.0
  %5359 = vmatpush1.msra.mxu0 0.0
  %5360 = vmatprep.subr.mxu0 0.0
  %5361 = vmatpush1.msra.mxu0 0.0
  %5362 = vmatprep.subr.mxu0 0.0
  %5363 = vmatpush1.msra.mxu0 0.0
  %5364 = vmatprep.subr.mxu0 0.0
  %5365 = vmatpush1.msra.mxu0 0.0
  %5366 = vmatprep.subr.mxu0 0.0
  %5367 = vmatpush1.msra.mxu0 0.0
  %5368 = vmatprep.subr.mxu0 0.0
  %5369 = vmatpush1.msra.mxu0 0.0
  %5370 = vmatprep.subr.mxu0 0.0
  %5371 = vmatpush1.msra.mxu0 0.0
  %5372 = vmatprep.subr.mxu0 0.0
  %5373 = vmatpush1.msra.mxu0 0.0
  %5374 = vmatprep.subr.mxu0 0.0
  %5375 = vmatpush1.msra.mxu0 0.0
  %5376 = vmatprep.subr.mxu0 0.0
  %5377 = vmatpush1.msra.mxu0 0.0
  %5378 = vmatprep.subr.mxu0 0.0
  %5379 = vmatpush1.msra.mxu0 0.0
  %5380 = vmatprep.subr.mxu0 0.0
  %5381 = vmatpush1.msra.mxu0 0.0
  %5382 = vmatprep.subr.mxu0 0.0
  %5383 = vmatpush1.msra.mxu0 0.0
  %5384 = vmatprep.subr.mxu0 0.0
  %5385 = vmatpush1.msra.mxu0 0.0
  %5386 = vmatprep.subr.mxu0 0.0
  %5387 = vmatpush1.msra.mxu0 0.0
  %5388 = vmatprep.subr.mxu0 0.0
  %5389 = vmatpush1.msra.mxu0 %v5353
  %5390 = vmatprep.subr.mxu0 0.0
  %5391 = vmatpush2.msra.mxu0 0.0
  %5392 = vmatprep.subr.mxu0 0.0
  %5393 = vmatpush2.msra.mxu0 0.0
  %5394 = vmatprep.subr.mxu0 0.0
  %5395 = vmatpush2.msra.mxu0 0.0
  %5396 = vmatprep.subr.mxu0 0.0
  %5397 = vmatpush2.msra.mxu0 0.0
  %5398 = vmatprep.subr.mxu0 0.0
  %5399 = vmatpush2.msra.mxu0 0.0
  %5400 = vmatprep.subr.mxu0 0.0
  %5401 = vmatpush2.msra.mxu0 0.0
  %5402 = vmatprep.subr.mxu0 0.0
  %5403 = vmatpush2.msra.mxu0 0.0
  %5404 = vmatprep.subr.mxu0 0.0
  %5405 = vmatpush2.msra.mxu0 0.0
  %5406 = vmatprep.subr.mxu0 0.0
  %5407 = vmatpush2.msra.mxu0 0.0
  %5408 = vmatprep.subr.mxu0 0.0
  %5409 = vmatpush2.msra.mxu0 0.0
  %5410 = vmatprep.subr.mxu0 0.0
  %5411 = vmatpush2.msra.mxu0 0.0
  %5412 = vmatprep.subr.mxu0 0.0
  %5413 = vmatpush2.msra.mxu0 0.0
  %5414 = vmatprep.subr.mxu0 0.0
  %5415 = vmatpush2.msra.mxu0 0.0
  %5416 = vmatprep.subr.mxu0 0.0
  %5417 = vmatpush2.msra.mxu0 0.0
  %5418 = vmatprep.subr.mxu0 0.0
  %5419 = vmatpush2.msra.mxu0 0.0
  %5420 = vmatprep.subr.mxu0 0.0
  %5421 = vmatpush2.msra.mxu0 0.0
  %5422 = vmatprep.mubr.f32.mxu0 0.0
  %5423 = vmatmul.mubr.f32.gmra.mxu0 %v5356
  %v5424 = vpop.f32.mrf.mxu0
  %v5425 = vadd.f32 0.0, %v5424
  %v5426 = vpop.f32.mrf.mxu0
  %5427 = vdwg.mxu0
  %v5429 = vsel %vm233, %v5425, 0
  %5431 = vmatprep.subr.mxu0 0.0
  %5432 = vmatpush1.msra.mxu0 0.0
  %5433 = vmatprep.subr.mxu0 0.0
  %5434 = vmatpush1.msra.mxu0 0.0
  %5435 = vmatprep.subr.mxu0 0.0
  %5436 = vmatpush1.msra.mxu0 0.0
  %5437 = vmatprep.subr.mxu0 0.0
  %5438 = vmatpush1.msra.mxu0 0.0
  %5439 = vmatprep.subr.mxu0 0.0
  %5440 = vmatpush1.msra.mxu0 0.0
  %5441 = vmatprep.subr.mxu0 0.0
  %5442 = vmatpush1.msra.mxu0 0.0
  %5443 = vmatprep.subr.mxu0 0.0
  %5444 = vmatpush1.msra.mxu0 0.0
  %5445 = vmatprep.subr.mxu0 0.0
  %5446 = vmatpush1.msra.mxu0 0.0
  %5447 = vmatprep.subr.mxu0 0.0
  %5448 = vmatpush1.msra.mxu0 0.0
  %5449 = vmatprep.subr.mxu0 0.0
  %5450 = vmatpush1.msra.mxu0 0.0
  %5451 = vmatprep.subr.mxu0 0.0
  %5452 = vmatpush1.msra.mxu0 0.0
  %5453 = vmatprep.subr.mxu0 0.0
  %5454 = vmatpush1.msra.mxu0 0.0
  %5455 = vmatprep.subr.mxu0 0.0
  %5456 = vmatpush1.msra.mxu0 0.0
  %5457 = vmatprep.subr.mxu0 0.0
  %5458 = vmatpush1.msra.mxu0 0.0
  %5459 = vmatprep.subr.mxu0 0.0
  %5460 = vmatpush1.msra.mxu0 0.0
  %5461 = vmatprep.subr.mxu0 0.0
  %5462 = vmatpush1.msra.mxu0 %v5096
  %5463 = vmatprep.subr.mxu0 0.0
  %5464 = vmatpush2.msra.mxu0 0.0
  %5465 = vmatprep.subr.mxu0 0.0
  %5466 = vmatpush2.msra.mxu0 0.0
  %5467 = vmatprep.subr.mxu0 0.0
  %5468 = vmatpush2.msra.mxu0 0.0
  %5469 = vmatprep.subr.mxu0 0.0
  %5470 = vmatpush2.msra.mxu0 0.0
  %5471 = vmatprep.subr.mxu0 0.0
  %5472 = vmatpush2.msra.mxu0 0.0
  %5473 = vmatprep.subr.mxu0 0.0
  %5474 = vmatpush2.msra.mxu0 0.0
  %5475 = vmatprep.subr.mxu0 0.0
  %5476 = vmatpush2.msra.mxu0 0.0
  %5477 = vmatprep.subr.mxu0 0.0
  %5478 = vmatpush2.msra.mxu0 0.0
  %5479 = vmatprep.subr.mxu0 0.0
  %5480 = vmatpush2.msra.mxu0 0.0
  %5481 = vmatprep.subr.mxu0 0.0
  %5482 = vmatpush2.msra.mxu0 0.0
  %5483 = vmatprep.subr.mxu0 0.0
  %5484 = vmatpush2.msra.mxu0 0.0
  %5485 = vmatprep.subr.mxu0 0.0
  %5486 = vmatpush2.msra.mxu0 0.0
  %5487 = vmatprep.subr.mxu0 0.0
  %5488 = vmatpush2.msra.mxu0 0.0
  %5489 = vmatprep.subr.mxu0 0.0
  %5490 = vmatpush2.msra.mxu0 0.0
  %5491 = vmatprep.subr.mxu0 0.0
  %5492 = vmatpush2.msra.mxu0 0.0
  %5493 = vmatprep.subr.mxu0 0.0
  %5494 = vmatpush2.msra.mxu0 0.0
  %5495 = vmatprep.mubr.f32.mxu0 0.0
  %5496 = vmatmul.mubr.f32.gmra.mxu0 %v5429
  %v5497 = vpop.f32.mrf.mxu0
  %v5498 = vadd.f32 0.0, %v5497
  %v5499 = vpop.f32.mrf.mxu0
  %5500 = vdwg.mxu0
  %v5502 = vsel %vm233, %v5260, 0
  %5504 = vmatprep.subr.mxu0 0.0
  %5505 = vmatpush1.msra.mxu0 0.0
  %5506 = vmatprep.subr.mxu0 0.0
  %5507 = vmatpush1.msra.mxu0 0.0
  %5508 = vmatprep.subr.mxu0 0.0
  %5509 = vmatpush1.msra.mxu0 0.0
  %5510 = vmatprep.subr.mxu0 0.0
  %5511 = vmatpush1.msra.mxu0 0.0
  %5512 = vmatprep.subr.mxu0 0.0
  %5513 = vmatpush1.msra.mxu0 0.0
  %5514 = vmatprep.subr.mxu0 0.0
  %5515 = vmatpush1.msra.mxu0 0.0
  %5516 = vmatprep.subr.mxu0 0.0
  %5517 = vmatpush1.msra.mxu0 0.0
  %5518 = vmatprep.subr.mxu0 0.0
  %5519 = vmatpush1.msra.mxu0 0.0
  %5520 = vmatprep.subr.mxu0 0.0
  %5521 = vmatpush1.msra.mxu0 0.0
  %5522 = vmatprep.subr.mxu0 0.0
  %5523 = vmatpush1.msra.mxu0 0.0
  %5524 = vmatprep.subr.mxu0 0.0
  %5525 = vmatpush1.msra.mxu0 0.0
  %5526 = vmatprep.subr.mxu0 0.0
  %5527 = vmatpush1.msra.mxu0 0.0
  %5528 = vmatprep.subr.mxu0 0.0
  %5529 = vmatpush1.msra.mxu0 0.0
  %5530 = vmatprep.subr.mxu0 0.0
  %5531 = vmatpush1.msra.mxu0 0.0
  %5532 = vmatprep.subr.mxu0 0.0
  %5533 = vmatpush1.msra.mxu0 0.0
  %5534 = vmatprep.subr.mxu0 0.0
  %5535 = vmatpush1.msra.mxu0 %v5095
  %5536 = vmatprep.subr.mxu0 0.0
  %5537 = vmatpush2.msra.mxu0 0.0
  %5538 = vmatprep.subr.mxu0 0.0
  %5539 = vmatpush2.msra.mxu0 0.0
  %5540 = vmatprep.subr.mxu0 0.0
  %5541 = vmatpush2.msra.mxu0 0.0
  %5542 = vmatprep.subr.mxu0 0.0
  %5543 = vmatpush2.msra.mxu0 0.0
  %5544 = vmatprep.subr.mxu0 0.0
  %5545 = vmatpush2.msra.mxu0 0.0
  %5546 = vmatprep.subr.mxu0 0.0
  %5547 = vmatpush2.msra.mxu0 0.0
  %5548 = vmatprep.subr.mxu0 0.0
  %5549 = vmatpush2.msra.mxu0 0.0
  %5550 = vmatprep.subr.mxu0 0.0
  %5551 = vmatpush2.msra.mxu0 0.0
  %5552 = vmatprep.subr.mxu0 0.0
  %5553 = vmatpush2.msra.mxu0 0.0
  %5554 = vmatprep.subr.mxu0 0.0
  %5555 = vmatpush2.msra.mxu0 0.0
  %5556 = vmatprep.subr.mxu0 0.0
  %5557 = vmatpush2.msra.mxu0 0.0
  %5558 = vmatprep.subr.mxu0 0.0
  %5559 = vmatpush2.msra.mxu0 0.0
  %5560 = vmatprep.subr.mxu0 0.0
  %5561 = vmatpush2.msra.mxu0 0.0
  %5562 = vmatprep.subr.mxu0 0.0
  %5563 = vmatpush2.msra.mxu0 0.0
  %5564 = vmatprep.subr.mxu0 0.0
  %5565 = vmatpush2.msra.mxu0 0.0
  %5566 = vmatprep.subr.mxu0 0.0
  %5567 = vmatpush2.msra.mxu0 0.0
  %5568 = vmatprep.mubr.f32.mxu0 0.0
  %5569 = vmatmul.mubr.f32.gmra.mxu0 %v5502
  %v5570 = vpop.f32.mrf.mxu0
  %v5571 = vadd.f32 %v5498, %v5570
  %v5572 = vpop.f32.mrf.mxu0
  %5573 = vdwg.mxu0
  %5574 = vrot.lane.b32.xlu0 %v5002, 112
  %v5575 = vpop.permute.xlu0 %5574
  %5576 = vrot.lane.b32.xlu0 %v5087, 112
  %v5577 = vpop.permute.xlu0 %5576
  %v5578 = vsel %vm233, %v5575, 0
  %v5580 = vsel %vm233, %v5577, 0
  %5582 = vmatprep.subr.mxu0 0.0
  %5583 = vmatpush1.xpose.msra.mxu0 0.0
  %5584 = vmatprep.subr.mxu0 0.0
  %5585 = vmatpush1.xpose.msra.mxu0 0.0
  %5586 = vmatprep.subr.mxu0 0.0
  %5587 = vmatpush1.xpose.msra.mxu0 0.0
  %5588 = vmatprep.subr.mxu0 0.0
  %5589 = vmatpush1.xpose.msra.mxu0 0.0
  %5590 = vmatprep.subr.mxu0 0.0
  %5591 = vmatpush1.xpose.msra.mxu0 0.0
  %5592 = vmatprep.subr.mxu0 0.0
  %5593 = vmatpush1.xpose.msra.mxu0 0.0
  %5594 = vmatprep.subr.mxu0 0.0
  %5595 = vmatpush1.xpose.msra.mxu0 0.0
  %5596 = vmatprep.subr.mxu0 0.0
  %5597 = vmatpush1.xpose.msra.mxu0 0.0
  %5598 = vmatprep.subr.mxu0 0.0
  %5599 = vmatpush1.xpose.msra.mxu0 0.0
  %5600 = vmatprep.subr.mxu0 0.0
  %5601 = vmatpush1.xpose.msra.mxu0 0.0
  %5602 = vmatprep.subr.mxu0 0.0
  %5603 = vmatpush1.xpose.msra.mxu0 0.0
  %5604 = vmatprep.subr.mxu0 0.0
  %5605 = vmatpush1.xpose.msra.mxu0 0.0
  %5606 = vmatprep.subr.mxu0 0.0
  %5607 = vmatpush1.xpose.msra.mxu0 0.0
  %5608 = vmatprep.subr.mxu0 0.0
  %5609 = vmatpush1.xpose.msra.mxu0 0.0
  %5610 = vmatprep.subr.mxu0 0.0
  %5611 = vmatpush1.xpose.msra.mxu0 0.0
  %5612 = vmatprep.subr.mxu0 0.0
  %5613 = vmatpush1.xpose.msra.mxu0 %v5580
  %5614 = vmatprep.subr.mxu0 0.0
  %5615 = vmatpush2.xpose.msra.mxu0 0.0
  %5616 = vmatprep.subr.mxu0 0.0
  %5617 = vmatpush2.xpose.msra.mxu0 0.0
  %5618 = vmatprep.subr.mxu0 0.0
  %5619 = vmatpush2.xpose.msra.mxu0 0.0
  %5620 = vmatprep.subr.mxu0 0.0
  %5621 = vmatpush2.xpose.msra.mxu0 0.0
  %5622 = vmatprep.subr.mxu0 0.0
  %5623 = vmatpush2.xpose.msra.mxu0 0.0
  %5624 = vmatprep.subr.mxu0 0.0
  %5625 = vmatpush2.xpose.msra.mxu0 0.0
  %5626 = vmatprep.subr.mxu0 0.0
  %5627 = vmatpush2.xpose.msra.mxu0 0.0
  %5628 = vmatprep.subr.mxu0 0.0
  %5629 = vmatpush2.xpose.msra.mxu0 0.0
  %5630 = vmatprep.subr.mxu0 0.0
  %5631 = vmatpush2.xpose.msra.mxu0 0.0
  %5632 = vmatprep.subr.mxu0 0.0
  %5633 = vmatpush2.xpose.msra.mxu0 0.0
  %5634 = vmatprep.subr.mxu0 0.0
  %5635 = vmatpush2.xpose.msra.mxu0 0.0
  %5636 = vmatprep.subr.mxu0 0.0
  %5637 = vmatpush2.xpose.msra.mxu0 0.0
  %5638 = vmatprep.subr.mxu0 0.0
  %5639 = vmatpush2.xpose.msra.mxu0 0.0
  %5640 = vmatprep.subr.mxu0 0.0
  %5641 = vmatpush2.xpose.msra.mxu0 0.0
  %5642 = vmatprep.subr.mxu0 0.0
  %5643 = vmatpush2.xpose.msra.mxu0 0.0
  %5644 = vmatprep.subr.mxu0 0.0
  %5645 = vmatpush2.xpose.msra.mxu0 0.0
  %5646 = vmatprep.mubr.f32.mxu0 0.0
  %5647 = vmatmul.mubr.f32.gmra.mxu0 %v5578
  %v5648 = vpop.f32.mrf.mxu0
  %v5649 = vadd.f32 0.0, %v5648
  %v5650 = vpop.f32.mrf.mxu0
  %5651 = vdwg.mxu0
  %v5652 = vsel %vm5175, %v5649, -inf
  %5653 = vmax.xlane.f32.xlu0 %v5652
  %v5654 = vpop.xlane.xlu0 %5653
  %v5655 = vsub.f32 %v5649, %v5654
  %v5656 = vmul.f32 %v5655, 1.442695
  %v5657 = vpow.pop %v5656
  %v5658 = vsel %vm5175, %v5657, 0.0
  %5659 = vadd.xlane.f32.xlu0 %v5658
  %v5660 = vpop.xlane.xlu0 %5659
  %v5661 = vrcp.pop %v5660
  %v5662 = vmul.f32 %v5657, %v5661
  %5663 = vrot.lane.b32.xlu0 %v5087, 80
  %v5664 = vpop.permute.xlu0 %5663
  %v5667 = vsel %vm233, %v5662, 0
  %5669 = vmatprep.subr.mxu0 0.0
  %5670 = vmatpush1.msra.mxu0 0.0
  %5671 = vmatprep.subr.mxu0 0.0
  %5672 = vmatpush1.msra.mxu0 0.0
  %5673 = vmatprep.subr.mxu0 0.0
  %5674 = vmatpush1.msra.mxu0 0.0
  %5675 = vmatprep.subr.mxu0 0.0
  %5676 = vmatpush1.msra.mxu0 0.0
  %5677 = vmatprep.subr.mxu0 0.0
  %5678 = vmatpush1.msra.mxu0 0.0
  %5679 = vmatprep.subr.mxu0 0.0
  %5680 = vmatpush1.msra.mxu0 0.0
  %5681 = vmatprep.subr.mxu0 0.0
  %5682 = vmatpush1.msra.mxu0 0.0
  %5683 = vmatprep.subr.mxu0 0.0
  %5684 = vmatpush1.msra.mxu0 0.0
  %5685 = vmatprep.subr.mxu0 0.0
  %5686 = vmatpush1.msra.mxu0 0.0
  %5687 = vmatprep.subr.mxu0 0.0
  %5688 = vmatpush1.msra.mxu0 0.0
  %5689 = vmatprep.subr.mxu0 0.0
  %5690 = vmatpush1.msra.mxu0 0.0
  %5691 = vmatprep.subr.mxu0 0.0
  %5692 = vmatpush1.msra.mxu0 0.0
  %5693 = vmatprep.subr.mxu0 0.0
  %5694 = vmatpush1.msra.mxu0 0.0
  %5695 = vmatprep.subr.mxu0 0.0
  %5696 = vmatpush1.msra.mxu0 0.0
  %5697 = vmatprep.subr.mxu0 0.0
  %5698 = vmatpush1.msra.mxu0 0.0
  %5699 = vmatprep.subr.mxu0 0.0
  %5700 = vmatpush1.msra.mxu0 %v5664
  %5701 = vmatprep.subr.mxu0 0.0
  %5702 = vmatpush2.msra.mxu0 0.0
  %5703 = vmatprep.subr.mxu0 0.0
  %5704 = vmatpush2.msra.mxu0 0.0
  %5705 = vmatprep.subr.mxu0 0.0
  %5706 = vmatpush2.msra.mxu0 0.0
  %5707 = vmatprep.subr.mxu0 0.0
  %5708 = vmatpush2.msra.mxu0 0.0
  %5709 = vmatprep.subr.mxu0 0.0
  %5710 = vmatpush2.msra.mxu0 0.0
  %5711 = vmatprep.subr.mxu0 0.0
  %5712 = vmatpush2.msra.mxu0 0.0
  %5713 = vmatprep.subr.mxu0 0.0
  %5714 = vmatpush2.msra.mxu0 0.0
  %5715 = vmatprep.subr.mxu0 0.0
  %5716 = vmatpush2.msra.mxu0 0.0
  %5717 = vmatprep.subr.mxu0 0.0
  %5718 = vmatpush2.msra.mxu0 0.0
  %5719 = vmatprep.subr.mxu0 0.0
  %5720 = vmatpush2.msra.mxu0 0.0
  %5721 = vmatprep.subr.mxu0 0.0
  %5722 = vmatpush2.msra.mxu0 0.0
  %5723 = vmatprep.subr.mxu0 0.0
  %5724 = vmatpush2.msra.mxu0 0.0
  %5725 = vmatprep.subr.mxu0 0.0
  %5726 = vmatpush2.msra.mxu0 0.0
  %5727 = vmatprep.subr.mxu0 0.0
  %5728 = vmatpush2.msra.mxu0 0.0
  %5729 = vmatprep.subr.mxu0 0.0
  %5730 = vmatpush2.msra.mxu0 0.0
  %5731 = vmatprep.subr.mxu0 0.0
  %5732 = vmatpush2.msra.mxu0 0.0
  %5733 = vmatprep.mubr.f32.mxu0 0.0
  %5734 = vmatmul.mubr.f32.gmra.mxu0 %v5667
  %v5735 = vpop.f32.mrf.mxu0
  %v5736 = vadd.f32 0.0, %v5735
  %v5737 = vpop.f32.mrf.mxu0
  %5738 = vdwg.mxu0
  %v5740 = vsel %vm233, %v5736, 0
  %5742 = vmatprep.subr.mxu0 0.0
  %5743 = vmatpush1.msra.mxu0 0.0
  %5744 = vmatprep.subr.mxu0 0.0
  %5745 = vmatpush1.msra.mxu0 0.0
  %5746 = vmatprep.subr.mxu0 0.0
  %5747 = vmatpush1.msra.mxu0 0.0
  %5748 = vmatprep.subr.mxu0 0.0
  %5749 = vmatpush1.msra.mxu0 0.0
  %5750 = vmatprep.subr.mxu0 0.0
  %5751 = vmatpush1.msra.mxu0 0.0
  %5752 = vmatprep.subr.mxu0 0.0
  %5753 = vmatpush1.msra.mxu0 0.0
  %5754 = vmatprep.subr.mxu0 0.0
  %5755 = vmatpush1.msra.mxu0 0.0
  %5756 = vmatprep.subr.mxu0 0.0
  %5757 = vmatpush1.msra.mxu0 0.0
  %5758 = vmatprep.subr.mxu0 0.0
  %5759 = vmatpush1.msra.mxu0 0.0
  %5760 = vmatprep.subr.mxu0 0.0
  %5761 = vmatpush1.msra.mxu0 0.0
  %5762 = vmatprep.subr.mxu0 0.0
  %5763 = vmatpush1.msra.mxu0 0.0
  %5764 = vmatprep.subr.mxu0 0.0
  %5765 = vmatpush1.msra.mxu0 0.0
  %5766 = vmatprep.subr.mxu0 0.0
  %5767 = vmatpush1.msra.mxu0 0.0
  %5768 = vmatprep.subr.mxu0 0.0
  %5769 = vmatpush1.msra.mxu0 0.0
  %5770 = vmatprep.subr.mxu0 0.0
  %5771 = vmatpush1.msra.mxu0 0.0
  %5772 = vmatprep.subr.mxu0 0.0
  %5773 = vmatpush1.msra.mxu0 %v5097
  %5774 = vmatprep.subr.mxu0 0.0
  %5775 = vmatpush2.msra.mxu0 0.0
  %5776 = vmatprep.subr.mxu0 0.0
  %5777 = vmatpush2.msra.mxu0 0.0
  %5778 = vmatprep.subr.mxu0 0.0
  %5779 = vmatpush2.msra.mxu0 0.0
  %5780 = vmatprep.subr.mxu0 0.0
  %5781 = vmatpush2.msra.mxu0 0.0
  %5782 = vmatprep.subr.mxu0 0.0
  %5783 = vmatpush2.msra.mxu0 0.0
  %5784 = vmatprep.subr.mxu0 0.0
  %5785 = vmatpush2.msra.mxu0 0.0
  %5786 = vmatprep.subr.mxu0 0.0
  %5787 = vmatpush2.msra.mxu0 0.0
  %5788 = vmatprep.subr.mxu0 0.0
  %5789 = vmatpush2.msra.mxu0 0.0
  %5790 = vmatprep.subr.mxu0 0.0
  %5791 = vmatpush2.msra.mxu0 0.0
  %5792 = vmatprep.subr.mxu0 0.0
  %5793 = vmatpush2.msra.mxu0 0.0
  %5794 = vmatprep.subr.mxu0 0.0
  %5795 = vmatpush2.msra.mxu0 0.0
  %5796 = vmatprep.subr.mxu0 0.0
  %5797 = vmatpush2.msra.mxu0 0.0
  %5798 = vmatprep.subr.mxu0 0.0
  %5799 = vmatpush2.msra.mxu0 0.0
  %5800 = vmatprep.subr.mxu0 0.0
  %5801 = vmatpush2.msra.mxu0 0.0
  %5802 = vmatprep.subr.mxu0 0.0
  %5803 = vmatpush2.msra.mxu0 0.0
  %5804 = vmatprep.subr.mxu0 0.0
  %5805 = vmatpush2.msra.mxu0 0.0
  %5806 = vmatprep.mubr.f32.mxu0 0.0
  %5807 = vmatmul.mubr.f32.gmra.mxu0 %v5740
  %v5808 = vpop.f32.mrf.mxu0
  %v5809 = vadd.f32 0.0, %v5808
  %v5810 = vpop.f32.mrf.mxu0
  %5811 = vdwg.mxu0
  %v5812 = vadd.f32 %v5571, %v5809
  %5813 = vrot.lane.b32.xlu0 %v5002, 104
  %v5814 = vpop.permute.xlu0 %5813
  %5815 = vrot.lane.b32.xlu0 %v5087, 104
  %v5816 = vpop.permute.xlu0 %5815
  %v5817 = vsel %vm233, %v5814, 0
  %v5819 = vsel %vm233, %v5816, 0
  %5821 = vmatprep.subr.mxu0 0.0
  %5822 = vmatpush1.xpose.msra.mxu0 0.0
  %5823 = vmatprep.subr.mxu0 0.0
  %5824 = vmatpush1.xpose.msra.mxu0 0.0
  %5825 = vmatprep.subr.mxu0 0.0
  %5826 = vmatpush1.xpose.msra.mxu0 0.0
  %5827 = vmatprep.subr.mxu0 0.0
  %5828 = vmatpush1.xpose.msra.mxu0 0.0
  %5829 = vmatprep.subr.mxu0 0.0
  %5830 = vmatpush1.xpose.msra.mxu0 0.0
  %5831 = vmatprep.subr.mxu0 0.0
  %5832 = vmatpush1.xpose.msra.mxu0 0.0
  %5833 = vmatprep.subr.mxu0 0.0
  %5834 = vmatpush1.xpose.msra.mxu0 0.0
  %5835 = vmatprep.subr.mxu0 0.0
  %5836 = vmatpush1.xpose.msra.mxu0 0.0
  %5837 = vmatprep.subr.mxu0 0.0
  %5838 = vmatpush1.xpose.msra.mxu0 0.0
  %5839 = vmatprep.subr.mxu0 0.0
  %5840 = vmatpush1.xpose.msra.mxu0 0.0
  %5841 = vmatprep.subr.mxu0 0.0
  %5842 = vmatpush1.xpose.msra.mxu0 0.0
  %5843 = vmatprep.subr.mxu0 0.0
  %5844 = vmatpush1.xpose.msra.mxu0 0.0
  %5845 = vmatprep.subr.mxu0 0.0
  %5846 = vmatpush1.xpose.msra.mxu0 0.0
  %5847 = vmatprep.subr.mxu0 0.0
  %5848 = vmatpush1.xpose.msra.mxu0 0.0
  %5849 = vmatprep.subr.mxu0 0.0
  %5850 = vmatpush1.xpose.msra.mxu0 0.0
  %5851 = vmatprep.subr.mxu0 0.0
  %5852 = vmatpush1.xpose.msra.mxu0 %v5819
  %5853 = vmatprep.subr.mxu0 0.0
  %5854 = vmatpush2.xpose.msra.mxu0 0.0
  %5855 = vmatprep.subr.mxu0 0.0
  %5856 = vmatpush2.xpose.msra.mxu0 0.0
  %5857 = vmatprep.subr.mxu0 0.0
  %5858 = vmatpush2.xpose.msra.mxu0 0.0
  %5859 = vmatprep.subr.mxu0 0.0
  %5860 = vmatpush2.xpose.msra.mxu0 0.0
  %5861 = vmatprep.subr.mxu0 0.0
  %5862 = vmatpush2.xpose.msra.mxu0 0.0
  %5863 = vmatprep.subr.mxu0 0.0
  %5864 = vmatpush2.xpose.msra.mxu0 0.0
  %5865 = vmatprep.subr.mxu0 0.0
  %5866 = vmatpush2.xpose.msra.mxu0 0.0
  %5867 = vmatprep.subr.mxu0 0.0
  %5868 = vmatpush2.xpose.msra.mxu0 0.0
  %5869 = vmatprep.subr.mxu0 0.0
  %5870 = vmatpush2.xpose.msra.mxu0 0.0
  %5871 = vmatprep.subr.mxu0 0.0
  %5872 = vmatpush2.xpose.msra.mxu0 0.0
  %5873 = vmatprep.subr.mxu0 0.0
  %5874 = vmatpush2.xpose.msra.mxu0 0.0
  %5875 = vmatprep.subr.mxu0 0.0
  %5876 = vmatpush2.xpose.msra.mxu0 0.0
  %5877 = vmatprep.subr.mxu0 0.0
  %5878 = vmatpush2.xpose.msra.mxu0 0.0
  %5879 = vmatprep.subr.mxu0 0.0
  %5880 = vmatpush2.xpose.msra.mxu0 0.0
  %5881 = vmatprep.subr.mxu0 0.0
  %5882 = vmatpush2.xpose.msra.mxu0 0.0
  %5883 = vmatprep.subr.mxu0 0.0
  %5884 = vmatpush2.xpose.msra.mxu0 0.0
  %5885 = vmatprep.mubr.f32.mxu0 0.0
  %5886 = vmatmul.mubr.f32.gmra.mxu0 %v5817
  %v5887 = vpop.f32.mrf.mxu0
  %v5888 = vadd.f32 0.0, %v5887
  %v5889 = vpop.f32.mrf.mxu0
  %5890 = vdwg.mxu0
  %v5891 = vsel %vm5175, %v5888, -inf
  %5892 = vmax.xlane.f32.xlu0 %v5891
  %v5893 = vpop.xlane.xlu0 %5892
  %v5894 = vsub.f32 %v5888, %v5893
  %v5895 = vmul.f32 %v5894, 1.442695
  %v5896 = vpow.pop %v5895
  %v5897 = vsel %vm5175, %v5896, 0.0
  %5898 = vadd.xlane.f32.xlu0 %v5897
  %v5899 = vpop.xlane.xlu0 %5898
  %v5900 = vrcp.pop %v5899
  %v5901 = vmul.f32 %v5896, %v5900
  %5902 = vrot.lane.b32.xlu0 %v5087, 72
  %v5903 = vpop.permute.xlu0 %5902
  %v5906 = vsel %vm233, %v5901, 0
  %5908 = vmatprep.subr.mxu0 0.0
  %5909 = vmatpush1.msra.mxu0 0.0
  %5910 = vmatprep.subr.mxu0 0.0
  %5911 = vmatpush1.msra.mxu0 0.0
  %5912 = vmatprep.subr.mxu0 0.0
  %5913 = vmatpush1.msra.mxu0 0.0
  %5914 = vmatprep.subr.mxu0 0.0
  %5915 = vmatpush1.msra.mxu0 0.0
  %5916 = vmatprep.subr.mxu0 0.0
  %5917 = vmatpush1.msra.mxu0 0.0
  %5918 = vmatprep.subr.mxu0 0.0
  %5919 = vmatpush1.msra.mxu0 0.0
  %5920 = vmatprep.subr.mxu0 0.0
  %5921 = vmatpush1.msra.mxu0 0.0
  %5922 = vmatprep.subr.mxu0 0.0
  %5923 = vmatpush1.msra.mxu0 0.0
  %5924 = vmatprep.subr.mxu0 0.0
  %5925 = vmatpush1.msra.mxu0 0.0
  %5926 = vmatprep.subr.mxu0 0.0
  %5927 = vmatpush1.msra.mxu0 0.0
  %5928 = vmatprep.subr.mxu0 0.0
  %5929 = vmatpush1.msra.mxu0 0.0
  %5930 = vmatprep.subr.mxu0 0.0
  %5931 = vmatpush1.msra.mxu0 0.0
  %5932 = vmatprep.subr.mxu0 0.0
  %5933 = vmatpush1.msra.mxu0 0.0
  %5934 = vmatprep.subr.mxu0 0.0
  %5935 = vmatpush1.msra.mxu0 0.0
  %5936 = vmatprep.subr.mxu0 0.0
  %5937 = vmatpush1.msra.mxu0 0.0
  %5938 = vmatprep.subr.mxu0 0.0
  %5939 = vmatpush1.msra.mxu0 %v5903
  %5940 = vmatprep.subr.mxu0 0.0
  %5941 = vmatpush2.msra.mxu0 0.0
  %5942 = vmatprep.subr.mxu0 0.0
  %5943 = vmatpush2.msra.mxu0 0.0
  %5944 = vmatprep.subr.mxu0 0.0
  %5945 = vmatpush2.msra.mxu0 0.0
  %5946 = vmatprep.subr.mxu0 0.0
  %5947 = vmatpush2.msra.mxu0 0.0
  %5948 = vmatprep.subr.mxu0 0.0
  %5949 = vmatpush2.msra.mxu0 0.0
  %5950 = vmatprep.subr.mxu0 0.0
  %5951 = vmatpush2.msra.mxu0 0.0
  %5952 = vmatprep.subr.mxu0 0.0
  %5953 = vmatpush2.msra.mxu0 0.0
  %5954 = vmatprep.subr.mxu0 0.0
  %5955 = vmatpush2.msra.mxu0 0.0
  %5956 = vmatprep.subr.mxu0 0.0
  %5957 = vmatpush2.msra.mxu0 0.0
  %5958 = vmatprep.subr.mxu0 0.0
  %5959 = vmatpush2.msra.mxu0 0.0
  %5960 = vmatprep.subr.mxu0 0.0
  %5961 = vmatpush2.msra.mxu0 0.0
  %5962 = vmatprep.subr.mxu0 0.0
  %5963 = vmatpush2.msra.mxu0 0.0
  %5964 = vmatprep.subr.mxu0 0.0
  %5965 = vmatpush2.msra.mxu0 0.0
  %5966 = vmatprep.subr.mxu0 0.0
  %5967 = vmatpush2.msra.mxu0 0.0
  %5968 = vmatprep.subr.mxu0 0.0
  %5969 = vmatpush2.msra.mxu0 0.0
  %5970 = vmatprep.subr.mxu0 0.0
  %5971 = vmatpush2.msra.mxu0 0.0
  %5972 = vmatprep.mubr.f32.mxu0 0.0
  %5973 = vmatmul.mubr.f32.gmra.mxu0 %v5906
  %v5974 = vpop.f32.mrf.mxu0
  %v5975 = vadd.f32 0.0, %v5974
  %v5976 = vpop.f32.mrf.mxu0
  %5977 = vdwg.mxu0
  %v5979 = vsel %vm233, %v5975, 0
  %5981 = vmatprep.subr.mxu0 0.0
  %5982 = vmatpush1.msra.mxu0 0.0
  %5983 = vmatprep.subr.mxu0 0.0
  %5984 = vmatpush1.msra.mxu0 0.0
  %5985 = vmatprep.subr.mxu0 0.0
  %5986 = vmatpush1.msra.mxu0 0.0
  %5987 = vmatprep.subr.mxu0 0.0
  %5988 = vmatpush1.msra.mxu0 0.0
  %5989 = vmatprep.subr.mxu0 0.0
  %5990 = vmatpush1.msra.mxu0 0.0
  %5991 = vmatprep.subr.mxu0 0.0
  %5992 = vmatpush1.msra.mxu0 0.0
  %5993 = vmatprep.subr.mxu0 0.0
  %5994 = vmatpush1.msra.mxu0 0.0
  %5995 = vmatprep.subr.mxu0 0.0
  %5996 = vmatpush1.msra.mxu0 0.0
  %5997 = vmatprep.subr.mxu0 0.0
  %5998 = vmatpush1.msra.mxu0 0.0
  %5999 = vmatprep.subr.mxu0 0.0
  %6000 = vmatpush1.msra.mxu0 0.0
  %6001 = vmatprep.subr.mxu0 0.0
  %6002 = vmatpush1.msra.mxu0 0.0
  %6003 = vmatprep.subr.mxu0 0.0
  %6004 = vmatpush1.msra.mxu0 0.0
  %6005 = vmatprep.subr.mxu0 0.0
  %6006 = vmatpush1.msra.mxu0 0.0
  %6007 = vmatprep.subr.mxu0 0.0
  %6008 = vmatpush1.msra.mxu0 0.0
  %6009 = vmatprep.subr.mxu0 0.0
  %6010 = vmatpush1.msra.mxu0 0.0
  %6011 = vmatprep.subr.mxu0 0.0
  %6012 = vmatpush1.msra.mxu0 %v5098
  %6013 = vmatprep.subr.mxu0 0.0
  %6014 = vmatpush2.msra.mxu0 0.0
  %6015 = vmatprep.subr.mxu0 0.0
  %6016 = vmatpush2.msra.mxu0 0.0
  %6017 = vmatprep.subr.mxu0 0.0
  %6018 = vmatpush2.msra.mxu0 0.0
  %6019 = vmatprep.subr.mxu0 0.0
  %6020 = vmatpush2.msra.mxu0 0.0
  %6021 = vmatprep.subr.mxu0 0.0
  %6022 = vmatpush2.msra.mxu0 0.0
  %6023 = vmatprep.subr.mxu0 0.0
  %6024 = vmatpush2.msra.mxu0 0.0
  %6025 = vmatprep.subr.mxu0 0.0
  %6026 = vmatpush2.msra.mxu0 0.0
  %6027 = vmatprep.subr.mxu0 0.0
  %6028 = vmatpush2.msra.mxu0 0.0
  %6029 = vmatprep.subr.mxu0 0.0
  %6030 = vmatpush2.msra.mxu0 0.0
  %6031 = vmatprep.subr.mxu0 0.0
  %6032 = vmatpush2.msra.mxu0 0.0
  %6033 = vmatprep.subr.mxu0 0.0
  %6034 = vmatpush2.msra.mxu0 0.0
  %6035 = vmatprep.subr.mxu0 0.0
  %6036 = vmatpush2.msra.mxu0 0.0
  %6037 = vmatprep.subr.mxu0 0.0
  %6038 = vmatpush2.msra.mxu0 0.0
  %6039 = vmatprep.subr.mxu0 0.0
  %6040 = vmatpush2.msra.mxu0 0.0
  %6041 = vmatprep.subr.mxu0 0.0
  %6042 = vmatpush2.msra.mxu0 0.0
  %6043 = vmatprep.subr.mxu0 0.0
  %6044 = vmatpush2.msra.mxu0 0.0
  %6045 = vmatprep.mubr.f32.mxu0 0.0
  %6046 = vmatmul.mubr.f32.gmra.mxu0 %v5979
  %v6047 = vpop.f32.mrf.mxu0
  %v6048 = vadd.f32 0.0, %v6047
  %v6049 = vpop.f32.mrf.mxu0
  %6050 = vdwg.mxu0
  %v6051 = vadd.f32 %v5812, %v6048
  %v6052 = vrot.slane %v5002, 1
  %v6053 = vsel %vm233, %v6052, 0
  %v6056 = vsel %vm233, %v5092, 0
  %6058 = vmatprep.subr.mxu0 0.0
  %6059 = vmatpush1.xpose.msra.mxu0 0.0
  %6060 = vmatprep.subr.mxu0 0.0
  %6061 = vmatpush1.xpose.msra.mxu0 0.0
  %6062 = vmatprep.subr.mxu0 0.0
  %6063 = vmatpush1.xpose.msra.mxu0 0.0
  %6064 = vmatprep.subr.mxu0 0.0
  %6065 = vmatpush1.xpose.msra.mxu0 0.0
  %6066 = vmatprep.subr.mxu0 0.0
  %6067 = vmatpush1.xpose.msra.mxu0 0.0
  %6068 = vmatprep.subr.mxu0 0.0
  %6069 = vmatpush1.xpose.msra.mxu0 0.0
  %6070 = vmatprep.subr.mxu0 0.0
  %6071 = vmatpush1.xpose.msra.mxu0 0.0
  %6072 = vmatprep.subr.mxu0 0.0
  %6073 = vmatpush1.xpose.msra.mxu0 0.0
  %6074 = vmatprep.subr.mxu0 0.0
  %6075 = vmatpush1.xpose.msra.mxu0 0.0
  %6076 = vmatprep.subr.mxu0 0.0
  %6077 = vmatpush1.xpose.msra.mxu0 0.0
  %6078 = vmatprep.subr.mxu0 0.0
  %6079 = vmatpush1.xpose.msra.mxu0 0.0
  %6080 = vmatprep.subr.mxu0 0.0
  %6081 = vmatpush1.xpose.msra.mxu0 0.0
  %6082 = vmatprep.subr.mxu0 0.0
  %6083 = vmatpush1.xpose.msra.mxu0 0.0
  %6084 = vmatprep.subr.mxu0 0.0
  %6085 = vmatpush1.xpose.msra.mxu0 0.0
  %6086 = vmatprep.subr.mxu0 0.0
  %6087 = vmatpush1.xpose.msra.mxu0 0.0
  %6088 = vmatprep.subr.mxu0 0.0
  %6089 = vmatpush1.xpose.msra.mxu0 %v6056
  %6090 = vmatprep.subr.mxu0 0.0
  %6091 = vmatpush2.xpose.msra.mxu0 0.0
  %6092 = vmatprep.subr.mxu0 0.0
  %6093 = vmatpush2.xpose.msra.mxu0 0.0
  %6094 = vmatprep.subr.mxu0 0.0
  %6095 = vmatpush2.xpose.msra.mxu0 0.0
  %6096 = vmatprep.subr.mxu0 0.0
  %6097 = vmatpush2.xpose.msra.mxu0 0.0
  %6098 = vmatprep.subr.mxu0 0.0
  %6099 = vmatpush2.xpose.msra.mxu0 0.0
  %6100 = vmatprep.subr.mxu0 0.0
  %6101 = vmatpush2.xpose.msra.mxu0 0.0
  %6102 = vmatprep.subr.mxu0 0.0
  %6103 = vmatpush2.xpose.msra.mxu0 0.0
  %6104 = vmatprep.subr.mxu0 0.0
  %6105 = vmatpush2.xpose.msra.mxu0 0.0
  %6106 = vmatprep.subr.mxu0 0.0
  %6107 = vmatpush2.xpose.msra.mxu0 0.0
  %6108 = vmatprep.subr.mxu0 0.0
  %6109 = vmatpush2.xpose.msra.mxu0 0.0
  %6110 = vmatprep.subr.mxu0 0.0
  %6111 = vmatpush2.xpose.msra.mxu0 0.0
  %6112 = vmatprep.subr.mxu0 0.0
  %6113 = vmatpush2.xpose.msra.mxu0 0.0
  %6114 = vmatprep.subr.mxu0 0.0
  %6115 = vmatpush2.xpose.msra.mxu0 0.0
  %6116 = vmatprep.subr.mxu0 0.0
  %6117 = vmatpush2.xpose.msra.mxu0 0.0
  %6118 = vmatprep.subr.mxu0 0.0
  %6119 = vmatpush2.xpose.msra.mxu0 0.0
  %6120 = vmatprep.subr.mxu0 0.0
  %6121 = vmatpush2.xpose.msra.mxu0 0.0
  %6122 = vmatprep.mubr.f32.mxu0 0.0
  %6123 = vmatmul.mubr.f32.gmra.mxu0 %v6053
  %v6124 = vpop.f32.mrf.mxu0
  %v6125 = vadd.f32 0.0, %v6124
  %v6126 = vpop.f32.mrf.mxu0
  %6127 = vdwg.mxu0
  %v6128 = vsel %vm5175, %v6125, -inf
  %6129 = vmax.xlane.f32.xlu0 %v6128
  %v6130 = vpop.xlane.xlu0 %6129
  %v6131 = vsub.f32 %v6125, %v6130
  %v6132 = vmul.f32 %v6131, 1.442695
  %v6133 = vpow.pop %v6132
  %v6134 = vsel %vm5175, %v6133, 0.0
  %6135 = vadd.xlane.f32.xlu0 %v6134
  %v6136 = vpop.xlane.xlu0 %6135
  %v6137 = vrcp.pop %v6136
  %v6138 = vmul.f32 %v6133, %v6137
  %6139 = vrot.lane.b32.xlu0 %v5092, 96
  %v6140 = vpop.permute.xlu0 %6139
  %v6143 = vsel %vm233, %v6138, 0
  %6145 = vmatprep.subr.mxu0 0.0
  %6146 = vmatpush1.msra.mxu0 0.0
  %6147 = vmatprep.subr.mxu0 0.0
  %6148 = vmatpush1.msra.mxu0 0.0
  %6149 = vmatprep.subr.mxu0 0.0
  %6150 = vmatpush1.msra.mxu0 0.0
  %6151 = vmatprep.subr.mxu0 0.0
  %6152 = vmatpush1.msra.mxu0 0.0
  %6153 = vmatprep.subr.mxu0 0.0
  %6154 = vmatpush1.msra.mxu0 0.0
  %6155 = vmatprep.subr.mxu0 0.0
  %6156 = vmatpush1.msra.mxu0 0.0
  %6157 = vmatprep.subr.mxu0 0.0
  %6158 = vmatpush1.msra.mxu0 0.0
  %6159 = vmatprep.subr.mxu0 0.0
  %6160 = vmatpush1.msra.mxu0 0.0
  %6161 = vmatprep.subr.mxu0 0.0
  %6162 = vmatpush1.msra.mxu0 0.0
  %6163 = vmatprep.subr.mxu0 0.0
  %6164 = vmatpush1.msra.mxu0 0.0
  %6165 = vmatprep.subr.mxu0 0.0
  %6166 = vmatpush1.msra.mxu0 0.0
  %6167 = vmatprep.subr.mxu0 0.0
  %6168 = vmatpush1.msra.mxu0 0.0
  %6169 = vmatprep.subr.mxu0 0.0
  %6170 = vmatpush1.msra.mxu0 0.0
  %6171 = vmatprep.subr.mxu0 0.0
  %6172 = vmatpush1.msra.mxu0 0.0
  %6173 = vmatprep.subr.mxu0 0.0
  %6174 = vmatpush1.msra.mxu0 0.0
  %6175 = vmatprep.subr.mxu0 0.0
  %6176 = vmatpush1.msra.mxu0 %v6140
  %6177 = vmatprep.subr.mxu0 0.0
  %6178 = vmatpush2.msra.mxu0 0.0
  %6179 = vmatprep.subr.mxu0 0.0
  %6180 = vmatpush2.msra.mxu0 0.0
  %6181 = vmatprep.subr.mxu0 0.0
  %6182 = vmatpush2.msra.mxu0 0.0
  %6183 = vmatprep.subr.mxu0 0.0
  %6184 = vmatpush2.msra.mxu0 0.0
  %6185 = vmatprep.subr.mxu0 0.0
  %6186 = vmatpush2.msra.mxu0 0.0
  %6187 = vmatprep.subr.mxu0 0.0
  %6188 = vmatpush2.msra.mxu0 0.0
  %6189 = vmatprep.subr.mxu0 0.0
  %6190 = vmatpush2.msra.mxu0 0.0
  %6191 = vmatprep.subr.mxu0 0.0
  %6192 = vmatpush2.msra.mxu0 0.0
  %6193 = vmatprep.subr.mxu0 0.0
  %6194 = vmatpush2.msra.mxu0 0.0
  %6195 = vmatprep.subr.mxu0 0.0
  %6196 = vmatpush2.msra.mxu0 0.0
  %6197 = vmatprep.subr.mxu0 0.0
  %6198 = vmatpush2.msra.mxu0 0.0
  %6199 = vmatprep.subr.mxu0 0.0
  %6200 = vmatpush2.msra.mxu0 0.0
  %6201 = vmatprep.subr.mxu0 0.0
  %6202 = vmatpush2.msra.mxu0 0.0
  %6203 = vmatprep.subr.mxu0 0.0
  %6204 = vmatpush2.msra.mxu0 0.0
  %6205 = vmatprep.subr.mxu0 0.0
  %6206 = vmatpush2.msra.mxu0 0.0
  %6207 = vmatprep.subr.mxu0 0.0
  %6208 = vmatpush2.msra.mxu0 0.0
  %6209 = vmatprep.mubr.f32.mxu0 0.0
  %6210 = vmatmul.mubr.f32.gmra.mxu0 %v6143
  %v6211 = vpop.f32.mrf.mxu0
  %v6212 = vadd.f32 0.0, %v6211
  %v6213 = vpop.f32.mrf.mxu0
  %6214 = vdwg.mxu0
  %6215 = vrot.lane.b32.xlu0 %v6052, 120
  %v6216 = vpop.permute.xlu0 %6215
  %6217 = vrot.lane.b32.xlu0 %v5092, 120
  %v6218 = vpop.permute.xlu0 %6217
  %v6219 = vsel %vm233, %v6216, 0
  %v6221 = vsel %vm233, %v6218, 0
  %6223 = vmatprep.subr.mxu0 0.0
  %6224 = vmatpush1.xpose.msra.mxu0 0.0
  %6225 = vmatprep.subr.mxu0 0.0
  %6226 = vmatpush1.xpose.msra.mxu0 0.0
  %6227 = vmatprep.subr.mxu0 0.0
  %6228 = vmatpush1.xpose.msra.mxu0 0.0
  %6229 = vmatprep.subr.mxu0 0.0
  %6230 = vmatpush1.xpose.msra.mxu0 0.0
  %6231 = vmatprep.subr.mxu0 0.0
  %6232 = vmatpush1.xpose.msra.mxu0 0.0
  %6233 = vmatprep.subr.mxu0 0.0
  %6234 = vmatpush1.xpose.msra.mxu0 0.0
  %6235 = vmatprep.subr.mxu0 0.0
  %6236 = vmatpush1.xpose.msra.mxu0 0.0
  %6237 = vmatprep.subr.mxu0 0.0
  %6238 = vmatpush1.xpose.msra.mxu0 0.0
  %6239 = vmatprep.subr.mxu0 0.0
  %6240 = vmatpush1.xpose.msra.mxu0 0.0
  %6241 = vmatprep.subr.mxu0 0.0
  %6242 = vmatpush1.xpose.msra.mxu0 0.0
  %6243 = vmatprep.subr.mxu0 0.0
  %6244 = vmatpush1.xpose.msra.mxu0 0.0
  %6245 = vmatprep.subr.mxu0 0.0
  %6246 = vmatpush1.xpose.msra.mxu0 0.0
  %6247 = vmatprep.subr.mxu0 0.0
  %6248 = vmatpush1.xpose.msra.mxu0 0.0
  %6249 = vmatprep.subr.mxu0 0.0
  %6250 = vmatpush1.xpose.msra.mxu0 0.0
  %6251 = vmatprep.subr.mxu0 0.0
  %6252 = vmatpush1.xpose.msra.mxu0 0.0
  %6253 = vmatprep.subr.mxu0 0.0
  %6254 = vmatpush1.xpose.msra.mxu0 %v6221
  %6255 = vmatprep.subr.mxu0 0.0
  %6256 = vmatpush2.xpose.msra.mxu0 0.0
  %6257 = vmatprep.subr.mxu0 0.0
  %6258 = vmatpush2.xpose.msra.mxu0 0.0
  %6259 = vmatprep.subr.mxu0 0.0
  %6260 = vmatpush2.xpose.msra.mxu0 0.0
  %6261 = vmatprep.subr.mxu0 0.0
  %6262 = vmatpush2.xpose.msra.mxu0 0.0
  %6263 = vmatprep.subr.mxu0 0.0
  %6264 = vmatpush2.xpose.msra.mxu0 0.0
  %6265 = vmatprep.subr.mxu0 0.0
  %6266 = vmatpush2.xpose.msra.mxu0 0.0
  %6267 = vmatprep.subr.mxu0 0.0
  %6268 = vmatpush2.xpose.msra.mxu0 0.0
  %6269 = vmatprep.subr.mxu0 0.0
  %6270 = vmatpush2.xpose.msra.mxu0 0.0
  %6271 = vmatprep.subr.mxu0 0.0
  %6272 = vmatpush2.xpose.msra.mxu0 0.0
  %6273 = vmatprep.subr.mxu0 0.0
  %6274 = vmatpush2.xpose.msra.mxu0 0.0
  %6275 = vmatprep.subr.mxu0 0.0
  %6276 = vmatpush2.xpose.msra.mxu0 0.0
  %6277 = vmatprep.subr.mxu0 0.0
  %6278 = vmatpush2.xpose.msra.mxu0 0.0
  %6279 = vmatprep.subr.mxu0 0.0
  %6280 = vmatpush2.xpose.msra.mxu0 0.0
  %6281 = vmatprep.subr.mxu0 0.0
  %6282 = vmatpush2.xpose.msra.mxu0 0.0
  %6283 = vmatprep.subr.mxu0 0.0
  %6284 = vmatpush2.xpose.msra.mxu0 0.0
  %6285 = vmatprep.subr.mxu0 0.0
  %6286 = vmatpush2.xpose.msra.mxu0 0.0
  %6287 = vmatprep.mubr.f32.mxu0 0.0
  %6288 = vmatmul.mubr.f32.gmra.mxu0 %v6219
  %v6289 = vpop.f32.mrf.mxu0
  %v6290 = vadd.f32 0.0, %v6289
  %v6291 = vpop.f32.mrf.mxu0
  %6292 = vdwg.mxu0
  %v6293 = vsel %vm5175, %v6290, -inf
  %6294 = vmax.xlane.f32.xlu0 %v6293
  %v6295 = vpop.xlane.xlu0 %6294
  %v6296 = vsub.f32 %v6290, %v6295
  %v6297 = vmul.f32 %v6296, 1.442695
  %v6298 = vpow.pop %v6297
  %v6299 = vsel %vm5175, %v6298, 0.0
  %6300 = vadd.xlane.f32.xlu0 %v6299
  %v6301 = vpop.xlane.xlu0 %6300
  %v6302 = vrcp.pop %v6301
  %v6303 = vmul.f32 %v6298, %v6302
  %6304 = vrot.lane.b32.xlu0 %v5092, 88
  %v6305 = vpop.permute.xlu0 %6304
  %v6308 = vsel %vm233, %v6303, 0
  %6310 = vmatprep.subr.mxu0 0.0
  %6311 = vmatpush1.msra.mxu0 0.0
  %6312 = vmatprep.subr.mxu0 0.0
  %6313 = vmatpush1.msra.mxu0 0.0
  %6314 = vmatprep.subr.mxu0 0.0
  %6315 = vmatpush1.msra.mxu0 0.0
  %6316 = vmatprep.subr.mxu0 0.0
  %6317 = vmatpush1.msra.mxu0 0.0
  %6318 = vmatprep.subr.mxu0 0.0
  %6319 = vmatpush1.msra.mxu0 0.0
  %6320 = vmatprep.subr.mxu0 0.0
  %6321 = vmatpush1.msra.mxu0 0.0
  %6322 = vmatprep.subr.mxu0 0.0
  %6323 = vmatpush1.msra.mxu0 0.0
  %6324 = vmatprep.subr.mxu0 0.0
  %6325 = vmatpush1.msra.mxu0 0.0
  %6326 = vmatprep.subr.mxu0 0.0
  %6327 = vmatpush1.msra.mxu0 0.0
  %6328 = vmatprep.subr.mxu0 0.0
  %6329 = vmatpush1.msra.mxu0 0.0
  %6330 = vmatprep.subr.mxu0 0.0
  %6331 = vmatpush1.msra.mxu0 0.0
  %6332 = vmatprep.subr.mxu0 0.0
  %6333 = vmatpush1.msra.mxu0 0.0
  %6334 = vmatprep.subr.mxu0 0.0
  %6335 = vmatpush1.msra.mxu0 0.0
  %6336 = vmatprep.subr.mxu0 0.0
  %6337 = vmatpush1.msra.mxu0 0.0
  %6338 = vmatprep.subr.mxu0 0.0
  %6339 = vmatpush1.msra.mxu0 0.0
  %6340 = vmatprep.subr.mxu0 0.0
  %6341 = vmatpush1.msra.mxu0 %v6305
  %6342 = vmatprep.subr.mxu0 0.0
  %6343 = vmatpush2.msra.mxu0 0.0
  %6344 = vmatprep.subr.mxu0 0.0
  %6345 = vmatpush2.msra.mxu0 0.0
  %6346 = vmatprep.subr.mxu0 0.0
  %6347 = vmatpush2.msra.mxu0 0.0
  %6348 = vmatprep.subr.mxu0 0.0
  %6349 = vmatpush2.msra.mxu0 0.0
  %6350 = vmatprep.subr.mxu0 0.0
  %6351 = vmatpush2.msra.mxu0 0.0
  %6352 = vmatprep.subr.mxu0 0.0
  %6353 = vmatpush2.msra.mxu0 0.0
  %6354 = vmatprep.subr.mxu0 0.0
  %6355 = vmatpush2.msra.mxu0 0.0
  %6356 = vmatprep.subr.mxu0 0.0
  %6357 = vmatpush2.msra.mxu0 0.0
  %6358 = vmatprep.subr.mxu0 0.0
  %6359 = vmatpush2.msra.mxu0 0.0
  %6360 = vmatprep.subr.mxu0 0.0
  %6361 = vmatpush2.msra.mxu0 0.0
  %6362 = vmatprep.subr.mxu0 0.0
  %6363 = vmatpush2.msra.mxu0 0.0
  %6364 = vmatprep.subr.mxu0 0.0
  %6365 = vmatpush2.msra.mxu0 0.0
  %6366 = vmatprep.subr.mxu0 0.0
  %6367 = vmatpush2.msra.mxu0 0.0
  %6368 = vmatprep.subr.mxu0 0.0
  %6369 = vmatpush2.msra.mxu0 0.0
  %6370 = vmatprep.subr.mxu0 0.0
  %6371 = vmatpush2.msra.mxu0 0.0
  %6372 = vmatprep.subr.mxu0 0.0
  %6373 = vmatpush2.msra.mxu0 0.0
  %6374 = vmatprep.mubr.f32.mxu0 0.0
  %6375 = vmatmul.mubr.f32.gmra.mxu0 %v6308
  %v6376 = vpop.f32.mrf.mxu0
  %v6377 = vadd.f32 0.0, %v6376
  %v6378 = vpop.f32.mrf.mxu0
  %6379 = vdwg.mxu0
  %v6381 = vsel %vm233, %v6377, 0
  %6383 = vmatprep.subr.mxu0 0.0
  %6384 = vmatpush1.msra.mxu0 0.0
  %6385 = vmatprep.subr.mxu0 0.0
  %6386 = vmatpush1.msra.mxu0 0.0
  %6387 = vmatprep.subr.mxu0 0.0
  %6388 = vmatpush1.msra.mxu0 0.0
  %6389 = vmatprep.subr.mxu0 0.0
  %6390 = vmatpush1.msra.mxu0 0.0
  %6391 = vmatprep.subr.mxu0 0.0
  %6392 = vmatpush1.msra.mxu0 0.0
  %6393 = vmatprep.subr.mxu0 0.0
  %6394 = vmatpush1.msra.mxu0 0.0
  %6395 = vmatprep.subr.mxu0 0.0
  %6396 = vmatpush1.msra.mxu0 0.0
  %6397 = vmatprep.subr.mxu0 0.0
  %6398 = vmatpush1.msra.mxu0 0.0
  %6399 = vmatprep.subr.mxu0 0.0
  %6400 = vmatpush1.msra.mxu0 0.0
  %6401 = vmatprep.subr.mxu0 0.0
  %6402 = vmatpush1.msra.mxu0 0.0
  %6403 = vmatprep.subr.mxu0 0.0
  %6404 = vmatpush1.msra.mxu0 0.0
  %6405 = vmatprep.subr.mxu0 0.0
  %6406 = vmatpush1.msra.mxu0 0.0
  %6407 = vmatprep.subr.mxu0 0.0
  %6408 = vmatpush1.msra.mxu0 0.0
  %6409 = vmatprep.subr.mxu0 0.0
  %6410 = vmatpush1.msra.mxu0 0.0
  %6411 = vmatprep.subr.mxu0 0.0
  %6412 = vmatpush1.msra.mxu0 0.0
  %6413 = vmatprep.subr.mxu0 0.0
  %6414 = vmatpush1.msra.mxu0 %v5096
  %6415 = vmatprep.subr.mxu0 0.0
  %6416 = vmatpush2.msra.mxu0 0.0
  %6417 = vmatprep.subr.mxu0 0.0
  %6418 = vmatpush2.msra.mxu0 0.0
  %6419 = vmatprep.subr.mxu0 0.0
  %6420 = vmatpush2.msra.mxu0 0.0
  %6421 = vmatprep.subr.mxu0 0.0
  %6422 = vmatpush2.msra.mxu0 0.0
  %6423 = vmatprep.subr.mxu0 0.0
  %6424 = vmatpush2.msra.mxu0 0.0
  %6425 = vmatprep.subr.mxu0 0.0
  %6426 = vmatpush2.msra.mxu0 0.0
  %6427 = vmatprep.subr.mxu0 0.0
  %6428 = vmatpush2.msra.mxu0 0.0
  %6429 = vmatprep.subr.mxu0 0.0
  %6430 = vmatpush2.msra.mxu0 0.0
  %6431 = vmatprep.subr.mxu0 0.0
  %6432 = vmatpush2.msra.mxu0 0.0
  %6433 = vmatprep.subr.mxu0 0.0
  %6434 = vmatpush2.msra.mxu0 0.0
  %6435 = vmatprep.subr.mxu0 0.0
  %6436 = vmatpush2.msra.mxu0 0.0
  %6437 = vmatprep.subr.mxu0 0.0
  %6438 = vmatpush2.msra.mxu0 0.0
  %6439 = vmatprep.subr.mxu0 0.0
  %6440 = vmatpush2.msra.mxu0 0.0
  %6441 = vmatprep.subr.mxu0 0.0
  %6442 = vmatpush2.msra.mxu0 0.0
  %6443 = vmatprep.subr.mxu0 0.0
  %6444 = vmatpush2.msra.mxu0 0.0
  %6445 = vmatprep.subr.mxu0 0.0
  %6446 = vmatpush2.msra.mxu0 0.0
  %6447 = vmatprep.mubr.f32.mxu0 0.0
  %6448 = vmatmul.mubr.f32.gmra.mxu0 %v6381
  %v6449 = vpop.f32.mrf.mxu0
  %v6450 = vadd.f32 0.0, %v6449
  %v6451 = vpop.f32.mrf.mxu0
  %6452 = vdwg.mxu0
  %v6454 = vsel %vm233, %v6212, 0
  %6456 = vmatprep.subr.mxu0 0.0
  %6457 = vmatpush1.msra.mxu0 0.0
  %6458 = vmatprep.subr.mxu0 0.0
  %6459 = vmatpush1.msra.mxu0 0.0
  %6460 = vmatprep.subr.mxu0 0.0
  %6461 = vmatpush1.msra.mxu0 0.0
  %6462 = vmatprep.subr.mxu0 0.0
  %6463 = vmatpush1.msra.mxu0 0.0
  %6464 = vmatprep.subr.mxu0 0.0
  %6465 = vmatpush1.msra.mxu0 0.0
  %6466 = vmatprep.subr.mxu0 0.0
  %6467 = vmatpush1.msra.mxu0 0.0
  %6468 = vmatprep.subr.mxu0 0.0
  %6469 = vmatpush1.msra.mxu0 0.0
  %6470 = vmatprep.subr.mxu0 0.0
  %6471 = vmatpush1.msra.mxu0 0.0
  %6472 = vmatprep.subr.mxu0 0.0
  %6473 = vmatpush1.msra.mxu0 0.0
  %6474 = vmatprep.subr.mxu0 0.0
  %6475 = vmatpush1.msra.mxu0 0.0
  %6476 = vmatprep.subr.mxu0 0.0
  %6477 = vmatpush1.msra.mxu0 0.0
  %6478 = vmatprep.subr.mxu0 0.0
  %6479 = vmatpush1.msra.mxu0 0.0
  %6480 = vmatprep.subr.mxu0 0.0
  %6481 = vmatpush1.msra.mxu0 0.0
  %6482 = vmatprep.subr.mxu0 0.0
  %6483 = vmatpush1.msra.mxu0 0.0
  %6484 = vmatprep.subr.mxu0 0.0
  %6485 = vmatpush1.msra.mxu0 0.0
  %6486 = vmatprep.subr.mxu0 0.0
  %6487 = vmatpush1.msra.mxu0 %v5095
  %6488 = vmatprep.subr.mxu0 0.0
  %6489 = vmatpush2.msra.mxu0 0.0
  %6490 = vmatprep.subr.mxu0 0.0
  %6491 = vmatpush2.msra.mxu0 0.0
  %6492 = vmatprep.subr.mxu0 0.0
  %6493 = vmatpush2.msra.mxu0 0.0
  %6494 = vmatprep.subr.mxu0 0.0
  %6495 = vmatpush2.msra.mxu0 0.0
  %6496 = vmatprep.subr.mxu0 0.0
  %6497 = vmatpush2.msra.mxu0 0.0
  %6498 = vmatprep.subr.mxu0 0.0
  %6499 = vmatpush2.msra.mxu0 0.0
  %6500 = vmatprep.subr.mxu0 0.0
  %6501 = vmatpush2.msra.mxu0 0.0
  %6502 = vmatprep.subr.mxu0 0.0
  %6503 = vmatpush2.msra.mxu0 0.0
  %6504 = vmatprep.subr.mxu0 0.0
  %6505 = vmatpush2.msra.mxu0 0.0
  %6506 = vmatprep.subr.mxu0 0.0
  %6507 = vmatpush2.msra.mxu0 0.0
  %6508 = vmatprep.subr.mxu0 0.0
  %6509 = vmatpush2.msra.mxu0 0.0
  %6510 = vmatprep.subr.mxu0 0.0
  %6511 = vmatpush2.msra.mxu0 0.0
  %6512 = vmatprep.subr.mxu0 0.0
  %6513 = vmatpush2.msra.mxu0 0.0
  %6514 = vmatprep.subr.mxu0 0.0
  %6515 = vmatpush2.msra.mxu0 0.0
  %6516 = vmatprep.subr.mxu0 0.0
  %6517 = vmatpush2.msra.mxu0 0.0
  %6518 = vmatprep.subr.mxu0 0.0
  %6519 = vmatpush2.msra.mxu0 0.0
  %6520 = vmatprep.mubr.f32.mxu0 0.0
  %6521 = vmatmul.mubr.f32.gmra.mxu0 %v6454
  %v6522 = vpop.f32.mrf.mxu0
  %v6523 = vadd.f32 %v6450, %v6522
  %v6524 = vpop.f32.mrf.mxu0
  %6525 = vdwg.mxu0
  %6526 = vrot.lane.b32.xlu0 %v6052, 112
  %v6527 = vpop.permute.xlu0 %6526
  %6528 = vrot.lane.b32.xlu0 %v5092, 112
  %v6529 = vpop.permute.xlu0 %6528
  %v6530 = vsel %vm233, %v6527, 0
  %v6532 = vsel %vm233, %v6529, 0
  %6534 = vmatprep.subr.mxu0 0.0
  %6535 = vmatpush1.xpose.msra.mxu0 0.0
  %6536 = vmatprep.subr.mxu0 0.0
  %6537 = vmatpush1.xpose.msra.mxu0 0.0
  %6538 = vmatprep.subr.mxu0 0.0
  %6539 = vmatpush1.xpose.msra.mxu0 0.0
  %6540 = vmatprep.subr.mxu0 0.0
  %6541 = vmatpush1.xpose.msra.mxu0 0.0
  %6542 = vmatprep.subr.mxu0 0.0
  %6543 = vmatpush1.xpose.msra.mxu0 0.0
  %6544 = vmatprep.subr.mxu0 0.0
  %6545 = vmatpush1.xpose.msra.mxu0 0.0
  %6546 = vmatprep.subr.mxu0 0.0
  %6547 = vmatpush1.xpose.msra.mxu0 0.0
  %6548 = vmatprep.subr.mxu0 0.0
  %6549 = vmatpush1.xpose.msra.mxu0 0.0
  %6550 = vmatprep.subr.mxu0 0.0
  %6551 = vmatpush1.xpose.msra.mxu0 0.0
  %6552 = vmatprep.subr.mxu0 0.0
  %6553 = vmatpush1.xpose.msra.mxu0 0.0
  %6554 = vmatprep.subr.mxu0 0.0
  %6555 = vmatpush1.xpose.msra.mxu0 0.0
  %6556 = vmatprep.subr.mxu0 0.0
  %6557 = vmatpush1.xpose.msra.mxu0 0.0
  %6558 = vmatprep.subr.mxu0 0.0
  %6559 = vmatpush1.xpose.msra.mxu0 0.0
  %6560 = vmatprep.subr.mxu0 0.0
  %6561 = vmatpush1.xpose.msra.mxu0 0.0
  %6562 = vmatprep.subr.mxu0 0.0
  %6563 = vmatpush1.xpose.msra.mxu0 0.0
  %6564 = vmatprep.subr.mxu0 0.0
  %6565 = vmatpush1.xpose.msra.mxu0 %v6532
  %6566 = vmatprep.subr.mxu0 0.0
  %6567 = vmatpush2.xpose.msra.mxu0 0.0
  %6568 = vmatprep.subr.mxu0 0.0
  %6569 = vmatpush2.xpose.msra.mxu0 0.0
  %6570 = vmatprep.subr.mxu0 0.0
  %6571 = vmatpush2.xpose.msra.mxu0 0.0
  %6572 = vmatprep.subr.mxu0 0.0
  %6573 = vmatpush2.xpose.msra.mxu0 0.0
  %6574 = vmatprep.subr.mxu0 0.0
  %6575 = vmatpush2.xpose.msra.mxu0 0.0
  %6576 = vmatprep.subr.mxu0 0.0
  %6577 = vmatpush2.xpose.msra.mxu0 0.0
  %6578 = vmatprep.subr.mxu0 0.0
  %6579 = vmatpush2.xpose.msra.mxu0 0.0
  %6580 = vmatprep.subr.mxu0 0.0
  %6581 = vmatpush2.xpose.msra.mxu0 0.0
  %6582 = vmatprep.subr.mxu0 0.0
  %6583 = vmatpush2.xpose.msra.mxu0 0.0
  %6584 = vmatprep.subr.mxu0 0.0
  %6585 = vmatpush2.xpose.msra.mxu0 0.0
  %6586 = vmatprep.subr.mxu0 0.0
  %6587 = vmatpush2.xpose.msra.mxu0 0.0
  %6588 = vmatprep.subr.mxu0 0.0
  %6589 = vmatpush2.xpose.msra.mxu0 0.0
  %6590 = vmatprep.subr.mxu0 0.0
  %6591 = vmatpush2.xpose.msra.mxu0 0.0
  %6592 = vmatprep.subr.mxu0 0.0
  %6593 = vmatpush2.xpose.msra.mxu0 0.0
  %6594 = vmatprep.subr.mxu0 0.0
  %6595 = vmatpush2.xpose.msra.mxu0 0.0
  %6596 = vmatprep.subr.mxu0 0.0
  %6597 = vmatpush2.xpose.msra.mxu0 0.0
  %6598 = vmatprep.mubr.f32.mxu0 0.0
  %6599 = vmatmul.mubr.f32.gmra.mxu0 %v6530
  %v6600 = vpop.f32.mrf.mxu0
  %v6601 = vadd.f32 0.0, %v6600
  %v6602 = vpop.f32.mrf.mxu0
  %6603 = vdwg.mxu0
  %v6604 = vsel %vm5175, %v6601, -inf
  %6605 = vmax.xlane.f32.xlu0 %v6604
  %v6606 = vpop.xlane.xlu0 %6605
  %v6607 = vsub.f32 %v6601, %v6606
  %v6608 = vmul.f32 %v6607, 1.442695
  %v6609 = vpow.pop %v6608
  %v6610 = vsel %vm5175, %v6609, 0.0
  %6611 = vadd.xlane.f32.xlu0 %v6610
  %v6612 = vpop.xlane.xlu0 %6611
  %v6613 = vrcp.pop %v6612
  %v6614 = vmul.f32 %v6609, %v6613
  %6615 = vrot.lane.b32.xlu0 %v5092, 80
  %v6616 = vpop.permute.xlu0 %6615
  %v6619 = vsel %vm233, %v6614, 0
  %6621 = vmatprep.subr.mxu0 0.0
  %6622 = vmatpush1.msra.mxu0 0.0
  %6623 = vmatprep.subr.mxu0 0.0
  %6624 = vmatpush1.msra.mxu0 0.0
  %6625 = vmatprep.subr.mxu0 0.0
  %6626 = vmatpush1.msra.mxu0 0.0
  %6627 = vmatprep.subr.mxu0 0.0
  %6628 = vmatpush1.msra.mxu0 0.0
  %6629 = vmatprep.subr.mxu0 0.0
  %6630 = vmatpush1.msra.mxu0 0.0
  %6631 = vmatprep.subr.mxu0 0.0
  %6632 = vmatpush1.msra.mxu0 0.0
  %6633 = vmatprep.subr.mxu0 0.0
  %6634 = vmatpush1.msra.mxu0 0.0
  %6635 = vmatprep.subr.mxu0 0.0
  %6636 = vmatpush1.msra.mxu0 0.0
  %6637 = vmatprep.subr.mxu0 0.0
  %6638 = vmatpush1.msra.mxu0 0.0
  %6639 = vmatprep.subr.mxu0 0.0
  %6640 = vmatpush1.msra.mxu0 0.0
  %6641 = vmatprep.subr.mxu0 0.0
  %6642 = vmatpush1.msra.mxu0 0.0
  %6643 = vmatprep.subr.mxu0 0.0
  %6644 = vmatpush1.msra.mxu0 0.0
  %6645 = vmatprep.subr.mxu0 0.0
  %6646 = vmatpush1.msra.mxu0 0.0
  %6647 = vmatprep.subr.mxu0 0.0
  %6648 = vmatpush1.msra.mxu0 0.0
  %6649 = vmatprep.subr.mxu0 0.0
  %6650 = vmatpush1.msra.mxu0 0.0
  %6651 = vmatprep.subr.mxu0 0.0
  %6652 = vmatpush1.msra.mxu0 %v6616
  %6653 = vmatprep.subr.mxu0 0.0
  %6654 = vmatpush2.msra.mxu0 0.0
  %6655 = vmatprep.subr.mxu0 0.0
  %6656 = vmatpush2.msra.mxu0 0.0
  %6657 = vmatprep.subr.mxu0 0.0
  %6658 = vmatpush2.msra.mxu0 0.0
  %6659 = vmatprep.subr.mxu0 0.0
  %6660 = vmatpush2.msra.mxu0 0.0
  %6661 = vmatprep.subr.mxu0 0.0
  %6662 = vmatpush2.msra.mxu0 0.0
  %6663 = vmatprep.subr.mxu0 0.0
  %6664 = vmatpush2.msra.mxu0 0.0
  %6665 = vmatprep.subr.mxu0 0.0
  %6666 = vmatpush2.msra.mxu0 0.0
  %6667 = vmatprep.subr.mxu0 0.0
  %6668 = vmatpush2.msra.mxu0 0.0
  %6669 = vmatprep.subr.mxu0 0.0
  %6670 = vmatpush2.msra.mxu0 0.0
  %6671 = vmatprep.subr.mxu0 0.0
  %6672 = vmatpush2.msra.mxu0 0.0
  %6673 = vmatprep.subr.mxu0 0.0
  %6674 = vmatpush2.msra.mxu0 0.0
  %6675 = vmatprep.subr.mxu0 0.0
  %6676 = vmatpush2.msra.mxu0 0.0
  %6677 = vmatprep.subr.mxu0 0.0
  %6678 = vmatpush2.msra.mxu0 0.0
  %6679 = vmatprep.subr.mxu0 0.0
  %6680 = vmatpush2.msra.mxu0 0.0
  %6681 = vmatprep.subr.mxu0 0.0
  %6682 = vmatpush2.msra.mxu0 0.0
  %6683 = vmatprep.subr.mxu0 0.0
  %6684 = vmatpush2.msra.mxu0 0.0
  %6685 = vmatprep.mubr.f32.mxu0 0.0
  %6686 = vmatmul.mubr.f32.gmra.mxu0 %v6619
  %v6687 = vpop.f32.mrf.mxu0
  %v6688 = vadd.f32 0.0, %v6687
  %v6689 = vpop.f32.mrf.mxu0
  %6690 = vdwg.mxu0
  %v6692 = vsel %vm233, %v6688, 0
  %6694 = vmatprep.subr.mxu0 0.0
  %6695 = vmatpush1.msra.mxu0 0.0
  %6696 = vmatprep.subr.mxu0 0.0
  %6697 = vmatpush1.msra.mxu0 0.0
  %6698 = vmatprep.subr.mxu0 0.0
  %6699 = vmatpush1.msra.mxu0 0.0
  %6700 = vmatprep.subr.mxu0 0.0
  %6701 = vmatpush1.msra.mxu0 0.0
  %6702 = vmatprep.subr.mxu0 0.0
  %6703 = vmatpush1.msra.mxu0 0.0
  %6704 = vmatprep.subr.mxu0 0.0
  %6705 = vmatpush1.msra.mxu0 0.0
  %6706 = vmatprep.subr.mxu0 0.0
  %6707 = vmatpush1.msra.mxu0 0.0
  %6708 = vmatprep.subr.mxu0 0.0
  %6709 = vmatpush1.msra.mxu0 0.0
  %6710 = vmatprep.subr.mxu0 0.0
  %6711 = vmatpush1.msra.mxu0 0.0
  %6712 = vmatprep.subr.mxu0 0.0
  %6713 = vmatpush1.msra.mxu0 0.0
  %6714 = vmatprep.subr.mxu0 0.0
  %6715 = vmatpush1.msra.mxu0 0.0
  %6716 = vmatprep.subr.mxu0 0.0
  %6717 = vmatpush1.msra.mxu0 0.0
  %6718 = vmatprep.subr.mxu0 0.0
  %6719 = vmatpush1.msra.mxu0 0.0
  %6720 = vmatprep.subr.mxu0 0.0
  %6721 = vmatpush1.msra.mxu0 0.0
  %6722 = vmatprep.subr.mxu0 0.0
  %6723 = vmatpush1.msra.mxu0 0.0
  %6724 = vmatprep.subr.mxu0 0.0
  %6725 = vmatpush1.msra.mxu0 %v5097
  %6726 = vmatprep.subr.mxu0 0.0
  %6727 = vmatpush2.msra.mxu0 0.0
  %6728 = vmatprep.subr.mxu0 0.0
  %6729 = vmatpush2.msra.mxu0 0.0
  %6730 = vmatprep.subr.mxu0 0.0
  %6731 = vmatpush2.msra.mxu0 0.0
  %6732 = vmatprep.subr.mxu0 0.0
  %6733 = vmatpush2.msra.mxu0 0.0
  %6734 = vmatprep.subr.mxu0 0.0
  %6735 = vmatpush2.msra.mxu0 0.0
  %6736 = vmatprep.subr.mxu0 0.0
  %6737 = vmatpush2.msra.mxu0 0.0
  %6738 = vmatprep.subr.mxu0 0.0
  %6739 = vmatpush2.msra.mxu0 0.0
  %6740 = vmatprep.subr.mxu0 0.0
  %6741 = vmatpush2.msra.mxu0 0.0
  %6742 = vmatprep.subr.mxu0 0.0
  %6743 = vmatpush2.msra.mxu0 0.0
  %6744 = vmatprep.subr.mxu0 0.0
  %6745 = vmatpush2.msra.mxu0 0.0
  %6746 = vmatprep.subr.mxu0 0.0
  %6747 = vmatpush2.msra.mxu0 0.0
  %6748 = vmatprep.subr.mxu0 0.0
  %6749 = vmatpush2.msra.mxu0 0.0
  %6750 = vmatprep.subr.mxu0 0.0
  %6751 = vmatpush2.msra.mxu0 0.0
  %6752 = vmatprep.subr.mxu0 0.0
  %6753 = vmatpush2.msra.mxu0 0.0
  %6754 = vmatprep.subr.mxu0 0.0
  %6755 = vmatpush2.msra.mxu0 0.0
  %6756 = vmatprep.subr.mxu0 0.0
  %6757 = vmatpush2.msra.mxu0 0.0
  %6758 = vmatprep.mubr.f32.mxu0 0.0
  %6759 = vmatmul.mubr.f32.gmra.mxu0 %v6692
  %v6760 = vpop.f32.mrf.mxu0
  %v6761 = vadd.f32 0.0, %v6760
  %v6762 = vpop.f32.mrf.mxu0
  %6763 = vdwg.mxu0
  %v6764 = vadd.f32 %v6523, %v6761
  %6765 = vrot.lane.b32.xlu0 %v6052, 104
  %v6766 = vpop.permute.xlu0 %6765
  %6767 = vrot.lane.b32.xlu0 %v5092, 104
  %v6768 = vpop.permute.xlu0 %6767
  %v6769 = vsel %vm233, %v6766, 0
  %v6771 = vsel %vm233, %v6768, 0
  %6773 = vmatprep.subr.mxu0 0.0
  %6774 = vmatpush1.xpose.msra.mxu0 0.0
  %6775 = vmatprep.subr.mxu0 0.0
  %6776 = vmatpush1.xpose.msra.mxu0 0.0
  %6777 = vmatprep.subr.mxu0 0.0
  %6778 = vmatpush1.xpose.msra.mxu0 0.0
  %6779 = vmatprep.subr.mxu0 0.0
  %6780 = vmatpush1.xpose.msra.mxu0 0.0
  %6781 = vmatprep.subr.mxu0 0.0
  %6782 = vmatpush1.xpose.msra.mxu0 0.0
  %6783 = vmatprep.subr.mxu0 0.0
  %6784 = vmatpush1.xpose.msra.mxu0 0.0
  %6785 = vmatprep.subr.mxu0 0.0
  %6786 = vmatpush1.xpose.msra.mxu0 0.0
  %6787 = vmatprep.subr.mxu0 0.0
  %6788 = vmatpush1.xpose.msra.mxu0 0.0
  %6789 = vmatprep.subr.mxu0 0.0
  %6790 = vmatpush1.xpose.msra.mxu0 0.0
  %6791 = vmatprep.subr.mxu0 0.0
  %6792 = vmatpush1.xpose.msra.mxu0 0.0
  %6793 = vmatprep.subr.mxu0 0.0
  %6794 = vmatpush1.xpose.msra.mxu0 0.0
  %6795 = vmatprep.subr.mxu0 0.0
  %6796 = vmatpush1.xpose.msra.mxu0 0.0
  %6797 = vmatprep.subr.mxu0 0.0
  %6798 = vmatpush1.xpose.msra.mxu0 0.0
  %6799 = vmatprep.subr.mxu0 0.0
  %6800 = vmatpush1.xpose.msra.mxu0 0.0
  %6801 = vmatprep.subr.mxu0 0.0
  %6802 = vmatpush1.xpose.msra.mxu0 0.0
  %6803 = vmatprep.subr.mxu0 0.0
  %6804 = vmatpush1.xpose.msra.mxu0 %v6771
  %6805 = vmatprep.subr.mxu0 0.0
  %6806 = vmatpush2.xpose.msra.mxu0 0.0
  %6807 = vmatprep.subr.mxu0 0.0
  %6808 = vmatpush2.xpose.msra.mxu0 0.0
  %6809 = vmatprep.subr.mxu0 0.0
  %6810 = vmatpush2.xpose.msra.mxu0 0.0
  %6811 = vmatprep.subr.mxu0 0.0
  %6812 = vmatpush2.xpose.msra.mxu0 0.0
  %6813 = vmatprep.subr.mxu0 0.0
  %6814 = vmatpush2.xpose.msra.mxu0 0.0
  %6815 = vmatprep.subr.mxu0 0.0
  %6816 = vmatpush2.xpose.msra.mxu0 0.0
  %6817 = vmatprep.subr.mxu0 0.0
  %6818 = vmatpush2.xpose.msra.mxu0 0.0
  %6819 = vmatprep.subr.mxu0 0.0
  %6820 = vmatpush2.xpose.msra.mxu0 0.0
  %6821 = vmatprep.subr.mxu0 0.0
  %6822 = vmatpush2.xpose.msra.mxu0 0.0
  %6823 = vmatprep.subr.mxu0 0.0
  %6824 = vmatpush2.xpose.msra.mxu0 0.0
  %6825 = vmatprep.subr.mxu0 0.0
  %6826 = vmatpush2.xpose.msra.mxu0 0.0
  %6827 = vmatprep.subr.mxu0 0.0
  %6828 = vmatpush2.xpose.msra.mxu0 0.0
  %6829 = vmatprep.subr.mxu0 0.0
  %6830 = vmatpush2.xpose.msra.mxu0 0.0
  %6831 = vmatprep.subr.mxu0 0.0
  %6832 = vmatpush2.xpose.msra.mxu0 0.0
  %6833 = vmatprep.subr.mxu0 0.0
  %6834 = vmatpush2.xpose.msra.mxu0 0.0
  %6835 = vmatprep.subr.mxu0 0.0
  %6836 = vmatpush2.xpose.msra.mxu0 0.0
  %6837 = vmatprep.mubr.f32.mxu0 0.0
  %6838 = vmatmul.mubr.f32.gmra.mxu0 %v6769
  %v6839 = vpop.f32.mrf.mxu0
  %v6840 = vadd.f32 0.0, %v6839
  %v6841 = vpop.f32.mrf.mxu0
  %6842 = vdwg.mxu0
  %v6843 = vsel %vm5175, %v6840, -inf
  %6844 = vmax.xlane.f32.xlu0 %v6843
  %v6845 = vpop.xlane.xlu0 %6844
  %v6846 = vsub.f32 %v6840, %v6845
  %v6847 = vmul.f32 %v6846, 1.442695
  %v6848 = vpow.pop %v6847
  %v6849 = vsel %vm5175, %v6848, 0.0
  %6850 = vadd.xlane.f32.xlu0 %v6849
  %v6851 = vpop.xlane.xlu0 %6850
  %v6852 = vrcp.pop %v6851
  %v6853 = vmul.f32 %v6848, %v6852
  %6854 = vrot.lane.b32.xlu0 %v5092, 72
  %v6855 = vpop.permute.xlu0 %6854
  %v6858 = vsel %vm233, %v6853, 0
  %6860 = vmatprep.subr.mxu0 0.0
  %6861 = vmatpush1.msra.mxu0 0.0
  %6862 = vmatprep.subr.mxu0 0.0
  %6863 = vmatpush1.msra.mxu0 0.0
  %6864 = vmatprep.subr.mxu0 0.0
  %6865 = vmatpush1.msra.mxu0 0.0
  %6866 = vmatprep.subr.mxu0 0.0
  %6867 = vmatpush1.msra.mxu0 0.0
  %6868 = vmatprep.subr.mxu0 0.0
  %6869 = vmatpush1.msra.mxu0 0.0
  %6870 = vmatprep.subr.mxu0 0.0
  %6871 = vmatpush1.msra.mxu0 0.0
  %6872 = vmatprep.subr.mxu0 0.0
  %6873 = vmatpush1.msra.mxu0 0.0
  %6874 = vmatprep.subr.mxu0 0.0
  %6875 = vmatpush1.msra.mxu0 0.0
  %6876 = vmatprep.subr.mxu0 0.0
  %6877 = vmatpush1.msra.mxu0 0.0
  %6878 = vmatprep.subr.mxu0 0.0
  %6879 = vmatpush1.msra.mxu0 0.0
  %6880 = vmatprep.subr.mxu0 0.0
  %6881 = vmatpush1.msra.mxu0 0.0
  %6882 = vmatprep.subr.mxu0 0.0
  %6883 = vmatpush1.msra.mxu0 0.0
  %6884 = vmatprep.subr.mxu0 0.0
  %6885 = vmatpush1.msra.mxu0 0.0
  %6886 = vmatprep.subr.mxu0 0.0
  %6887 = vmatpush1.msra.mxu0 0.0
  %6888 = vmatprep.subr.mxu0 0.0
  %6889 = vmatpush1.msra.mxu0 0.0
  %6890 = vmatprep.subr.mxu0 0.0
  %6891 = vmatpush1.msra.mxu0 %v6855
  %6892 = vmatprep.subr.mxu0 0.0
  %6893 = vmatpush2.msra.mxu0 0.0
  %6894 = vmatprep.subr.mxu0 0.0
  %6895 = vmatpush2.msra.mxu0 0.0
  %6896 = vmatprep.subr.mxu0 0.0
  %6897 = vmatpush2.msra.mxu0 0.0
  %6898 = vmatprep.subr.mxu0 0.0
  %6899 = vmatpush2.msra.mxu0 0.0
  %6900 = vmatprep.subr.mxu0 0.0
  %6901 = vmatpush2.msra.mxu0 0.0
  %6902 = vmatprep.subr.mxu0 0.0
  %6903 = vmatpush2.msra.mxu0 0.0
  %6904 = vmatprep.subr.mxu0 0.0
  %6905 = vmatpush2.msra.mxu0 0.0
  %6906 = vmatprep.subr.mxu0 0.0
  %6907 = vmatpush2.msra.mxu0 0.0
  %6908 = vmatprep.subr.mxu0 0.0
  %6909 = vmatpush2.msra.mxu0 0.0
  %6910 = vmatprep.subr.mxu0 0.0
  %6911 = vmatpush2.msra.mxu0 0.0
  %6912 = vmatprep.subr.mxu0 0.0
  %6913 = vmatpush2.msra.mxu0 0.0
  %6914 = vmatprep.subr.mxu0 0.0
  %6915 = vmatpush2.msra.mxu0 0.0
  %6916 = vmatprep.subr.mxu0 0.0
  %6917 = vmatpush2.msra.mxu0 0.0
  %6918 = vmatprep.subr.mxu0 0.0
  %6919 = vmatpush2.msra.mxu0 0.0
  %6920 = vmatprep.subr.mxu0 0.0
  %6921 = vmatpush2.msra.mxu0 0.0
  %6922 = vmatprep.subr.mxu0 0.0
  %6923 = vmatpush2.msra.mxu0 0.0
  %6924 = vmatprep.mubr.f32.mxu0 0.0
  %6925 = vmatmul.mubr.f32.gmra.mxu0 %v6858
  %v6926 = vpop.f32.mrf.mxu0
  %v6927 = vadd.f32 0.0, %v6926
  %v6928 = vpop.f32.mrf.mxu0
  %6929 = vdwg.mxu0
  %v6931 = vsel %vm233, %v6927, 0
  %6933 = vmatprep.subr.mxu0 0.0
  %6934 = vmatpush1.msra.mxu0 0.0
  %6935 = vmatprep.subr.mxu0 0.0
  %6936 = vmatpush1.msra.mxu0 0.0
  %6937 = vmatprep.subr.mxu0 0.0
  %6938 = vmatpush1.msra.mxu0 0.0
  %6939 = vmatprep.subr.mxu0 0.0
  %6940 = vmatpush1.msra.mxu0 0.0
  %6941 = vmatprep.subr.mxu0 0.0
  %6942 = vmatpush1.msra.mxu0 0.0
  %6943 = vmatprep.subr.mxu0 0.0
  %6944 = vmatpush1.msra.mxu0 0.0
  %6945 = vmatprep.subr.mxu0 0.0
  %6946 = vmatpush1.msra.mxu0 0.0
  %6947 = vmatprep.subr.mxu0 0.0
  %6948 = vmatpush1.msra.mxu0 0.0
  %6949 = vmatprep.subr.mxu0 0.0
  %6950 = vmatpush1.msra.mxu0 0.0
  %6951 = vmatprep.subr.mxu0 0.0
  %6952 = vmatpush1.msra.mxu0 0.0
  %6953 = vmatprep.subr.mxu0 0.0
  %6954 = vmatpush1.msra.mxu0 0.0
  %6955 = vmatprep.subr.mxu0 0.0
  %6956 = vmatpush1.msra.mxu0 0.0
  %6957 = vmatprep.subr.mxu0 0.0
  %6958 = vmatpush1.msra.mxu0 0.0
  %6959 = vmatprep.subr.mxu0 0.0
  %6960 = vmatpush1.msra.mxu0 0.0
  %6961 = vmatprep.subr.mxu0 0.0
  %6962 = vmatpush1.msra.mxu0 0.0
  %6963 = vmatprep.subr.mxu0 0.0
  %6964 = vmatpush1.msra.mxu0 %v5098
  %6965 = vmatprep.subr.mxu0 0.0
  %6966 = vmatpush2.msra.mxu0 0.0
  %6967 = vmatprep.subr.mxu0 0.0
  %6968 = vmatpush2.msra.mxu0 0.0
  %6969 = vmatprep.subr.mxu0 0.0
  %6970 = vmatpush2.msra.mxu0 0.0
  %6971 = vmatprep.subr.mxu0 0.0
  %6972 = vmatpush2.msra.mxu0 0.0
  %6973 = vmatprep.subr.mxu0 0.0
  %6974 = vmatpush2.msra.mxu0 0.0
  %6975 = vmatprep.subr.mxu0 0.0
  %6976 = vmatpush2.msra.mxu0 0.0
  %6977 = vmatprep.subr.mxu0 0.0
  %6978 = vmatpush2.msra.mxu0 0.0
  %6979 = vmatprep.subr.mxu0 0.0
  %6980 = vmatpush2.msra.mxu0 0.0
  %6981 = vmatprep.subr.mxu0 0.0
  %6982 = vmatpush2.msra.mxu0 0.0
  %6983 = vmatprep.subr.mxu0 0.0
  %6984 = vmatpush2.msra.mxu0 0.0
  %6985 = vmatprep.subr.mxu0 0.0
  %6986 = vmatpush2.msra.mxu0 0.0
  %6987 = vmatprep.subr.mxu0 0.0
  %6988 = vmatpush2.msra.mxu0 0.0
  %6989 = vmatprep.subr.mxu0 0.0
  %6990 = vmatpush2.msra.mxu0 0.0
  %6991 = vmatprep.subr.mxu0 0.0
  %6992 = vmatpush2.msra.mxu0 0.0
  %6993 = vmatprep.subr.mxu0 0.0
  %6994 = vmatpush2.msra.mxu0 0.0
  %6995 = vmatprep.subr.mxu0 0.0
  %6996 = vmatpush2.msra.mxu0 0.0
  %6997 = vmatprep.mubr.f32.mxu0 0.0
  %6998 = vmatmul.mubr.f32.gmra.mxu0 %v6931
  %v6999 = vpop.f32.mrf.mxu0
  %v7000 = vadd.f32 0.0, %v6999
  %v7001 = vpop.f32.mrf.mxu0
  %7002 = vdwg.mxu0
  %v7003 = vadd.f32 %v6764, %v7000
  %v7005 = vrot.slane %v7003, 7
  %v7007 = vsel %vm127, %v6051, %v7005
  %v7008 = vld [vmem:[%s4 + $0x1d0] sm:$0x1]
  %v7009 = vlaneseq
  %v7010 = vshrl.u32 %v7009, 7
  %v7011 = vsub.s32 0, %v7010
  %v7012 = vrot.slane %v7008, %v7011
  %v7013 = vadd.f32 %v7007, %v7012
  %v7014 = vadd.f32 %v4922, %v7013
  %v7015 = vld [vmem:[%s4 + $0x230] sm:$0x1]
  %v7016 = vld [vmem:[%s4 + $0x238] sm:$0x1]
  %v7017 = vsel %vm4899, %v7014, 0.0
  %7018 = vadd.xlane.f32.xlu0 %v7017
  %v7019 = vpop.xlane.xlu0 %7018
  %v7020 = vmul.f32 %v7019, %v2153
  %v7021 = vsub.f32 %v7014, %v7020
  %v7022 = vmul.f32 %v7021, %v7021
  %v7023 = vsel %vm4899, %v7022, 0.0
  %7024 = vadd.xlane.f32.xlu0 %v7023
  %v7025 = vpop.xlane.xlu0 %7024
  %v7026 = vmul.f32 %v7025, %v2153
  %v7027 = vadd.f32 %v7026, 1e-05
  %v7028 = vrsqrt.pop %v7027
  %v7029 = vmul.f32 %v7021, %v7028
  %v7030 = vlaneseq
  %v7031 = vshrl.u32 %v7030, 7
  %v7032 = vsub.s32 0, %v7031
  %v7033 = vrot.slane %v7015, %v7032
  %v7034 = vmul.f32 %v7029, %v7033
  %v7035 = vlaneseq
  %v7036 = vshrl.u32 %v7035, 7
  %v7037 = vsub.s32 0, %v7036
  %v7038 = vrot.slane %v7016, %v7037
  %v7039 = vadd.f32 %v7034, %v7038
  %v7040 = vld [vmem:[%s3 + $0x50] sm:$0xff]
  %v7041 = vld [vmem:[%s3 + $0x58] sm:$0xff]
  %v7042 = vld [vmem:[%s3 + $0x60] sm:$0xff]
  %v7043 = vld [vmem:[%s3 + $0x68] sm:$0xff]
  %v7044 = vld [vmem:[%s3 + $0x70] sm:$0x1]
  %v7045 = vlaneseq
  %v7046 = vshrl.u32 %v7045, 7
  %v7047 = vsub.s32 0, %v7046
  %v7048 = vrot.slane %v7044, %v7047
  %v7050 = vsel %vm148, %v7039, 0
  %7052 = vmatprep.subr.mxu0 0.0
  %7053 = vmatpush1.msra.mxu0 0.0
  %7054 = vmatprep.subr.mxu0 0.0
  %7055 = vmatpush1.msra.mxu0 0.0
  %7056 = vmatprep.subr.mxu0 0.0
  %7057 = vmatpush1.msra.mxu0 0.0
  %7058 = vmatprep.subr.mxu0 0.0
  %7059 = vmatpush1.msra.mxu0 0.0
  %7060 = vmatprep.subr.mxu0 0.0
  %7061 = vmatpush1.msra.mxu0 0.0
  %7062 = vmatprep.subr.mxu0 0.0
  %7063 = vmatpush1.msra.mxu0 0.0
  %7064 = vmatprep.subr.mxu0 0.0
  %7065 = vmatpush1.msra.mxu0 0.0
  %7066 = vmatprep.subr.mxu0 0.0
  %7067 = vmatpush1.msra.mxu0 0.0
  %7068 = vmatprep.subr.mxu0 0.0
  %7069 = vmatpush1.msra.mxu0 0.0
  %7070 = vmatprep.subr.mxu0 0.0
  %7071 = vmatpush1.msra.mxu0 0.0
  %7072 = vmatprep.subr.mxu0 0.0
  %7073 = vmatpush1.msra.mxu0 0.0
  %7074 = vmatprep.subr.mxu0 0.0
  %7075 = vmatpush1.msra.mxu0 0.0
  %7076 = vmatprep.subr.mxu0 0.0
  %7077 = vmatpush1.msra.mxu0 %v7043
  %7078 = vmatprep.subr.mxu0 0.0
  %7079 = vmatpush1.msra.mxu0 %v7042
  %7080 = vmatprep.subr.mxu0 0.0
  %7081 = vmatpush1.msra.mxu0 %v7041
  %7082 = vmatprep.subr.mxu0 0.0
  %7083 = vmatpush1.msra.mxu0 %v7040
  %7084 = vmatprep.subr.mxu0 0.0
  %7085 = vmatpush2.msra.mxu0 0.0
  %7086 = vmatprep.subr.mxu0 0.0
  %7087 = vmatpush2.msra.mxu0 0.0
  %7088 = vmatprep.subr.mxu0 0.0
  %7089 = vmatpush2.msra.mxu0 0.0
  %7090 = vmatprep.subr.mxu0 0.0
  %7091 = vmatpush2.msra.mxu0 0.0
  %7092 = vmatprep.subr.mxu0 0.0
  %7093 = vmatpush2.msra.mxu0 0.0
  %7094 = vmatprep.subr.mxu0 0.0
  %7095 = vmatpush2.msra.mxu0 0.0
  %7096 = vmatprep.subr.mxu0 0.0
  %7097 = vmatpush2.msra.mxu0 0.0
  %7098 = vmatprep.subr.mxu0 0.0
  %7099 = vmatpush2.msra.mxu0 0.0
  %7100 = vmatprep.subr.mxu0 0.0
  %7101 = vmatpush2.msra.mxu0 0.0
  %7102 = vmatprep.subr.mxu0 0.0
  %7103 = vmatpush2.msra.mxu0 0.0
  %7104 = vmatprep.subr.mxu0 0.0
  %7105 = vmatpush2.msra.mxu0 0.0
  %7106 = vmatprep.subr.mxu0 0.0
  %7107 = vmatpush2.msra.mxu0 0.0
  %7108 = vmatprep.subr.mxu0 0.0
  %7109 = vmatpush2.msra.mxu0 0.0
  %7110 = vmatprep.subr.mxu0 0.0
  %7111 = vmatpush2.msra.mxu0 0.0
  %7112 = vmatprep.subr.mxu0 0.0
  %7113 = vmatpush2.msra.mxu0 0.0
  %7114 = vmatprep.subr.mxu0 0.0
  %7115 = vmatpush2.msra.mxu0 0.0
  %7116 = vmatprep.mubr.f32.mxu0 0.0
  %7117 = vmatmul.mubr.f32.gmra.mxu0 %v7050
  %v7118 = vpop.f32.mrf.mxu0
  %v7119 = vadd.f32 %v7048, %v7118
  %v7120 = vpop.f32.mrf.mxu0
  %7121 = vdwg.mxu0
  %v7122 = vmax.f32 %v7119, 0.0
  %v7123 = vld [vmem:[%s4 + $0x1d8] sm:$0xff]
  %v7124 = vld [vmem:[%s4 + $0x1e0] sm:$0xff]
  %v7125 = vld [vmem:[%s4 + $0x1e8] sm:$0xff]
  %v7126 = vld [vmem:[%s4 + $0x1f0] sm:$0xff]
  %v7127 = vld [vmem:[%s4 + $0x1f8] sm:$0xff]
  %v7128 = vld [vmem:[%s4 + $0x200] sm:$0xff]
  %v7129 = vld [vmem:[%s4 + $0x208] sm:$0xff]
  %v7130 = vld [vmem:[%s4 + $0x210] sm:$0xff]
  %v7131 = vld [vmem:[%s4 + $0x218] sm:$0x1]
  %v7132 = vlaneseq
  %v7133 = vshrl.u32 %v7132, 7
  %v7134 = vsub.s32 0, %v7133
  %v7135 = vrot.slane %v7131, %v7134
  %v7137 = vsel %vm2291, %v7122, 0
  %7139 = vmatprep.subr.mxu0 0.0
  %7140 = vmatpush1.msra.mxu0 0.0
  %7141 = vmatprep.subr.mxu0 0.0
  %7142 = vmatpush1.msra.mxu0 0.0
  %7143 = vmatprep.subr.mxu0 0.0
  %7144 = vmatpush1.msra.mxu0 0.0
  %7145 = vmatprep.subr.mxu0 0.0
  %7146 = vmatpush1.msra.mxu0 0.0
  %7147 = vmatprep.subr.mxu0 0.0
  %7148 = vmatpush1.msra.mxu0 0.0
  %7149 = vmatprep.subr.mxu0 0.0
  %7150 = vmatpush1.msra.mxu0 0.0
  %7151 = vmatprep.subr.mxu0 0.0
  %7152 = vmatpush1.msra.mxu0 0.0
  %7153 = vmatprep.subr.mxu0 0.0
  %7154 = vmatpush1.msra.mxu0 0.0
  %7155 = vmatprep.subr.mxu0 0.0
  %7156 = vmatpush1.msra.mxu0 %v7130
  %7157 = vmatprep.subr.mxu0 0.0
  %7158 = vmatpush1.msra.mxu0 %v7129
  %7159 = vmatprep.subr.mxu0 0.0
  %7160 = vmatpush1.msra.mxu0 %v7128
  %7161 = vmatprep.subr.mxu0 0.0
  %7162 = vmatpush1.msra.mxu0 %v7127
  %7163 = vmatprep.subr.mxu0 0.0
  %7164 = vmatpush1.msra.mxu0 %v7126
  %7165 = vmatprep.subr.mxu0 0.0
  %7166 = vmatpush1.msra.mxu0 %v7125
  %7167 = vmatprep.subr.mxu0 0.0
  %7168 = vmatpush1.msra.mxu0 %v7124
  %7169 = vmatprep.subr.mxu0 0.0
  %7170 = vmatpush1.msra.mxu0 %v7123
  %7171 = vmatprep.subr.mxu0 0.0
  %7172 = vmatpush2.msra.mxu0 0.0
  %7173 = vmatprep.subr.mxu0 0.0
  %7174 = vmatpush2.msra.mxu0 0.0
  %7175 = vmatprep.subr.mxu0 0.0
  %7176 = vmatpush2.msra.mxu0 0.0
  %7177 = vmatprep.subr.mxu0 0.0
  %7178 = vmatpush2.msra.mxu0 0.0
  %7179 = vmatprep.subr.mxu0 0.0
  %7180 = vmatpush2.msra.mxu0 0.0
  %7181 = vmatprep.subr.mxu0 0.0
  %7182 = vmatpush2.msra.mxu0 0.0
  %7183 = vmatprep.subr.mxu0 0.0
  %7184 = vmatpush2.msra.mxu0 0.0
  %7185 = vmatprep.subr.mxu0 0.0
  %7186 = vmatpush2.msra.mxu0 0.0
  %7187 = vmatprep.subr.mxu0 0.0
  %7188 = vmatpush2.msra.mxu0 0.0
  %7189 = vmatprep.subr.mxu0 0.0
  %7190 = vmatpush2.msra.mxu0 0.0
  %7191 = vmatprep.subr.mxu0 0.0
  %7192 = vmatpush2.msra.mxu0 0.0
  %7193 = vmatprep.subr.mxu0 0.0
  %7194 = vmatpush2.msra.mxu0 0.0
  %7195 = vmatprep.subr.mxu0 0.0
  %7196 = vmatpush2.msra.mxu0 0.0
  %7197 = vmatprep.subr.mxu0 0.0
  %7198 = vmatpush2.msra.mxu0 0.0
  %7199 = vmatprep.subr.mxu0 0.0
  %7200 = vmatpush2.msra.mxu0 0.0
  %7201 = vmatprep.subr.mxu0 0.0
  %7202 = vmatpush2.msra.mxu0 0.0
  %7203 = vmatprep.mubr.f32.mxu0 0.0
  %7204 = vmatmul.mubr.f32.gmra.mxu0 %v7137
  %v7205 = vpop.f32.mrf.mxu0
  %v7206 = vadd.f32 %v7135, %v7205
  %v7207 = vpop.f32.mrf.mxu0
  %7208 = vdwg.mxu0
  %v7209 = vadd.f32 %v7039, %v7206
  %v7210 = vld [vmem:[%s4 + $0x240] sm:$0x1]
  %v7211 = vld [vmem:[%s4 + $0x248] sm:$0x1]
  %v7212 = vsel %vm4899, %v7209, 0.0
  %7213 = vadd.xlane.f32.xlu0 %v7212
  %v7214 = vpop.xlane.xlu0 %7213
  %v7215 = vmul.f32 %v7214, %v2153
  %v7216 = vsub.f32 %v7209, %v7215
  %v7217 = vmul.f32 %v7216, %v7216
  %v7218 = vsel %vm4899, %v7217, 0.0
  %7219 = vadd.xlane.f32.xlu0 %v7218
  %v7220 = vpop.xlane.xlu0 %7219
  %v7221 = vmul.f32 %v7220, %v2153
  %v7222 = vadd.f32 %v7221, 1e-05
  %v7223 = vrsqrt.pop %v7222
  %v7224 = vmul.f32 %v7216, %v7223
  %v7225 = vlaneseq
  %v7226 = vshrl.u32 %v7225, 7
  %v7227 = vsub.s32 0, %v7226
  %v7228 = vrot.slane %v7210, %v7227
  %v7229 = vmul.f32 %v7224, %v7228
  %v7230 = vlaneseq
  %v7231 = vshrl.u32 %v7230, 7
  %v7232 = vsub.s32 0, %v7231
  %v7233 = vrot.slane %v7211, %v7232
  %v7234 = vadd.f32 %v7229, %v7233
  %v7235 = vld [vmem:[%s4 + $0x250] sm:$0xff]
  %v7236 = vld [vmem:[%s4 + $0x258] sm:$0xff]
  %v7237 = vld [vmem:[%s4 + $0x260] sm:$0xff]
  %v7238 = vld [vmem:[%s4 + $0x268] sm:$0xff]
  %v7239 = vld [vmem:[%s4 + $0x270] sm:$0x1]
  %v7240 = vlaneseq
  %v7241 = vshrl.u32 %v7240, 7
  %v7242 = vsub.s32 0, %v7241
  %v7243 = vrot.slane %v7239, %v7242
  %v7245 = vsel %vm148, %v7234, 0
  %7247 = vmatprep.subr.mxu0 0.0
  %7248 = vmatpush1.msra.mxu0 0.0
  %7249 = vmatprep.subr.mxu0 0.0
  %7250 = vmatpush1.msra.mxu0 0.0
  %7251 = vmatprep.subr.mxu0 0.0
  %7252 = vmatpush1.msra.mxu0 0.0
  %7253 = vmatprep.subr.mxu0 0.0
  %7254 = vmatpush1.msra.mxu0 0.0
  %7255 = vmatprep.subr.mxu0 0.0
  %7256 = vmatpush1.msra.mxu0 0.0
  %7257 = vmatprep.subr.mxu0 0.0
  %7258 = vmatpush1.msra.mxu0 0.0
  %7259 = vmatprep.subr.mxu0 0.0
  %7260 = vmatpush1.msra.mxu0 0.0
  %7261 = vmatprep.subr.mxu0 0.0
  %7262 = vmatpush1.msra.mxu0 0.0
  %7263 = vmatprep.subr.mxu0 0.0
  %7264 = vmatpush1.msra.mxu0 0.0
  %7265 = vmatprep.subr.mxu0 0.0
  %7266 = vmatpush1.msra.mxu0 0.0
  %7267 = vmatprep.subr.mxu0 0.0
  %7268 = vmatpush1.msra.mxu0 0.0
  %7269 = vmatprep.subr.mxu0 0.0
  %7270 = vmatpush1.msra.mxu0 0.0
  %7271 = vmatprep.subr.mxu0 0.0
  %7272 = vmatpush1.msra.mxu0 %v7238
  %7273 = vmatprep.subr.mxu0 0.0
  %7274 = vmatpush1.msra.mxu0 %v7237
  %7275 = vmatprep.subr.mxu0 0.0
  %7276 = vmatpush1.msra.mxu0 %v7236
  %7277 = vmatprep.subr.mxu0 0.0
  %7278 = vmatpush1.msra.mxu0 %v7235
  %7279 = vmatprep.subr.mxu0 0.0
  %7280 = vmatpush2.msra.mxu0 0.0
  %7281 = vmatprep.subr.mxu0 0.0
  %7282 = vmatpush2.msra.mxu0 0.0
  %7283 = vmatprep.subr.mxu0 0.0
  %7284 = vmatpush2.msra.mxu0 0.0
  %7285 = vmatprep.subr.mxu0 0.0
  %7286 = vmatpush2.msra.mxu0 0.0
  %7287 = vmatprep.subr.mxu0 0.0
  %7288 = vmatpush2.msra.mxu0 0.0
  %7289 = vmatprep.subr.mxu0 0.0
  %7290 = vmatpush2.msra.mxu0 0.0
  %7291 = vmatprep.subr.mxu0 0.0
  %7292 = vmatpush2.msra.mxu0 0.0
  %7293 = vmatprep.subr.mxu0 0.0
  %7294 = vmatpush2.msra.mxu0 0.0
  %7295 = vmatprep.subr.mxu0 0.0
  %7296 = vmatpush2.msra.mxu0 0.0
  %7297 = vmatprep.subr.mxu0 0.0
  %7298 = vmatpush2.msra.mxu0 0.0
  %7299 = vmatprep.subr.mxu0 0.0
  %7300 = vmatpush2.msra.mxu0 0.0
  %7301 = vmatprep.subr.mxu0 0.0
  %7302 = vmatpush2.msra.mxu0 0.0
  %7303 = vmatprep.subr.mxu0 0.0
  %7304 = vmatpush2.msra.mxu0 0.0
  %7305 = vmatprep.subr.mxu0 0.0
  %7306 = vmatpush2.msra.mxu0 0.0
  %7307 = vmatprep.subr.mxu0 0.0
  %7308 = vmatpush2.msra.mxu0 0.0
  %7309 = vmatprep.subr.mxu0 0.0
  %7310 = vmatpush2.msra.mxu0 0.0
  %7311 = vmatprep.mubr.f32.mxu0 0.0
  %7312 = vmatmul.mubr.f32.gmra.mxu0 %v7245
  %v7313 = vpop.f32.mrf.mxu0
  %v7314 = vadd.f32 %v7243, %v7313
  %v7315 = vpop.f32.mrf.mxu0
  %7316 = vdwg.mxu0
  %v7317 = vld [vmem:[%s4 + $0x278] sm:$0xff]
  %v7318 = vld [vmem:[%s4 + $0x280] sm:$0xff]
  %v7319 = vld [vmem:[%s4 + $0x288] sm:$0xff]
  %v7320 = vld [vmem:[%s4 + $0x290] sm:$0xff]
  %v7321 = vld [vmem:[%s4 + $0x298] sm:$0x1]
  %v7322 = vlaneseq
  %v7323 = vshrl.u32 %v7322, 7
  %v7324 = vsub.s32 0, %v7323
  %v7325 = vrot.slane %v7321, %v7324
  %v7327 = vsel %vm148, %v7314, 0
  %7329 = vmatprep.subr.mxu0 0.0
  %7330 = vmatpush1.msra.mxu0 0.0
  %7331 = vmatprep.subr.mxu0 0.0
  %7332 = vmatpush1.msra.mxu0 0.0
  %7333 = vmatprep.subr.mxu0 0.0
  %7334 = vmatpush1.msra.mxu0 0.0
  %7335 = vmatprep.subr.mxu0 0.0
  %7336 = vmatpush1.msra.mxu0 0.0
  %7337 = vmatprep.subr.mxu0 0.0
  %7338 = vmatpush1.msra.mxu0 0.0
  %7339 = vmatprep.subr.mxu0 0.0
  %7340 = vmatpush1.msra.mxu0 0.0
  %7341 = vmatprep.subr.mxu0 0.0
  %7342 = vmatpush1.msra.mxu0 0.0
  %7343 = vmatprep.subr.mxu0 0.0
  %7344 = vmatpush1.msra.mxu0 0.0
  %7345 = vmatprep.subr.mxu0 0.0
  %7346 = vmatpush1.msra.mxu0 0.0
  %7347 = vmatprep.subr.mxu0 0.0
  %7348 = vmatpush1.msra.mxu0 0.0
  %7349 = vmatprep.subr.mxu0 0.0
  %7350 = vmatpush1.msra.mxu0 0.0
  %7351 = vmatprep.subr.mxu0 0.0
  %7352 = vmatpush1.msra.mxu0 0.0
  %7353 = vmatprep.subr.mxu0 0.0
  %7354 = vmatpush1.msra.mxu0 %v7320
  %7355 = vmatprep.subr.mxu0 0.0
  %7356 = vmatpush1.msra.mxu0 %v7319
  %7357 = vmatprep.subr.mxu0 0.0
  %7358 = vmatpush1.msra.mxu0 %v7318
  %7359 = vmatprep.subr.mxu0 0.0
  %7360 = vmatpush1.msra.mxu0 %v7317
  %7361 = vmatprep.subr.mxu0 0.0
  %7362 = vmatpush2.msra.mxu0 0.0
  %7363 = vmatprep.subr.mxu0 0.0
  %7364 = vmatpush2.msra.mxu0 0.0
  %7365 = vmatprep.subr.mxu0 0.0
  %7366 = vmatpush2.msra.mxu0 0.0
  %7367 = vmatprep.subr.mxu0 0.0
  %7368 = vmatpush2.msra.mxu0 0.0
  %7369 = vmatprep.subr.mxu0 0.0
  %7370 = vmatpush2.msra.mxu0 0.0
  %7371 = vmatprep.subr.mxu0 0.0
  %7372 = vmatpush2.msra.mxu0 0.0
  %7373 = vmatprep.subr.mxu0 0.0
  %7374 = vmatpush2.msra.mxu0 0.0
  %7375 = vmatprep.subr.mxu0 0.0
  %7376 = vmatpush2.msra.mxu0 0.0
  %7377 = vmatprep.subr.mxu0 0.0
  %7378 = vmatpush2.msra.mxu0 0.0
  %7379 = vmatprep.subr.mxu0 0.0
  %7380 = vmatpush2.msra.mxu0 0.0
  %7381 = vmatprep.subr.mxu0 0.0
  %7382 = vmatpush2.msra.mxu0 0.0
  %7383 = vmatprep.subr.mxu0 0.0
  %7384 = vmatpush2.msra.mxu0 0.0
  %7385 = vmatprep.subr.mxu0 0.0
  %7386 = vmatpush2.msra.mxu0 0.0
  %7387 = vmatprep.subr.mxu0 0.0
  %7388 = vmatpush2.msra.mxu0 0.0
  %7389 = vmatprep.subr.mxu0 0.0
  %7390 = vmatpush2.msra.mxu0 0.0
  %7391 = vmatprep.subr.mxu0 0.0
  %7392 = vmatpush2.msra.mxu0 0.0
  %7393 = vmatprep.mubr.f32.mxu0 0.0
  %7394 = vmatmul.mubr.f32.gmra.mxu0 %v7327
  %v7395 = vpop.f32.mrf.mxu0
  %v7396 = vadd.f32 %v7325, %v7395
  %v7397 = vpop.f32.mrf.mxu0
  %7398 = vdwg.mxu0
  %v7399 = vadd.f32 %v7234, %v7396
  %v7400 = vld [vmem:[%s4 + $0x338] sm:$0x1]
  %v7401 = vld [vmem:[%s4 + $0x340] sm:$0x1]
  %v7402 = vsel %vm4899, %v7399, 0.0
  %7403 = vadd.xlane.f32.xlu0 %v7402
  %v7404 = vpop.xlane.xlu0 %7403
  %v7405 = vmul.f32 %v7404, %v2153
  %v7406 = vsub.f32 %v7399, %v7405
  %v7407 = vmul.f32 %v7406, %v7406
  %v7408 = vsel %vm4899, %v7407, 0.0
  %7409 = vadd.xlane.f32.xlu0 %v7408
  %v7410 = vpop.xlane.xlu0 %7409
  %v7411 = vmul.f32 %v7410, %v2153
  %v7412 = vadd.f32 %v7411, 1e-05
  %v7413 = vrsqrt.pop %v7412
  %v7414 = vmul.f32 %v7406, %v7413
  %v7415 = vlaneseq
  %v7416 = vshrl.u32 %v7415, 7
  %v7417 = vsub.s32 0, %v7416
  %v7418 = vrot.slane %v7400, %v7417
  %v7419 = vmul.f32 %v7414, %v7418
  %v7420 = vlaneseq
  %v7421 = vshrl.u32 %v7420, 7
  %v7422 = vsub.s32 0, %v7421
  %v7423 = vrot.slane %v7401, %v7422
  %v7424 = vadd.f32 %v7419, %v7423
  %v7425 = vld [vmem:[%s4 + $0x2a0] sm:$0xff]
  %v7426 = vld [vmem:[%s4 + $0x2a8] sm:$0xff]
  %v7427 = vld [vmem:[%s4 + $0x2b0] sm:$0xff]
  %v7428 = vld [vmem:[%s4 + $0x2b8] sm:$0xff]
  %v7429 = vld [vmem:[%s4 + $0x2c0] sm:$0x1]
  %v7430 = vlaneseq
  %v7431 = vshrl.u32 %v7430, 7
  %v7432 = vsub.s32 0, %v7431
  %v7433 = vrot.slane %v7429, %v7432
  %v7435 = vsel %vm148, %v7424, 0
  %7437 = vmatprep.subr.mxu0 0.0
  %7438 = vmatpush1.msra.mxu0 0.0
  %7439 = vmatprep.subr.mxu0 0.0
  %7440 = vmatpush1.msra.mxu0 0.0
  %7441 = vmatprep.subr.mxu0 0.0
  %7442 = vmatpush1.msra.mxu0 0.0
  %7443 = vmatprep.subr.mxu0 0.0
  %7444 = vmatpush1.msra.mxu0 0.0
  %7445 = vmatprep.subr.mxu0 0.0
  %7446 = vmatpush1.msra.mxu0 0.0
  %7447 = vmatprep.subr.mxu0 0.0
  %7448 = vmatpush1.msra.mxu0 0.0
  %7449 = vmatprep.subr.mxu0 0.0
  %7450 = vmatpush1.msra.mxu0 0.0
  %7451 = vmatprep.subr.mxu0 0.0
  %7452 = vmatpush1.msra.mxu0 0.0
  %7453 = vmatprep.subr.mxu0 0.0
  %7454 = vmatpush1.msra.mxu0 0.0
  %7455 = vmatprep.subr.mxu0 0.0
  %7456 = vmatpush1.msra.mxu0 0.0
  %7457 = vmatprep.subr.mxu0 0.0
  %7458 = vmatpush1.msra.mxu0 0.0
  %7459 = vmatprep.subr.mxu0 0.0
  %7460 = vmatpush1.msra.mxu0 0.0
  %7461 = vmatprep.subr.mxu0 0.0
  %7462 = vmatpush1.msra.mxu0 %v7428
  %7463 = vmatprep.subr.mxu0 0.0
  %7464 = vmatpush1.msra.mxu0 %v7427
  %7465 = vmatprep.subr.mxu0 0.0
  %7466 = vmatpush1.msra.mxu0 %v7426
  %7467 = vmatprep.subr.mxu0 0.0
  %7468 = vmatpush1.msra.mxu0 %v7425
  %7469 = vmatprep.subr.mxu0 0.0
  %7470 = vmatpush2.msra.mxu0 0.0
  %7471 = vmatprep.subr.mxu0 0.0
  %7472 = vmatpush2.msra.mxu0 0.0
  %7473 = vmatprep.subr.mxu0 0.0
  %7474 = vmatpush2.msra.mxu0 0.0
  %7475 = vmatprep.subr.mxu0 0.0
  %7476 = vmatpush2.msra.mxu0 0.0
  %7477 = vmatprep.subr.mxu0 0.0
  %7478 = vmatpush2.msra.mxu0 0.0
  %7479 = vmatprep.subr.mxu0 0.0
  %7480 = vmatpush2.msra.mxu0 0.0
  %7481 = vmatprep.subr.mxu0 0.0
  %7482 = vmatpush2.msra.mxu0 0.0
  %7483 = vmatprep.subr.mxu0 0.0
  %7484 = vmatpush2.msra.mxu0 0.0
  %7485 = vmatprep.subr.mxu0 0.0
  %7486 = vmatpush2.msra.mxu0 0.0
  %7487 = vmatprep.subr.mxu0 0.0
  %7488 = vmatpush2.msra.mxu0 0.0
  %7489 = vmatprep.subr.mxu0 0.0
  %7490 = vmatpush2.msra.mxu0 0.0
  %7491 = vmatprep.subr.mxu0 0.0
  %7492 = vmatpush2.msra.mxu0 0.0
  %7493 = vmatprep.subr.mxu0 0.0
  %7494 = vmatpush2.msra.mxu0 0.0
  %7495 = vmatprep.subr.mxu0 0.0
  %7496 = vmatpush2.msra.mxu0 0.0
  %7497 = vmatprep.subr.mxu0 0.0
  %7498 = vmatpush2.msra.mxu0 0.0
  %7499 = vmatprep.subr.mxu0 0.0
  %7500 = vmatpush2.msra.mxu0 0.0
  %7501 = vmatprep.mubr.f32.mxu0 0.0
  %7502 = vmatmul.mubr.f32.gmra.mxu0 %v7435
  %v7503 = vpop.f32.mrf.mxu0
  %v7504 = vadd.f32 %v7433, %v7503
  %v7505 = vpop.f32.mrf.mxu0
  %7506 = vdwg.mxu0
  %v7507 = vld [vmem:[%s2 + $0x28] sm:$0xff]
  %v7508 = vld [vmem:[%s2 + $0x30] sm:$0xff]
  %v7509 = vld [vmem:[%s2 + $0x38] sm:$0xff]
  %v7510 = vld [vmem:[%s2 + $0x40] sm:$0xff]
  %v7511 = vld [vmem:[%s2 + $0x48] sm:$0x1]
  %v7512 = vlaneseq
  %v7513 = vshrl.u32 %v7512, 7
  %v7514 = vsub.s32 0, %v7513
  %v7515 = vrot.slane %v7511, %v7514
  %7516 = vmatprep.subr.mxu0 0.0
  %7517 = vmatpush1.msra.mxu0 0.0
  %7518 = vmatprep.subr.mxu0 0.0
  %7519 = vmatpush1.msra.mxu0 0.0
  %7520 = vmatprep.subr.mxu0 0.0
  %7521 = vmatpush1.msra.mxu0 0.0
  %7522 = vmatprep.subr.mxu0 0.0
  %7523 = vmatpush1.msra.mxu0 0.0
  %7524 = vmatprep.subr.mxu0 0.0
  %7525 = vmatpush1.msra.mxu0 0.0
  %7526 = vmatprep.subr.mxu0 0.0
  %7527 = vmatpush1.msra.mxu0 0.0
  %7528 = vmatprep.subr.mxu0 0.0
  %7529 = vmatpush1.msra.mxu0 0.0
  %7530 = vmatprep.subr.mxu0 0.0
  %7531 = vmatpush1.msra.mxu0 0.0
  %7532 = vmatprep.subr.mxu0 0.0
  %7533 = vmatpush1.msra.mxu0 0.0
  %7534 = vmatprep.subr.mxu0 0.0
  %7535 = vmatpush1.msra.mxu0 0.0
  %7536 = vmatprep.subr.mxu0 0.0
  %7537 = vmatpush1.msra.mxu0 0.0
  %7538 = vmatprep.subr.mxu0 0.0
  %7539 = vmatpush1.msra.mxu0 0.0
  %7540 = vmatprep.subr.mxu0 0.0
  %7541 = vmatpush1.msra.mxu0 %v7510
  %7542 = vmatprep.subr.mxu0 0.0
  %7543 = vmatpush1.msra.mxu0 %v7509
  %7544 = vmatprep.subr.mxu0 0.0
  %7545 = vmatpush1.msra.mxu0 %v7508
  %7546 = vmatprep.subr.mxu0 0.0
  %7547 = vmatpush1.msra.mxu0 %v7507
  %7548 = vmatprep.subr.mxu0 0.0
  %7549 = vmatpush2.msra.mxu0 0.0
  %7550 = vmatprep.subr.mxu0 0.0
  %7551 = vmatpush2.msra.mxu0 0.0
  %7552 = vmatprep.subr.mxu0 0.0
  %7553 = vmatpush2.msra.mxu0 0.0
  %7554 = vmatprep.subr.mxu0 0.0
  %7555 = vmatpush2.msra.mxu0 0.0
  %7556 = vmatprep.subr.mxu0 0.0
  %7557 = vmatpush2.msra.mxu0 0.0
  %7558 = vmatprep.subr.mxu0 0.0
  %7559 = vmatpush2.msra.mxu0 0.0
  %7560 = vmatprep.subr.mxu0 0.0
  %7561 = vmatpush2.msra.mxu0 0.0
  %7562 = vmatprep.subr.mxu0 0.0
  %7563 = vmatpush2.msra.mxu0 0.0
  %7564 = vmatprep.subr.mxu0 0.0
  %7565 = vmatpush2.msra.mxu0 0.0
  %7566 = vmatprep.subr.mxu0 0.0
  %7567 = vmatpush2.msra.mxu0 0.0
  %7568 = vmatprep.subr.mxu0 0.0
  %7569 = vmatpush2.msra.mxu0 0.0
  %7570 = vmatprep.subr.mxu0 0.0
  %7571 = vmatpush2.msra.mxu0 0.0
  %7572 = vmatprep.subr.mxu0 0.0
  %7573 = vmatpush2.msra.mxu0 0.0
  %7574 = vmatprep.subr.mxu0 0.0
  %7575 = vmatpush2.msra.mxu0 0.0
  %7576 = vmatprep.subr.mxu0 0.0
  %7577 = vmatpush2.msra.mxu0 0.0
  %7578 = vmatprep.subr.mxu0 0.0
  %7579 = vmatpush2.msra.mxu0 0.0
  %7580 = vmatprep.mubr.f32.mxu0 0.0
  %7581 = vmatmul.mubr.f32.gmra.mxu0 %v5015
  %v7582 = vpop.f32.mrf.mxu0
  %v7583 = vadd.f32 %v7515, %v7582
  %v7584 = vpop.f32.mrf.mxu0
  %7585 = vmatprep.mubr.f32.mxu0 0.0
  %7586 = vmatmul.mubr.f32.gmra.mxu0 %v5018
  %v7587 = vpop.f32.mrf.mxu0
  %v7588 = vadd.f32 %v7515, %v7587
  %v7589 = vpop.f32.mrf.mxu0
  %7590 = vdwg.mxu0
  %v7591 = vld [vmem:[%s4 + $0x2c8] sm:$0xff]
  %v7592 = vld [vmem:[%s4 + $0x2d0] sm:$0xff]
  %v7593 = vld [vmem:[%s4 + $0x2d8] sm:$0xff]
  %v7594 = vld [vmem:[%s4 + $0x2e0] sm:$0xff]
  %v7596 = vsel %vm233, %v7504, 0
  %v7599 = vsel %vm233, %v7583, 0
  %7601 = vmatprep.subr.mxu0 0.0
  %7602 = vmatpush1.xpose.msra.mxu0 0.0
  %7603 = vmatprep.subr.mxu0 0.0
  %7604 = vmatpush1.xpose.msra.mxu0 0.0
  %7605 = vmatprep.subr.mxu0 0.0
  %7606 = vmatpush1.xpose.msra.mxu0 0.0
  %7607 = vmatprep.subr.mxu0 0.0
  %7608 = vmatpush1.xpose.msra.mxu0 0.0
  %7609 = vmatprep.subr.mxu0 0.0
  %7610 = vmatpush1.xpose.msra.mxu0 0.0
  %7611 = vmatprep.subr.mxu0 0.0
  %7612 = vmatpush1.xpose.msra.mxu0 0.0
  %7613 = vmatprep.subr.mxu0 0.0
  %7614 = vmatpush1.xpose.msra.mxu0 0.0
  %7615 = vmatprep.subr.mxu0 0.0
  %7616 = vmatpush1.xpose.msra.mxu0 0.0
  %7617 = vmatprep.subr.mxu0 0.0
  %7618 = vmatpush1.xpose.msra.mxu0 0.0
  %7619 = vmatprep.subr.mxu0 0.0
  %7620 = vmatpush1.xpose.msra.mxu0 0.0
  %7621 = vmatprep.subr.mxu0 0.0
  %7622 = vmatpush1.xpose.msra.mxu0 0.0
  %7623 = vmatprep.subr.mxu0 0.0
  %7624 = vmatpush1.xpose.msra.mxu0 0.0
  %7625 = vmatprep.subr.mxu0 0.0
  %7626 = vmatpush1.xpose.msra.mxu0 0.0
  %7627 = vmatprep.subr.mxu0 0.0
  %7628 = vmatpush1.xpose.msra.mxu0 0.0
  %7629 = vmatprep.subr.mxu0 0.0
  %7630 = vmatpush1.xpose.msra.mxu0 0.0
  %7631 = vmatprep.subr.mxu0 0.0
  %7632 = vmatpush1.xpose.msra.mxu0 %v7599
  %7633 = vmatprep.subr.mxu0 0.0
  %7634 = vmatpush2.xpose.msra.mxu0 0.0
  %7635 = vmatprep.subr.mxu0 0.0
  %7636 = vmatpush2.xpose.msra.mxu0 0.0
  %7637 = vmatprep.subr.mxu0 0.0
  %7638 = vmatpush2.xpose.msra.mxu0 0.0
  %7639 = vmatprep.subr.mxu0 0.0
  %7640 = vmatpush2.xpose.msra.mxu0 0.0
  %7641 = vmatprep.subr.mxu0 0.0
  %7642 = vmatpush2.xpose.msra.mxu0 0.0
  %7643 = vmatprep.subr.mxu0 0.0
  %7644 = vmatpush2.xpose.msra.mxu0 0.0
  %7645 = vmatprep.subr.mxu0 0.0
  %7646 = vmatpush2.xpose.msra.mxu0 0.0
  %7647 = vmatprep.subr.mxu0 0.0
  %7648 = vmatpush2.xpose.msra.mxu0 0.0
  %7649 = vmatprep.subr.mxu0 0.0
  %7650 = vmatpush2.xpose.msra.mxu0 0.0
  %7651 = vmatprep.subr.mxu0 0.0
  %7652 = vmatpush2.xpose.msra.mxu0 0.0
  %7653 = vmatprep.subr.mxu0 0.0
  %7654 = vmatpush2.xpose.msra.mxu0 0.0
  %7655 = vmatprep.subr.mxu0 0.0
  %7656 = vmatpush2.xpose.msra.mxu0 0.0
  %7657 = vmatprep.subr.mxu0 0.0
  %7658 = vmatpush2.xpose.msra.mxu0 0.0
  %7659 = vmatprep.subr.mxu0 0.0
  %7660 = vmatpush2.xpose.msra.mxu0 0.0
  %7661 = vmatprep.subr.mxu0 0.0
  %7662 = vmatpush2.xpose.msra.mxu0 0.0
  %7663 = vmatprep.subr.mxu0 0.0
  %7664 = vmatpush2.xpose.msra.mxu0 0.0
  %7665 = vmatprep.mubr.f32.mxu0 0.0
  %7666 = vmatmul.mubr.f32.gmra.mxu0 %v7596
  %v7667 = vpop.f32.mrf.mxu0
  %v7668 = vadd.f32 0.0, %v7667
  %v7669 = vpop.f32.mrf.mxu0
  %7670 = vdwg.mxu0
  %v7671 = vsel %vm5175, %v7668, -inf
  %7672 = vmax.xlane.f32.xlu0 %v7671
  %v7673 = vpop.xlane.xlu0 %7672
  %v7674 = vsub.f32 %v7668, %v7673
  %v7675 = vmul.f32 %v7674, 1.442695
  %v7676 = vpow.pop %v7675
  %v7677 = vsel %vm5175, %v7676, 0.0
  %7678 = vadd.xlane.f32.xlu0 %v7677
  %v7679 = vpop.xlane.xlu0 %7678
  %v7680 = vrcp.pop %v7679
  %v7681 = vmul.f32 %v7676, %v7680
  %7682 = vrot.lane.b32.xlu0 %v7583, 96
  %v7683 = vpop.permute.xlu0 %7682
  %v7686 = vsel %vm233, %v7681, 0
  %7688 = vmatprep.subr.mxu0 0.0
  %7689 = vmatpush1.msra.mxu0 0.0
  %7690 = vmatprep.subr.mxu0 0.0
  %7691 = vmatpush1.msra.mxu0 0.0
  %7692 = vmatprep.subr.mxu0 0.0
  %7693 = vmatpush1.msra.mxu0 0.0
  %7694 = vmatprep.subr.mxu0 0.0
  %7695 = vmatpush1.msra.mxu0 0.0
  %7696 = vmatprep.subr.mxu0 0.0
  %7697 = vmatpush1.msra.mxu0 0.0
  %7698 = vmatprep.subr.mxu0 0.0
  %7699 = vmatpush1.msra.mxu0 0.0
  %7700 = vmatprep.subr.mxu0 0.0
  %7701 = vmatpush1.msra.mxu0 0.0
  %7702 = vmatprep.subr.mxu0 0.0
  %7703 = vmatpush1.msra.mxu0 0.0
  %7704 = vmatprep.subr.mxu0 0.0
  %7705 = vmatpush1.msra.mxu0 0.0
  %7706 = vmatprep.subr.mxu0 0.0
  %7707 = vmatpush1.msra.mxu0 0.0
  %7708 = vmatprep.subr.mxu0 0.0
  %7709 = vmatpush1.msra.mxu0 0.0
  %7710 = vmatprep.subr.mxu0 0.0
  %7711 = vmatpush1.msra.mxu0 0.0
  %7712 = vmatprep.subr.mxu0 0.0
  %7713 = vmatpush1.msra.mxu0 0.0
  %7714 = vmatprep.subr.mxu0 0.0
  %7715 = vmatpush1.msra.mxu0 0.0
  %7716 = vmatprep.subr.mxu0 0.0
  %7717 = vmatpush1.msra.mxu0 0.0
  %7718 = vmatprep.subr.mxu0 0.0
  %7719 = vmatpush1.msra.mxu0 %v7683
  %7720 = vmatprep.subr.mxu0 0.0
  %7721 = vmatpush2.msra.mxu0 0.0
  %7722 = vmatprep.subr.mxu0 0.0
  %7723 = vmatpush2.msra.mxu0 0.0
  %7724 = vmatprep.subr.mxu0 0.0
  %7725 = vmatpush2.msra.mxu0 0.0
  %7726 = vmatprep.subr.mxu0 0.0
  %7727 = vmatpush2.msra.mxu0 0.0
  %7728 = vmatprep.subr.mxu0 0.0
  %7729 = vmatpush2.msra.mxu0 0.0
  %7730 = vmatprep.subr.mxu0 0.0
  %7731 = vmatpush2.msra.mxu0 0.0
  %7732 = vmatprep.subr.mxu0 0.0
  %7733 = vmatpush2.msra.mxu0 0.0
  %7734 = vmatprep.subr.mxu0 0.0
  %7735 = vmatpush2.msra.mxu0 0.0
  %7736 = vmatprep.subr.mxu0 0.0
  %7737 = vmatpush2.msra.mxu0 0.0
  %7738 = vmatprep.subr.mxu0 0.0
  %7739 = vmatpush2.msra.mxu0 0.0
  %7740 = vmatprep.subr.mxu0 0.0
  %7741 = vmatpush2.msra.mxu0 0.0
  %7742 = vmatprep.subr.mxu0 0.0
  %7743 = vmatpush2.msra.mxu0 0.0
  %7744 = vmatprep.subr.mxu0 0.0
  %7745 = vmatpush2.msra.mxu0 0.0
  %7746 = vmatprep.subr.mxu0 0.0
  %7747 = vmatpush2.msra.mxu0 0.0
  %7748 = vmatprep.subr.mxu0 0.0
  %7749 = vmatpush2.msra.mxu0 0.0
  %7750 = vmatprep.subr.mxu0 0.0
  %7751 = vmatpush2.msra.mxu0 0.0
  %7752 = vmatprep.mubr.f32.mxu0 0.0
  %7753 = vmatmul.mubr.f32.gmra.mxu0 %v7686
  %v7754 = vpop.f32.mrf.mxu0
  %v7755 = vadd.f32 0.0, %v7754
  %v7756 = vpop.f32.mrf.mxu0
  %7757 = vdwg.mxu0
  %7758 = vrot.lane.b32.xlu0 %v7504, 120
  %v7759 = vpop.permute.xlu0 %7758
  %7760 = vrot.lane.b32.xlu0 %v7583, 120
  %v7761 = vpop.permute.xlu0 %7760
  %v7762 = vsel %vm233, %v7759, 0
  %v7764 = vsel %vm233, %v7761, 0
  %7766 = vmatprep.subr.mxu0 0.0
  %7767 = vmatpush1.xpose.msra.mxu0 0.0
  %7768 = vmatprep.subr.mxu0 0.0
  %7769 = vmatpush1.xpose.msra.mxu0 0.0
  %7770 = vmatprep.subr.mxu0 0.0
  %7771 = vmatpush1.xpose.msra.mxu0 0.0
  %7772 = vmatprep.subr.mxu0 0.0
  %7773 = vmatpush1.xpose.msra.mxu0 0.0
  %7774 = vmatprep.subr.mxu0 0.0
  %7775 = vmatpush1.xpose.msra.mxu0 0.0
  %7776 = vmatprep.subr.mxu0 0.0
  %7777 = vmatpush1.xpose.msra.mxu0 0.0
  %7778 = vmatprep.subr.mxu0 0.0
  %7779 = vmatpush1.xpose.msra.mxu0 0.0
  %7780 = vmatprep.subr.mxu0 0.0
  %7781 = vmatpush1.xpose.msra.mxu0 0.0
  %7782 = vmatprep.subr.mxu0 0.0
  %7783 = vmatpush1.xpose.msra.mxu0 0.0
  %7784 = vmatprep.subr.mxu0 0.0
  %7785 = vmatpush1.xpose.msra.mxu0 0.0
  %7786 = vmatprep.subr.mxu0 0.0
  %7787 = vmatpush1.xpose.msra.mxu0 0.0
  %7788 = vmatprep.subr.mxu0 0.0
  %7789 = vmatpush1.xpose.msra.mxu0 0.0
  %7790 = vmatprep.subr.mxu0 0.0
  %7791 = vmatpush1.xpose.msra.mxu0 0.0
  %7792 = vmatprep.subr.mxu0 0.0
  %7793 = vmatpush1.xpose.msra.mxu0 0.0
  %7794 = vmatprep.subr.mxu0 0.0
  %7795 = vmatpush1.xpose.msra.mxu0 0.0
  %7796 = vmatprep.subr.mxu0 0.0
  %7797 = vmatpush1.xpose.msra.mxu0 %v7764
  %7798 = vmatprep.subr.mxu0 0.0
  %7799 = vmatpush2.xpose.msra.mxu0 0.0
  %7800 = vmatprep.subr.mxu0 0.0
  %7801 = vmatpush2.xpose.msra.mxu0 0.0
  %7802 = vmatprep.subr.mxu0 0.0
  %7803 = vmatpush2.xpose.msra.mxu0 0.0
  %7804 = vmatprep.subr.mxu0 0.0
  %7805 = vmatpush2.xpose.msra.mxu0 0.0
  %7806 = vmatprep.subr.mxu0 0.0
  %7807 = vmatpush2.xpose.msra.mxu0 0.0
  %7808 = vmatprep.subr.mxu0 0.0
  %7809 = vmatpush2.xpose.msra.mxu0 0.0
  %7810 = vmatprep.subr.mxu0 0.0
  %7811 = vmatpush2.xpose.msra.mxu0 0.0
  %7812 = vmatprep.subr.mxu0 0.0
  %7813 = vmatpush2.xpose.msra.mxu0 0.0
  %7814 = vmatprep.subr.mxu0 0.0
  %7815 = vmatpush2.xpose.msra.mxu0 0.0
  %7816 = vmatprep.subr.mxu0 0.0
  %7817 = vmatpush2.xpose.msra.mxu0 0.0
  %7818 = vmatprep.subr.mxu0 0.0
  %7819 = vmatpush2.xpose.msra.mxu0 0.0
  %7820 = vmatprep.subr.mxu0 0.0
  %7821 = vmatpush2.xpose.msra.mxu0 0.0
  %7822 = vmatprep.subr.mxu0 0.0
  %7823 = vmatpush2.xpose.msra.mxu0 0.0
  %7824 = vmatprep.subr.mxu0 0.0
  %7825 = vmatpush2.xpose.msra.mxu0 0.0
  %7826 = vmatprep.subr.mxu0 0.0
  %7827 = vmatpush2.xpose.msra.mxu0 0.0
  %7828 = vmatprep.subr.mxu0 0.0
  %7829 = vmatpush2.xpose.msra.mxu0 0.0
  %7830 = vmatprep.mubr.f32.mxu0 0.0
  %7831 = vmatmul.mubr.f32.gmra.mxu0 %v7762
  %v7832 = vpop.f32.mrf.mxu0
  %v7833 = vadd.f32 0.0, %v7832
  %v7834 = vpop.f32.mrf.mxu0
  %7835 = vdwg.mxu0
  %v7836 = vsel %vm5175, %v7833, -inf
  %7837 = vmax.xlane.f32.xlu0 %v7836
  %v7838 = vpop.xlane.xlu0 %7837
  %v7839 = vsub.f32 %v7833, %v7838
  %v7840 = vmul.f32 %v7839, 1.442695
  %v7841 = vpow.pop %v7840
  %v7842 = vsel %vm5175, %v7841, 0.0
  %7843 = vadd.xlane.f32.xlu0 %v7842
  %v7844 = vpop.xlane.xlu0 %7843
  %v7845 = vrcp.pop %v7844
  %v7846 = vmul.f32 %v7841, %v7845
  %7847 = vrot.lane.b32.xlu0 %v7583, 88
  %v7848 = vpop.permute.xlu0 %7847
  %v7851 = vsel %vm233, %v7846, 0
  %7853 = vmatprep.subr.mxu0 0.0
  %7854 = vmatpush1.msra.mxu0 0.0
  %7855 = vmatprep.subr.mxu0 0.0
  %7856 = vmatpush1.msra.mxu0 0.0
  %7857 = vmatprep.subr.mxu0 0.0
  %7858 = vmatpush1.msra.mxu0 0.0
  %7859 = vmatprep.subr.mxu0 0.0
  %7860 = vmatpush1.msra.mxu0 0.0
  %7861 = vmatprep.subr.mxu0 0.0
  %7862 = vmatpush1.msra.mxu0 0.0
  %7863 = vmatprep.subr.mxu0 0.0
  %7864 = vmatpush1.msra.mxu0 0.0
  %7865 = vmatprep.subr.mxu0 0.0
  %7866 = vmatpush1.msra.mxu0 0.0
  %7867 = vmatprep.subr.mxu0 0.0
  %7868 = vmatpush1.msra.mxu0 0.0
  %7869 = vmatprep.subr.mxu0 0.0
  %7870 = vmatpush1.msra.mxu0 0.0
  %7871 = vmatprep.subr.mxu0 0.0
  %7872 = vmatpush1.msra.mxu0 0.0
  %7873 = vmatprep.subr.mxu0 0.0
  %7874 = vmatpush1.msra.mxu0 0.0
  %7875 = vmatprep.subr.mxu0 0.0
  %7876 = vmatpush1.msra.mxu0 0.0
  %7877 = vmatprep.subr.mxu0 0.0
  %7878 = vmatpush1.msra.mxu0 0.0
  %7879 = vmatprep.subr.mxu0 0.0
  %7880 = vmatpush1.msra.mxu0 0.0
  %7881 = vmatprep.subr.mxu0 0.0
  %7882 = vmatpush1.msra.mxu0 0.0
  %7883 = vmatprep.subr.mxu0 0.0
  %7884 = vmatpush1.msra.mxu0 %v7848
  %7885 = vmatprep.subr.mxu0 0.0
  %7886 = vmatpush2.msra.mxu0 0.0
  %7887 = vmatprep.subr.mxu0 0.0
  %7888 = vmatpush2.msra.mxu0 0.0
  %7889 = vmatprep.subr.mxu0 0.0
  %7890 = vmatpush2.msra.mxu0 0.0
  %7891 = vmatprep.subr.mxu0 0.0
  %7892 = vmatpush2.msra.mxu0 0.0
  %7893 = vmatprep.subr.mxu0 0.0
  %7894 = vmatpush2.msra.mxu0 0.0
  %7895 = vmatprep.subr.mxu0 0.0
  %7896 = vmatpush2.msra.mxu0 0.0
  %7897 = vmatprep.subr.mxu0 0.0
  %7898 = vmatpush2.msra.mxu0 0.0
  %7899 = vmatprep.subr.mxu0 0.0
  %7900 = vmatpush2.msra.mxu0 0.0
  %7901 = vmatprep.subr.mxu0 0.0
  %7902 = vmatpush2.msra.mxu0 0.0
  %7903 = vmatprep.subr.mxu0 0.0
  %7904 = vmatpush2.msra.mxu0 0.0
  %7905 = vmatprep.subr.mxu0 0.0
  %7906 = vmatpush2.msra.mxu0 0.0
  %7907 = vmatprep.subr.mxu0 0.0
  %7908 = vmatpush2.msra.mxu0 0.0
  %7909 = vmatprep.subr.mxu0 0.0
  %7910 = vmatpush2.msra.mxu0 0.0
  %7911 = vmatprep.subr.mxu0 0.0
  %7912 = vmatpush2.msra.mxu0 0.0
  %7913 = vmatprep.subr.mxu0 0.0
  %7914 = vmatpush2.msra.mxu0 0.0
  %7915 = vmatprep.subr.mxu0 0.0
  %7916 = vmatpush2.msra.mxu0 0.0
  %7917 = vmatprep.mubr.f32.mxu0 0.0
  %7918 = vmatmul.mubr.f32.gmra.mxu0 %v7851
  %v7919 = vpop.f32.mrf.mxu0
  %v7920 = vadd.f32 0.0, %v7919
  %v7921 = vpop.f32.mrf.mxu0
  %7922 = vdwg.mxu0
  %v7924 = vsel %vm233, %v7920, 0
  %7926 = vmatprep.subr.mxu0 0.0
  %7927 = vmatpush1.msra.mxu0 0.0
  %7928 = vmatprep.subr.mxu0 0.0
  %7929 = vmatpush1.msra.mxu0 0.0
  %7930 = vmatprep.subr.mxu0 0.0
  %7931 = vmatpush1.msra.mxu0 0.0
  %7932 = vmatprep.subr.mxu0 0.0
  %7933 = vmatpush1.msra.mxu0 0.0
  %7934 = vmatprep.subr.mxu0 0.0
  %7935 = vmatpush1.msra.mxu0 0.0
  %7936 = vmatprep.subr.mxu0 0.0
  %7937 = vmatpush1.msra.mxu0 0.0
  %7938 = vmatprep.subr.mxu0 0.0
  %7939 = vmatpush1.msra.mxu0 0.0
  %7940 = vmatprep.subr.mxu0 0.0
  %7941 = vmatpush1.msra.mxu0 0.0
  %7942 = vmatprep.subr.mxu0 0.0
  %7943 = vmatpush1.msra.mxu0 0.0
  %7944 = vmatprep.subr.mxu0 0.0
  %7945 = vmatpush1.msra.mxu0 0.0
  %7946 = vmatprep.subr.mxu0 0.0
  %7947 = vmatpush1.msra.mxu0 0.0
  %7948 = vmatprep.subr.mxu0 0.0
  %7949 = vmatpush1.msra.mxu0 0.0
  %7950 = vmatprep.subr.mxu0 0.0
  %7951 = vmatpush1.msra.mxu0 0.0
  %7952 = vmatprep.subr.mxu0 0.0
  %7953 = vmatpush1.msra.mxu0 0.0
  %7954 = vmatprep.subr.mxu0 0.0
  %7955 = vmatpush1.msra.mxu0 0.0
  %7956 = vmatprep.subr.mxu0 0.0
  %7957 = vmatpush1.msra.mxu0 %v7592
  %7958 = vmatprep.subr.mxu0 0.0
  %7959 = vmatpush2.msra.mxu0 0.0
  %7960 = vmatprep.subr.mxu0 0.0
  %7961 = vmatpush2.msra.mxu0 0.0
  %7962 = vmatprep.subr.mxu0 0.0
  %7963 = vmatpush2.msra.mxu0 0.0
  %7964 = vmatprep.subr.mxu0 0.0
  %7965 = vmatpush2.msra.mxu0 0.0
  %7966 = vmatprep.subr.mxu0 0.0
  %7967 = vmatpush2.msra.mxu0 0.0
  %7968 = vmatprep.subr.mxu0 0.0
  %7969 = vmatpush2.msra.mxu0 0.0
  %7970 = vmatprep.subr.mxu0 0.0
  %7971 = vmatpush2.msra.mxu0 0.0
  %7972 = vmatprep.subr.mxu0 0.0
  %7973 = vmatpush2.msra.mxu0 0.0
  %7974 = vmatprep.subr.mxu0 0.0
  %7975 = vmatpush2.msra.mxu0 0.0
  %7976 = vmatprep.subr.mxu0 0.0
  %7977 = vmatpush2.msra.mxu0 0.0
  %7978 = vmatprep.subr.mxu0 0.0
  %7979 = vmatpush2.msra.mxu0 0.0
  %7980 = vmatprep.subr.mxu0 0.0
  %7981 = vmatpush2.msra.mxu0 0.0
  %7982 = vmatprep.subr.mxu0 0.0
  %7983 = vmatpush2.msra.mxu0 0.0
  %7984 = vmatprep.subr.mxu0 0.0
  %7985 = vmatpush2.msra.mxu0 0.0
  %7986 = vmatprep.subr.mxu0 0.0
  %7987 = vmatpush2.msra.mxu0 0.0
  %7988 = vmatprep.subr.mxu0 0.0
  %7989 = vmatpush2.msra.mxu0 0.0
  %7990 = vmatprep.mubr.f32.mxu0 0.0
  %7991 = vmatmul.mubr.f32.gmra.mxu0 %v7924
  %v7992 = vpop.f32.mrf.mxu0
  %v7993 = vadd.f32 0.0, %v7992
  %v7994 = vpop.f32.mrf.mxu0
  %7995 = vdwg.mxu0
  %v7997 = vsel %vm233, %v7755, 0
  %7999 = vmatprep.subr.mxu0 0.0
  %8000 = vmatpush1.msra.mxu0 0.0
  %8001 = vmatprep.subr.mxu0 0.0
  %8002 = vmatpush1.msra.mxu0 0.0
  %8003 = vmatprep.subr.mxu0 0.0
  %8004 = vmatpush1.msra.mxu0 0.0
  %8005 = vmatprep.subr.mxu0 0.0
  %8006 = vmatpush1.msra.mxu0 0.0
  %8007 = vmatprep.subr.mxu0 0.0
  %8008 = vmatpush1.msra.mxu0 0.0
  %8009 = vmatprep.subr.mxu0 0.0
  %8010 = vmatpush1.msra.mxu0 0.0
  %8011 = vmatprep.subr.mxu0 0.0
  %8012 = vmatpush1.msra.mxu0 0.0
  %8013 = vmatprep.subr.mxu0 0.0
  %8014 = vmatpush1.msra.mxu0 0.0
  %8015 = vmatprep.subr.mxu0 0.0
  %8016 = vmatpush1.msra.mxu0 0.0
  %8017 = vmatprep.subr.mxu0 0.0
  %8018 = vmatpush1.msra.mxu0 0.0
  %8019 = vmatprep.subr.mxu0 0.0
  %8020 = vmatpush1.msra.mxu0 0.0
  %8021 = vmatprep.subr.mxu0 0.0
  %8022 = vmatpush1.msra.mxu0 0.0
  %8023 = vmatprep.subr.mxu0 0.0
  %8024 = vmatpush1.msra.mxu0 0.0
  %8025 = vmatprep.subr.mxu0 0.0
  %8026 = vmatpush1.msra.mxu0 0.0
  %8027 = vmatprep.subr.mxu0 0.0
  %8028 = vmatpush1.msra.mxu0 0.0
  %8029 = vmatprep.subr.mxu0 0.0
  %8030 = vmatpush1.msra.mxu0 %v7591
  %8031 = vmatprep.subr.mxu0 0.0
  %8032 = vmatpush2.msra.mxu0 0.0
  %8033 = vmatprep.subr.mxu0 0.0
  %8034 = vmatpush2.msra.mxu0 0.0
  %8035 = vmatprep.subr.mxu0 0.0
  %8036 = vmatpush2.msra.mxu0 0.0
  %8037 = vmatprep.subr.mxu0 0.0
  %8038 = vmatpush2.msra.mxu0 0.0
  %8039 = vmatprep.subr.mxu0 0.0
  %8040 = vmatpush2.msra.mxu0 0.0
  %8041 = vmatprep.subr.mxu0 0.0
  %8042 = vmatpush2.msra.mxu0 0.0
  %8043 = vmatprep.subr.mxu0 0.0
  %8044 = vmatpush2.msra.mxu0 0.0
  %8045 = vmatprep.subr.mxu0 0.0
  %8046 = vmatpush2.msra.mxu0 0.0
  %8047 = vmatprep.subr.mxu0 0.0
  %8048 = vmatpush2.msra.mxu0 0.0
  %8049 = vmatprep.subr.mxu0 0.0
  %8050 = vmatpush2.msra.mxu0 0.0
  %8051 = vmatprep.subr.mxu0 0.0
  %8052 = vmatpush2.msra.mxu0 0.0
  %8053 = vmatprep.subr.mxu0 0.0
  %8054 = vmatpush2.msra.mxu0 0.0
  %8055 = vmatprep.subr.mxu0 0.0
  %8056 = vmatpush2.msra.mxu0 0.0
  %8057 = vmatprep.subr.mxu0 0.0
  %8058 = vmatpush2.msra.mxu0 0.0
  %8059 = vmatprep.subr.mxu0 0.0
  %8060 = vmatpush2.msra.mxu0 0.0
  %8061 = vmatprep.subr.mxu0 0.0
  %8062 = vmatpush2.msra.mxu0 0.0
  %8063 = vmatprep.mubr.f32.mxu0 0.0
  %8064 = vmatmul.mubr.f32.gmra.mxu0 %v7997
  %v8065 = vpop.f32.mrf.mxu0
  %v8066 = vadd.f32 %v7993, %v8065
  %v8067 = vpop.f32.mrf.mxu0
  %8068 = vdwg.mxu0
  %8069 = vrot.lane.b32.xlu0 %v7504, 112
  %v8070 = vpop.permute.xlu0 %8069
  %8071 = vrot.lane.b32.xlu0 %v7583, 112
  %v8072 = vpop.permute.xlu0 %8071
  %v8073 = vsel %vm233, %v8070, 0
  %v8075 = vsel %vm233, %v8072, 0
  %8077 = vmatprep.subr.mxu0 0.0
  %8078 = vmatpush1.xpose.msra.mxu0 0.0
  %8079 = vmatprep.subr.mxu0 0.0
  %8080 = vmatpush1.xpose.msra.mxu0 0.0
  %8081 = vmatprep.subr.mxu0 0.0
  %8082 = vmatpush1.xpose.msra.mxu0 0.0
  %8083 = vmatprep.subr.mxu0 0.0
  %8084 = vmatpush1.xpose.msra.mxu0 0.0
  %8085 = vmatprep.subr.mxu0 0.0
  %8086 = vmatpush1.xpose.msra.mxu0 0.0
  %8087 = vmatprep.subr.mxu0 0.0
  %8088 = vmatpush1.xpose.msra.mxu0 0.0
  %8089 = vmatprep.subr.mxu0 0.0
  %8090 = vmatpush1.xpose.msra.mxu0 0.0
  %8091 = vmatprep.subr.mxu0 0.0
  %8092 = vmatpush1.xpose.msra.mxu0 0.0
  %8093 = vmatprep.subr.mxu0 0.0
  %8094 = vmatpush1.xpose.msra.mxu0 0.0
  %8095 = vmatprep.subr.mxu0 0.0
  %8096 = vmatpush1.xpose.msra.mxu0 0.0
  %8097 = vmatprep.subr.mxu0 0.0
  %8098 = vmatpush1.xpose.msra.mxu0 0.0
  %8099 = vmatprep.subr.mxu0 0.0
  %8100 = vmatpush1.xpose.msra.mxu0 0.0
  %8101 = vmatprep.subr.mxu0 0.0
  %8102 = vmatpush1.xpose.msra.mxu0 0.0
  %8103 = vmatprep.subr.mxu0 0.0
  %8104 = vmatpush1.xpose.msra.mxu0 0.0
  %8105 = vmatprep.subr.mxu0 0.0
  %8106 = vmatpush1.xpose.msra.mxu0 0.0
  %8107 = vmatprep.subr.mxu0 0.0
  %8108 = vmatpush1.xpose.msra.mxu0 %v8075
  %8109 = vmatprep.subr.mxu0 0.0
  %8110 = vmatpush2.xpose.msra.mxu0 0.0
  %8111 = vmatprep.subr.mxu0 0.0
  %8112 = vmatpush2.xpose.msra.mxu0 0.0
  %8113 = vmatprep.subr.mxu0 0.0
  %8114 = vmatpush2.xpose.msra.mxu0 0.0
  %8115 = vmatprep.subr.mxu0 0.0
  %8116 = vmatpush2.xpose.msra.mxu0 0.0
  %8117 = vmatprep.subr.mxu0 0.0
  %8118 = vmatpush2.xpose.msra.mxu0 0.0
  %8119 = vmatprep.subr.mxu0 0.0
  %8120 = vmatpush2.xpose.msra.mxu0 0.0
  %8121 = vmatprep.subr.mxu0 0.0
  %8122 = vmatpush2.xpose.msra.mxu0 0.0
  %8123 = vmatprep.subr.mxu0 0.0
  %8124 = vmatpush2.xpose.msra.mxu0 0.0
  %8125 = vmatprep.subr.mxu0 0.0
  %8126 = vmatpush2.xpose.msra.mxu0 0.0
  %8127 = vmatprep.subr.mxu0 0.0
  %8128 = vmatpush2.xpose.msra.mxu0 0.0
  %8129 = vmatprep.subr.mxu0 0.0
  %8130 = vmatpush2.xpose.msra.mxu0 0.0
  %8131 = vmatprep.subr.mxu0 0.0
  %8132 = vmatpush2.xpose.msra.mxu0 0.0
  %8133 = vmatprep.subr.mxu0 0.0
  %8134 = vmatpush2.xpose.msra.mxu0 0.0
  %8135 = vmatprep.subr.mxu0 0.0
  %8136 = vmatpush2.xpose.msra.mxu0 0.0
  %8137 = vmatprep.subr.mxu0 0.0
  %8138 = vmatpush2.xpose.msra.mxu0 0.0
  %8139 = vmatprep.subr.mxu0 0.0
  %8140 = vmatpush2.xpose.msra.mxu0 0.0
  %8141 = vmatprep.mubr.f32.mxu0 0.0
  %8142 = vmatmul.mubr.f32.gmra.mxu0 %v8073
  %v8143 = vpop.f32.mrf.mxu0
  %v8144 = vadd.f32 0.0, %v8143
  %v8145 = vpop.f32.mrf.mxu0
  %8146 = vdwg.mxu0
  %v8147 = vsel %vm5175, %v8144, -inf
  %8148 = vmax.xlane.f32.xlu0 %v8147
  %v8149 = vpop.xlane.xlu0 %8148
  %v8150 = vsub.f32 %v8144, %v8149
  %v8151 = vmul.f32 %v8150, 1.442695
  %v8152 = vpow.pop %v8151
  %v8153 = vsel %vm5175, %v8152, 0.0
  %8154 = vadd.xlane.f32.xlu0 %v8153
  %v8155 = vpop.xlane.xlu0 %8154
  %v8156 = vrcp.pop %v8155
  %v8157 = vmul.f32 %v8152, %v8156
  %8158 = vrot.lane.b32.xlu0 %v7583, 80
  %v8159 = vpop.permute.xlu0 %8158
  %v8162 = vsel %vm233, %v8157, 0
  %8164 = vmatprep.subr.mxu0 0.0
  %8165 = vmatpush1.msra.mxu0 0.0
  %8166 = vmatprep.subr.mxu0 0.0
  %8167 = vmatpush1.msra.mxu0 0.0
  %8168 = vmatprep.subr.mxu0 0.0
  %8169 = vmatpush1.msra.mxu0 0.0
  %8170 = vmatprep.subr.mxu0 0.0
  %8171 = vmatpush1.msra.mxu0 0.0
  %8172 = vmatprep.subr.mxu0 0.0
  %8173 = vmatpush1.msra.mxu0 0.0
  %8174 = vmatprep.subr.mxu0 0.0
  %8175 = vmatpush1.msra.mxu0 0.0
  %8176 = vmatprep.subr.mxu0 0.0
  %8177 = vmatpush1.msra.mxu0 0.0
  %8178 = vmatprep.subr.mxu0 0.0
  %8179 = vmatpush1.msra.mxu0 0.0
  %8180 = vmatprep.subr.mxu0 0.0
  %8181 = vmatpush1.msra.mxu0 0.0
  %8182 = vmatprep.subr.mxu0 0.0
  %8183 = vmatpush1.msra.mxu0 0.0
  %8184 = vmatprep.subr.mxu0 0.0
  %8185 = vmatpush1.msra.mxu0 0.0
  %8186 = vmatprep.subr.mxu0 0.0
  %8187 = vmatpush1.msra.mxu0 0.0
  %8188 = vmatprep.subr.mxu0 0.0
  %8189 = vmatpush1.msra.mxu0 0.0
  %8190 = vmatprep.subr.mxu0 0.0
  %8191 = vmatpush1.msra.mxu0 0.0
  %8192 = vmatprep.subr.mxu0 0.0
  %8193 = vmatpush1.msra.mxu0 0.0
  %8194 = vmatprep.subr.mxu0 0.0
  %8195 = vmatpush1.msra.mxu0 %v8159
  %8196 = vmatprep.subr.mxu0 0.0
  %8197 = vmatpush2.msra.mxu0 0.0
  %8198 = vmatprep.subr.mxu0 0.0
  %8199 = vmatpush2.msra.mxu0 0.0
  %8200 = vmatprep.subr.mxu0 0.0
  %8201 = vmatpush2.msra.mxu0 0.0
  %8202 = vmatprep.subr.mxu0 0.0
  %8203 = vmatpush2.msra.mxu0 0.0
  %8204 = vmatprep.subr.mxu0 0.0
  %8205 = vmatpush2.msra.mxu0 0.0
  %8206 = vmatprep.subr.mxu0 0.0
  %8207 = vmatpush2.msra.mxu0 0.0
  %8208 = vmatprep.subr.mxu0 0.0
  %8209 = vmatpush2.msra.mxu0 0.0
  %8210 = vmatprep.subr.mxu0 0.0
  %8211 = vmatpush2.msra.mxu0 0.0
  %8212 = vmatprep.subr.mxu0 0.0
  %8213 = vmatpush2.msra.mxu0 0.0
  %8214 = vmatprep.subr.mxu0 0.0
  %8215 = vmatpush2.msra.mxu0 0.0
  %8216 = vmatprep.subr.mxu0 0.0
  %8217 = vmatpush2.msra.mxu0 0.0
  %8218 = vmatprep.subr.mxu0 0.0
  %8219 = vmatpush2.msra.mxu0 0.0
  %8220 = vmatprep.subr.mxu0 0.0
  %8221 = vmatpush2.msra.mxu0 0.0
  %8222 = vmatprep.subr.mxu0 0.0
  %8223 = vmatpush2.msra.mxu0 0.0
  %8224 = vmatprep.subr.mxu0 0.0
  %8225 = vmatpush2.msra.mxu0 0.0
  %8226 = vmatprep.subr.mxu0 0.0
  %8227 = vmatpush2.msra.mxu0 0.0
  %8228 = vmatprep.mubr.f32.mxu0 0.0
  %8229 = vmatmul.mubr.f32.gmra.mxu0 %v8162
  %v8230 = vpop.f32.mrf.mxu0
  %v8231 = vadd.f32 0.0, %v8230
  %v8232 = vpop.f32.mrf.mxu0
  %8233 = vdwg.mxu0
  %v8235 = vsel %vm233, %v8231, 0
  %8237 = vmatprep.subr.mxu0 0.0
  %8238 = vmatpush1.msra.mxu0 0.0
  %8239 = vmatprep.subr.mxu0 0.0
  %8240 = vmatpush1.msra.mxu0 0.0
  %8241 = vmatprep.subr.mxu0 0.0
  %8242 = vmatpush1.msra.mxu0 0.0
  %8243 = vmatprep.subr.mxu0 0.0
  %8244 = vmatpush1.msra.mxu0 0.0
  %8245 = vmatprep.subr.mxu0 0.0
  %8246 = vmatpush1.msra.mxu0 0.0
  %8247 = vmatprep.subr.mxu0 0.0
  %8248 = vmatpush1.msra.mxu0 0.0
  %8249 = vmatprep.subr.mxu0 0.0
  %8250 = vmatpush1.msra.mxu0 0.0
  %8251 = vmatprep.subr.mxu0 0.0
  %8252 = vmatpush1.msra.mxu0 0.0
  %8253 = vmatprep.subr.mxu0 0.0
  %8254 = vmatpush1.msra.mxu0 0.0
  %8255 = vmatprep.subr.mxu0 0.0
  %8256 = vmatpush1.msra.mxu0 0.0
  %8257 = vmatprep.subr.mxu0 0.0
  %8258 = vmatpush1.msra.mxu0 0.0
  %8259 = vmatprep.subr.mxu0 0.0
  %8260 = vmatpush1.msra.mxu0 0.0
  %8261 = vmatprep.subr.mxu0 0.0
  %8262 = vmatpush1.msra.mxu0 0.0
  %8263 = vmatprep.subr.mxu0 0.0
  %8264 = vmatpush1.msra.mxu0 0.0
  %8265 = vmatprep.subr.mxu0 0.0
  %8266 = vmatpush1.msra.mxu0 0.0
  %8267 = vmatprep.subr.mxu0 0.0
  %8268 = vmatpush1.msra.mxu0 %v7593
  %8269 = vmatprep.subr.mxu0 0.0
  %8270 = vmatpush2.msra.mxu0 0.0
  %8271 = vmatprep.subr.mxu0 0.0
  %8272 = vmatpush2.msra.mxu0 0.0
  %8273 = vmatprep.subr.mxu0 0.0
  %8274 = vmatpush2.msra.mxu0 0.0
  %8275 = vmatprep.subr.mxu0 0.0
  %8276 = vmatpush2.msra.mxu0 0.0
  %8277 = vmatprep.subr.mxu0 0.0
  %8278 = vmatpush2.msra.mxu0 0.0
  %8279 = vmatprep.subr.mxu0 0.0
  %8280 = vmatpush2.msra.mxu0 0.0
  %8281 = vmatprep.subr.mxu0 0.0
  %8282 = vmatpush2.msra.mxu0 0.0
  %8283 = vmatprep.subr.mxu0 0.0
  %8284 = vmatpush2.msra.mxu0 0.0
  %8285 = vmatprep.subr.mxu0 0.0
  %8286 = vmatpush2.msra.mxu0 0.0
  %8287 = vmatprep.subr.mxu0 0.0
  %8288 = vmatpush2.msra.mxu0 0.0
  %8289 = vmatprep.subr.mxu0 0.0
  %8290 = vmatpush2.msra.mxu0 0.0
  %8291 = vmatprep.subr.mxu0 0.0
  %8292 = vmatpush2.msra.mxu0 0.0
  %8293 = vmatprep.subr.mxu0 0.0
  %8294 = vmatpush2.msra.mxu0 0.0
  %8295 = vmatprep.subr.mxu0 0.0
  %8296 = vmatpush2.msra.mxu0 0.0
  %8297 = vmatprep.subr.mxu0 0.0
  %8298 = vmatpush2.msra.mxu0 0.0
  %8299 = vmatprep.subr.mxu0 0.0
  %8300 = vmatpush2.msra.mxu0 0.0
  %8301 = vmatprep.mubr.f32.mxu0 0.0
  %8302 = vmatmul.mubr.f32.gmra.mxu0 %v8235
  %v8303 = vpop.f32.mrf.mxu0
  %v8304 = vadd.f32 0.0, %v8303
  %v8305 = vpop.f32.mrf.mxu0
  %8306 = vdwg.mxu0
  %v8307 = vadd.f32 %v8066, %v8304
  %8308 = vrot.lane.b32.xlu0 %v7504, 104
  %v8309 = vpop.permute.xlu0 %8308
  %8310 = vrot.lane.b32.xlu0 %v7583, 104
  %v8311 = vpop.permute.xlu0 %8310
  %v8312 = vsel %vm233, %v8309, 0
  %v8314 = vsel %vm233, %v8311, 0
  %8316 = vmatprep.subr.mxu0 0.0
  %8317 = vmatpush1.xpose.msra.mxu0 0.0
  %8318 = vmatprep.subr.mxu0 0.0
  %8319 = vmatpush1.xpose.msra.mxu0 0.0
  %8320 = vmatprep.subr.mxu0 0.0
  %8321 = vmatpush1.xpose.msra.mxu0 0.0
  %8322 = vmatprep.subr.mxu0 0.0
  %8323 = vmatpush1.xpose.msra.mxu0 0.0
  %8324 = vmatprep.subr.mxu0 0.0
  %8325 = vmatpush1.xpose.msra.mxu0 0.0
  %8326 = vmatprep.subr.mxu0 0.0
  %8327 = vmatpush1.xpose.msra.mxu0 0.0
  %8328 = vmatprep.subr.mxu0 0.0
  %8329 = vmatpush1.xpose.msra.mxu0 0.0
  %8330 = vmatprep.subr.mxu0 0.0
  %8331 = vmatpush1.xpose.msra.mxu0 0.0
  %8332 = vmatprep.subr.mxu0 0.0
  %8333 = vmatpush1.xpose.msra.mxu0 0.0
  %8334 = vmatprep.subr.mxu0 0.0
  %8335 = vmatpush1.xpose.msra.mxu0 0.0
  %8336 = vmatprep.subr.mxu0 0.0
  %8337 = vmatpush1.xpose.msra.mxu0 0.0
  %8338 = vmatprep.subr.mxu0 0.0
  %8339 = vmatpush1.xpose.msra.mxu0 0.0
  %8340 = vmatprep.subr.mxu0 0.0
  %8341 = vmatpush1.xpose.msra.mxu0 0.0
  %8342 = vmatprep.subr.mxu0 0.0
  %8343 = vmatpush1.xpose.msra.mxu0 0.0
  %8344 = vmatprep.subr.mxu0 0.0
  %8345 = vmatpush1.xpose.msra.mxu0 0.0
  %8346 = vmatprep.subr.mxu0 0.0
  %8347 = vmatpush1.xpose.msra.mxu0 %v8314
  %8348 = vmatprep.subr.mxu0 0.0
  %8349 = vmatpush2.xpose.msra.mxu0 0.0
  %8350 = vmatprep.subr.mxu0 0.0
  %8351 = vmatpush2.xpose.msra.mxu0 0.0
  %8352 = vmatprep.subr.mxu0 0.0
  %8353 = vmatpush2.xpose.msra.mxu0 0.0
  %8354 = vmatprep.subr.mxu0 0.0
  %8355 = vmatpush2.xpose.msra.mxu0 0.0
  %8356 = vmatprep.subr.mxu0 0.0
  %8357 = vmatpush2.xpose.msra.mxu0 0.0
  %8358 = vmatprep.subr.mxu0 0.0
  %8359 = vmatpush2.xpose.msra.mxu0 0.0
  %8360 = vmatprep.subr.mxu0 0.0
  %8361 = vmatpush2.xpose.msra.mxu0 0.0
  %8362 = vmatprep.subr.mxu0 0.0
  %8363 = vmatpush2.xpose.msra.mxu0 0.0
  %8364 = vmatprep.subr.mxu0 0.0
  %8365 = vmatpush2.xpose.msra.mxu0 0.0
  %8366 = vmatprep.subr.mxu0 0.0
  %8367 = vmatpush2.xpose.msra.mxu0 0.0
  %8368 = vmatprep.subr.mxu0 0.0
  %8369 = vmatpush2.xpose.msra.mxu0 0.0
  %8370 = vmatprep.subr.mxu0 0.0
  %8371 = vmatpush2.xpose.msra.mxu0 0.0
  %8372 = vmatprep.subr.mxu0 0.0
  %8373 = vmatpush2.xpose.msra.mxu0 0.0
  %8374 = vmatprep.subr.mxu0 0.0
  %8375 = vmatpush2.xpose.msra.mxu0 0.0
  %8376 = vmatprep.subr.mxu0 0.0
  %8377 = vmatpush2.xpose.msra.mxu0 0.0
  %8378 = vmatprep.subr.mxu0 0.0
  %8379 = vmatpush2.xpose.msra.mxu0 0.0
  %8380 = vmatprep.mubr.f32.mxu0 0.0
  %8381 = vmatmul.mubr.f32.gmra.mxu0 %v8312
  %v8382 = vpop.f32.mrf.mxu0
  %v8383 = vadd.f32 0.0, %v8382
  %v8384 = vpop.f32.mrf.mxu0
  %8385 = vdwg.mxu0
  %v8386 = vsel %vm5175, %v8383, -inf
  %8387 = vmax.xlane.f32.xlu0 %v8386
  %v8388 = vpop.xlane.xlu0 %8387
  %v8389 = vsub.f32 %v8383, %v8388
  %v8390 = vmul.f32 %v8389, 1.442695
  %v8391 = vpow.pop %v8390
  %v8392 = vsel %vm5175, %v8391, 0.0
  %8393 = vadd.xlane.f32.xlu0 %v8392
  %v8394 = vpop.xlane.xlu0 %8393
  %v8395 = vrcp.pop %v8394
  %v8396 = vmul.f32 %v8391, %v8395
  %8397 = vrot.lane.b32.xlu0 %v7583, 72
  %v8398 = vpop.permute.xlu0 %8397
  %v8401 = vsel %vm233, %v8396, 0
  %8403 = vmatprep.subr.mxu0 0.0
  %8404 = vmatpush1.msra.mxu0 0.0
  %8405 = vmatprep.subr.mxu0 0.0
  %8406 = vmatpush1.msra.mxu0 0.0
  %8407 = vmatprep.subr.mxu0 0.0
  %8408 = vmatpush1.msra.mxu0 0.0
  %8409 = vmatprep.subr.mxu0 0.0
  %8410 = vmatpush1.msra.mxu0 0.0
  %8411 = vmatprep.subr.mxu0 0.0
  %8412 = vmatpush1.msra.mxu0 0.0
  %8413 = vmatprep.subr.mxu0 0.0
  %8414 = vmatpush1.msra.mxu0 0.0
  %8415 = vmatprep.subr.mxu0 0.0
  %8416 = vmatpush1.msra.mxu0 0.0
  %8417 = vmatprep.subr.mxu0 0.0
  %8418 = vmatpush1.msra.mxu0 0.0
  %8419 = vmatprep.subr.mxu0 0.0
  %8420 = vmatpush1.msra.mxu0 0.0
  %8421 = vmatprep.subr.mxu0 0.0
  %8422 = vmatpush1.msra.mxu0 0.0
  %8423 = vmatprep.subr.mxu0 0.0
  %8424 = vmatpush1.msra.mxu0 0.0
  %8425 = vmatprep.subr.mxu0 0.0
  %8426 = vmatpush1.msra.mxu0 0.0
  %8427 = vmatprep.subr.mxu0 0.0
  %8428 = vmatpush1.msra.mxu0 0.0
  %8429 = vmatprep.subr.mxu0 0.0
  %8430 = vmatpush1.msra.mxu0 0.0
  %8431 = vmatprep.subr.mxu0 0.0
  %8432 = vmatpush1.msra.mxu0 0.0
  %8433 = vmatprep.subr.mxu0 0.0
  %8434 = vmatpush1.msra.mxu0 %v8398
  %8435 = vmatprep.subr.mxu0 0.0
  %8436 = vmatpush2.msra.mxu0 0.0
  %8437 = vmatprep.subr.mxu0 0.0
  %8438 = vmatpush2.msra.mxu0 0.0
  %8439 = vmatprep.subr.mxu0 0.0
  %8440 = vmatpush2.msra.mxu0 0.0
  %8441 = vmatprep.subr.mxu0 0.0
  %8442 = vmatpush2.msra.mxu0 0.0
  %8443 = vmatprep.subr.mxu0 0.0
  %8444 = vmatpush2.msra.mxu0 0.0
  %8445 = vmatprep.subr.mxu0 0.0
  %8446 = vmatpush2.msra.mxu0 0.0
  %8447 = vmatprep.subr.mxu0 0.0
  %8448 = vmatpush2.msra.mxu0 0.0
  %8449 = vmatprep.subr.mxu0 0.0
  %8450 = vmatpush2.msra.mxu0 0.0
  %8451 = vmatprep.subr.mxu0 0.0
  %8452 = vmatpush2.msra.mxu0 0.0
  %8453 = vmatprep.subr.mxu0 0.0
  %8454 = vmatpush2.msra.mxu0 0.0
  %8455 = vmatprep.subr.mxu0 0.0
  %8456 = vmatpush2.msra.mxu0 0.0
  %8457 = vmatprep.subr.mxu0 0.0
  %8458 = vmatpush2.msra.mxu0 0.0
  %8459 = vmatprep.subr.mxu0 0.0
  %8460 = vmatpush2.msra.mxu0 0.0
  %8461 = vmatprep.subr.mxu0 0.0
  %8462 = vmatpush2.msra.mxu0 0.0
  %8463 = vmatprep.subr.mxu0 0.0
  %8464 = vmatpush2.msra.mxu0 0.0
  %8465 = vmatprep.subr.mxu0 0.0
  %8466 = vmatpush2.msra.mxu0 0.0
  %8467 = vmatprep.mubr.f32.mxu0 0.0
  %8468 = vmatmul.mubr.f32.gmra.mxu0 %v8401
  %v8469 = vpop.f32.mrf.mxu0
  %v8470 = vadd.f32 0.0, %v8469
  %v8471 = vpop.f32.mrf.mxu0
  %8472 = vdwg.mxu0
  %v8474 = vsel %vm233, %v8470, 0
  %8476 = vmatprep.subr.mxu0 0.0
  %8477 = vmatpush1.msra.mxu0 0.0
  %8478 = vmatprep.subr.mxu0 0.0
  %8479 = vmatpush1.msra.mxu0 0.0
  %8480 = vmatprep.subr.mxu0 0.0
  %8481 = vmatpush1.msra.mxu0 0.0
  %8482 = vmatprep.subr.mxu0 0.0
  %8483 = vmatpush1.msra.mxu0 0.0
  %8484 = vmatprep.subr.mxu0 0.0
  %8485 = vmatpush1.msra.mxu0 0.0
  %8486 = vmatprep.subr.mxu0 0.0
  %8487 = vmatpush1.msra.mxu0 0.0
  %8488 = vmatprep.subr.mxu0 0.0
  %8489 = vmatpush1.msra.mxu0 0.0
  %8490 = vmatprep.subr.mxu0 0.0
  %8491 = vmatpush1.msra.mxu0 0.0
  %8492 = vmatprep.subr.mxu0 0.0
  %8493 = vmatpush1.msra.mxu0 0.0
  %8494 = vmatprep.subr.mxu0 0.0
  %8495 = vmatpush1.msra.mxu0 0.0
  %8496 = vmatprep.subr.mxu0 0.0
  %8497 = vmatpush1.msra.mxu0 0.0
  %8498 = vmatprep.subr.mxu0 0.0
  %8499 = vmatpush1.msra.mxu0 0.0
  %8500 = vmatprep.subr.mxu0 0.0
  %8501 = vmatpush1.msra.mxu0 0.0
  %8502 = vmatprep.subr.mxu0 0.0
  %8503 = vmatpush1.msra.mxu0 0.0
  %8504 = vmatprep.subr.mxu0 0.0
  %8505 = vmatpush1.msra.mxu0 0.0
  %8506 = vmatprep.subr.mxu0 0.0
  %8507 = vmatpush1.msra.mxu0 %v7594
  %8508 = vmatprep.subr.mxu0 0.0
  %8509 = vmatpush2.msra.mxu0 0.0
  %8510 = vmatprep.subr.mxu0 0.0
  %8511 = vmatpush2.msra.mxu0 0.0
  %8512 = vmatprep.subr.mxu0 0.0
  %8513 = vmatpush2.msra.mxu0 0.0
  %8514 = vmatprep.subr.mxu0 0.0
  %8515 = vmatpush2.msra.mxu0 0.0
  %8516 = vmatprep.subr.mxu0 0.0
  %8517 = vmatpush2.msra.mxu0 0.0
  %8518 = vmatprep.subr.mxu0 0.0
  %8519 = vmatpush2.msra.mxu0 0.0
  %8520 = vmatprep.subr.mxu0 0.0
  %8521 = vmatpush2.msra.mxu0 0.0
  %8522 = vmatprep.subr.mxu0 0.0
  %8523 = vmatpush2.msra.mxu0 0.0
  %8524 = vmatprep.subr.mxu0 0.0
  %8525 = vmatpush2.msra.mxu0 0.0
  %8526 = vmatprep.subr.mxu0 0.0
  %8527 = vmatpush2.msra.mxu0 0.0
  %8528 = vmatprep.subr.mxu0 0.0
  %8529 = vmatpush2.msra.mxu0 0.0
  %8530 = vmatprep.subr.mxu0 0.0
  %8531 = vmatpush2.msra.mxu0 0.0
  %8532 = vmatprep.subr.mxu0 0.0
  %8533 = vmatpush2.msra.mxu0 0.0
  %8534 = vmatprep.subr.mxu0 0.0
  %8535 = vmatpush2.msra.mxu0 0.0
  %8536 = vmatprep.subr.mxu0 0.0
  %8537 = vmatpush2.msra.mxu0 0.0
  %8538 = vmatprep.subr.mxu0 0.0
  %8539 = vmatpush2.msra.mxu0 0.0
  %8540 = vmatprep.mubr.f32.mxu0 0.0
  %8541 = vmatmul.mubr.f32.gmra.mxu0 %v8474
  %v8542 = vpop.f32.mrf.mxu0
  %v8543 = vadd.f32 0.0, %v8542
  %v8544 = vpop.f32.mrf.mxu0
  %8545 = vdwg.mxu0
  %v8546 = vadd.f32 %v8307, %v8543
  %v8547 = vrot.slane %v7504, 1
  %v8548 = vsel %vm233, %v8547, 0
  %v8551 = vsel %vm233, %v7588, 0
  %8553 = vmatprep.subr.mxu0 0.0
  %8554 = vmatpush1.xpose.msra.mxu0 0.0
  %8555 = vmatprep.subr.mxu0 0.0
  %8556 = vmatpush1.xpose.msra.mxu0 0.0
  %8557 = vmatprep.subr.mxu0 0.0
  %8558 = vmatpush1.xpose.msra.mxu0 0.0
  %8559 = vmatprep.subr.mxu0 0.0
  %8560 = vmatpush1.xpose.msra.mxu0 0.0
  %8561 = vmatprep.subr.mxu0 0.0
  %8562 = vmatpush1.xpose.msra.mxu0 0.0
  %8563 = vmatprep.subr.mxu0 0.0
  %8564 = vmatpush1.xpose.msra.mxu0 0.0
  %8565 = vmatprep.subr.mxu0 0.0
  %8566 = vmatpush1.xpose.msra.mxu0 0.0
  %8567 = vmatprep.subr.mxu0 0.0
  %8568 = vmatpush1.xpose.msra.mxu0 0.0
  %8569 = vmatprep.subr.mxu0 0.0
  %8570 = vmatpush1.xpose.msra.mxu0 0.0
  %8571 = vmatprep.subr.mxu0 0.0
  %8572 = vmatpush1.xpose.msra.mxu0 0.0
  %8573 = vmatprep.subr.mxu0 0.0
  %8574 = vmatpush1.xpose.msra.mxu0 0.0
  %8575 = vmatprep.subr.mxu0 0.0
  %8576 = vmatpush1.xpose.msra.mxu0 0.0
  %8577 = vmatprep.subr.mxu0 0.0
  %8578 = vmatpush1.xpose.msra.mxu0 0.0
  %8579 = vmatprep.subr.mxu0 0.0
  %8580 = vmatpush1.xpose.msra.mxu0 0.0
  %8581 = vmatprep.subr.mxu0 0.0
  %8582 = vmatpush1.xpose.msra.mxu0 0.0
  %8583 = vmatprep.subr.mxu0 0.0
  %8584 = vmatpush1.xpose.msra.mxu0 %v8551
  %8585 = vmatprep.subr.mxu0 0.0
  %8586 = vmatpush2.xpose.msra.mxu0 0.0
  %8587 = vmatprep.subr.mxu0 0.0
  %8588 = vmatpush2.xpose.msra.mxu0 0.0
  %8589 = vmatprep.subr.mxu0 0.0
  %8590 = vmatpush2.xpose.msra.mxu0 0.0
  %8591 = vmatprep.subr.mxu0 0.0
  %8592 = vmatpush2.xpose.msra.mxu0 0.0
  %8593 = vmatprep.subr.mxu0 0.0
  %8594 = vmatpush2.xpose.msra.mxu0 0.0
  %8595 = vmatprep.subr.mxu0 0.0
  %8596 = vmatpush2.xpose.msra.mxu0 0.0
  %8597 = vmatprep.subr.mxu0 0.0
  %8598 = vmatpush2.xpose.msra.mxu0 0.0
  %8599 = vmatprep.subr.mxu0 0.0
  %8600 = vmatpush2.xpose.msra.mxu0 0.0
  %8601 = vmatprep.subr.mxu0 0.0
  %8602 = vmatpush2.xpose.msra.mxu0 0.0
  %8603 = vmatprep.subr.mxu0 0.0
  %8604 = vmatpush2.xpose.msra.mxu0 0.0
  %8605 = vmatprep.subr.mxu0 0.0
  %8606 = vmatpush2.xpose.msra.mxu0 0.0
  %8607 = vmatprep.subr.mxu0 0.0
  %8608 = vmatpush2.xpose.msra.mxu0 0.0
  %8609 = vmatprep.subr.mxu0 0.0
  %8610 = vmatpush2.xpose.msra.mxu0 0.0
  %8611 = vmatprep.subr.mxu0 0.0
  %8612 = vmatpush2.xpose.msra.mxu0 0.0
  %8613 = vmatprep.subr.mxu0 0.0
  %8614 = vmatpush2.xpose.msra.mxu0 0.0
  %8615 = vmatprep.subr.mxu0 0.0
  %8616 = vmatpush2.xpose.msra.mxu0 0.0
  %8617 = vmatprep.mubr.f32.mxu0 0.0
  %8618 = vmatmul.mubr.f32.gmra.mxu0 %v8548
  %v8619 = vpop.f32.mrf.mxu0
  %v8620 = vadd.f32 0.0, %v8619
  %v8621 = vpop.f32.mrf.mxu0
  %8622 = vdwg.mxu0
  %v8623 = vsel %vm5175, %v8620, -inf
  %8624 = vmax.xlane.f32.xlu0 %v8623
  %v8625 = vpop.xlane.xlu0 %8624
  %v8626 = vsub.f32 %v8620, %v8625
  %v8627 = vmul.f32 %v8626, 1.442695
  %v8628 = vpow.pop %v8627
  %v8629 = vsel %vm5175, %v8628, 0.0
  %8630 = vadd.xlane.f32.xlu0 %v8629
  %v8631 = vpop.xlane.xlu0 %8630
  %v8632 = vrcp.pop %v8631
  %v8633 = vmul.f32 %v8628, %v8632
  %8634 = vrot.lane.b32.xlu0 %v7588, 96
  %v8635 = vpop.permute.xlu0 %8634
  %v8638 = vsel %vm233, %v8633, 0
  %8640 = vmatprep.subr.mxu0 0.0
  %8641 = vmatpush1.msra.mxu0 0.0
  %8642 = vmatprep.subr.mxu0 0.0
  %8643 = vmatpush1.msra.mxu0 0.0
  %8644 = vmatprep.subr.mxu0 0.0
  %8645 = vmatpush1.msra.mxu0 0.0
  %8646 = vmatprep.subr.mxu0 0.0
  %8647 = vmatpush1.msra.mxu0 0.0
  %8648 = vmatprep.subr.mxu0 0.0
  %8649 = vmatpush1.msra.mxu0 0.0
  %8650 = vmatprep.subr.mxu0 0.0
  %8651 = vmatpush1.msra.mxu0 0.0
  %8652 = vmatprep.subr.mxu0 0.0
  %8653 = vmatpush1.msra.mxu0 0.0
  %8654 = vmatprep.subr.mxu0 0.0
  %8655 = vmatpush1.msra.mxu0 0.0
  %8656 = vmatprep.subr.mxu0 0.0
  %8657 = vmatpush1.msra.mxu0 0.0
  %8658 = vmatprep.subr.mxu0 0.0
  %8659 = vmatpush1.msra.mxu0 0.0
  %8660 = vmatprep.subr.mxu0 0.0
  %8661 = vmatpush1.msra.mxu0 0.0
  %8662 = vmatprep.subr.mxu0 0.0
  %8663 = vmatpush1.msra.mxu0 0.0
  %8664 = vmatprep.subr.mxu0 0.0
  %8665 = vmatpush1.msra.mxu0 0.0
  %8666 = vmatprep.subr.mxu0 0.0
  %8667 = vmatpush1.msra.mxu0 0.0
  %8668 = vmatprep.subr.mxu0 0.0
  %8669 = vmatpush1.msra.mxu0 0.0
  %8670 = vmatprep.subr.mxu0 0.0
  %8671 = vmatpush1.msra.mxu0 %v8635
  %8672 = vmatprep.subr.mxu0 0.0
  %8673 = vmatpush2.msra.mxu0 0.0
  %8674 = vmatprep.subr.mxu0 0.0
  %8675 = vmatpush2.msra.mxu0 0.0
  %8676 = vmatprep.subr.mxu0 0.0
  %8677 = vmatpush2.msra.mxu0 0.0
  %8678 = vmatprep.subr.mxu0 0.0
  %8679 = vmatpush2.msra.mxu0 0.0
  %8680 = vmatprep.subr.mxu0 0.0
  %8681 = vmatpush2.msra.mxu0 0.0
  %8682 = vmatprep.subr.mxu0 0.0
  %8683 = vmatpush2.msra.mxu0 0.0
  %8684 = vmatprep.subr.mxu0 0.0
  %8685 = vmatpush2.msra.mxu0 0.0
  %8686 = vmatprep.subr.mxu0 0.0
  %8687 = vmatpush2.msra.mxu0 0.0
  %8688 = vmatprep.subr.mxu0 0.0
  %8689 = vmatpush2.msra.mxu0 0.0
  %8690 = vmatprep.subr.mxu0 0.0
  %8691 = vmatpush2.msra.mxu0 0.0
  %8692 = vmatprep.subr.mxu0 0.0
  %8693 = vmatpush2.msra.mxu0 0.0
  %8694 = vmatprep.subr.mxu0 0.0
  %8695 = vmatpush2.msra.mxu0 0.0
  %8696 = vmatprep.subr.mxu0 0.0
  %8697 = vmatpush2.msra.mxu0 0.0
  %8698 = vmatprep.subr.mxu0 0.0
  %8699 = vmatpush2.msra.mxu0 0.0
  %8700 = vmatprep.subr.mxu0 0.0
  %8701 = vmatpush2.msra.mxu0 0.0
  %8702 = vmatprep.subr.mxu0 0.0
  %8703 = vmatpush2.msra.mxu0 0.0
  %8704 = vmatprep.mubr.f32.mxu0 0.0
  %8705 = vmatmul.mubr.f32.gmra.mxu0 %v8638
  %v8706 = vpop.f32.mrf.mxu0
  %v8707 = vadd.f32 0.0, %v8706
  %v8708 = vpop.f32.mrf.mxu0
  %8709 = vdwg.mxu0
  %8710 = vrot.lane.b32.xlu0 %v8547, 120
  %v8711 = vpop.permute.xlu0 %8710
  %8712 = vrot.lane.b32.xlu0 %v7588, 120
  %v8713 = vpop.permute.xlu0 %8712
  %v8714 = vsel %vm233, %v8711, 0
  %v8716 = vsel %vm233, %v8713, 0
  %8718 = vmatprep.subr.mxu0 0.0
  %8719 = vmatpush1.xpose.msra.mxu0 0.0
  %8720 = vmatprep.subr.mxu0 0.0
  %8721 = vmatpush1.xpose.msra.mxu0 0.0
  %8722 = vmatprep.subr.mxu0 0.0
  %8723 = vmatpush1.xpose.msra.mxu0 0.0
  %8724 = vmatprep.subr.mxu0 0.0
  %8725 = vmatpush1.xpose.msra.mxu0 0.0
  %8726 = vmatprep.subr.mxu0 0.0
  %8727 = vmatpush1.xpose.msra.mxu0 0.0
  %8728 = vmatprep.subr.mxu0 0.0
  %8729 = vmatpush1.xpose.msra.mxu0 0.0
  %8730 = vmatprep.subr.mxu0 0.0
  %8731 = vmatpush1.xpose.msra.mxu0 0.0
  %8732 = vmatprep.subr.mxu0 0.0
  %8733 = vmatpush1.xpose.msra.mxu0 0.0
  %8734 = vmatprep.subr.mxu0 0.0
  %8735 = vmatpush1.xpose.msra.mxu0 0.0
  %8736 = vmatprep.subr.mxu0 0.0
  %8737 = vmatpush1.xpose.msra.mxu0 0.0
  %8738 = vmatprep.subr.mxu0 0.0
  %8739 = vmatpush1.xpose.msra.mxu0 0.0
  %8740 = vmatprep.subr.mxu0 0.0
  %8741 = vmatpush1.xpose.msra.mxu0 0.0
  %8742 = vmatprep.subr.mxu0 0.0
  %8743 = vmatpush1.xpose.msra.mxu0 0.0
  %8744 = vmatprep.subr.mxu0 0.0
  %8745 = vmatpush1.xpose.msra.mxu0 0.0
  %8746 = vmatprep.subr.mxu0 0.0
  %8747 = vmatpush1.xpose.msra.mxu0 0.0
  %8748 = vmatprep.subr.mxu0 0.0
  %8749 = vmatpush1.xpose.msra.mxu0 %v8716
  %8750 = vmatprep.subr.mxu0 0.0
  %8751 = vmatpush2.xpose.msra.mxu0 0.0
  %8752 = vmatprep.subr.mxu0 0.0
  %8753 = vmatpush2.xpose.msra.mxu0 0.0
  %8754 = vmatprep.subr.mxu0 0.0
  %8755 = vmatpush2.xpose.msra.mxu0 0.0
  %8756 = vmatprep.subr.mxu0 0.0
  %8757 = vmatpush2.xpose.msra.mxu0 0.0
  %8758 = vmatprep.subr.mxu0 0.0
  %8759 = vmatpush2.xpose.msra.mxu0 0.0
  %8760 = vmatprep.subr.mxu0 0.0
  %8761 = vmatpush2.xpose.msra.mxu0 0.0
  %8762 = vmatprep.subr.mxu0 0.0
  %8763 = vmatpush2.xpose.msra.mxu0 0.0
  %8764 = vmatprep.subr.mxu0 0.0
  %8765 = vmatpush2.xpose.msra.mxu0 0.0
  %8766 = vmatprep.subr.mxu0 0.0
  %8767 = vmatpush2.xpose.msra.mxu0 0.0
  %8768 = vmatprep.subr.mxu0 0.0
  %8769 = vmatpush2.xpose.msra.mxu0 0.0
  %8770 = vmatprep.subr.mxu0 0.0
  %8771 = vmatpush2.xpose.msra.mxu0 0.0
  %8772 = vmatprep.subr.mxu0 0.0
  %8773 = vmatpush2.xpose.msra.mxu0 0.0
  %8774 = vmatprep.subr.mxu0 0.0
  %8775 = vmatpush2.xpose.msra.mxu0 0.0
  %8776 = vmatprep.subr.mxu0 0.0
  %8777 = vmatpush2.xpose.msra.mxu0 0.0
  %8778 = vmatprep.subr.mxu0 0.0
  %8779 = vmatpush2.xpose.msra.mxu0 0.0
  %8780 = vmatprep.subr.mxu0 0.0
  %8781 = vmatpush2.xpose.msra.mxu0 0.0
  %8782 = vmatprep.mubr.f32.mxu0 0.0
  %8783 = vmatmul.mubr.f32.gmra.mxu0 %v8714
  %v8784 = vpop.f32.mrf.mxu0
  %v8785 = vadd.f32 0.0, %v8784
  %v8786 = vpop.f32.mrf.mxu0
  %8787 = vdwg.mxu0
  %v8788 = vsel %vm5175, %v8785, -inf
  %8789 = vmax.xlane.f32.xlu0 %v8788
  %v8790 = vpop.xlane.xlu0 %8789
  %v8791 = vsub.f32 %v8785, %v8790
  %v8792 = vmul.f32 %v8791, 1.442695
  %v8793 = vpow.pop %v8792
  %v8794 = vsel %vm5175, %v8793, 0.0
  %8795 = vadd.xlane.f32.xlu0 %v8794
  %v8796 = vpop.xlane.xlu0 %8795
  %v8797 = vrcp.pop %v8796
  %v8798 = vmul.f32 %v8793, %v8797
  %8799 = vrot.lane.b32.xlu0 %v7588, 88
  %v8800 = vpop.permute.xlu0 %8799
  %v8803 = vsel %vm233, %v8798, 0
  %8805 = vmatprep.subr.mxu0 0.0
  %8806 = vmatpush1.msra.mxu0 0.0
  %8807 = vmatprep.subr.mxu0 0.0
  %8808 = vmatpush1.msra.mxu0 0.0
  %8809 = vmatprep.subr.mxu0 0.0
  %8810 = vmatpush1.msra.mxu0 0.0
  %8811 = vmatprep.subr.mxu0 0.0
  %8812 = vmatpush1.msra.mxu0 0.0
  %8813 = vmatprep.subr.mxu0 0.0
  %8814 = vmatpush1.msra.mxu0 0.0
  %8815 = vmatprep.subr.mxu0 0.0
  %8816 = vmatpush1.msra.mxu0 0.0
  %8817 = vmatprep.subr.mxu0 0.0
  %8818 = vmatpush1.msra.mxu0 0.0
  %8819 = vmatprep.subr.mxu0 0.0
  %8820 = vmatpush1.msra.mxu0 0.0
  %8821 = vmatprep.subr.mxu0 0.0
  %8822 = vmatpush1.msra.mxu0 0.0
  %8823 = vmatprep.subr.mxu0 0.0
  %8824 = vmatpush1.msra.mxu0 0.0
  %8825 = vmatprep.subr.mxu0 0.0
  %8826 = vmatpush1.msra.mxu0 0.0
  %8827 = vmatprep.subr.mxu0 0.0
  %8828 = vmatpush1.msra.mxu0 0.0
  %8829 = vmatprep.subr.mxu0 0.0
  %8830 = vmatpush1.msra.mxu0 0.0
  %8831 = vmatprep.subr.mxu0 0.0
  %8832 = vmatpush1.msra.mxu0 0.0
  %8833 = vmatprep.subr.mxu0 0.0
  %8834 = vmatpush1.msra.mxu0 0.0
  %8835 = vmatprep.subr.mxu0 0.0
  %8836 = vmatpush1.msra.mxu0 %v8800
  %8837 = vmatprep.subr.mxu0 0.0
  %8838 = vmatpush2.msra.mxu0 0.0
  %8839 = vmatprep.subr.mxu0 0.0
  %8840 = vmatpush2.msra.mxu0 0.0
  %8841 = vmatprep.subr.mxu0 0.0
  %8842 = vmatpush2.msra.mxu0 0.0
  %8843 = vmatprep.subr.mxu0 0.0
  %8844 = vmatpush2.msra.mxu0 0.0
  %8845 = vmatprep.subr.mxu0 0.0
  %8846 = vmatpush2.msra.mxu0 0.0
  %8847 = vmatprep.subr.mxu0 0.0
  %8848 = vmatpush2.msra.mxu0 0.0
  %8849 = vmatprep.subr.mxu0 0.0
  %8850 = vmatpush2.msra.mxu0 0.0
  %8851 = vmatprep.subr.mxu0 0.0
  %8852 = vmatpush2.msra.mxu0 0.0
  %8853 = vmatprep.subr.mxu0 0.0
  %8854 = vmatpush2.msra.mxu0 0.0
  %8855 = vmatprep.subr.mxu0 0.0
  %8856 = vmatpush2.msra.mxu0 0.0
  %8857 = vmatprep.subr.mxu0 0.0
  %8858 = vmatpush2.msra.mxu0 0.0
  %8859 = vmatprep.subr.mxu0 0.0
  %8860 = vmatpush2.msra.mxu0 0.0
  %8861 = vmatprep.subr.mxu0 0.0
  %8862 = vmatpush2.msra.mxu0 0.0
  %8863 = vmatprep.subr.mxu0 0.0
  %8864 = vmatpush2.msra.mxu0 0.0
  %8865 = vmatprep.subr.mxu0 0.0
  %8866 = vmatpush2.msra.mxu0 0.0
  %8867 = vmatprep.subr.mxu0 0.0
  %8868 = vmatpush2.msra.mxu0 0.0
  %8869 = vmatprep.mubr.f32.mxu0 0.0
  %8870 = vmatmul.mubr.f32.gmra.mxu0 %v8803
  %v8871 = vpop.f32.mrf.mxu0
  %v8872 = vadd.f32 0.0, %v8871
  %v8873 = vpop.f32.mrf.mxu0
  %8874 = vdwg.mxu0
  %v8876 = vsel %vm233, %v8872, 0
  %8878 = vmatprep.subr.mxu0 0.0
  %8879 = vmatpush1.msra.mxu0 0.0
  %8880 = vmatprep.subr.mxu0 0.0
  %8881 = vmatpush1.msra.mxu0 0.0
  %8882 = vmatprep.subr.mxu0 0.0
  %8883 = vmatpush1.msra.mxu0 0.0
  %8884 = vmatprep.subr.mxu0 0.0
  %8885 = vmatpush1.msra.mxu0 0.0
  %8886 = vmatprep.subr.mxu0 0.0
  %8887 = vmatpush1.msra.mxu0 0.0
  %8888 = vmatprep.subr.mxu0 0.0
  %8889 = vmatpush1.msra.mxu0 0.0
  %8890 = vmatprep.subr.mxu0 0.0
  %8891 = vmatpush1.msra.mxu0 0.0
  %8892 = vmatprep.subr.mxu0 0.0
  %8893 = vmatpush1.msra.mxu0 0.0
  %8894 = vmatprep.subr.mxu0 0.0
  %8895 = vmatpush1.msra.mxu0 0.0
  %8896 = vmatprep.subr.mxu0 0.0
  %8897 = vmatpush1.msra.mxu0 0.0
  %8898 = vmatprep.subr.mxu0 0.0
  %8899 = vmatpush1.msra.mxu0 0.0
  %8900 = vmatprep.subr.mxu0 0.0
  %8901 = vmatpush1.msra.mxu0 0.0
  %8902 = vmatprep.subr.mxu0 0.0
  %8903 = vmatpush1.msra.mxu0 0.0
  %8904 = vmatprep.subr.mxu0 0.0
  %8905 = vmatpush1.msra.mxu0 0.0
  %8906 = vmatprep.subr.mxu0 0.0
  %8907 = vmatpush1.msra.mxu0 0.0
  %8908 = vmatprep.subr.mxu0 0.0
  %8909 = vmatpush1.msra.mxu0 %v7592
  %8910 = vmatprep.subr.mxu0 0.0
  %8911 = vmatpush2.msra.mxu0 0.0
  %8912 = vmatprep.subr.mxu0 0.0
  %8913 = vmatpush2.msra.mxu0 0.0
  %8914 = vmatprep.subr.mxu0 0.0
  %8915 = vmatpush2.msra.mxu0 0.0
  %8916 = vmatprep.subr.mxu0 0.0
  %8917 = vmatpush2.msra.mxu0 0.0
  %8918 = vmatprep.subr.mxu0 0.0
  %8919 = vmatpush2.msra.mxu0 0.0
  %8920 = vmatprep.subr.mxu0 0.0
  %8921 = vmatpush2.msra.mxu0 0.0
  %8922 = vmatprep.subr.mxu0 0.0
  %8923 = vmatpush2.msra.mxu0 0.0
  %8924 = vmatprep.subr.mxu0 0.0
  %8925 = vmatpush2.msra.mxu0 0.0
  %8926 = vmatprep.subr.mxu0 0.0
  %8927 = vmatpush2.msra.mxu0 0.0
  %8928 = vmatprep.subr.mxu0 0.0
  %8929 = vmatpush2.msra.mxu0 0.0
  %8930 = vmatprep.subr.mxu0 0.0
  %8931 = vmatpush2.msra.mxu0 0.0
  %8932 = vmatprep.subr.mxu0 0.0
  %8933 = vmatpush2.msra.mxu0 0.0
  %8934 = vmatprep.subr.mxu0 0.0
  %8935 = vmatpush2.msra.mxu0 0.0
  %8936 = vmatprep.subr.mxu0 0.0
  %8937 = vmatpush2.msra.mxu0 0.0
  %8938 = vmatprep.subr.mxu0 0.0
  %8939 = vmatpush2.msra.mxu0 0.0
  %8940 = vmatprep.subr.mxu0 0.0
  %8941 = vmatpush2.msra.mxu0 0.0
  %8942 = vmatprep.mubr.f32.mxu0 0.0
  %8943 = vmatmul.mubr.f32.gmra.mxu0 %v8876
  %v8944 = vpop.f32.mrf.mxu0
  %v8945 = vadd.f32 0.0, %v8944
  %v8946 = vpop.f32.mrf.mxu0
  %8947 = vdwg.mxu0
  %v8949 = vsel %vm233, %v8707, 0
  %8951 = vmatprep.subr.mxu0 0.0
  %8952 = vmatpush1.msra.mxu0 0.0
  %8953 = vmatprep.subr.mxu0 0.0
  %8954 = vmatpush1.msra.mxu0 0.0
  %8955 = vmatprep.subr.mxu0 0.0
  %8956 = vmatpush1.msra.mxu0 0.0
  %8957 = vmatprep.subr.mxu0 0.0
  %8958 = vmatpush1.msra.mxu0 0.0
  %8959 = vmatprep.subr.mxu0 0.0
  %8960 = vmatpush1.msra.mxu0 0.0
  %8961 = vmatprep.subr.mxu0 0.0
  %8962 = vmatpush1.msra.mxu0 0.0
  %8963 = vmatprep.subr.mxu0 0.0
  %8964 = vmatpush1.msra.mxu0 0.0
  %8965 = vmatprep.subr.mxu0 0.0
  %8966 = vmatpush1.msra.mxu0 0.0
  %8967 = vmatprep.subr.mxu0 0.0
  %8968 = vmatpush1.msra.mxu0 0.0
  %8969 = vmatprep.subr.mxu0 0.0
  %8970 = vmatpush1.msra.mxu0 0.0
  %8971 = vmatprep.subr.mxu0 0.0
  %8972 = vmatpush1.msra.mxu0 0.0
  %8973 = vmatprep.subr.mxu0 0.0
  %8974 = vmatpush1.msra.mxu0 0.0
  %8975 = vmatprep.subr.mxu0 0.0
  %8976 = vmatpush1.msra.mxu0 0.0
  %8977 = vmatprep.subr.mxu0 0.0
  %8978 = vmatpush1.msra.mxu0 0.0
  %8979 = vmatprep.subr.mxu0 0.0
  %8980 = vmatpush1.msra.mxu0 0.0
  %8981 = vmatprep.subr.mxu0 0.0
  %8982 = vmatpush1.msra.mxu0 %v7591
  %8983 = vmatprep.subr.mxu0 0.0
  %8984 = vmatpush2.msra.mxu0 0.0
  %8985 = vmatprep.subr.mxu0 0.0
  %8986 = vmatpush2.msra.mxu0 0.0
  %8987 = vmatprep.subr.mxu0 0.0
  %8988 = vmatpush2.msra.mxu0 0.0
  %8989 = vmatprep.subr.mxu0 0.0
  %8990 = vmatpush2.msra.mxu0 0.0
  %8991 = vmatprep.subr.mxu0 0.0
  %8992 = vmatpush2.msra.mxu0 0.0
  %8993 = vmatprep.subr.mxu0 0.0
  %8994 = vmatpush2.msra.mxu0 0.0
  %8995 = vmatprep.subr.mxu0 0.0
  %8996 = vmatpush2.msra.mxu0 0.0
  %8997 = vmatprep.subr.mxu0 0.0
  %8998 = vmatpush2.msra.mxu0 0.0
  %8999 = vmatprep.subr.mxu0 0.0
  %9000 = vmatpush2.msra.mxu0 0.0
  %9001 = vmatprep.subr.mxu0 0.0
  %9002 = vmatpush2.msra.mxu0 0.0
  %9003 = vmatprep.subr.mxu0 0.0
  %9004 = vmatpush2.msra.mxu0 0.0
  %9005 = vmatprep.subr.mxu0 0.0
  %9006 = vmatpush2.msra.mxu0 0.0
  %9007 = vmatprep.subr.mxu0 0.0
  %9008 = vmatpush2.msra.mxu0 0.0
  %9009 = vmatprep.subr.mxu0 0.0
  %9010 = vmatpush2.msra.mxu0 0.0
  %9011 = vmatprep.subr.mxu0 0.0
  %9012 = vmatpush2.msra.mxu0 0.0
  %9013 = vmatprep.subr.mxu0 0.0
  %9014 = vmatpush2.msra.mxu0 0.0
  %9015 = vmatprep.mubr.f32.mxu0 0.0
  %9016 = vmatmul.mubr.f32.gmra.mxu0 %v8949
  %v9017 = vpop.f32.mrf.mxu0
  %v9018 = vadd.f32 %v8945, %v9017
  %v9019 = vpop.f32.mrf.mxu0
  %9020 = vdwg.mxu0
  %9021 = vrot.lane.b32.xlu0 %v8547, 112
  %v9022 = vpop.permute.xlu0 %9021
  %9023 = vrot.lane.b32.xlu0 %v7588, 112
  %v9024 = vpop.permute.xlu0 %9023
  %v9025 = vsel %vm233, %v9022, 0
  %v9027 = vsel %vm233, %v9024, 0
  %9029 = vmatprep.subr.mxu0 0.0
  %9030 = vmatpush1.xpose.msra.mxu0 0.0
  %9031 = vmatprep.subr.mxu0 0.0
  %9032 = vmatpush1.xpose.msra.mxu0 0.0
  %9033 = vmatprep.subr.mxu0 0.0
  %9034 = vmatpush1.xpose.msra.mxu0 0.0
  %9035 = vmatprep.subr.mxu0 0.0
  %9036 = vmatpush1.xpose.msra.mxu0 0.0
  %9037 = vmatprep.subr.mxu0 0.0
  %9038 = vmatpush1.xpose.msra.mxu0 0.0
  %9039 = vmatprep.subr.mxu0 0.0
  %9040 = vmatpush1.xpose.msra.mxu0 0.0
  %9041 = vmatprep.subr.mxu0 0.0
  %9042 = vmatpush1.xpose.msra.mxu0 0.0
  %9043 = vmatprep.subr.mxu0 0.0
  %9044 = vmatpush1.xpose.msra.mxu0 0.0
  %9045 = vmatprep.subr.mxu0 0.0
  %9046 = vmatpush1.xpose.msra.mxu0 0.0
  %9047 = vmatprep.subr.mxu0 0.0
  %9048 = vmatpush1.xpose.msra.mxu0 0.0
  %9049 = vmatprep.subr.mxu0 0.0
  %9050 = vmatpush1.xpose.msra.mxu0 0.0
  %9051 = vmatprep.subr.mxu0 0.0
  %9052 = vmatpush1.xpose.msra.mxu0 0.0
  %9053 = vmatprep.subr.mxu0 0.0
  %9054 = vmatpush1.xpose.msra.mxu0 0.0
  %9055 = vmatprep.subr.mxu0 0.0
  %9056 = vmatpush1.xpose.msra.mxu0 0.0
  %9057 = vmatprep.subr.mxu0 0.0
  %9058 = vmatpush1.xpose.msra.mxu0 0.0
  %9059 = vmatprep.subr.mxu0 0.0
  %9060 = vmatpush1.xpose.msra.mxu0 %v9027
  %9061 = vmatprep.subr.mxu0 0.0
  %9062 = vmatpush2.xpose.msra.mxu0 0.0
  %9063 = vmatprep.subr.mxu0 0.0
  %9064 = vmatpush2.xpose.msra.mxu0 0.0
  %9065 = vmatprep.subr.mxu0 0.0
  %9066 = vmatpush2.xpose.msra.mxu0 0.0
  %9067 = vmatprep.subr.mxu0 0.0
  %9068 = vmatpush2.xpose.msra.mxu0 0.0
  %9069 = vmatprep.subr.mxu0 0.0
  %9070 = vmatpush2.xpose.msra.mxu0 0.0
  %9071 = vmatprep.subr.mxu0 0.0
  %9072 = vmatpush2.xpose.msra.mxu0 0.0
  %9073 = vmatprep.subr.mxu0 0.0
  %9074 = vmatpush2.xpose.msra.mxu0 0.0
  %9075 = vmatprep.subr.mxu0 0.0
  %9076 = vmatpush2.xpose.msra.mxu0 0.0
  %9077 = vmatprep.subr.mxu0 0.0
  %9078 = vmatpush2.xpose.msra.mxu0 0.0
  %9079 = vmatprep.subr.mxu0 0.0
  %9080 = vmatpush2.xpose.msra.mxu0 0.0
  %9081 = vmatprep.subr.mxu0 0.0
  %9082 = vmatpush2.xpose.msra.mxu0 0.0
  %9083 = vmatprep.subr.mxu0 0.0
  %9084 = vmatpush2.xpose.msra.mxu0 0.0
  %9085 = vmatprep.subr.mxu0 0.0
  %9086 = vmatpush2.xpose.msra.mxu0 0.0
  %9087 = vmatprep.subr.mxu0 0.0
  %9088 = vmatpush2.xpose.msra.mxu0 0.0
  %9089 = vmatprep.subr.mxu0 0.0
  %9090 = vmatpush2.xpose.msra.mxu0 0.0
  %9091 = vmatprep.subr.mxu0 0.0
  %9092 = vmatpush2.xpose.msra.mxu0 0.0
  %9093 = vmatprep.mubr.f32.mxu0 0.0
  %9094 = vmatmul.mubr.f32.gmra.mxu0 %v9025
  %v9095 = vpop.f32.mrf.mxu0
  %v9096 = vadd.f32 0.0, %v9095
  %v9097 = vpop.f32.mrf.mxu0
  %9098 = vdwg.mxu0
  %v9099 = vsel %vm5175, %v9096, -inf
  %9100 = vmax.xlane.f32.xlu0 %v9099
  %v9101 = vpop.xlane.xlu0 %9100
  %v9102 = vsub.f32 %v9096, %v9101
  %v9103 = vmul.f32 %v9102, 1.442695
  %v9104 = vpow.pop %v9103
  %v9105 = vsel %vm5175, %v9104, 0.0
  %9106 = vadd.xlane.f32.xlu0 %v9105
  %v9107 = vpop.xlane.xlu0 %9106
  %v9108 = vrcp.pop %v9107
  %v9109 = vmul.f32 %v9104, %v9108
  %9110 = vrot.lane.b32.xlu0 %v7588, 80
  %v9111 = vpop.permute.xlu0 %9110
  %v9114 = vsel %vm233, %v9109, 0
  %9116 = vmatprep.subr.mxu0 0.0
  %9117 = vmatpush1.msra.mxu0 0.0
  %9118 = vmatprep.subr.mxu0 0.0
  %9119 = vmatpush1.msra.mxu0 0.0
  %9120 = vmatprep.subr.mxu0 0.0
  %9121 = vmatpush1.msra.mxu0 0.0
  %9122 = vmatprep.subr.mxu0 0.0
  %9123 = vmatpush1.msra.mxu0 0.0
  %9124 = vmatprep.subr.mxu0 0.0
  %9125 = vmatpush1.msra.mxu0 0.0
  %9126 = vmatprep.subr.mxu0 0.0
  %9127 = vmatpush1.msra.mxu0 0.0
  %9128 = vmatprep.subr.mxu0 0.0
  %9129 = vmatpush1.msra.mxu0 0.0
  %9130 = vmatprep.subr.mxu0 0.0
  %9131 = vmatpush1.msra.mxu0 0.0
  %9132 = vmatprep.subr.mxu0 0.0
  %9133 = vmatpush1.msra.mxu0 0.0
  %9134 = vmatprep.subr.mxu0 0.0
  %9135 = vmatpush1.msra.mxu0 0.0
  %9136 = vmatprep.subr.mxu0 0.0
  %9137 = vmatpush1.msra.mxu0 0.0
  %9138 = vmatprep.subr.mxu0 0.0
  %9139 = vmatpush1.msra.mxu0 0.0
  %9140 = vmatprep.subr.mxu0 0.0
  %9141 = vmatpush1.msra.mxu0 0.0
  %9142 = vmatprep.subr.mxu0 0.0
  %9143 = vmatpush1.msra.mxu0 0.0
  %9144 = vmatprep.subr.mxu0 0.0
  %9145 = vmatpush1.msra.mxu0 0.0
  %9146 = vmatprep.subr.mxu0 0.0
  %9147 = vmatpush1.msra.mxu0 %v9111
  %9148 = vmatprep.subr.mxu0 0.0
  %9149 = vmatpush2.msra.mxu0 0.0
  %9150 = vmatprep.subr.mxu0 0.0
  %9151 = vmatpush2.msra.mxu0 0.0
  %9152 = vmatprep.subr.mxu0 0.0
  %9153 = vmatpush2.msra.mxu0 0.0
  %9154 = vmatprep.subr.mxu0 0.0
  %9155 = vmatpush2.msra.mxu0 0.0
  %9156 = vmatprep.subr.mxu0 0.0
  %9157 = vmatpush2.msra.mxu0 0.0
  %9158 = vmatprep.subr.mxu0 0.0
  %9159 = vmatpush2.msra.mxu0 0.0
  %9160 = vmatprep.subr.mxu0 0.0
  %9161 = vmatpush2.msra.mxu0 0.0
  %9162 = vmatprep.subr.mxu0 0.0
  %9163 = vmatpush2.msra.mxu0 0.0
  %9164 = vmatprep.subr.mxu0 0.0
  %9165 = vmatpush2.msra.mxu0 0.0
  %9166 = vmatprep.subr.mxu0 0.0
  %9167 = vmatpush2.msra.mxu0 0.0
  %9168 = vmatprep.subr.mxu0 0.0
  %9169 = vmatpush2.msra.mxu0 0.0
  %9170 = vmatprep.subr.mxu0 0.0
  %9171 = vmatpush2.msra.mxu0 0.0
  %9172 = vmatprep.subr.mxu0 0.0
  %9173 = vmatpush2.msra.mxu0 0.0
  %9174 = vmatprep.subr.mxu0 0.0
  %9175 = vmatpush2.msra.mxu0 0.0
  %9176 = vmatprep.subr.mxu0 0.0
  %9177 = vmatpush2.msra.mxu0 0.0
  %9178 = vmatprep.subr.mxu0 0.0
  %9179 = vmatpush2.msra.mxu0 0.0
  %9180 = vmatprep.mubr.f32.mxu0 0.0
  %9181 = vmatmul.mubr.f32.gmra.mxu0 %v9114
  %v9182 = vpop.f32.mrf.mxu0
  %v9183 = vadd.f32 0.0, %v9182
  %v9184 = vpop.f32.mrf.mxu0
  %9185 = vdwg.mxu0
  %v9187 = vsel %vm233, %v9183, 0
  %9189 = vmatprep.subr.mxu0 0.0
  %9190 = vmatpush1.msra.mxu0 0.0
  %9191 = vmatprep.subr.mxu0 0.0
  %9192 = vmatpush1.msra.mxu0 0.0
  %9193 = vmatprep.subr.mxu0 0.0
  %9194 = vmatpush1.msra.mxu0 0.0
  %9195 = vmatprep.subr.mxu0 0.0
  %9196 = vmatpush1.msra.mxu0 0.0
  %9197 = vmatprep.subr.mxu0 0.0
  %9198 = vmatpush1.msra.mxu0 0.0
  %9199 = vmatprep.subr.mxu0 0.0
  %9200 = vmatpush1.msra.mxu0 0.0
  %9201 = vmatprep.subr.mxu0 0.0
  %9202 = vmatpush1.msra.mxu0 0.0
  %9203 = vmatprep.subr.mxu0 0.0
  %9204 = vmatpush1.msra.mxu0 0.0
  %9205 = vmatprep.subr.mxu0 0.0
  %9206 = vmatpush1.msra.mxu0 0.0
  %9207 = vmatprep.subr.mxu0 0.0
  %9208 = vmatpush1.msra.mxu0 0.0
  %9209 = vmatprep.subr.mxu0 0.0
  %9210 = vmatpush1.msra.mxu0 0.0
  %9211 = vmatprep.subr.mxu0 0.0
  %9212 = vmatpush1.msra.mxu0 0.0
  %9213 = vmatprep.subr.mxu0 0.0
  %9214 = vmatpush1.msra.mxu0 0.0
  %9215 = vmatprep.subr.mxu0 0.0
  %9216 = vmatpush1.msra.mxu0 0.0
  %9217 = vmatprep.subr.mxu0 0.0
  %9218 = vmatpush1.msra.mxu0 0.0
  %9219 = vmatprep.subr.mxu0 0.0
  %9220 = vmatpush1.msra.mxu0 %v7593
  %9221 = vmatprep.subr.mxu0 0.0
  %9222 = vmatpush2.msra.mxu0 0.0
  %9223 = vmatprep.subr.mxu0 0.0
  %9224 = vmatpush2.msra.mxu0 0.0
  %9225 = vmatprep.subr.mxu0 0.0
  %9226 = vmatpush2.msra.mxu0 0.0
  %9227 = vmatprep.subr.mxu0 0.0
  %9228 = vmatpush2.msra.mxu0 0.0
  %9229 = vmatprep.subr.mxu0 0.0
  %9230 = vmatpush2.msra.mxu0 0.0
  %9231 = vmatprep.subr.mxu0 0.0
  %9232 = vmatpush2.msra.mxu0 0.0
  %9233 = vmatprep.subr.mxu0 0.0
  %9234 = vmatpush2.msra.mxu0 0.0
  %9235 = vmatprep.subr.mxu0 0.0
  %9236 = vmatpush2.msra.mxu0 0.0
  %9237 = vmatprep.subr.mxu0 0.0
  %9238 = vmatpush2.msra.mxu0 0.0
  %9239 = vmatprep.subr.mxu0 0.0
  %9240 = vmatpush2.msra.mxu0 0.0
  %9241 = vmatprep.subr.mxu0 0.0
  %9242 = vmatpush2.msra.mxu0 0.0
  %9243 = vmatprep.subr.mxu0 0.0
  %9244 = vmatpush2.msra.mxu0 0.0
  %9245 = vmatprep.subr.mxu0 0.0
  %9246 = vmatpush2.msra.mxu0 0.0
  %9247 = vmatprep.subr.mxu0 0.0
  %9248 = vmatpush2.msra.mxu0 0.0
  %9249 = vmatprep.subr.mxu0 0.0
  %9250 = vmatpush2.msra.mxu0 0.0
  %9251 = vmatprep.subr.mxu0 0.0
  %9252 = vmatpush2.msra.mxu0 0.0
  %9253 = vmatprep.mubr.f32.mxu0 0.0
  %9254 = vmatmul.mubr.f32.gmra.mxu0 %v9187
  %v9255 = vpop.f32.mrf.mxu0
  %v9256 = vadd.f32 0.0, %v9255
  %v9257 = vpop.f32.mrf.mxu0
  %9258 = vdwg.mxu0
  %v9259 = vadd.f32 %v9018, %v9256
  %9260 = vrot.lane.b32.xlu0 %v8547, 104
  %v9261 = vpop.permute.xlu0 %9260
  %9262 = vrot.lane.b32.xlu0 %v7588, 104
  %v9263 = vpop.permute.xlu0 %9262
  %v9264 = vsel %vm233, %v9261, 0
  %v9266 = vsel %vm233, %v9263, 0
  %9268 = vmatprep.subr.mxu0 0.0
  %9269 = vmatpush1.xpose.msra.mxu0 0.0
  %9270 = vmatprep.subr.mxu0 0.0
  %9271 = vmatpush1.xpose.msra.mxu0 0.0
  %9272 = vmatprep.subr.mxu0 0.0
  %9273 = vmatpush1.xpose.msra.mxu0 0.0
  %9274 = vmatprep.subr.mxu0 0.0
  %9275 = vmatpush1.xpose.msra.mxu0 0.0
  %9276 = vmatprep.subr.mxu0 0.0
  %9277 = vmatpush1.xpose.msra.mxu0 0.0
  %9278 = vmatprep.subr.mxu0 0.0
  %9279 = vmatpush1.xpose.msra.mxu0 0.0
  %9280 = vmatprep.subr.mxu0 0.0
  %9281 = vmatpush1.xpose.msra.mxu0 0.0
  %9282 = vmatprep.subr.mxu0 0.0
  %9283 = vmatpush1.xpose.msra.mxu0 0.0
  %9284 = vmatprep.subr.mxu0 0.0
  %9285 = vmatpush1.xpose.msra.mxu0 0.0
  %9286 = vmatprep.subr.mxu0 0.0
  %9287 = vmatpush1.xpose.msra.mxu0 0.0
  %9288 = vmatprep.subr.mxu0 0.0
  %9289 = vmatpush1.xpose.msra.mxu0 0.0
  %9290 = vmatprep.subr.mxu0 0.0
  %9291 = vmatpush1.xpose.msra.mxu0 0.0
  %9292 = vmatprep.subr.mxu0 0.0
  %9293 = vmatpush1.xpose.msra.mxu0 0.0
  %9294 = vmatprep.subr.mxu0 0.0
  %9295 = vmatpush1.xpose.msra.mxu0 0.0
  %9296 = vmatprep.subr.mxu0 0.0
  %9297 = vmatpush1.xpose.msra.mxu0 0.0
  %9298 = vmatprep.subr.mxu0 0.0
  %9299 = vmatpush1.xpose.msra.mxu0 %v9266
  %9300 = vmatprep.subr.mxu0 0.0
  %9301 = vmatpush2.xpose.msra.mxu0 0.0
  %9302 = vmatprep.subr.mxu0 0.0
  %9303 = vmatpush2.xpose.msra.mxu0 0.0
  %9304 = vmatprep.subr.mxu0 0.0
  %9305 = vmatpush2.xpose.msra.mxu0 0.0
  %9306 = vmatprep.subr.mxu0 0.0
  %9307 = vmatpush2.xpose.msra.mxu0 0.0
  %9308 = vmatprep.subr.mxu0 0.0
  %9309 = vmatpush2.xpose.msra.mxu0 0.0
  %9310 = vmatprep.subr.mxu0 0.0
  %9311 = vmatpush2.xpose.msra.mxu0 0.0
  %9312 = vmatprep.subr.mxu0 0.0
  %9313 = vmatpush2.xpose.msra.mxu0 0.0
  %9314 = vmatprep.subr.mxu0 0.0
  %9315 = vmatpush2.xpose.msra.mxu0 0.0
  %9316 = vmatprep.subr.mxu0 0.0
  %9317 = vmatpush2.xpose.msra.mxu0 0.0
  %9318 = vmatprep.subr.mxu0 0.0
  %9319 = vmatpush2.xpose.msra.mxu0 0.0
  %9320 = vmatprep.subr.mxu0 0.0
  %9321 = vmatpush2.xpose.msra.mxu0 0.0
  %9322 = vmatprep.subr.mxu0 0.0
  %9323 = vmatpush2.xpose.msra.mxu0 0.0
  %9324 = vmatprep.subr.mxu0 0.0
  %9325 = vmatpush2.xpose.msra.mxu0 0.0
  %9326 = vmatprep.subr.mxu0 0.0
  %9327 = vmatpush2.xpose.msra.mxu0 0.0
  %9328 = vmatprep.subr.mxu0 0.0
  %9329 = vmatpush2.xpose.msra.mxu0 0.0
  %9330 = vmatprep.subr.mxu0 0.0
  %9331 = vmatpush2.xpose.msra.mxu0 0.0
  %9332 = vmatprep.mubr.f32.mxu0 0.0
  %9333 = vmatmul.mubr.f32.gmra.mxu0 %v9264
  %v9334 = vpop.f32.mrf.mxu0
  %v9335 = vadd.f32 0.0, %v9334
  %v9336 = vpop.f32.mrf.mxu0
  %9337 = vdwg.mxu0
  %v9338 = vsel %vm5175, %v9335, -inf
  %9339 = vmax.xlane.f32.xlu0 %v9338
  %v9340 = vpop.xlane.xlu0 %9339
  %v9341 = vsub.f32 %v9335, %v9340
  %v9342 = vmul.f32 %v9341, 1.442695
  %v9343 = vpow.pop %v9342
  %v9344 = vsel %vm5175, %v9343, 0.0
  %9345 = vadd.xlane.f32.xlu0 %v9344
  %v9346 = vpop.xlane.xlu0 %9345
  %v9347 = vrcp.pop %v9346
  %v9348 = vmul.f32 %v9343, %v9347
  %9349 = vrot.lane.b32.xlu0 %v7588, 72
  %v9350 = vpop.permute.xlu0 %9349
  %v9353 = vsel %vm233, %v9348, 0
  %9355 = vmatprep.subr.mxu0 0.0
  %9356 = vmatpush1.msra.mxu0 0.0
  %9357 = vmatprep.subr.mxu0 0.0
  %9358 = vmatpush1.msra.mxu0 0.0
  %9359 = vmatprep.subr.mxu0 0.0
  %9360 = vmatpush1.msra.mxu0 0.0
  %9361 = vmatprep.subr.mxu0 0.0
  %9362 = vmatpush1.msra.mxu0 0.0
  %9363 = vmatprep.subr.mxu0 0.0
  %9364 = vmatpush1.msra.mxu0 0.0
  %9365 = vmatprep.subr.mxu0 0.0
  %9366 = vmatpush1.msra.mxu0 0.0
  %9367 = vmatprep.subr.mxu0 0.0
  %9368 = vmatpush1.msra.mxu0 0.0
  %9369 = vmatprep.subr.mxu0 0.0
  %9370 = vmatpush1.msra.mxu0 0.0
  %9371 = vmatprep.subr.mxu0 0.0
  %9372 = vmatpush1.msra.mxu0 0.0
  %9373 = vmatprep.subr.mxu0 0.0
  %9374 = vmatpush1.msra.mxu0 0.0
  %9375 = vmatprep.subr.mxu0 0.0
  %9376 = vmatpush1.msra.mxu0 0.0
  %9377 = vmatprep.subr.mxu0 0.0
  %9378 = vmatpush1.msra.mxu0 0.0
  %9379 = vmatprep.subr.mxu0 0.0
  %9380 = vmatpush1.msra.mxu0 0.0
  %9381 = vmatprep.subr.mxu0 0.0
  %9382 = vmatpush1.msra.mxu0 0.0
  %9383 = vmatprep.subr.mxu0 0.0
  %9384 = vmatpush1.msra.mxu0 0.0
  %9385 = vmatprep.subr.mxu0 0.0
  %9386 = vmatpush1.msra.mxu0 %v9350
  %9387 = vmatprep.subr.mxu0 0.0
  %9388 = vmatpush2.msra.mxu0 0.0
  %9389 = vmatprep.subr.mxu0 0.0
  %9390 = vmatpush2.msra.mxu0 0.0
  %9391 = vmatprep.subr.mxu0 0.0
  %9392 = vmatpush2.msra.mxu0 0.0
  %9393 = vmatprep.subr.mxu0 0.0
  %9394 = vmatpush2.msra.mxu0 0.0
  %9395 = vmatprep.subr.mxu0 0.0
  %9396 = vmatpush2.msra.mxu0 0.0
  %9397 = vmatprep.subr.mxu0 0.0
  %9398 = vmatpush2.msra.mxu0 0.0
  %9399 = vmatprep.subr.mxu0 0.0
  %9400 = vmatpush2.msra.mxu0 0.0
  %9401 = vmatprep.subr.mxu0 0.0
  %9402 = vmatpush2.msra.mxu0 0.0
  %9403 = vmatprep.subr.mxu0 0.0
  %9404 = vmatpush2.msra.mxu0 0.0
  %9405 = vmatprep.subr.mxu0 0.0
  %9406 = vmatpush2.msra.mxu0 0.0
  %9407 = vmatprep.subr.mxu0 0.0
  %9408 = vmatpush2.msra.mxu0 0.0
  %9409 = vmatprep.subr.mxu0 0.0
  %9410 = vmatpush2.msra.mxu0 0.0
  %9411 = vmatprep.subr.mxu0 0.0
  %9412 = vmatpush2.msra.mxu0 0.0
  %9413 = vmatprep.subr.mxu0 0.0
  %9414 = vmatpush2.msra.mxu0 0.0
  %9415 = vmatprep.subr.mxu0 0.0
  %9416 = vmatpush2.msra.mxu0 0.0
  %9417 = vmatprep.subr.mxu0 0.0
  %9418 = vmatpush2.msra.mxu0 0.0
  %9419 = vmatprep.mubr.f32.mxu0 0.0
  %9420 = vmatmul.mubr.f32.gmra.mxu0 %v9353
  %v9421 = vpop.f32.mrf.mxu0
  %v9422 = vadd.f32 0.0, %v9421
  %v9423 = vpop.f32.mrf.mxu0
  %9424 = vdwg.mxu0
  %v9426 = vsel %vm233, %v9422, 0
  %9428 = vmatprep.subr.mxu0 0.0
  %9429 = vmatpush1.msra.mxu0 0.0
  %9430 = vmatprep.subr.mxu0 0.0
  %9431 = vmatpush1.msra.mxu0 0.0
  %9432 = vmatprep.subr.mxu0 0.0
  %9433 = vmatpush1.msra.mxu0 0.0
  %9434 = vmatprep.subr.mxu0 0.0
  %9435 = vmatpush1.msra.mxu0 0.0
  %9436 = vmatprep.subr.mxu0 0.0
  %9437 = vmatpush1.msra.mxu0 0.0
  %9438 = vmatprep.subr.mxu0 0.0
  %9439 = vmatpush1.msra.mxu0 0.0
  %9440 = vmatprep.subr.mxu0 0.0
  %9441 = vmatpush1.msra.mxu0 0.0
  %9442 = vmatprep.subr.mxu0 0.0
  %9443 = vmatpush1.msra.mxu0 0.0
  %9444 = vmatprep.subr.mxu0 0.0
  %9445 = vmatpush1.msra.mxu0 0.0
  %9446 = vmatprep.subr.mxu0 0.0
  %9447 = vmatpush1.msra.mxu0 0.0
  %9448 = vmatprep.subr.mxu0 0.0
  %9449 = vmatpush1.msra.mxu0 0.0
  %9450 = vmatprep.subr.mxu0 0.0
  %9451 = vmatpush1.msra.mxu0 0.0
  %9452 = vmatprep.subr.mxu0 0.0
  %9453 = vmatpush1.msra.mxu0 0.0
  %9454 = vmatprep.subr.mxu0 0.0
  %9455 = vmatpush1.msra.mxu0 0.0
  %9456 = vmatprep.subr.mxu0 0.0
  %9457 = vmatpush1.msra.mxu0 0.0
  %9458 = vmatprep.subr.mxu0 0.0
  %9459 = vmatpush1.msra.mxu0 %v7594
  %9460 = vmatprep.subr.mxu0 0.0
  %9461 = vmatpush2.msra.mxu0 0.0
  %9462 = vmatprep.subr.mxu0 0.0
  %9463 = vmatpush2.msra.mxu0 0.0
  %9464 = vmatprep.subr.mxu0 0.0
  %9465 = vmatpush2.msra.mxu0 0.0
  %9466 = vmatprep.subr.mxu0 0.0
  %9467 = vmatpush2.msra.mxu0 0.0
  %9468 = vmatprep.subr.mxu0 0.0
  %9469 = vmatpush2.msra.mxu0 0.0
  %9470 = vmatprep.subr.mxu0 0.0
  %9471 = vmatpush2.msra.mxu0 0.0
  %9472 = vmatprep.subr.mxu0 0.0
  %9473 = vmatpush2.msra.mxu0 0.0
  %9474 = vmatprep.subr.mxu0 0.0
  %9475 = vmatpush2.msra.mxu0 0.0
  %9476 = vmatprep.subr.mxu0 0.0
  %9477 = vmatpush2.msra.mxu0 0.0
  %9478 = vmatprep.subr.mxu0 0.0
  %9479 = vmatpush2.msra.mxu0 0.0
  %9480 = vmatprep.subr.mxu0 0.0
  %9481 = vmatpush2.msra.mxu0 0.0
  %9482 = vmatprep.subr.mxu0 0.0
  %9483 = vmatpush2.msra.mxu0 0.0
  %9484 = vmatprep.subr.mxu0 0.0
  %9485 = vmatpush2.msra.mxu0 0.0
  %9486 = vmatprep.subr.mxu0 0.0
  %9487 = vmatpush2.msra.mxu0 0.0
  %9488 = vmatprep.subr.mxu0 0.0
  %9489 = vmatpush2.msra.mxu0 0.0
  %9490 = vmatprep.subr.mxu0 0.0
  %9491 = vmatpush2.msra.mxu0 0.0
  %9492 = vmatprep.mubr.f32.mxu0 0.0
  %9493 = vmatmul.mubr.f32.gmra.mxu0 %v9426
  %v9494 = vpop.f32.mrf.mxu0
  %v9495 = vadd.f32 0.0, %v9494
  %v9496 = vpop.f32.mrf.mxu0
  %9497 = vdwg.mxu0
  %v9498 = vadd.f32 %v9259, %v9495
  %v9500 = vrot.slane %v9498, 7
  %v9502 = vsel %vm127, %v8546, %v9500
  %v9503 = vld [vmem:[%s4 + $0x2e8] sm:$0x1]
  %v9504 = vlaneseq
  %v9505 = vshrl.u32 %v9504, 7
  %v9506 = vsub.s32 0, %v9505
  %v9507 = vrot.slane %v9503, %v9506
  %v9508 = vadd.f32 %v9502, %v9507
  %v9509 = vadd.f32 %v7424, %v9508
  %v9510 = vld [vmem:[%s4 + $0x348] sm:$0x1]
  %v9511 = vld [vmem:[%s4 + $0x350] sm:$0x1]
  %v9512 = vsel %vm4899, %v9509, 0.0
  %9513 = vadd.xlane.f32.xlu0 %v9512
  %v9514 = vpop.xlane.xlu0 %9513
  %v9515 = vmul.f32 %v9514, %v2153
  %v9516 = vsub.f32 %v9509, %v9515
  %v9517 = vmul.f32 %v9516, %v9516
  %v9518 = vsel %vm4899, %v9517, 0.0
  %9519 = vadd.xlane.f32.xlu0 %v9518
  %v9520 = vpop.xlane.xlu0 %9519
  %v9521 = vmul.f32 %v9520, %v2153
  %v9522 = vadd.f32 %v9521, 1e-05
  %v9523 = vrsqrt.pop %v9522
  %v9524 = vmul.f32 %v9516, %v9523
  %v9525 = vlaneseq
  %v9526 = vshrl.u32 %v9525, 7
  %v9527 = vsub.s32 0, %v9526
  %v9528 = vrot.slane %v9510, %v9527
  %v9529 = vmul.f32 %v9524, %v9528
  %v9530 = vlaneseq
  %v9531 = vshrl.u32 %v9530, 7
  %v9532 = vsub.s32 0, %v9531
  %v9533 = vrot.slane %v9511, %v9532
  %v9534 = vadd.f32 %v9529, %v9533
  %v9535 = vld [vmem:[%s3 + $0x78] sm:$0xff]
  %v9536 = vld [vmem:[%s3 + $0x80] sm:$0xff]
  %v9537 = vld [vmem:[%s3 + $0x88] sm:$0xff]
  %v9538 = vld [vmem:[%s3 + $0x90] sm:$0xff]
  %v9539 = vld [vmem:[%s3 + $0x98] sm:$0x1]
  %v9540 = vlaneseq
  %v9541 = vshrl.u32 %v9540, 7
  %v9542 = vsub.s32 0, %v9541
  %v9543 = vrot.slane %v9539, %v9542
  %v9545 = vsel %vm148, %v9534, 0
  %9547 = vmatprep.subr.mxu0 0.0
  %9548 = vmatpush1.msra.mxu0 0.0
  %9549 = vmatprep.subr.mxu0 0.0
  %9550 = vmatpush1.msra.mxu0 0.0
  %9551 = vmatprep.subr.mxu0 0.0
  %9552 = vmatpush1.msra.mxu0 0.0
  %9553 = vmatprep.subr.mxu0 0.0
  %9554 = vmatpush1.msra.mxu0 0.0
  %9555 = vmatprep.subr.mxu0 0.0
  %9556 = vmatpush1.msra.mxu0 0.0
  %9557 = vmatprep.subr.mxu0 0.0
  %9558 = vmatpush1.msra.mxu0 0.0
  %9559 = vmatprep.subr.mxu0 0.0
  %9560 = vmatpush1.msra.mxu0 0.0
  %9561 = vmatprep.subr.mxu0 0.0
  %9562 = vmatpush1.msra.mxu0 0.0
  %9563 = vmatprep.subr.mxu0 0.0
  %9564 = vmatpush1.msra.mxu0 0.0
  %9565 = vmatprep.subr.mxu0 0.0
  %9566 = vmatpush1.msra.mxu0 0.0
  %9567 = vmatprep.subr.mxu0 0.0
  %9568 = vmatpush1.msra.mxu0 0.0
  %9569 = vmatprep.subr.mxu0 0.0
  %9570 = vmatpush1.msra.mxu0 0.0
  %9571 = vmatprep.subr.mxu0 0.0
  %9572 = vmatpush1.msra.mxu0 %v9538
  %9573 = vmatprep.subr.mxu0 0.0
  %9574 = vmatpush1.msra.mxu0 %v9537
  %9575 = vmatprep.subr.mxu0 0.0
  %9576 = vmatpush1.msra.mxu0 %v9536
  %9577 = vmatprep.subr.mxu0 0.0
  %9578 = vmatpush1.msra.mxu0 %v9535
  %9579 = vmatprep.subr.mxu0 0.0
  %9580 = vmatpush2.msra.mxu0 0.0
  %9581 = vmatprep.subr.mxu0 0.0
  %9582 = vmatpush2.msra.mxu0 0.0
  %9583 = vmatprep.subr.mxu0 0.0
  %9584 = vmatpush2.msra.mxu0 0.0
  %9585 = vmatprep.subr.mxu0 0.0
  %9586 = vmatpush2.msra.mxu0 0.0
  %9587 = vmatprep.subr.mxu0 0.0
  %9588 = vmatpush2.msra.mxu0 0.0
  %9589 = vmatprep.subr.mxu0 0.0
  %9590 = vmatpush2.msra.mxu0 0.0
  %9591 = vmatprep.subr.mxu0 0.0
  %9592 = vmatpush2.msra.mxu0 0.0
  %9593 = vmatprep.subr.mxu0 0.0
  %9594 = vmatpush2.msra.mxu0 0.0
  %9595 = vmatprep.subr.mxu0 0.0
  %9596 = vmatpush2.msra.mxu0 0.0
  %9597 = vmatprep.subr.mxu0 0.0
  %9598 = vmatpush2.msra.mxu0 0.0
  %9599 = vmatprep.subr.mxu0 0.0
  %9600 = vmatpush2.msra.mxu0 0.0
  %9601 = vmatprep.subr.mxu0 0.0
  %9602 = vmatpush2.msra.mxu0 0.0
  %9603 = vmatprep.subr.mxu0 0.0
  %9604 = vmatpush2.msra.mxu0 0.0
  %9605 = vmatprep.subr.mxu0 0.0
  %9606 = vmatpush2.msra.mxu0 0.0
  %9607 = vmatprep.subr.mxu0 0.0
  %9608 = vmatpush2.msra.mxu0 0.0
  %9609 = vmatprep.subr.mxu0 0.0
  %9610 = vmatpush2.msra.mxu0 0.0
  %9611 = vmatprep.mubr.f32.mxu0 0.0
  %9612 = vmatmul.mubr.f32.gmra.mxu0 %v9545
  %v9613 = vpop.f32.mrf.mxu0
  %v9614 = vadd.f32 %v9543, %v9613
  %v9615 = vpop.f32.mrf.mxu0
  %9616 = vdwg.mxu0
  %v9617 = vmax.f32 %v9614, 0.0
  %v9618 = vld [vmem:[%s4 + $0x2f0] sm:$0xff]
  %v9619 = vld [vmem:[%s4 + $0x2f8] sm:$0xff]
  %v9620 = vld [vmem:[%s4 + $0x300] sm:$0xff]
  %v9621 = vld [vmem:[%s4 + $0x308] sm:$0xff]
  %v9622 = vld [vmem:[%s4 + $0x310] sm:$0xff]
  %v9623 = vld [vmem:[%s4 + $0x318] sm:$0xff]
  %v9624 = vld [vmem:[%s4 + $0x320] sm:$0xff]
  %v9625 = vld [vmem:[%s4 + $0x328] sm:$0xff]
  %v9626 = vld [vmem:[%s4 + $0x330] sm:$0x1]
  %v9627 = vlaneseq
  %v9628 = vshrl.u32 %v9627, 7
  %v9629 = vsub.s32 0, %v9628
  %v9630 = vrot.slane %v9626, %v9629
  %v9632 = vsel %vm2291, %v9617, 0
  %9634 = vmatprep.subr.mxu0 0.0
  %9635 = vmatpush1.msra.mxu0 0.0
  %9636 = vmatprep.subr.mxu0 0.0
  %9637 = vmatpush1.msra.mxu0 0.0
  %9638 = vmatprep.subr.mxu0 0.0
  %9639 = vmatpush1.msra.mxu0 0.0
  %9640 = vmatprep.subr.mxu0 0.0
  %9641 = vmatpush1.msra.mxu0 0.0
  %9642 = vmatprep.subr.mxu0 0.0
  %9643 = vmatpush1.msra.mxu0 0.0
  %9644 = vmatprep.subr.mxu0 0.0
  %9645 = vmatpush1.msra.mxu0 0.0
  %9646 = vmatprep.subr.mxu0 0.0
  %9647 = vmatpush1.msra.mxu0 0.0
  %9648 = vmatprep.subr.mxu0 0.0
  %9649 = vmatpush1.msra.mxu0 0.0
  %9650 = vmatprep.subr.mxu0 0.0
  %9651 = vmatpush1.msra.mxu0 %v9625
  %9652 = vmatprep.subr.mxu0 0.0
  %9653 = vmatpush1.msra.mxu0 %v9624
  %9654 = vmatprep.subr.mxu0 0.0
  %9655 = vmatpush1.msra.mxu0 %v9623
  %9656 = vmatprep.subr.mxu0 0.0
  %9657 = vmatpush1.msra.mxu0 %v9622
  %9658 = vmatprep.subr.mxu0 0.0
  %9659 = vmatpush1.msra.mxu0 %v9621
  %9660 = vmatprep.subr.mxu0 0.0
  %9661 = vmatpush1.msra.mxu0 %v9620
  %9662 = vmatprep.subr.mxu0 0.0
  %9663 = vmatpush1.msra.mxu0 %v9619
  %9664 = vmatprep.subr.mxu0 0.0
  %9665 = vmatpush1.msra.mxu0 %v9618
  %9666 = vmatprep.subr.mxu0 0.0
  %9667 = vmatpush2.msra.mxu0 0.0
  %9668 = vmatprep.subr.mxu0 0.0
  %9669 = vmatpush2.msra.mxu0 0.0
  %9670 = vmatprep.subr.mxu0 0.0
  %9671 = vmatpush2.msra.mxu0 0.0
  %9672 = vmatprep.subr.mxu0 0.0
  %9673 = vmatpush2.msra.mxu0 0.0
  %9674 = vmatprep.subr.mxu0 0.0
  %9675 = vmatpush2.msra.mxu0 0.0
  %9676 = vmatprep.subr.mxu0 0.0
  %9677 = vmatpush2.msra.mxu0 0.0
  %9678 = vmatprep.subr.mxu0 0.0
  %9679 = vmatpush2.msra.mxu0 0.0
  %9680 = vmatprep.subr.mxu0 0.0
  %9681 = vmatpush2.msra.mxu0 0.0
  %9682 = vmatprep.subr.mxu0 0.0
  %9683 = vmatpush2.msra.mxu0 0.0
  %9684 = vmatprep.subr.mxu0 0.0
  %9685 = vmatpush2.msra.mxu0 0.0
  %9686 = vmatprep.subr.mxu0 0.0
  %9687 = vmatpush2.msra.mxu0 0.0
  %9688 = vmatprep.subr.mxu0 0.0
  %9689 = vmatpush2.msra.mxu0 0.0
  %9690 = vmatprep.subr.mxu0 0.0
  %9691 = vmatpush2.msra.mxu0 0.0
  %9692 = vmatprep.subr.mxu0 0.0
  %9693 = vmatpush2.msra.mxu0 0.0
  %9694 = vmatprep.subr.mxu0 0.0
  %9695 = vmatpush2.msra.mxu0 0.0
  %9696 = vmatprep.subr.mxu0 0.0
  %9697 = vmatpush2.msra.mxu0 0.0
  %9698 = vmatprep.mubr.f32.mxu0 0.0
  %9699 = vmatmul.mubr.f32.gmra.mxu0 %v9632
  %v9700 = vpop.f32.mrf.mxu0
  %v9701 = vadd.f32 %v9630, %v9700
  %v9702 = vpop.f32.mrf.mxu0
  %9703 = vdwg.mxu0
  %v9704 = vadd.f32 %v9534, %v9701
  %v9705 = vld [vmem:[%s4 + $0x358] sm:$0x1]
  %v9706 = vld [vmem:[%s4 + $0x360] sm:$0x1]
  %v9707 = vsel %vm4899, %v9704, 0.0
  %9708 = vadd.xlane.f32.xlu0 %v9707
  %v9709 = vpop.xlane.xlu0 %9708
  %v9710 = vmul.f32 %v9709, %v2153
  %v9711 = vsub.f32 %v9704, %v9710
  %v9712 = vmul.f32 %v9711, %v9711
  %v9713 = vsel %vm4899, %v9712, 0.0
  %9714 = vadd.xlane.f32.xlu0 %v9713
  %v9715 = vpop.xlane.xlu0 %9714
  %v9716 = vmul.f32 %v9715, %v2153
  %v9717 = vadd.f32 %v9716, 1e-05
  %v9718 = vrsqrt.pop %v9717
  %v9719 = vmul.f32 %v9711, %v9718
  %v9720 = vlaneseq
  %v9721 = vshrl.u32 %v9720, 7
  %v9722 = vsub.s32 0, %v9721
  %v9723 = vrot.slane %v9705, %v9722
  %v9724 = vmul.f32 %v9719, %v9723
  %v9725 = vlaneseq
  %v9726 = vshrl.u32 %v9725, 7
  %v9727 = vsub.s32 0, %v9726
  %v9728 = vrot.slane %v9706, %v9727
  %v9729 = vadd.f32 %v9724, %v9728
  %v9730 = vld [vmem:[%s4 + $0x378] sm:$0x1]
  %v9731 = vld [vmem:[%s4 + $0x380] sm:$0x1]
  %v9732 = vsel %vm4899, %v9729, 0.0
  %9733 = vadd.xlane.f32.xlu0 %v9732
  %v9734 = vpop.xlane.xlu0 %9733
  %v9735 = vmul.f32 %v9734, %v2153
  %v9736 = vsub.f32 %v9729, %v9735
  %v9737 = vmul.f32 %v9736, %v9736
  %v9738 = vsel %vm4899, %v9737, 0.0
  %9739 = vadd.xlane.f32.xlu0 %v9738
  %v9740 = vpop.xlane.xlu0 %9739
  %v9741 = vmul.f32 %v9740, %v2153
  %v9742 = vadd.f32 %v9741, 1e-05
  %v9743 = vrsqrt.pop %v9742
  %v9744 = vmul.f32 %v9736, %v9743
  %v9745 = vlaneseq
  %v9746 = vshrl.u32 %v9745, 7
  %v9747 = vsub.s32 0, %v9746
  %v9748 = vrot.slane %v9730, %v9747
  %v9749 = vmul.f32 %v9744, %v9748
  %v9750 = vlaneseq
  %v9751 = vshrl.u32 %v9750, 7
  %v9752 = vsub.s32 0, %v9751
  %v9753 = vrot.slane %v9731, %v9752
  %v9754 = vadd.f32 %v9749, %v9753
  %v9755 = vld [vmem:[%s5] sm:$0xff]
  %v9756 = vld [vmem:[%s5 + $0x8] sm:$0xff]
  %v9757 = vld [vmem:[%s5 + $0x10] sm:$0xff]
  %v9758 = vld [vmem:[%s5 + $0x18] sm:$0xff]
  %v9759 = vld [vmem:[%s5 + $0x20] sm:$0x1]
  %v9760 = vlaneseq
  %v9761 = vshrl.u32 %v9760, 7
  %v9762 = vsub.s32 0, %v9761
  %v9763 = vrot.slane %v9759, %v9762
  %v9765 = vsel %vm148, %v9754, 0
  %9767 = vmatprep.subr.mxu0 0.0
  %9768 = vmatpush1.msra.mxu0 0.0
  %9769 = vmatprep.subr.mxu0 0.0
  %9770 = vmatpush1.msra.mxu0 0.0
  %9771 = vmatprep.subr.mxu0 0.0
  %9772 = vmatpush1.msra.mxu0 0.0
  %9773 = vmatprep.subr.mxu0 0.0
  %9774 = vmatpush1.msra.mxu0 0.0
  %9775 = vmatprep.subr.mxu0 0.0
  %9776 = vmatpush1.msra.mxu0 0.0
  %9777 = vmatprep.subr.mxu0 0.0
  %9778 = vmatpush1.msra.mxu0 0.0
  %9779 = vmatprep.subr.mxu0 0.0
  %9780 = vmatpush1.msra.mxu0 0.0
  %9781 = vmatprep.subr.mxu0 0.0
  %9782 = vmatpush1.msra.mxu0 0.0
  %9783 = vmatprep.subr.mxu0 0.0
  %9784 = vmatpush1.msra.mxu0 0.0
  %9785 = vmatprep.subr.mxu0 0.0
  %9786 = vmatpush1.msra.mxu0 0.0
  %9787 = vmatprep.subr.mxu0 0.0
  %9788 = vmatpush1.msra.mxu0 0.0
  %9789 = vmatprep.subr.mxu0 0.0
  %9790 = vmatpush1.msra.mxu0 0.0
  %9791 = vmatprep.subr.mxu0 0.0
  %9792 = vmatpush1.msra.mxu0 %v9758
  %9793 = vmatprep.subr.mxu0 0.0
  %9794 = vmatpush1.msra.mxu0 %v9757
  %9795 = vmatprep.subr.mxu0 0.0
  %9796 = vmatpush1.msra.mxu0 %v9756
  %9797 = vmatprep.subr.mxu0 0.0
  %9798 = vmatpush1.msra.mxu0 %v9755
  %9799 = vmatprep.subr.mxu0 0.0
  %9800 = vmatpush2.msra.mxu0 0.0
  %9801 = vmatprep.subr.mxu0 0.0
  %9802 = vmatpush2.msra.mxu0 0.0
  %9803 = vmatprep.subr.mxu0 0.0
  %9804 = vmatpush2.msra.mxu0 0.0
  %9805 = vmatprep.subr.mxu0 0.0
  %9806 = vmatpush2.msra.mxu0 0.0
  %9807 = vmatprep.subr.mxu0 0.0
  %9808 = vmatpush2.msra.mxu0 0.0
  %9809 = vmatprep.subr.mxu0 0.0
  %9810 = vmatpush2.msra.mxu0 0.0
  %9811 = vmatprep.subr.mxu0 0.0
  %9812 = vmatpush2.msra.mxu0 0.0
  %9813 = vmatprep.subr.mxu0 0.0
  %9814 = vmatpush2.msra.mxu0 0.0
  %9815 = vmatprep.subr.mxu0 0.0
  %9816 = vmatpush2.msra.mxu0 0.0
  %9817 = vmatprep.subr.mxu0 0.0
  %9818 = vmatpush2.msra.mxu0 0.0
  %9819 = vmatprep.subr.mxu0 0.0
  %9820 = vmatpush2.msra.mxu0 0.0
  %9821 = vmatprep.subr.mxu0 0.0
  %9822 = vmatpush2.msra.mxu0 0.0
  %9823 = vmatprep.subr.mxu0 0.0
  %9824 = vmatpush2.msra.mxu0 0.0
  %9825 = vmatprep.subr.mxu0 0.0
  %9826 = vmatpush2.msra.mxu0 0.0
  %9827 = vmatprep.subr.mxu0 0.0
  %9828 = vmatpush2.msra.mxu0 0.0
  %9829 = vmatprep.subr.mxu0 0.0
  %9830 = vmatpush2.msra.mxu0 0.0
  %9831 = vmatprep.mubr.f32.mxu0 0.0
  %9832 = vmatmul.mubr.f32.gmra.mxu0 %v9765
  %v9833 = vpop.f32.mrf.mxu0
  %v9834 = vadd.f32 %v9763, %v9833
  %v9835 = vpop.f32.mrf.mxu0
  %9836 = vdwg.mxu0
  %vm9837 = vcmask 91136
  %9838 = vst.msk [vmem:[%s6] sm:$0x3] %vm9837, %v9834
  // Predicated region
  $region26: #{transformer_forward.1} parent=0 // pred_check
    _
  $region27: #{transformer_forward.1} parent=0 // pred_check_branch
    %9840 = sbr.rel (0) target = $region29
  $region28: #{transformer_forward.1} parent=0 // pred_region
    _
  $region29: #{transformer_forward.1} parent=0 // pred_fallthru
    _
  // Predicated region
  $region30: #{transformer_forward.1} parent=0 // pred_check
    _
  $region31: #{transformer_forward.1} parent=0 // pred_check_branch
    %9842 = sbr.rel (0) target = $region33
  $region32: #{transformer_forward.1} parent=0 // pred_region
    _
  $region33: #{transformer_forward.1} parent=0 // pred_fallthru
    _

</llo_original>
